<compile_context>
chip_gen: v7x
topology: tpu7x:2x2x1
jax: 0.10.0
libtpu: 0.0.40
codegen_flags: <defaults>
</compile_context>

<pallas_src>
import functools
import math

import jax
import jax.numpy as jnp
from jax.experimental import pallas as pl
from jax.experimental.pallas import tpu as pltpu

_MIN_PALLAS_BYTES = 1 << 20           # below this, XLA's relayout beats a kernel launch
_MIN_GRID_STEPS = 8                   # keep megacore / pipelining busy (v7x: 2 TCs)
_MIN_STEP_BLOCK_BYTES = 512 * 1024    # never shrink blocks below this to hit step count


# ------------------------------------------------------------------ hardware budgets

def _device_kind():
    try:
        return jax.devices()[0].device_kind
    except Exception:
        return "unknown"


@functools.lru_cache(maxsize=None)
def _budget_cfg():
    """Generation-aware VMEM / block budgets (v5e/v6e: 128 MiB VMEM, v7x: 64 MiB)."""
    vmem = None
    try:
        info = pltpu.get_tpu_info()
        for attr in ("vmem_capacity_bytes", "vmem_bytes", "vmem_size_bytes"):
            v = getattr(info, attr, None)
            if v:
                vmem = int(v)
                break
    except Exception:
        vmem = None
    if vmem is None:
        vmem = 64 << 20                       # conservative: assume v7x-class VMEM
    if vmem >= 96 << 20:                      # v5e / v6e (128 MiB physical VMEM)
        return {"vmem_limit": 96 << 20, "resident_cap": 64 << 20, "block_bytes": 4 << 20}
    # v7x-class: 64 MiB physical — leave headroom for Mosaic internal scratch.
    return {"vmem_limit": 48 << 20, "resident_cap": 40 << 20, "block_bytes": 4 << 20}


# --------------------------------------------------------------------------- planning

def _simplify(shape, perm):
    """Drop unit axes and merge input axes that stay adjacent & in-order in the output.

    The reshapes between original and simplified layouts are free (row-major order is
    preserved on both sides).  Returns (new_shape, new_perm)."""
    ndim = len(shape)
    keep = [a for a in range(ndim) if shape[a] != 1]
    remap = {a: i for i, a in enumerate(keep)}
    shape = tuple(shape[a] for a in keep)
    perm = tuple(remap[p] for p in perm if p in remap)
    ndim = len(shape)
    if ndim <= 1:
        return shape, tuple(range(ndim))

    inv = [0] * ndim
    for j, p in enumerate(perm):
        inv[p] = j

    groups = [[0]]
    for a in range(1, ndim):
        if inv[a] == inv[a - 1] + 1:        # stays adjacent & ordered in the output
            groups[-1].append(a)
        else:
            groups.append([a])

    def reduce(groups):
        gid = {}
        for gi, g in enumerate(groups):
            for a in g:
                gid[a] = gi
        new_shape = tuple(math.prod(shape[a] for a in g) for g in groups)
        new_perm, last = [], None
        for p in perm:
            if gid[p] != last:
                new_perm.append(gid[p])
                last = gid[p]
        return new_shape, tuple(new_perm)

    new_shape, new_perm = reduce(groups)
    if new_perm == tuple(range(len(new_perm))):
        return new_shape, new_perm          # pure reshape, handled by the caller

    # If the trailing input group is also the output's trailing group, keep its first
    # axis separate: that preserves a "leading axes only" structure (pure DMA relabel,
    # no in-kernel shuffle) while the remaining merged lane dim stays >=128 wide.
    g_last = groups[-1]
    if (perm[-1] == ndim - 1 and len(g_last) >= 2
            and math.prod(shape[a] for a in g_last[1:]) >= 128):
        groups = groups[:-1] + [[g_last[0]], g_last[1:]]
        new_shape, new_perm = reduce(groups)
    return new_shape, new_perm


def _out_layout(shape, perm, blocks, collapse):
    """Output array shape & block shape as presented to pallas_call."""
    if collapse:
        merged_dim = shape[perm[-2]] * shape[perm[-1]]
        merged_blk = blocks[perm[-2]] * shape[perm[-1]]     # blocks[perm[-1]] == full
        out_shape = tuple(shape[p] for p in perm[:-2]) + (merged_dim,)
        out_block = tuple(blocks[p] for p in perm[:-2]) + (merged_blk,)
    else:
        out_shape = tuple(shape[p] for p in perm)
        out_block = tuple(blocks[p] for p in perm)
    return out_shape, out_block


def _padded_bytes(block, itemsize, sub):
    """Conservative VMEM footprint of a block ((sub,128)-tile padding on minor dims)."""
    lanes = -(-block[-1] // 128) * 128
    rows = -(-block[-2] // sub) * sub if len(block) >= 2 else 1
    lead = math.prod(block[:-2]) if len(block) > 2 else 1
    return lead * rows * lanes * itemsize


def _plan(shape, perm, itemsize, collapse, cfg):
    """Per-input-axis block sizes.

    Every block is either a multiple of its minor-dim alignment or the full axis
    extent (legal even when the alignment does not divide the axis: the grid uses
    cdiv and Pallas masks the edge blocks).  Minor dims of both the input block and
    the (possibly lane-merged) output block are aligned; the x2 double-buffered
    padded footprint respects the per-generation VMEM budget; blocks are shrunk
    (down to a floor) until the grid has enough steps for megacore / pipelining.
    Returns None when no legal plan fits the budget."""
    ndim = len(shape)
    sub = {4: 8, 2: 16, 1: 32}.get(itemsize, 8)
    align = [1] * ndim
    force_full = [False] * ndim
    inv = [0] * ndim
    for j, p in enumerate(perm):
        inv[p] = j

    def bump(a, v):
        align[a] = align[a] * v // math.gcd(align[a], v)

    bump(ndim - 1, 128)                            # input lane dim
    bump(ndim - 2, sub)                            # input sublane dim
    if collapse:
        s1 = shape[perm[-1]]
        force_full[perm[-1]] = True                # whole axis folded into output lanes
        need = 128 // math.gcd(128, s1)
        while need * s1 < 512:                     # merged lane rows >= 512 (unmasked vst)
            need *= 2
        bump(perm[-2], need)
        bump(perm[-3], sub)                        # output sublane dim after the merge
    else:
        bump(perm[-1], 128)                        # output lane dim
        bump(perm[-2], sub)                        # output sublane dim

    budget = max(1, cfg["block_bytes"] // itemsize)    # target elements per block
    blocks = [0] * ndim
    constrained, leading = [], []
    for a in range(ndim):
        if force_full[a]:
            blocks[a] = shape[a]
            budget = max(1, budget // blocks[a])
        elif align[a] > 1:
            constrained.append(a)
        else:
            leading.append(a)

    constrained.sort(key=lambda a: -align[a])          # lane axes first
    for i, a in enumerate(constrained):
        min_rest = math.prod(min(align[b], shape[b]) for b in constrained[i + 1:])
        target = max(align[a], budget // max(1, min_rest))
        if shape[a] <= align[a] or target >= shape[a]:
            blocks[a] = shape[a]                       # full extent is always legal
        else:
            blocks[a] = max(align[a], (min(target, shape[a]) // align[a]) * align[a])
        budget = max(1, budget // blocks[a])

    # Leftover budget to leading axes; unmoved ones first so the cheap identity-copy
    # (pure DMA relabel) kernel stays available whenever possible.
    leading.sort(key=lambda a: (inv[a] != a, -a))
    for a in leading:
        blocks[a] = max(1, min(shape[a], budget))
        budget = max(1, budget // blocks[a])

    # Keep enough grid steps for megacore sharding / pipeline overlap (v7x: 2 TCs).
    def nsteps():
        return math.prod(-(-shape[a] // blocks[a]) for a in range(ndim))

    def blk_bytes():
        return math.prod(blocks) * itemsize

    while nsteps() < _MIN_GRID_STEPS and blk_bytes() >= 2 * _MIN_STEP_BLOCK_BYTES:
        cands = []
        for a in range(ndim):
            if force_full[a]:
                continue
            if align[a] == 1 and blocks[a] >= 2:
                cands.append(a)
            elif align[a] > 1 and blocks[a] >= 2 * align[a]:
                cands.append(a)
        if not cands:
            break
        # Prefer leading axes, then sublane-aligned; shrink lane-aligned axes last.
        cands.sort(key=lambda a: (align[a] % 128 == 0, align[a] > 1,
                                  -(blocks[a] // max(1, align[a]))))
        a = cands[0]
        if align[a] == 1:
            blocks[a] = max(1, blocks[a] // 2)
        else:
            blocks[a] = max(align[a], ((blocks[a] // 2) // align[a]) * align[a])

    blocks = tuple(blocks)
    _, out_block = _out_layout(shape, perm, blocks, collapse)
    resident = 2 * (_padded_bytes(blocks, itemsize, sub)          # x2: double buffering
                    + _padded_bytes(out_block, itemsize, sub))
    if resident > cfg["resident_cap"]:
        return None
    return blocks


# ----------------------------------------------------------------------------- kernel

def _pallas_permute(xs, perm, blocks, collapse):
    shape = tuple(xs.shape)
    ndim = len(shape)
    itemsize = xs.dtype.itemsize
    inv = [0] * ndim
    for j, p in enumerate(perm):
        inv[p] = j

    # Grid ordered by OUTPUT axes: the fastest-iterating grid axis advances the
    # output's minor-most tiled block, so consecutive write-back DMAs hit
    # consecutive HBM addresses.  cdiv grid: edge blocks are padded/masked by Pallas.
    grid = tuple(-(-shape[p] // blocks[p]) for p in perm)
    out_shape_call, out_block = _out_layout(shape, perm, blocks, collapse)

    def in_index(*g):
        return tuple(g[inv[a]] for a in range(ndim))

    if collapse:
        def out_index(*g):
            return g[:-1]       # inner merged axis is fully resident (block idx == 0)
    else:
        def out_index(*g):
            return g

    needs_transpose = any(blocks[a] > 1 for a in range(ndim) if inv[a] != a)

    if needs_transpose:
        # TODO(synk): for bf16/int8, pack pairs/quads into u32 (pltpu.bitcast) around
        # the in-tile transpose when the permutation keeps sub-word groups together,
        # to halve/quarter XLU work; and gate pipeline_mode=pl.Buffered(3) on the
        # per-generation VMEM budget if profiles show exposed DMA behind the XLU.
        def kernel(x_ref, o_ref):
            # Reorder the VMEM-resident tile; the trailing reshape is a no-op unless
            # the lane-dense (merged) output layout is in use.
            o_ref[...] = jnp.transpose(x_ref[...], perm).reshape(o_ref.shape)
    else:
        def kernel(x_ref, o_ref):
            # Only unit-sized block axes move: the permute is a pure DMA relabel
            # expressed by the index maps — identity copy in the kernel.
            o_ref[...] = x_ref[...].reshape(o_ref.shape)

    cfg = _budget_cfg()
    return pl.pallas_call(
        kernel,
        out_shape=jax.ShapeDtypeStruct(out_shape_call, xs.dtype),
        grid=grid,
        in_specs=[pl.BlockSpec(tuple(blocks), in_index)],
        out_specs=pl.BlockSpec(out_block, out_index),
        compiler_params=pltpu.CompilerParams(
            dimension_semantics=("parallel",) * ndim,
            vmem_limit_bytes=cfg["vmem_limit"],
        ),
        cost_estimate=pl.CostEstimate(
            flops=0, transcendentals=0,
            bytes_accessed=2 * math.prod(shape) * itemsize),
    )(xs)


@functools.partial(
    jax.jit,
    static_argnames=("s_shape", "s_perm", "blocks", "collapse", "out_shape"))
def _permute_call(x, *, s_shape, s_perm, blocks, collapse, out_shape):
    xs = jnp.reshape(x, s_shape)                      # free (contiguous)
    ys = _pallas_permute(xs, s_perm, blocks, collapse)
    return jnp.reshape(ys, out_shape)                 # free (contiguous)


@functools.lru_cache(maxsize=None)
def _collapse_lowerable(s_shape, s_perm, blocks, dtype, device_kind):
    """AOT decision (cached per config & device generation) on whether Mosaic can
    lower/compile the lane-dense (merged output) layout.  Works on abstract shapes,
    so the fast path is available under an outer jax.jit — no runtime exception probe."""
    del device_kind  # part of the cache key only
    try:
        fn = functools.partial(_pallas_permute, perm=s_perm, blocks=blocks, collapse=True)
        jax.jit(fn).lower(jax.ShapeDtypeStruct(s_shape, dtype)).compile()
        return True
    except Exception:
        # AOT lowering/compile rejection only (nothing has executed yet):
        # fall back to the plain tiled layout for this config.
        return False


# ---------------------------------------------------------------------------- wrapper

def permute_pallas(x, perm):
    """Pallas equivalent of `Permute(*perm)(x)` (== torch.Tensor.permute)."""
    ndim = x.ndim
    perm = tuple(int(p) % ndim if ndim else int(p) for p in perm)
    if sorted(perm) != list(range(ndim)):
        raise ValueError(f"invalid permutation {perm} for rank {ndim}")
    out_shape = tuple(int(x.shape[p]) for p in perm)
    if perm == tuple(range(ndim)):
        return x

    itemsize = x.dtype.itemsize
    s_shape, s_perm = _simplify(tuple(int(d) for d in x.shape), perm)
    if s_perm == tuple(range(len(s_perm))):
        return jnp.reshape(x, out_shape)              # axis relabel only: free reshape

    nbytes = math.prod(s_shape) * itemsize
    if (nbytes < _MIN_PALLAS_BYTES or len(s_shape) < 2
            or itemsize not in (1, 2, 4) or x.dtype == jnp.bool_):
        # Tiny / exotic inputs: a Pallas launch is pure overhead, let XLA relayout.
        return jnp.transpose(x, perm)

    cfg = _budget_cfg()
    sndim = len(s_shape)
    want_dense = (sndim >= 3 and s_perm[-1] != sndim - 1
                  and s_shape[s_perm[-1]] < 128)

    if want_dense:
        plan = _plan(s_shape, s_perm, itemsize, True, cfg)
        if plan is not None and _collapse_lowerable(
                s_shape, s_perm, plan, x.dtype, _device_kind()):
            return _permute_call(x, s_shape=s_shape, s_perm=s_perm, blocks=plan,
                                 collapse=True, out_shape=out_shape)

    plan = _plan(s_shape, s_perm, itemsize, False, cfg)
    if plan is None:
        # Awkward dims that cannot be tiled legally within the VMEM budget.
        return jnp.transpose(x, perm)
    return _permute_call(x, s_shape=s_shape, s_perm=s_perm, blocks=plan,
                         collapse=False, out_shape=out_shape)


class Permute:
    """JAX/Pallas counterpart of the PyTorch `Permute` module."""

    def __init__(self, *perm):
        self.perm = tuple(perm)

    def __call__(self, x):
        return permute_pallas(x, self.perm)


if __name__ == "__main__":
    key = jax.random.PRNGKey(0)
    cases = [
        # (shape, perm)
        ((2, 4, 16, 16), (0, 2, 3, 1)),     # tiny: XLA relayout fallback path
        ((2, 8, 128, 256), (0, 2, 3, 1)),   # NCHW->NHWC, narrow C: lane-dense path
        ((2, 8, 128, 256), (0, 2, 1, 3)),   # swap C<->H: in-tile reorder path
        ((2, 4, 512, 256), (1, 0, 2, 3)),   # leading-axes swap
        ((1000, 512), (1, 0)),              # 2-D transpose, non-divisible dim (cdiv edges)
    ]
    for shape, perm in cases:
        key, subkey = jax.random.split(key)
        x = jax.random.normal(subkey, shape, dtype=jnp.float32)
        out = jax.block_until_ready(Permute(*perm)(x))
        ref = jnp.transpose(x, perm)
        assert out.shape == ref.shape, (shape, perm, out.shape, ref.shape)
        assert out.dtype == ref.dtype, (shape, perm, out.dtype, ref.dtype)
        assert jnp.array_equal(out, ref), f"mismatch for shape={shape} perm={perm}"
    print("KERNEL_OK")
</pallas_src>

<mosaic_0001>
module attributes {stable_mosaic.version = 11 : i64} {
  func.func @kernel(%arg0: i32, %arg1: i32, %arg2: i32, %arg3: memref<1x8x16384xf32, #tpu.memory_space<vmem>>, %arg4: memref<1x16384x8xf32, #tpu.memory_space<vmem>>) attributes {dimension_semantics = [#tpu.dimension_semantics<parallel>, #tpu.dimension_semantics<parallel>, #tpu.dimension_semantics<parallel>], iteration_bounds = array<i64: 2, 2, 1>, scalar_prefetch = 0 : i64, scratch_operands = 0 : i64, tpu.core_type = #tpu.core_type<tc>, window_params = [{transform_indices = @transform_0, window_bounds = array<i64: 1, 8, 16384>}, {transform_indices = @transform_1, window_bounds = array<i64: 1, 16384, 8>}]} {
    %c0 = arith.constant 0 : index
    %c0_0 = arith.constant 0 : index
    %c0_1 = arith.constant 0 : index
    %0 = vector.load %arg3[%c0, %c0_0, %c0_1] : memref<1x8x16384xf32, #tpu.memory_space<vmem>>, vector<1x8x16384xf32>
    %1 = tpu.transpose %0, [0, 2, 1] : vector<1x8x16384xf32> -> vector<1x16384x8xf32>
    %c0_2 = arith.constant 0 : index
    %c0_3 = arith.constant 0 : index
    %c0_4 = arith.constant 0 : index
    %2 = vector.load %arg4[%c0_2, %c0_3, %c0_4] : memref<1x16384x8xf32, #tpu.memory_space<vmem>>, vector<1x16384x8xf32>
    tpu.vector_store %arg4[%c0_2, %c0_3, %c0_4], %1 {strides = array<i32>} : memref<1x16384x8xf32, #tpu.memory_space<vmem>>, vector<1x16384x8xf32>,
    return
  }
  func.func @transform_0(%arg0: i32, %arg1: i32, %arg2: i32) -> (i32, i32, i32) {
    %c0_i32 = arith.constant 0 : i32
    return %arg0, %arg2, %arg1 : i32, i32, i32
  }
  func.func @transform_1(%arg0: i32, %arg1: i32, %arg2: i32) -> (i32, i32, i32) {
    %c0_i32 = arith.constant 0 : i32
    return %arg0, %arg1, %arg2 : i32, i32, i32
  }
}

</mosaic_0001>

<llo_original>
// kernel: _permute_call.1
$region0: #{_permute_call.1}
  #allocation0 [shape = 'u32[]', space=smem, size = 0x4, offset = 0x4, fixed_abs, tag = 'smem constant byte address 0x4 - core index']
  #allocation1 [shape = 'u32[144,128]{1,0:T(1,128)}', space=vmem, size = 0x12000, scoped, tag = 'internal scratch']
  %s0 = inlined_call_operand.vmem [shape: f32[2,8,32768], index: 0, kind: input, shape index: {}]
  %s1 = inlined_call_operand.hbm [shape: f32[2,32768,8], index: 1, kind: output, shape index: {}]
  %s2 = sld [smem:[#allocation0]]
  $region37: #{_permute_call.1} parent=0
    _
  %s4 = ssub.s32 1, %s2
  %s5 = scalar_select 0, %s4, %s2
  $region1: #{_permute_call.1} parent=0
    #allocation2 [shape = 'u8[16777216]{0}', space=vmem, size = 0x1000000, scoped, tag = 'output window, operand 0']
    #allocation3 [shape = 's32[2]{0}', space=sflag, size = 0x8, scoped, tag = 'scoped memory for _permute_call.1']
    %6 = vsyncpa [#allocation3], 0
    %s7 = scalar_lea.sflag [#allocation3], 1
    %8 = vsyncpa %s7, 0
    loop: start=0, step=1, limit=6
    $region2: #{_permute_call.1} parent=1 // loop_pre_header
      _
    $region3: #{_permute_call.1} parent=1 // loop_header
      %s10 = sphi 0, %s14
      %p11 = scmp.ge.s32.totalorder %s10, 6
      %s17 = sphi 0, %s36
      %s18 = sphi 0, %s32
      %s19 = sphi 0, %s28
      %s20 = sphi 0, %s17
      %s21 = sphi 0, %s18
      %s22 = sphi 0, %s19
      %s23 = sphi 0, %s20
      %s24 = sphi 0, %s21
      %s25 = sphi 0, %s22
      %s43 = sphi 0, %s45
      %s46 = sphi 0, %s43
      %s47 = sphi 0, %s46
      %s63 = sphi 0, %s47
      %s73 = sphi 0, %s75
      %s76 = sphi 0, %s73
      %s77 = sphi 0, %s76
      %s93 = sphi 0, %s77
    $region4: #{_permute_call.1} parent=1 // loop_header_branch
      %13 = sbr.rel (%p11) target = $region8
    $region5: #{_permute_call.1} parent=1 // loop_body
      %s15 = ssub.s32 %s10, 1
      %s16 = ssub.s32 %s10, 2
      %s26 = sadd.s32 1, %s19
      %p27 = scmp.ge.s32.totalorder %s26, 1
      %s28 = scalar_select %p27, 0, %s26
      %s29 = sadd.s32 1, %s18
      %s30 = scalar_select %p27, %s29, %s18
      %p31 = scmp.ge.s32.totalorder %s30, 2
      %s32 = scalar_select %p31, 0, %s30
      %s33 = sadd.s32 1, %s17
      %s34 = scalar_select %p31, %s33, %s17
      %p35 = scmp.ge.s32.totalorder %s34, 2
      %s36 = scalar_select %p35, 0, %s34
      %s37 = ssub.s32 %s17, %s36
      %s38 = ssub.s32 %s19, %s28
      %s39 = sor.u32 %s37, %s38
      %s40 = ssub.s32 %s18, %s32
      %s41 = sor.u32 %s39, %s40
      %p42 = scmp.eq.s32.totalorder %s41, 0
      %s44 = sadd.s32 %s43, 1
      %s45 = scalar_select %p42, %s43, %s44
      %p48 = pneg %p42
      %p49 = scmp.eq.s32.totalorder %s10, 3
      %p50 = por %p48, %p49
      %p51 = scmp.ne.s32.totalorder %s43, %s46
      %p52 = scmp.eq.s32.totalorder %s10, 0
      %p53 = por %p51, %p52
      %p54 = scmp.ne.s32.totalorder %s43, %s46
      %p55 = scmp.eq.s32.totalorder %s15, 3
      %p56 = por %p54, %p55
      %p57 = scmp.ne.s32.totalorder %s46, %s47
      %p58 = scmp.eq.s32.totalorder %s15, 0
      %p59 = por %p57, %p58
      %p60 = scmp.ne.s32.totalorder %s46, %s47
      %p61 = scmp.eq.s32.totalorder %s16, 3
      %p62 = por %p60, %p61
      %p64 = scmp.ne.s32.totalorder %s47, %s63
      %p65 = scmp.eq.s32.totalorder %s16, 0
      %p66 = por %p64, %p65
      %s67 = ssub.s32 %s17, %s36
      %s68 = ssub.s32 %s18, %s32
      %s69 = sor.u32 %s67, %s68
      %s70 = ssub.s32 %s19, %s28
      %s71 = sor.u32 %s69, %s70
      %p72 = scmp.eq.s32.totalorder %s71, 0
      %s74 = sadd.s32 %s73, 1
      %s75 = scalar_select %p72, %s73, %s74
      %p78 = pneg %p72
      %p79 = scmp.eq.s32.totalorder %s10, 3
      %p80 = por %p78, %p79
      %p81 = scmp.ne.s32.totalorder %s73, %s76
      %p82 = scmp.eq.s32.totalorder %s10, 0
      %p83 = por %p81, %p82
      %p84 = scmp.ne.s32.totalorder %s73, %s76
      %p85 = scmp.eq.s32.totalorder %s15, 3
      %p86 = por %p84, %p85
      %p87 = scmp.ne.s32.totalorder %s76, %s77
      %p88 = scmp.eq.s32.totalorder %s15, 0
      %p89 = por %p87, %p88
      %p90 = scmp.ne.s32.totalorder %s76, %s77
      %p91 = scmp.eq.s32.totalorder %s16, 3
      %p92 = por %p90, %p91
      %p94 = scmp.ne.s32.totalorder %s77, %s93
      %p95 = scmp.eq.s32.totalorder %s16, 0
      %p96 = por %p94, %p95
      %p97 = scmp.le.s32.totalorder 1, %s10
      %p98 = scmp.lt.s32.totalorder %s10, 5
      %p99 = pnand %p97, %p98
      %p100 = pneg %p99
      // Predicated region
      $region9: #{_permute_call.1} parent=5 // pred_check
        _
      $region10: #{_permute_call.1} parent=5 // pred_check_branch
        %102 = sbr.rel (%p99) target = $region12
      $region11: #{_permute_call.1} parent=5 // pred_region
        %s103 = ssub.s32 %s10, 1
      $region12: #{_permute_call.1} parent=5 // pred_fallthru
        _
      %p104 = scmp.lt.s32.totalorder %s10, 4
      // Predicated region
      $region13: #{_permute_call.1} parent=5 // pred_check
        %p105 = pneg %p104
      $region14: #{_permute_call.1} parent=5 // pred_check_branch
        %107 = sbr.rel (%p105) target = $region16
      $region15: #{_permute_call.1} parent=5 // pred_region
        // Predicated region
        $region17: #{_permute_call.1} parent=15 // pred_check
          %p108 = pneg %p53
        $region18: #{_permute_call.1} parent=15 // pred_check_branch
          %110 = sbr.rel (%p108) target = $region20
        $region19: #{_permute_call.1} parent=15 // pred_region
          %s111 = smul.u32 128, %s18
          %p112 = scmp.lt.s32.totalorder %s17, 1
          %s113 = scalar_select %p112, %s17, 1
          %p114 = scmp.lt.s32.totalorder %s19, 0
          %s115 = scalar_select %p114, %s19, 0
          %p116 = scmp.lt.s32.totalorder %s111, 255
          %s117 = scalar_select %p116, %s111, 255
          %s118 = smul.addr %s115, 256
          %s119 = sadd.s32 %s117, %s118
          %s120 = smul.addr %s113, 256
          %s121 = sadd.s32 %s119, %s120
          %s122 = smul.addr %s121, 8
          %s123 = scalar_lea.vmem %s0, %s122
          %s124 = smul.u32 128, %s18
        $region20: #{_permute_call.1} parent=15 // pred_fallthru
          _
      $region16: #{_permute_call.1} parent=5 // pred_fallthru
        _
      %p125 = scmp.le.s32.totalorder 1, %s10
      %p126 = scmp.lt.s32.totalorder %s10, 5
      %p127 = pnand %p125, %p126
      %p128 = pneg %p127
      // Predicated region
      $region21: #{_permute_call.1} parent=5 // pred_check
        _
      $region22: #{_permute_call.1} parent=5 // pred_check_branch
        %130 = sbr.rel (%p127) target = $region24
      $region23: #{_permute_call.1} parent=5 // pred_region
        %s131 = ssub.s32 %s10, 1
        %s132 = smul.u32 128, %s21
        %p133 = scmp.lt.s32.totalorder %s20, 1
        %s134 = scalar_select %p133, %s20, 1
        %p135 = scmp.lt.s32.totalorder %s22, 0
        %s136 = scalar_select %p135, %s22, 0
        %p137 = scmp.lt.s32.totalorder %s132, 255
        %s138 = scalar_select %p137, %s132, 255
        %s139 = smul.addr %s136, 256
        %s140 = sadd.s32 %s138, %s139
        %s141 = smul.addr %s134, 256
        %s142 = sadd.s32 %s140, %s141
        %s143 = smul.addr %s142, 8
        %s144 = scalar_lea.vmem %s0, %s143
        %p145 = pneg %p59
        %p146 = pneg %p56
        %p147 = pneg %p89
        %p148 = pneg %p86
        %s149 = sand.u32 %s76, 1
        %s150 = scalar_lea.sflag [#allocation3], %s149
        %s151 = sand.u32 %s76, 1
        %s152 = smul.addr %s151, 16384
        %s153 = scalar_lea.vmem [#allocation2], %s152
        %s154 = smul.u32 128, %s21
        %p155 = scmp.lt.s32.totalorder %s20, 1
        %s156 = scalar_select %p155, %s20, 1
        %p157 = scmp.lt.s32.totalorder %s22, 0
        %s158 = scalar_select %p157, %s22, 0
        %p159 = scmp.lt.s32.totalorder %s154, 255
        %s160 = scalar_select %p159, %s154, 255
        %s161 = smul.addr %s158, 256
        %s162 = sadd.s32 %s160, %s161
        %s163 = smul.addr %s156, 256
        %s164 = sadd.s32 %s162, %s163
        %s165 = smul.addr %s164, 8
        %s166 = scalar_lea.vmem %s0, %s165
        %s167 = smul.u32 128, %s21
        %s168 = smul.u32 2048, %s21
        %v169 = vld [vmem:[%s166] sm:$0xff]
        %v170 = vld [vmem:[%s166 + $0x8] sm:$0xff]
        %v171 = vld [vmem:[%s166 + $0x10] sm:$0xff]
        %v172 = vld [vmem:[%s166 + $0x18] sm:$0xff]
        %v173 = vld [vmem:[%s166 + $0x20] sm:$0xff]
        %v174 = vld [vmem:[%s166 + $0x28] sm:$0xff]
        %v175 = vld [vmem:[%s166 + $0x30] sm:$0xff]
        %v176 = vld [vmem:[%s166 + $0x38] sm:$0xff]
        %v177 = vld [vmem:[%s166 + $0x40] sm:$0xff]
        %v178 = vld [vmem:[%s166 + $0x48] sm:$0xff]
        %v179 = vld [vmem:[%s166 + $0x50] sm:$0xff]
        %v180 = vld [vmem:[%s166 + $0x58] sm:$0xff]
        %v181 = vld [vmem:[%s166 + $0x60] sm:$0xff]
        %v182 = vld [vmem:[%s166 + $0x68] sm:$0xff]
        %v183 = vld [vmem:[%s166 + $0x70] sm:$0xff]
        %v184 = vld [vmem:[%s166 + $0x78] sm:$0xff]
        %v185 = vld [vmem:[%s166 + $0x80] sm:$0xff]
        %v186 = vld [vmem:[%s166 + $0x88] sm:$0xff]
        %v187 = vld [vmem:[%s166 + $0x90] sm:$0xff]
        %v188 = vld [vmem:[%s166 + $0x98] sm:$0xff]
        %v189 = vld [vmem:[%s166 + $0xa0] sm:$0xff]
        %v190 = vld [vmem:[%s166 + $0xa8] sm:$0xff]
        %v191 = vld [vmem:[%s166 + $0xb0] sm:$0xff]
        %v192 = vld [vmem:[%s166 + $0xb8] sm:$0xff]
        %v193 = vld [vmem:[%s166 + $0xc0] sm:$0xff]
        %v194 = vld [vmem:[%s166 + $0xc8] sm:$0xff]
        %v195 = vld [vmem:[%s166 + $0xd0] sm:$0xff]
        %v196 = vld [vmem:[%s166 + $0xd8] sm:$0xff]
        %v197 = vld [vmem:[%s166 + $0xe0] sm:$0xff]
        %v198 = vld [vmem:[%s166 + $0xe8] sm:$0xff]
        %v199 = vld [vmem:[%s166 + $0xf0] sm:$0xff]
        %v200 = vld [vmem:[%s166 + $0xf8] sm:$0xff]
        %v201 = vld [vmem:[%s166 + $0x100] sm:$0xff]
        %v202 = vld [vmem:[%s166 + $0x108] sm:$0xff]
        %v203 = vld [vmem:[%s166 + $0x110] sm:$0xff]
        %v204 = vld [vmem:[%s166 + $0x118] sm:$0xff]
        %v205 = vld [vmem:[%s166 + $0x120] sm:$0xff]
        %v206 = vld [vmem:[%s166 + $0x128] sm:$0xff]
        %v207 = vld [vmem:[%s166 + $0x130] sm:$0xff]
        %v208 = vld [vmem:[%s166 + $0x138] sm:$0xff]
        %v209 = vld [vmem:[%s166 + $0x140] sm:$0xff]
        %v210 = vld [vmem:[%s166 + $0x148] sm:$0xff]
        %v211 = vld [vmem:[%s166 + $0x150] sm:$0xff]
        %v212 = vld [vmem:[%s166 + $0x158] sm:$0xff]
        %v213 = vld [vmem:[%s166 + $0x160] sm:$0xff]
        %v214 = vld [vmem:[%s166 + $0x168] sm:$0xff]
        %v215 = vld [vmem:[%s166 + $0x170] sm:$0xff]
        %v216 = vld [vmem:[%s166 + $0x178] sm:$0xff]
        %v217 = vld [vmem:[%s166 + $0x180] sm:$0xff]
        %v218 = vld [vmem:[%s166 + $0x188] sm:$0xff]
        %v219 = vld [vmem:[%s166 + $0x190] sm:$0xff]
        %v220 = vld [vmem:[%s166 + $0x198] sm:$0xff]
        %v221 = vld [vmem:[%s166 + $0x1a0] sm:$0xff]
        %v222 = vld [vmem:[%s166 + $0x1a8] sm:$0xff]
        %v223 = vld [vmem:[%s166 + $0x1b0] sm:$0xff]
        %v224 = vld [vmem:[%s166 + $0x1b8] sm:$0xff]
        %v225 = vld [vmem:[%s166 + $0x1c0] sm:$0xff]
        %v226 = vld [vmem:[%s166 + $0x1c8] sm:$0xff]
        %v227 = vld [vmem:[%s166 + $0x1d0] sm:$0xff]
        %v228 = vld [vmem:[%s166 + $0x1d8] sm:$0xff]
        %v229 = vld [vmem:[%s166 + $0x1e0] sm:$0xff]
        %v230 = vld [vmem:[%s166 + $0x1e8] sm:$0xff]
        %v231 = vld [vmem:[%s166 + $0x1f0] sm:$0xff]
        %v232 = vld [vmem:[%s166 + $0x1f8] sm:$0xff]
        %v233 = vld [vmem:[%s166 + $0x200] sm:$0xff]
        %v234 = vld [vmem:[%s166 + $0x208] sm:$0xff]
        %v235 = vld [vmem:[%s166 + $0x210] sm:$0xff]
        %v236 = vld [vmem:[%s166 + $0x218] sm:$0xff]
        %v237 = vld [vmem:[%s166 + $0x220] sm:$0xff]
        %v238 = vld [vmem:[%s166 + $0x228] sm:$0xff]
        %v239 = vld [vmem:[%s166 + $0x230] sm:$0xff]
        %v240 = vld [vmem:[%s166 + $0x238] sm:$0xff]
        %v241 = vld [vmem:[%s166 + $0x240] sm:$0xff]
        %v242 = vld [vmem:[%s166 + $0x248] sm:$0xff]
        %v243 = vld [vmem:[%s166 + $0x250] sm:$0xff]
        %v244 = vld [vmem:[%s166 + $0x258] sm:$0xff]
        %v245 = vld [vmem:[%s166 + $0x260] sm:$0xff]
        %v246 = vld [vmem:[%s166 + $0x268] sm:$0xff]
        %v247 = vld [vmem:[%s166 + $0x270] sm:$0xff]
        %v248 = vld [vmem:[%s166 + $0x278] sm:$0xff]
        %v249 = vld [vmem:[%s166 + $0x280] sm:$0xff]
        %v250 = vld [vmem:[%s166 + $0x288] sm:$0xff]
        %v251 = vld [vmem:[%s166 + $0x290] sm:$0xff]
        %v252 = vld [vmem:[%s166 + $0x298] sm:$0xff]
        %v253 = vld [vmem:[%s166 + $0x2a0] sm:$0xff]
        %v254 = vld [vmem:[%s166 + $0x2a8] sm:$0xff]
        %v255 = vld [vmem:[%s166 + $0x2b0] sm:$0xff]
        %v256 = vld [vmem:[%s166 + $0x2b8] sm:$0xff]
        %v257 = vld [vmem:[%s166 + $0x2c0] sm:$0xff]
        %v258 = vld [vmem:[%s166 + $0x2c8] sm:$0xff]
        %v259 = vld [vmem:[%s166 + $0x2d0] sm:$0xff]
        %v260 = vld [vmem:[%s166 + $0x2d8] sm:$0xff]
        %v261 = vld [vmem:[%s166 + $0x2e0] sm:$0xff]
        %v262 = vld [vmem:[%s166 + $0x2e8] sm:$0xff]
        %v263 = vld [vmem:[%s166 + $0x2f0] sm:$0xff]
        %v264 = vld [vmem:[%s166 + $0x2f8] sm:$0xff]
        %v265 = vld [vmem:[%s166 + $0x300] sm:$0xff]
        %v266 = vld [vmem:[%s166 + $0x308] sm:$0xff]
        %v267 = vld [vmem:[%s166 + $0x310] sm:$0xff]
        %v268 = vld [vmem:[%s166 + $0x318] sm:$0xff]
        %v269 = vld [vmem:[%s166 + $0x320] sm:$0xff]
        %v270 = vld [vmem:[%s166 + $0x328] sm:$0xff]
        %v271 = vld [vmem:[%s166 + $0x330] sm:$0xff]
        %v272 = vld [vmem:[%s166 + $0x338] sm:$0xff]
        %v273 = vld [vmem:[%s166 + $0x340] sm:$0xff]
        %v274 = vld [vmem:[%s166 + $0x348] sm:$0xff]
        %v275 = vld [vmem:[%s166 + $0x350] sm:$0xff]
        %v276 = vld [vmem:[%s166 + $0x358] sm:$0xff]
        %v277 = vld [vmem:[%s166 + $0x360] sm:$0xff]
        %v278 = vld [vmem:[%s166 + $0x368] sm:$0xff]
        %v279 = vld [vmem:[%s166 + $0x370] sm:$0xff]
        %v280 = vld [vmem:[%s166 + $0x378] sm:$0xff]
        %v281 = vld [vmem:[%s166 + $0x380] sm:$0xff]
        %v282 = vld [vmem:[%s166 + $0x388] sm:$0xff]
        %v283 = vld [vmem:[%s166 + $0x390] sm:$0xff]
        %v284 = vld [vmem:[%s166 + $0x398] sm:$0xff]
        %v285 = vld [vmem:[%s166 + $0x3a0] sm:$0xff]
        %v286 = vld [vmem:[%s166 + $0x3a8] sm:$0xff]
        %v287 = vld [vmem:[%s166 + $0x3b0] sm:$0xff]
        %v288 = vld [vmem:[%s166 + $0x3b8] sm:$0xff]
        %v289 = vld [vmem:[%s166 + $0x3c0] sm:$0xff]
        %v290 = vld [vmem:[%s166 + $0x3c8] sm:$0xff]
        %v291 = vld [vmem:[%s166 + $0x3d0] sm:$0xff]
        %v292 = vld [vmem:[%s166 + $0x3d8] sm:$0xff]
        %v293 = vld [vmem:[%s166 + $0x3e0] sm:$0xff]
        %v294 = vld [vmem:[%s166 + $0x3e8] sm:$0xff]
        %v295 = vld [vmem:[%s166 + $0x3f0] sm:$0xff]
        %v296 = vld [vmem:[%s166 + $0x3f8] sm:$0xff]
        %297 = vxpose.xlu0.b32.start [1/16] %v169, 128
        %298 = vxpose.xlu0.b32.cont [2/16] 0.0, 128
        %299 = vxpose.xlu0.b32.cont [3/16] 0.0, 128
        %300 = vxpose.xlu0.b32.cont [4/16] 0.0, 128
        %301 = vxpose.xlu0.b32.cont [5/16] 0.0, 128
        %302 = vxpose.xlu0.b32.cont [6/16] 0.0, 128
        %303 = vxpose.xlu0.b32.cont [7/16] 0.0, 128
        %304 = vxpose.xlu0.b32.cont [8/16] 0.0, 128
        %305 = vxpose.xlu0.b32.cont [9/16] 0.0, 128
        %306 = vxpose.xlu0.b32.cont [10/16] 0.0, 128
        %307 = vxpose.xlu0.b32.cont [11/16] 0.0, 128
        %308 = vxpose.xlu0.b32.cont [12/16] 0.0, 128
        %309 = vxpose.xlu0.b32.cont [13/16] 0.0, 128
        %310 = vxpose.xlu0.b32.cont [14/16] 0.0, 128
        %311 = vxpose.xlu0.b32.cont [15/16] 0.0, 128
        %312 = vxpose.xlu0.b32.end [16/16] 0.0, 128
        %v313 = vpop.trf.xlu0
        %v314 = vpop.trf.xlu0
        %v315 = vpop.trf.xlu0
        %v316 = vpop.trf.xlu0
        %v317 = vpop.trf.xlu0
        %v318 = vpop.trf.xlu0
        %v319 = vpop.trf.xlu0
        %v320 = vpop.trf.xlu0
        %v321 = vpop.trf.xlu0
        %v322 = vpop.trf.xlu0
        %v323 = vpop.trf.xlu0
        %v324 = vpop.trf.xlu0
        %v325 = vpop.trf.xlu0
        %v326 = vpop.trf.xlu0
        %v327 = vpop.trf.xlu0
        %v328 = vpop.trf.xlu0
        %329 = vxpose.xlu0.b32.start [1/16] %v170, 128
        %330 = vxpose.xlu0.b32.cont [2/16] 0.0, 128
        %331 = vxpose.xlu0.b32.cont [3/16] 0.0, 128
        %332 = vxpose.xlu0.b32.cont [4/16] 0.0, 128
        %333 = vxpose.xlu0.b32.cont [5/16] 0.0, 128
        %334 = vxpose.xlu0.b32.cont [6/16] 0.0, 128
        %335 = vxpose.xlu0.b32.cont [7/16] 0.0, 128
        %336 = vxpose.xlu0.b32.cont [8/16] 0.0, 128
        %337 = vxpose.xlu0.b32.cont [9/16] 0.0, 128
        %338 = vxpose.xlu0.b32.cont [10/16] 0.0, 128
        %339 = vxpose.xlu0.b32.cont [11/16] 0.0, 128
        %340 = vxpose.xlu0.b32.cont [12/16] 0.0, 128
        %341 = vxpose.xlu0.b32.cont [13/16] 0.0, 128
        %342 = vxpose.xlu0.b32.cont [14/16] 0.0, 128
        %343 = vxpose.xlu0.b32.cont [15/16] 0.0, 128
        %344 = vxpose.xlu0.b32.end [16/16] 0.0, 128
        %v345 = vpop.trf.xlu0
        %v346 = vpop.trf.xlu0
        %v347 = vpop.trf.xlu0
        %v348 = vpop.trf.xlu0
        %v349 = vpop.trf.xlu0
        %v350 = vpop.trf.xlu0
        %v351 = vpop.trf.xlu0
        %v352 = vpop.trf.xlu0
        %v353 = vpop.trf.xlu0
        %v354 = vpop.trf.xlu0
        %v355 = vpop.trf.xlu0
        %v356 = vpop.trf.xlu0
        %v357 = vpop.trf.xlu0
        %v358 = vpop.trf.xlu0
        %v359 = vpop.trf.xlu0
        %v360 = vpop.trf.xlu0
        %361 = vxpose.xlu0.b32.start [1/16] %v171, 128
        %362 = vxpose.xlu0.b32.cont [2/16] 0.0, 128
        %363 = vxpose.xlu0.b32.cont [3/16] 0.0, 128
        %364 = vxpose.xlu0.b32.cont [4/16] 0.0, 128
        %365 = vxpose.xlu0.b32.cont [5/16] 0.0, 128
        %366 = vxpose.xlu0.b32.cont [6/16] 0.0, 128
        %367 = vxpose.xlu0.b32.cont [7/16] 0.0, 128
        %368 = vxpose.xlu0.b32.cont [8/16] 0.0, 128
        %369 = vxpose.xlu0.b32.cont [9/16] 0.0, 128
        %370 = vxpose.xlu0.b32.cont [10/16] 0.0, 128
        %371 = vxpose.xlu0.b32.cont [11/16] 0.0, 128
        %372 = vxpose.xlu0.b32.cont [12/16] 0.0, 128
        %373 = vxpose.xlu0.b32.cont [13/16] 0.0, 128
        %374 = vxpose.xlu0.b32.cont [14/16] 0.0, 128
        %375 = vxpose.xlu0.b32.cont [15/16] 0.0, 128
        %376 = vxpose.xlu0.b32.end [16/16] 0.0, 128
        %v377 = vpop.trf.xlu0
        %v378 = vpop.trf.xlu0
        %v379 = vpop.trf.xlu0
        %v380 = vpop.trf.xlu0
        %v381 = vpop.trf.xlu0
        %v382 = vpop.trf.xlu0
        %v383 = vpop.trf.xlu0
        %v384 = vpop.trf.xlu0
        %v385 = vpop.trf.xlu0
        %v386 = vpop.trf.xlu0
        %v387 = vpop.trf.xlu0
        %v388 = vpop.trf.xlu0
        %v389 = vpop.trf.xlu0
        %v390 = vpop.trf.xlu0
        %v391 = vpop.trf.xlu0
        %v392 = vpop.trf.xlu0
        %393 = vxpose.xlu0.b32.start [1/16] %v172, 128
        %394 = vxpose.xlu0.b32.cont [2/16] 0.0, 128
        %395 = vxpose.xlu0.b32.cont [3/16] 0.0, 128
        %396 = vxpose.xlu0.b32.cont [4/16] 0.0, 128
        %397 = vxpose.xlu0.b32.cont [5/16] 0.0, 128
        %398 = vxpose.xlu0.b32.cont [6/16] 0.0, 128
        %399 = vxpose.xlu0.b32.cont [7/16] 0.0, 128
        %400 = vxpose.xlu0.b32.cont [8/16] 0.0, 128
        %401 = vxpose.xlu0.b32.cont [9/16] 0.0, 128
        %402 = vxpose.xlu0.b32.cont [10/16] 0.0, 128
        %403 = vxpose.xlu0.b32.cont [11/16] 0.0, 128
        %404 = vxpose.xlu0.b32.cont [12/16] 0.0, 128
        %405 = vxpose.xlu0.b32.cont [13/16] 0.0, 128
        %406 = vxpose.xlu0.b32.cont [14/16] 0.0, 128
        %407 = vxpose.xlu0.b32.cont [15/16] 0.0, 128
        %408 = vxpose.xlu0.b32.end [16/16] 0.0, 128
        %v409 = vpop.trf.xlu0
        %v410 = vpop.trf.xlu0
        %v411 = vpop.trf.xlu0
        %v412 = vpop.trf.xlu0
        %v413 = vpop.trf.xlu0
        %v414 = vpop.trf.xlu0
        %v415 = vpop.trf.xlu0
        %v416 = vpop.trf.xlu0
        %v417 = vpop.trf.xlu0
        %v418 = vpop.trf.xlu0
        %v419 = vpop.trf.xlu0
        %v420 = vpop.trf.xlu0
        %v421 = vpop.trf.xlu0
        %v422 = vpop.trf.xlu0
        %v423 = vpop.trf.xlu0
        %v424 = vpop.trf.xlu0
        %425 = vxpose.xlu0.b32.start [1/16] %v173, 128
        %426 = vxpose.xlu0.b32.cont [2/16] 0.0, 128
        %427 = vxpose.xlu0.b32.cont [3/16] 0.0, 128
        %428 = vxpose.xlu0.b32.cont [4/16] 0.0, 128
        %429 = vxpose.xlu0.b32.cont [5/16] 0.0, 128
        %430 = vxpose.xlu0.b32.cont [6/16] 0.0, 128
        %431 = vxpose.xlu0.b32.cont [7/16] 0.0, 128
        %432 = vxpose.xlu0.b32.cont [8/16] 0.0, 128
        %433 = vxpose.xlu0.b32.cont [9/16] 0.0, 128
        %434 = vxpose.xlu0.b32.cont [10/16] 0.0, 128
        %435 = vxpose.xlu0.b32.cont [11/16] 0.0, 128
        %436 = vxpose.xlu0.b32.cont [12/16] 0.0, 128
        %437 = vxpose.xlu0.b32.cont [13/16] 0.0, 128
        %438 = vxpose.xlu0.b32.cont [14/16] 0.0, 128
        %439 = vxpose.xlu0.b32.cont [15/16] 0.0, 128
        %440 = vxpose.xlu0.b32.end [16/16] 0.0, 128
        %v441 = vpop.trf.xlu0
        %v442 = vpop.trf.xlu0
        %v443 = vpop.trf.xlu0
        %v444 = vpop.trf.xlu0
        %v445 = vpop.trf.xlu0
        %v446 = vpop.trf.xlu0
        %v447 = vpop.trf.xlu0
        %v448 = vpop.trf.xlu0
        %v449 = vpop.trf.xlu0
        %v450 = vpop.trf.xlu0
        %v451 = vpop.trf.xlu0
        %v452 = vpop.trf.xlu0
        %v453 = vpop.trf.xlu0
        %v454 = vpop.trf.xlu0
        %v455 = vpop.trf.xlu0
        %v456 = vpop.trf.xlu0
        %457 = vxpose.xlu0.b32.start [1/16] %v174, 128
        %458 = vxpose.xlu0.b32.cont [2/16] 0.0, 128
        %459 = vxpose.xlu0.b32.cont [3/16] 0.0, 128
        %460 = vxpose.xlu0.b32.cont [4/16] 0.0, 128
        %461 = vxpose.xlu0.b32.cont [5/16] 0.0, 128
        %462 = vxpose.xlu0.b32.cont [6/16] 0.0, 128
        %463 = vxpose.xlu0.b32.cont [7/16] 0.0, 128
        %464 = vxpose.xlu0.b32.cont [8/16] 0.0, 128
        %465 = vxpose.xlu0.b32.cont [9/16] 0.0, 128
        %466 = vxpose.xlu0.b32.cont [10/16] 0.0, 128
        %467 = vxpose.xlu0.b32.cont [11/16] 0.0, 128
        %468 = vxpose.xlu0.b32.cont [12/16] 0.0, 128
        %469 = vxpose.xlu0.b32.cont [13/16] 0.0, 128
        %470 = vxpose.xlu0.b32.cont [14/16] 0.0, 128
        %471 = vxpose.xlu0.b32.cont [15/16] 0.0, 128
        %472 = vxpose.xlu0.b32.end [16/16] 0.0, 128
        %v473 = vpop.trf.xlu0
        %v474 = vpop.trf.xlu0
        %v475 = vpop.trf.xlu0
        %v476 = vpop.trf.xlu0
        %v477 = vpop.trf.xlu0
        %v478 = vpop.trf.xlu0
        %v479 = vpop.trf.xlu0
        %v480 = vpop.trf.xlu0
        %v481 = vpop.trf.xlu0
        %v482 = vpop.trf.xlu0
        %v483 = vpop.trf.xlu0
        %v484 = vpop.trf.xlu0
        %v485 = vpop.trf.xlu0
        %v486 = vpop.trf.xlu0
        %v487 = vpop.trf.xlu0
        %v488 = vpop.trf.xlu0
        %489 = vxpose.xlu0.b32.start [1/16] %v175, 128
        %490 = vxpose.xlu0.b32.cont [2/16] 0.0, 128
        %491 = vxpose.xlu0.b32.cont [3/16] 0.0, 128
        %492 = vxpose.xlu0.b32.cont [4/16] 0.0, 128
        %493 = vxpose.xlu0.b32.cont [5/16] 0.0, 128
        %494 = vxpose.xlu0.b32.cont [6/16] 0.0, 128
        %495 = vxpose.xlu0.b32.cont [7/16] 0.0, 128
        %496 = vxpose.xlu0.b32.cont [8/16] 0.0, 128
        %497 = vxpose.xlu0.b32.cont [9/16] 0.0, 128
        %498 = vxpose.xlu0.b32.cont [10/16] 0.0, 128
        %499 = vxpose.xlu0.b32.cont [11/16] 0.0, 128
        %500 = vxpose.xlu0.b32.cont [12/16] 0.0, 128
        %501 = vxpose.xlu0.b32.cont [13/16] 0.0, 128
        %502 = vxpose.xlu0.b32.cont [14/16] 0.0, 128
        %503 = vxpose.xlu0.b32.cont [15/16] 0.0, 128
        %504 = vxpose.xlu0.b32.end [16/16] 0.0, 128
        %v505 = vpop.trf.xlu0
        %v506 = vpop.trf.xlu0
        %v507 = vpop.trf.xlu0
        %v508 = vpop.trf.xlu0
        %v509 = vpop.trf.xlu0
        %v510 = vpop.trf.xlu0
        %v511 = vpop.trf.xlu0
        %v512 = vpop.trf.xlu0
        %v513 = vpop.trf.xlu0
        %v514 = vpop.trf.xlu0
        %v515 = vpop.trf.xlu0
        %v516 = vpop.trf.xlu0
        %v517 = vpop.trf.xlu0
        %v518 = vpop.trf.xlu0
        %v519 = vpop.trf.xlu0
        %v520 = vpop.trf.xlu0
        %521 = vxpose.xlu0.b32.start [1/16] %v176, 128
        %522 = vxpose.xlu0.b32.cont [2/16] 0.0, 128
        %523 = vxpose.xlu0.b32.cont [3/16] 0.0, 128
        %524 = vxpose.xlu0.b32.cont [4/16] 0.0, 128
        %525 = vxpose.xlu0.b32.cont [5/16] 0.0, 128
        %526 = vxpose.xlu0.b32.cont [6/16] 0.0, 128
        %527 = vxpose.xlu0.b32.cont [7/16] 0.0, 128
        %528 = vxpose.xlu0.b32.cont [8/16] 0.0, 128
        %529 = vxpose.xlu0.b32.cont [9/16] 0.0, 128
        %530 = vxpose.xlu0.b32.cont [10/16] 0.0, 128
        %531 = vxpose.xlu0.b32.cont [11/16] 0.0, 128
        %532 = vxpose.xlu0.b32.cont [12/16] 0.0, 128
        %533 = vxpose.xlu0.b32.cont [13/16] 0.0, 128
        %534 = vxpose.xlu0.b32.cont [14/16] 0.0, 128
        %535 = vxpose.xlu0.b32.cont [15/16] 0.0, 128
        %536 = vxpose.xlu0.b32.end [16/16] 0.0, 128
        %v537 = vpop.trf.xlu0
        %v538 = vpop.trf.xlu0
        %v539 = vpop.trf.xlu0
        %v540 = vpop.trf.xlu0
        %v541 = vpop.trf.xlu0
        %v542 = vpop.trf.xlu0
        %v543 = vpop.trf.xlu0
        %v544 = vpop.trf.xlu0
        %v545 = vpop.trf.xlu0
        %v546 = vpop.trf.xlu0
        %v547 = vpop.trf.xlu0
        %v548 = vpop.trf.xlu0
        %v549 = vpop.trf.xlu0
        %v550 = vpop.trf.xlu0
        %v551 = vpop.trf.xlu0
        %v552 = vpop.trf.xlu0
        %553 = vxpose.xlu0.b32.start [1/16] %v177, 128
        %554 = vxpose.xlu0.b32.cont [2/16] 0.0, 128
        %555 = vxpose.xlu0.b32.cont [3/16] 0.0, 128
        %556 = vxpose.xlu0.b32.cont [4/16] 0.0, 128
        %557 = vxpose.xlu0.b32.cont [5/16] 0.0, 128
        %558 = vxpose.xlu0.b32.cont [6/16] 0.0, 128
        %559 = vxpose.xlu0.b32.cont [7/16] 0.0, 128
        %560 = vxpose.xlu0.b32.cont [8/16] 0.0, 128
        %561 = vxpose.xlu0.b32.cont [9/16] 0.0, 128
        %562 = vxpose.xlu0.b32.cont [10/16] 0.0, 128
        %563 = vxpose.xlu0.b32.cont [11/16] 0.0, 128
        %564 = vxpose.xlu0.b32.cont [12/16] 0.0, 128
        %565 = vxpose.xlu0.b32.cont [13/16] 0.0, 128
        %566 = vxpose.xlu0.b32.cont [14/16] 0.0, 128
        %567 = vxpose.xlu0.b32.cont [15/16] 0.0, 128
        %568 = vxpose.xlu0.b32.end [16/16] 0.0, 128
        %v569 = vpop.trf.xlu0
        %v570 = vpop.trf.xlu0
        %v571 = vpop.trf.xlu0
        %v572 = vpop.trf.xlu0
        %v573 = vpop.trf.xlu0
        %v574 = vpop.trf.xlu0
        %v575 = vpop.trf.xlu0
        %v576 = vpop.trf.xlu0
        %v577 = vpop.trf.xlu0
        %v578 = vpop.trf.xlu0
        %v579 = vpop.trf.xlu0
        %v580 = vpop.trf.xlu0
        %v581 = vpop.trf.xlu0
        %v582 = vpop.trf.xlu0
        %v583 = vpop.trf.xlu0
        %v584 = vpop.trf.xlu0
        %585 = vxpose.xlu0.b32.start [1/16] %v178, 128
        %586 = vxpose.xlu0.b32.cont [2/16] 0.0, 128
        %587 = vxpose.xlu0.b32.cont [3/16] 0.0, 128
        %588 = vxpose.xlu0.b32.cont [4/16] 0.0, 128
        %589 = vxpose.xlu0.b32.cont [5/16] 0.0, 128
        %590 = vxpose.xlu0.b32.cont [6/16] 0.0, 128
        %591 = vxpose.xlu0.b32.cont [7/16] 0.0, 128
        %592 = vxpose.xlu0.b32.cont [8/16] 0.0, 128
        %593 = vxpose.xlu0.b32.cont [9/16] 0.0, 128
        %594 = vxpose.xlu0.b32.cont [10/16] 0.0, 128
        %595 = vxpose.xlu0.b32.cont [11/16] 0.0, 128
        %596 = vxpose.xlu0.b32.cont [12/16] 0.0, 128
        %597 = vxpose.xlu0.b32.cont [13/16] 0.0, 128
        %598 = vxpose.xlu0.b32.cont [14/16] 0.0, 128
        %599 = vxpose.xlu0.b32.cont [15/16] 0.0, 128
        %600 = vxpose.xlu0.b32.end [16/16] 0.0, 128
        %v601 = vpop.trf.xlu0
        %v602 = vpop.trf.xlu0
        %v603 = vpop.trf.xlu0
        %v604 = vpop.trf.xlu0
        %v605 = vpop.trf.xlu0
        %v606 = vpop.trf.xlu0
        %v607 = vpop.trf.xlu0
        %v608 = vpop.trf.xlu0
        %v609 = vpop.trf.xlu0
        %v610 = vpop.trf.xlu0
        %v611 = vpop.trf.xlu0
        %v612 = vpop.trf.xlu0
        %v613 = vpop.trf.xlu0
        %v614 = vpop.trf.xlu0
        %v615 = vpop.trf.xlu0
        %v616 = vpop.trf.xlu0
        %617 = vxpose.xlu0.b32.start [1/16] %v179, 128
        %618 = vxpose.xlu0.b32.cont [2/16] 0.0, 128
        %619 = vxpose.xlu0.b32.cont [3/16] 0.0, 128
        %620 = vxpose.xlu0.b32.cont [4/16] 0.0, 128
        %621 = vxpose.xlu0.b32.cont [5/16] 0.0, 128
        %622 = vxpose.xlu0.b32.cont [6/16] 0.0, 128
        %623 = vxpose.xlu0.b32.cont [7/16] 0.0, 128
        %624 = vxpose.xlu0.b32.cont [8/16] 0.0, 128
        %625 = vxpose.xlu0.b32.cont [9/16] 0.0, 128
        %626 = vxpose.xlu0.b32.cont [10/16] 0.0, 128
        %627 = vxpose.xlu0.b32.cont [11/16] 0.0, 128
        %628 = vxpose.xlu0.b32.cont [12/16] 0.0, 128
        %629 = vxpose.xlu0.b32.cont [13/16] 0.0, 128
        %630 = vxpose.xlu0.b32.cont [14/16] 0.0, 128
        %631 = vxpose.xlu0.b32.cont [15/16] 0.0, 128
        %632 = vxpose.xlu0.b32.end [16/16] 0.0, 128
        %v633 = vpop.trf.xlu0
        %v634 = vpop.trf.xlu0
        %v635 = vpop.trf.xlu0
        %v636 = vpop.trf.xlu0
        %v637 = vpop.trf.xlu0
        %v638 = vpop.trf.xlu0
        %v639 = vpop.trf.xlu0
        %v640 = vpop.trf.xlu0
        %v641 = vpop.trf.xlu0
        %v642 = vpop.trf.xlu0
        %v643 = vpop.trf.xlu0
        %v644 = vpop.trf.xlu0
        %v645 = vpop.trf.xlu0
        %v646 = vpop.trf.xlu0
        %v647 = vpop.trf.xlu0
        %v648 = vpop.trf.xlu0
        %649 = vxpose.xlu0.b32.start [1/16] %v180, 128
        %650 = vxpose.xlu0.b32.cont [2/16] 0.0, 128
        %651 = vxpose.xlu0.b32.cont [3/16] 0.0, 128
        %652 = vxpose.xlu0.b32.cont [4/16] 0.0, 128
        %653 = vxpose.xlu0.b32.cont [5/16] 0.0, 128
        %654 = vxpose.xlu0.b32.cont [6/16] 0.0, 128
        %655 = vxpose.xlu0.b32.cont [7/16] 0.0, 128
        %656 = vxpose.xlu0.b32.cont [8/16] 0.0, 128
        %657 = vxpose.xlu0.b32.cont [9/16] 0.0, 128
        %658 = vxpose.xlu0.b32.cont [10/16] 0.0, 128
        %659 = vxpose.xlu0.b32.cont [11/16] 0.0, 128
        %660 = vxpose.xlu0.b32.cont [12/16] 0.0, 128
        %661 = vxpose.xlu0.b32.cont [13/16] 0.0, 128
        %662 = vxpose.xlu0.b32.cont [14/16] 0.0, 128
        %663 = vxpose.xlu0.b32.cont [15/16] 0.0, 128
        %664 = vxpose.xlu0.b32.end [16/16] 0.0, 128
        %v665 = vpop.trf.xlu0
        %v666 = vpop.trf.xlu0
        %v667 = vpop.trf.xlu0
        %v668 = vpop.trf.xlu0
        %v669 = vpop.trf.xlu0
        %v670 = vpop.trf.xlu0
        %v671 = vpop.trf.xlu0
        %v672 = vpop.trf.xlu0
        %v673 = vpop.trf.xlu0
        %v674 = vpop.trf.xlu0
        %v675 = vpop.trf.xlu0
        %v676 = vpop.trf.xlu0
        %v677 = vpop.trf.xlu0
        %v678 = vpop.trf.xlu0
        %v679 = vpop.trf.xlu0
        %v680 = vpop.trf.xlu0
        %681 = vxpose.xlu0.b32.start [1/16] %v181, 128
        %682 = vxpose.xlu0.b32.cont [2/16] 0.0, 128
        %683 = vxpose.xlu0.b32.cont [3/16] 0.0, 128
        %684 = vxpose.xlu0.b32.cont [4/16] 0.0, 128
        %685 = vxpose.xlu0.b32.cont [5/16] 0.0, 128
        %686 = vxpose.xlu0.b32.cont [6/16] 0.0, 128
        %687 = vxpose.xlu0.b32.cont [7/16] 0.0, 128
        %688 = vxpose.xlu0.b32.cont [8/16] 0.0, 128
        %689 = vxpose.xlu0.b32.cont [9/16] 0.0, 128
        %690 = vxpose.xlu0.b32.cont [10/16] 0.0, 128
        %691 = vxpose.xlu0.b32.cont [11/16] 0.0, 128
        %692 = vxpose.xlu0.b32.cont [12/16] 0.0, 128
        %693 = vxpose.xlu0.b32.cont [13/16] 0.0, 128
        %694 = vxpose.xlu0.b32.cont [14/16] 0.0, 128
        %695 = vxpose.xlu0.b32.cont [15/16] 0.0, 128
        %696 = vxpose.xlu0.b32.end [16/16] 0.0, 128
        %v697 = vpop.trf.xlu0
        %v698 = vpop.trf.xlu0
        %v699 = vpop.trf.xlu0
        %v700 = vpop.trf.xlu0
        %v701 = vpop.trf.xlu0
        %v702 = vpop.trf.xlu0
        %v703 = vpop.trf.xlu0
        %v704 = vpop.trf.xlu0
        %v705 = vpop.trf.xlu0
        %v706 = vpop.trf.xlu0
        %v707 = vpop.trf.xlu0
        %v708 = vpop.trf.xlu0
        %v709 = vpop.trf.xlu0
        %v710 = vpop.trf.xlu0
        %v711 = vpop.trf.xlu0
        %v712 = vpop.trf.xlu0
        %713 = vxpose.xlu0.b32.start [1/16] %v182, 128
        %714 = vxpose.xlu0.b32.cont [2/16] 0.0, 128
        %715 = vxpose.xlu0.b32.cont [3/16] 0.0, 128
        %716 = vxpose.xlu0.b32.cont [4/16] 0.0, 128
        %717 = vxpose.xlu0.b32.cont [5/16] 0.0, 128
        %718 = vxpose.xlu0.b32.cont [6/16] 0.0, 128
        %719 = vxpose.xlu0.b32.cont [7/16] 0.0, 128
        %720 = vxpose.xlu0.b32.cont [8/16] 0.0, 128
        %721 = vxpose.xlu0.b32.cont [9/16] 0.0, 128
        %722 = vxpose.xlu0.b32.cont [10/16] 0.0, 128
        %723 = vxpose.xlu0.b32.cont [11/16] 0.0, 128
        %724 = vxpose.xlu0.b32.cont [12/16] 0.0, 128
        %725 = vxpose.xlu0.b32.cont [13/16] 0.0, 128
        %726 = vxpose.xlu0.b32.cont [14/16] 0.0, 128
        %727 = vxpose.xlu0.b32.cont [15/16] 0.0, 128
        %728 = vxpose.xlu0.b32.end [16/16] 0.0, 128
        %v729 = vpop.trf.xlu0
        %v730 = vpop.trf.xlu0
        %v731 = vpop.trf.xlu0
        %v732 = vpop.trf.xlu0
        %v733 = vpop.trf.xlu0
        %v734 = vpop.trf.xlu0
        %v735 = vpop.trf.xlu0
        %v736 = vpop.trf.xlu0
        %v737 = vpop.trf.xlu0
        %v738 = vpop.trf.xlu0
        %v739 = vpop.trf.xlu0
        %v740 = vpop.trf.xlu0
        %v741 = vpop.trf.xlu0
        %v742 = vpop.trf.xlu0
        %v743 = vpop.trf.xlu0
        %v744 = vpop.trf.xlu0
        %745 = vxpose.xlu0.b32.start [1/16] %v183, 128
        %746 = vxpose.xlu0.b32.cont [2/16] 0.0, 128
        %747 = vxpose.xlu0.b32.cont [3/16] 0.0, 128
        %748 = vxpose.xlu0.b32.cont [4/16] 0.0, 128
        %749 = vxpose.xlu0.b32.cont [5/16] 0.0, 128
        %750 = vxpose.xlu0.b32.cont [6/16] 0.0, 128
        %751 = vxpose.xlu0.b32.cont [7/16] 0.0, 128
        %752 = vxpose.xlu0.b32.cont [8/16] 0.0, 128
        %753 = vxpose.xlu0.b32.cont [9/16] 0.0, 128
        %754 = vxpose.xlu0.b32.cont [10/16] 0.0, 128
        %755 = vxpose.xlu0.b32.cont [11/16] 0.0, 128
        %756 = vxpose.xlu0.b32.cont [12/16] 0.0, 128
        %757 = vxpose.xlu0.b32.cont [13/16] 0.0, 128
        %758 = vxpose.xlu0.b32.cont [14/16] 0.0, 128
        %759 = vxpose.xlu0.b32.cont [15/16] 0.0, 128
        %760 = vxpose.xlu0.b32.end [16/16] 0.0, 128
        %v761 = vpop.trf.xlu0
        %v762 = vpop.trf.xlu0
        %v763 = vpop.trf.xlu0
        %v764 = vpop.trf.xlu0
        %v765 = vpop.trf.xlu0
        %v766 = vpop.trf.xlu0
        %v767 = vpop.trf.xlu0
        %v768 = vpop.trf.xlu0
        %v769 = vpop.trf.xlu0
        %v770 = vpop.trf.xlu0
        %v771 = vpop.trf.xlu0
        %v772 = vpop.trf.xlu0
        %v773 = vpop.trf.xlu0
        %v774 = vpop.trf.xlu0
        %v775 = vpop.trf.xlu0
        %v776 = vpop.trf.xlu0
        %777 = vxpose.xlu0.b32.start [1/16] %v184, 128
        %778 = vxpose.xlu0.b32.cont [2/16] 0.0, 128
        %779 = vxpose.xlu0.b32.cont [3/16] 0.0, 128
        %780 = vxpose.xlu0.b32.cont [4/16] 0.0, 128
        %781 = vxpose.xlu0.b32.cont [5/16] 0.0, 128
        %782 = vxpose.xlu0.b32.cont [6/16] 0.0, 128
        %783 = vxpose.xlu0.b32.cont [7/16] 0.0, 128
        %784 = vxpose.xlu0.b32.cont [8/16] 0.0, 128
        %785 = vxpose.xlu0.b32.cont [9/16] 0.0, 128
        %786 = vxpose.xlu0.b32.cont [10/16] 0.0, 128
        %787 = vxpose.xlu0.b32.cont [11/16] 0.0, 128
        %788 = vxpose.xlu0.b32.cont [12/16] 0.0, 128
        %789 = vxpose.xlu0.b32.cont [13/16] 0.0, 128
        %790 = vxpose.xlu0.b32.cont [14/16] 0.0, 128
        %791 = vxpose.xlu0.b32.cont [15/16] 0.0, 128
        %792 = vxpose.xlu0.b32.end [16/16] 0.0, 128
        %v793 = vpop.trf.xlu0
        %v794 = vpop.trf.xlu0
        %v795 = vpop.trf.xlu0
        %v796 = vpop.trf.xlu0
        %v797 = vpop.trf.xlu0
        %v798 = vpop.trf.xlu0
        %v799 = vpop.trf.xlu0
        %v800 = vpop.trf.xlu0
        %v801 = vpop.trf.xlu0
        %v802 = vpop.trf.xlu0
        %v803 = vpop.trf.xlu0
        %v804 = vpop.trf.xlu0
        %v805 = vpop.trf.xlu0
        %v806 = vpop.trf.xlu0
        %v807 = vpop.trf.xlu0
        %v808 = vpop.trf.xlu0
        %809 = vxpose.xlu0.b32.start [1/16] %v185, 128
        %810 = vxpose.xlu0.b32.cont [2/16] 0.0, 128
        %811 = vxpose.xlu0.b32.cont [3/16] 0.0, 128
        %812 = vxpose.xlu0.b32.cont [4/16] 0.0, 128
        %813 = vxpose.xlu0.b32.cont [5/16] 0.0, 128
        %814 = vxpose.xlu0.b32.cont [6/16] 0.0, 128
        %815 = vxpose.xlu0.b32.cont [7/16] 0.0, 128
        %816 = vxpose.xlu0.b32.cont [8/16] 0.0, 128
        %817 = vxpose.xlu0.b32.cont [9/16] 0.0, 128
        %818 = vxpose.xlu0.b32.cont [10/16] 0.0, 128
        %819 = vxpose.xlu0.b32.cont [11/16] 0.0, 128
        %820 = vxpose.xlu0.b32.cont [12/16] 0.0, 128
        %821 = vxpose.xlu0.b32.cont [13/16] 0.0, 128
        %822 = vxpose.xlu0.b32.cont [14/16] 0.0, 128
        %823 = vxpose.xlu0.b32.cont [15/16] 0.0, 128
        %824 = vxpose.xlu0.b32.end [16/16] 0.0, 128
        %v825 = vpop.trf.xlu0
        %v826 = vpop.trf.xlu0
        %v827 = vpop.trf.xlu0
        %v828 = vpop.trf.xlu0
        %v829 = vpop.trf.xlu0
        %v830 = vpop.trf.xlu0
        %v831 = vpop.trf.xlu0
        %v832 = vpop.trf.xlu0
        %v833 = vpop.trf.xlu0
        %v834 = vpop.trf.xlu0
        %v835 = vpop.trf.xlu0
        %v836 = vpop.trf.xlu0
        %v837 = vpop.trf.xlu0
        %v838 = vpop.trf.xlu0
        %v839 = vpop.trf.xlu0
        %v840 = vpop.trf.xlu0
        %841 = vxpose.xlu0.b32.start [1/16] %v186, 128
        %842 = vxpose.xlu0.b32.cont [2/16] 0.0, 128
        %843 = vxpose.xlu0.b32.cont [3/16] 0.0, 128
        %844 = vxpose.xlu0.b32.cont [4/16] 0.0, 128
        %845 = vxpose.xlu0.b32.cont [5/16] 0.0, 128
        %846 = vxpose.xlu0.b32.cont [6/16] 0.0, 128
        %847 = vxpose.xlu0.b32.cont [7/16] 0.0, 128
        %848 = vxpose.xlu0.b32.cont [8/16] 0.0, 128
        %849 = vxpose.xlu0.b32.cont [9/16] 0.0, 128
        %850 = vxpose.xlu0.b32.cont [10/16] 0.0, 128
        %851 = vxpose.xlu0.b32.cont [11/16] 0.0, 128
        %852 = vxpose.xlu0.b32.cont [12/16] 0.0, 128
        %853 = vxpose.xlu0.b32.cont [13/16] 0.0, 128
        %854 = vxpose.xlu0.b32.cont [14/16] 0.0, 128
        %855 = vxpose.xlu0.b32.cont [15/16] 0.0, 128
        %856 = vxpose.xlu0.b32.end [16/16] 0.0, 128
        %v857 = vpop.trf.xlu0
        %v858 = vpop.trf.xlu0
        %v859 = vpop.trf.xlu0
        %v860 = vpop.trf.xlu0
        %v861 = vpop.trf.xlu0
        %v862 = vpop.trf.xlu0
        %v863 = vpop.trf.xlu0
        %v864 = vpop.trf.xlu0
        %v865 = vpop.trf.xlu0
        %v866 = vpop.trf.xlu0
        %v867 = vpop.trf.xlu0
        %v868 = vpop.trf.xlu0
        %v869 = vpop.trf.xlu0
        %v870 = vpop.trf.xlu0
        %v871 = vpop.trf.xlu0
        %v872 = vpop.trf.xlu0
        %873 = vxpose.xlu0.b32.start [1/16] %v187, 128
        %874 = vxpose.xlu0.b32.cont [2/16] 0.0, 128
        %875 = vxpose.xlu0.b32.cont [3/16] 0.0, 128
        %876 = vxpose.xlu0.b32.cont [4/16] 0.0, 128
        %877 = vxpose.xlu0.b32.cont [5/16] 0.0, 128
        %878 = vxpose.xlu0.b32.cont [6/16] 0.0, 128
        %879 = vxpose.xlu0.b32.cont [7/16] 0.0, 128
        %880 = vxpose.xlu0.b32.cont [8/16] 0.0, 128
        %881 = vxpose.xlu0.b32.cont [9/16] 0.0, 128
        %882 = vxpose.xlu0.b32.cont [10/16] 0.0, 128
        %883 = vxpose.xlu0.b32.cont [11/16] 0.0, 128
        %884 = vxpose.xlu0.b32.cont [12/16] 0.0, 128
        %885 = vxpose.xlu0.b32.cont [13/16] 0.0, 128
        %886 = vxpose.xlu0.b32.cont [14/16] 0.0, 128
        %887 = vxpose.xlu0.b32.cont [15/16] 0.0, 128
        %888 = vxpose.xlu0.b32.end [16/16] 0.0, 128
        %v889 = vpop.trf.xlu0
        %v890 = vpop.trf.xlu0
        %v891 = vpop.trf.xlu0
        %v892 = vpop.trf.xlu0
        %v893 = vpop.trf.xlu0
        %v894 = vpop.trf.xlu0
        %v895 = vpop.trf.xlu0
        %v896 = vpop.trf.xlu0
        %v897 = vpop.trf.xlu0
        %v898 = vpop.trf.xlu0
        %v899 = vpop.trf.xlu0
        %v900 = vpop.trf.xlu0
        %v901 = vpop.trf.xlu0
        %v902 = vpop.trf.xlu0
        %v903 = vpop.trf.xlu0
        %v904 = vpop.trf.xlu0
        %905 = vxpose.xlu0.b32.start [1/16] %v188, 128
        %906 = vxpose.xlu0.b32.cont [2/16] 0.0, 128
        %907 = vxpose.xlu0.b32.cont [3/16] 0.0, 128
        %908 = vxpose.xlu0.b32.cont [4/16] 0.0, 128
        %909 = vxpose.xlu0.b32.cont [5/16] 0.0, 128
        %910 = vxpose.xlu0.b32.cont [6/16] 0.0, 128
        %911 = vxpose.xlu0.b32.cont [7/16] 0.0, 128
        %912 = vxpose.xlu0.b32.cont [8/16] 0.0, 128
        %913 = vxpose.xlu0.b32.cont [9/16] 0.0, 128
        %914 = vxpose.xlu0.b32.cont [10/16] 0.0, 128
        %915 = vxpose.xlu0.b32.cont [11/16] 0.0, 128
        %916 = vxpose.xlu0.b32.cont [12/16] 0.0, 128
        %917 = vxpose.xlu0.b32.cont [13/16] 0.0, 128
        %918 = vxpose.xlu0.b32.cont [14/16] 0.0, 128
        %919 = vxpose.xlu0.b32.cont [15/16] 0.0, 128
        %920 = vxpose.xlu0.b32.end [16/16] 0.0, 128
        %v921 = vpop.trf.xlu0
        %v922 = vpop.trf.xlu0
        %v923 = vpop.trf.xlu0
        %v924 = vpop.trf.xlu0
        %v925 = vpop.trf.xlu0
        %v926 = vpop.trf.xlu0
        %v927 = vpop.trf.xlu0
        %v928 = vpop.trf.xlu0
        %v929 = vpop.trf.xlu0
        %v930 = vpop.trf.xlu0
        %v931 = vpop.trf.xlu0
        %v932 = vpop.trf.xlu0
        %v933 = vpop.trf.xlu0
        %v934 = vpop.trf.xlu0
        %v935 = vpop.trf.xlu0
        %v936 = vpop.trf.xlu0
        %937 = vxpose.xlu0.b32.start [1/16] %v189, 128
        %938 = vxpose.xlu0.b32.cont [2/16] 0.0, 128
        %939 = vxpose.xlu0.b32.cont [3/16] 0.0, 128
        %940 = vxpose.xlu0.b32.cont [4/16] 0.0, 128
        %941 = vxpose.xlu0.b32.cont [5/16] 0.0, 128
        %942 = vxpose.xlu0.b32.cont [6/16] 0.0, 128
        %943 = vxpose.xlu0.b32.cont [7/16] 0.0, 128
        %944 = vxpose.xlu0.b32.cont [8/16] 0.0, 128
        %945 = vxpose.xlu0.b32.cont [9/16] 0.0, 128
        %946 = vxpose.xlu0.b32.cont [10/16] 0.0, 128
        %947 = vxpose.xlu0.b32.cont [11/16] 0.0, 128
        %948 = vxpose.xlu0.b32.cont [12/16] 0.0, 128
        %949 = vxpose.xlu0.b32.cont [13/16] 0.0, 128
        %950 = vxpose.xlu0.b32.cont [14/16] 0.0, 128
        %951 = vxpose.xlu0.b32.cont [15/16] 0.0, 128
        %952 = vxpose.xlu0.b32.end [16/16] 0.0, 128
        %v953 = vpop.trf.xlu0
        %v954 = vpop.trf.xlu0
        %v955 = vpop.trf.xlu0
        %v956 = vpop.trf.xlu0
        %v957 = vpop.trf.xlu0
        %v958 = vpop.trf.xlu0
        %v959 = vpop.trf.xlu0
        %v960 = vpop.trf.xlu0
        %v961 = vpop.trf.xlu0
        %v962 = vpop.trf.xlu0
        %v963 = vpop.trf.xlu0
        %v964 = vpop.trf.xlu0
        %v965 = vpop.trf.xlu0
        %v966 = vpop.trf.xlu0
        %v967 = vpop.trf.xlu0
        %v968 = vpop.trf.xlu0
        %969 = vxpose.xlu0.b32.start [1/16] %v190, 128
        %970 = vxpose.xlu0.b32.cont [2/16] 0.0, 128
        %971 = vxpose.xlu0.b32.cont [3/16] 0.0, 128
        %972 = vxpose.xlu0.b32.cont [4/16] 0.0, 128
        %973 = vxpose.xlu0.b32.cont [5/16] 0.0, 128
        %974 = vxpose.xlu0.b32.cont [6/16] 0.0, 128
        %975 = vxpose.xlu0.b32.cont [7/16] 0.0, 128
        %976 = vxpose.xlu0.b32.cont [8/16] 0.0, 128
        %977 = vxpose.xlu0.b32.cont [9/16] 0.0, 128
        %978 = vxpose.xlu0.b32.cont [10/16] 0.0, 128
        %979 = vxpose.xlu0.b32.cont [11/16] 0.0, 128
        %980 = vxpose.xlu0.b32.cont [12/16] 0.0, 128
        %981 = vxpose.xlu0.b32.cont [13/16] 0.0, 128
        %982 = vxpose.xlu0.b32.cont [14/16] 0.0, 128
        %983 = vxpose.xlu0.b32.cont [15/16] 0.0, 128
        %984 = vxpose.xlu0.b32.end [16/16] 0.0, 128
        %v985 = vpop.trf.xlu0
        %v986 = vpop.trf.xlu0
        %v987 = vpop.trf.xlu0
        %v988 = vpop.trf.xlu0
        %v989 = vpop.trf.xlu0
        %v990 = vpop.trf.xlu0
        %v991 = vpop.trf.xlu0
        %v992 = vpop.trf.xlu0
        %v993 = vpop.trf.xlu0
        %v994 = vpop.trf.xlu0
        %v995 = vpop.trf.xlu0
        %v996 = vpop.trf.xlu0
        %v997 = vpop.trf.xlu0
        %v998 = vpop.trf.xlu0
        %v999 = vpop.trf.xlu0
        %v1000 = vpop.trf.xlu0
        %1001 = vxpose.xlu0.b32.start [1/16] %v191, 128
        %1002 = vxpose.xlu0.b32.cont [2/16] 0.0, 128
        %1003 = vxpose.xlu0.b32.cont [3/16] 0.0, 128
        %1004 = vxpose.xlu0.b32.cont [4/16] 0.0, 128
        %1005 = vxpose.xlu0.b32.cont [5/16] 0.0, 128
        %1006 = vxpose.xlu0.b32.cont [6/16] 0.0, 128
        %1007 = vxpose.xlu0.b32.cont [7/16] 0.0, 128
        %1008 = vxpose.xlu0.b32.cont [8/16] 0.0, 128
        %1009 = vxpose.xlu0.b32.cont [9/16] 0.0, 128
        %1010 = vxpose.xlu0.b32.cont [10/16] 0.0, 128
        %1011 = vxpose.xlu0.b32.cont [11/16] 0.0, 128
        %1012 = vxpose.xlu0.b32.cont [12/16] 0.0, 128
        %1013 = vxpose.xlu0.b32.cont [13/16] 0.0, 128
        %1014 = vxpose.xlu0.b32.cont [14/16] 0.0, 128
        %1015 = vxpose.xlu0.b32.cont [15/16] 0.0, 128
        %1016 = vxpose.xlu0.b32.end [16/16] 0.0, 128
        %v1017 = vpop.trf.xlu0
        %v1018 = vpop.trf.xlu0
        %v1019 = vpop.trf.xlu0
        %v1020 = vpop.trf.xlu0
        %v1021 = vpop.trf.xlu0
        %v1022 = vpop.trf.xlu0
        %v1023 = vpop.trf.xlu0
        %v1024 = vpop.trf.xlu0
        %v1025 = vpop.trf.xlu0
        %v1026 = vpop.trf.xlu0
        %v1027 = vpop.trf.xlu0
        %v1028 = vpop.trf.xlu0
        %v1029 = vpop.trf.xlu0
        %v1030 = vpop.trf.xlu0
        %v1031 = vpop.trf.xlu0
        %v1032 = vpop.trf.xlu0
        %1033 = vxpose.xlu0.b32.start [1/16] %v192, 128
        %1034 = vxpose.xlu0.b32.cont [2/16] 0.0, 128
        %1035 = vxpose.xlu0.b32.cont [3/16] 0.0, 128
        %1036 = vxpose.xlu0.b32.cont [4/16] 0.0, 128
        %1037 = vxpose.xlu0.b32.cont [5/16] 0.0, 128
        %1038 = vxpose.xlu0.b32.cont [6/16] 0.0, 128
        %1039 = vxpose.xlu0.b32.cont [7/16] 0.0, 128
        %1040 = vxpose.xlu0.b32.cont [8/16] 0.0, 128
        %1041 = vxpose.xlu0.b32.cont [9/16] 0.0, 128
        %1042 = vxpose.xlu0.b32.cont [10/16] 0.0, 128
        %1043 = vxpose.xlu0.b32.cont [11/16] 0.0, 128
        %1044 = vxpose.xlu0.b32.cont [12/16] 0.0, 128
        %1045 = vxpose.xlu0.b32.cont [13/16] 0.0, 128
        %1046 = vxpose.xlu0.b32.cont [14/16] 0.0, 128
        %1047 = vxpose.xlu0.b32.cont [15/16] 0.0, 128
        %1048 = vxpose.xlu0.b32.end [16/16] 0.0, 128
        %v1049 = vpop.trf.xlu0
        %v1050 = vpop.trf.xlu0
        %v1051 = vpop.trf.xlu0
        %v1052 = vpop.trf.xlu0
        %v1053 = vpop.trf.xlu0
        %v1054 = vpop.trf.xlu0
        %v1055 = vpop.trf.xlu0
        %v1056 = vpop.trf.xlu0
        %v1057 = vpop.trf.xlu0
        %v1058 = vpop.trf.xlu0
        %v1059 = vpop.trf.xlu0
        %v1060 = vpop.trf.xlu0
        %v1061 = vpop.trf.xlu0
        %v1062 = vpop.trf.xlu0
        %v1063 = vpop.trf.xlu0
        %v1064 = vpop.trf.xlu0
        %1065 = vxpose.xlu0.b32.start [1/16] %v193, 128
        %1066 = vxpose.xlu0.b32.cont [2/16] 0.0, 128
        %1067 = vxpose.xlu0.b32.cont [3/16] 0.0, 128
        %1068 = vxpose.xlu0.b32.cont [4/16] 0.0, 128
        %1069 = vxpose.xlu0.b32.cont [5/16] 0.0, 128
        %1070 = vxpose.xlu0.b32.cont [6/16] 0.0, 128
        %1071 = vxpose.xlu0.b32.cont [7/16] 0.0, 128
        %1072 = vxpose.xlu0.b32.cont [8/16] 0.0, 128
        %1073 = vxpose.xlu0.b32.cont [9/16] 0.0, 128
        %1074 = vxpose.xlu0.b32.cont [10/16] 0.0, 128
        %1075 = vxpose.xlu0.b32.cont [11/16] 0.0, 128
        %1076 = vxpose.xlu0.b32.cont [12/16] 0.0, 128
        %1077 = vxpose.xlu0.b32.cont [13/16] 0.0, 128
        %1078 = vxpose.xlu0.b32.cont [14/16] 0.0, 128
        %1079 = vxpose.xlu0.b32.cont [15/16] 0.0, 128
        %1080 = vxpose.xlu0.b32.end [16/16] 0.0, 128
        %v1081 = vpop.trf.xlu0
        %v1082 = vpop.trf.xlu0
        %v1083 = vpop.trf.xlu0
        %v1084 = vpop.trf.xlu0
        %v1085 = vpop.trf.xlu0
        %v1086 = vpop.trf.xlu0
        %v1087 = vpop.trf.xlu0
        %v1088 = vpop.trf.xlu0
        %v1089 = vpop.trf.xlu0
        %v1090 = vpop.trf.xlu0
        %v1091 = vpop.trf.xlu0
        %v1092 = vpop.trf.xlu0
        %v1093 = vpop.trf.xlu0
        %v1094 = vpop.trf.xlu0
        %v1095 = vpop.trf.xlu0
        %v1096 = vpop.trf.xlu0
        %1097 = vxpose.xlu0.b32.start [1/16] %v194, 128
        %1098 = vxpose.xlu0.b32.cont [2/16] 0.0, 128
        %1099 = vxpose.xlu0.b32.cont [3/16] 0.0, 128
        %1100 = vxpose.xlu0.b32.cont [4/16] 0.0, 128
        %1101 = vxpose.xlu0.b32.cont [5/16] 0.0, 128
        %1102 = vxpose.xlu0.b32.cont [6/16] 0.0, 128
        %1103 = vxpose.xlu0.b32.cont [7/16] 0.0, 128
        %1104 = vxpose.xlu0.b32.cont [8/16] 0.0, 128
        %1105 = vxpose.xlu0.b32.cont [9/16] 0.0, 128
        %1106 = vxpose.xlu0.b32.cont [10/16] 0.0, 128
        %1107 = vxpose.xlu0.b32.cont [11/16] 0.0, 128
        %1108 = vxpose.xlu0.b32.cont [12/16] 0.0, 128
        %1109 = vxpose.xlu0.b32.cont [13/16] 0.0, 128
        %1110 = vxpose.xlu0.b32.cont [14/16] 0.0, 128
        %1111 = vxpose.xlu0.b32.cont [15/16] 0.0, 128
        %1112 = vxpose.xlu0.b32.end [16/16] 0.0, 128
        %v1113 = vpop.trf.xlu0
        %v1114 = vpop.trf.xlu0
        %v1115 = vpop.trf.xlu0
        %v1116 = vpop.trf.xlu0
        %v1117 = vpop.trf.xlu0
        %v1118 = vpop.trf.xlu0
        %v1119 = vpop.trf.xlu0
        %v1120 = vpop.trf.xlu0
        %v1121 = vpop.trf.xlu0
        %v1122 = vpop.trf.xlu0
        %v1123 = vpop.trf.xlu0
        %v1124 = vpop.trf.xlu0
        %v1125 = vpop.trf.xlu0
        %v1126 = vpop.trf.xlu0
        %v1127 = vpop.trf.xlu0
        %v1128 = vpop.trf.xlu0
        %1129 = vxpose.xlu0.b32.start [1/16] %v195, 128
        %1130 = vxpose.xlu0.b32.cont [2/16] 0.0, 128
        %1131 = vxpose.xlu0.b32.cont [3/16] 0.0, 128
        %1132 = vxpose.xlu0.b32.cont [4/16] 0.0, 128
        %1133 = vxpose.xlu0.b32.cont [5/16] 0.0, 128
        %1134 = vxpose.xlu0.b32.cont [6/16] 0.0, 128
        %1135 = vxpose.xlu0.b32.cont [7/16] 0.0, 128
        %1136 = vxpose.xlu0.b32.cont [8/16] 0.0, 128
        %1137 = vxpose.xlu0.b32.cont [9/16] 0.0, 128
        %1138 = vxpose.xlu0.b32.cont [10/16] 0.0, 128
        %1139 = vxpose.xlu0.b32.cont [11/16] 0.0, 128
        %1140 = vxpose.xlu0.b32.cont [12/16] 0.0, 128
        %1141 = vxpose.xlu0.b32.cont [13/16] 0.0, 128
        %1142 = vxpose.xlu0.b32.cont [14/16] 0.0, 128
        %1143 = vxpose.xlu0.b32.cont [15/16] 0.0, 128
        %1144 = vxpose.xlu0.b32.end [16/16] 0.0, 128
        %v1145 = vpop.trf.xlu0
        %v1146 = vpop.trf.xlu0
        %v1147 = vpop.trf.xlu0
        %v1148 = vpop.trf.xlu0
        %v1149 = vpop.trf.xlu0
        %v1150 = vpop.trf.xlu0
        %v1151 = vpop.trf.xlu0
        %v1152 = vpop.trf.xlu0
        %v1153 = vpop.trf.xlu0
        %v1154 = vpop.trf.xlu0
        %v1155 = vpop.trf.xlu0
        %v1156 = vpop.trf.xlu0
        %v1157 = vpop.trf.xlu0
        %v1158 = vpop.trf.xlu0
        %v1159 = vpop.trf.xlu0
        %v1160 = vpop.trf.xlu0
        %1161 = vxpose.xlu0.b32.start [1/16] %v196, 128
        %1162 = vxpose.xlu0.b32.cont [2/16] 0.0, 128
        %1163 = vxpose.xlu0.b32.cont [3/16] 0.0, 128
        %1164 = vxpose.xlu0.b32.cont [4/16] 0.0, 128
        %1165 = vxpose.xlu0.b32.cont [5/16] 0.0, 128
        %1166 = vxpose.xlu0.b32.cont [6/16] 0.0, 128
        %1167 = vxpose.xlu0.b32.cont [7/16] 0.0, 128
        %1168 = vxpose.xlu0.b32.cont [8/16] 0.0, 128
        %1169 = vxpose.xlu0.b32.cont [9/16] 0.0, 128
        %1170 = vxpose.xlu0.b32.cont [10/16] 0.0, 128
        %1171 = vxpose.xlu0.b32.cont [11/16] 0.0, 128
        %1172 = vxpose.xlu0.b32.cont [12/16] 0.0, 128
        %1173 = vxpose.xlu0.b32.cont [13/16] 0.0, 128
        %1174 = vxpose.xlu0.b32.cont [14/16] 0.0, 128
        %1175 = vxpose.xlu0.b32.cont [15/16] 0.0, 128
        %1176 = vxpose.xlu0.b32.end [16/16] 0.0, 128
        %v1177 = vpop.trf.xlu0
        %v1178 = vpop.trf.xlu0
        %v1179 = vpop.trf.xlu0
        %v1180 = vpop.trf.xlu0
        %v1181 = vpop.trf.xlu0
        %v1182 = vpop.trf.xlu0
        %v1183 = vpop.trf.xlu0
        %v1184 = vpop.trf.xlu0
        %v1185 = vpop.trf.xlu0
        %v1186 = vpop.trf.xlu0
        %v1187 = vpop.trf.xlu0
        %v1188 = vpop.trf.xlu0
        %v1189 = vpop.trf.xlu0
        %v1190 = vpop.trf.xlu0
        %v1191 = vpop.trf.xlu0
        %v1192 = vpop.trf.xlu0
        %1193 = vxpose.xlu0.b32.start [1/16] %v197, 128
        %1194 = vxpose.xlu0.b32.cont [2/16] 0.0, 128
        %1195 = vxpose.xlu0.b32.cont [3/16] 0.0, 128
        %1196 = vxpose.xlu0.b32.cont [4/16] 0.0, 128
        %1197 = vxpose.xlu0.b32.cont [5/16] 0.0, 128
        %1198 = vxpose.xlu0.b32.cont [6/16] 0.0, 128
        %1199 = vxpose.xlu0.b32.cont [7/16] 0.0, 128
        %1200 = vxpose.xlu0.b32.cont [8/16] 0.0, 128
        %1201 = vxpose.xlu0.b32.cont [9/16] 0.0, 128
        %1202 = vxpose.xlu0.b32.cont [10/16] 0.0, 128
        %1203 = vxpose.xlu0.b32.cont [11/16] 0.0, 128
        %1204 = vxpose.xlu0.b32.cont [12/16] 0.0, 128
        %1205 = vxpose.xlu0.b32.cont [13/16] 0.0, 128
        %1206 = vxpose.xlu0.b32.cont [14/16] 0.0, 128
        %1207 = vxpose.xlu0.b32.cont [15/16] 0.0, 128
        %1208 = vxpose.xlu0.b32.end [16/16] 0.0, 128
        %v1209 = vpop.trf.xlu0
        %v1210 = vpop.trf.xlu0
        %v1211 = vpop.trf.xlu0
        %v1212 = vpop.trf.xlu0
        %v1213 = vpop.trf.xlu0
        %v1214 = vpop.trf.xlu0
        %v1215 = vpop.trf.xlu0
        %v1216 = vpop.trf.xlu0
        %v1217 = vpop.trf.xlu0
        %v1218 = vpop.trf.xlu0
        %v1219 = vpop.trf.xlu0
        %v1220 = vpop.trf.xlu0
        %v1221 = vpop.trf.xlu0
        %v1222 = vpop.trf.xlu0
        %v1223 = vpop.trf.xlu0
        %v1224 = vpop.trf.xlu0
        %1225 = vxpose.xlu0.b32.start [1/16] %v198, 128
        %1226 = vxpose.xlu0.b32.cont [2/16] 0.0, 128
        %1227 = vxpose.xlu0.b32.cont [3/16] 0.0, 128
        %1228 = vxpose.xlu0.b32.cont [4/16] 0.0, 128
        %1229 = vxpose.xlu0.b32.cont [5/16] 0.0, 128
        %1230 = vxpose.xlu0.b32.cont [6/16] 0.0, 128
        %1231 = vxpose.xlu0.b32.cont [7/16] 0.0, 128
        %1232 = vxpose.xlu0.b32.cont [8/16] 0.0, 128
        %1233 = vxpose.xlu0.b32.cont [9/16] 0.0, 128
        %1234 = vxpose.xlu0.b32.cont [10/16] 0.0, 128
        %1235 = vxpose.xlu0.b32.cont [11/16] 0.0, 128
        %1236 = vxpose.xlu0.b32.cont [12/16] 0.0, 128
        %1237 = vxpose.xlu0.b32.cont [13/16] 0.0, 128
        %1238 = vxpose.xlu0.b32.cont [14/16] 0.0, 128
        %1239 = vxpose.xlu0.b32.cont [15/16] 0.0, 128
        %1240 = vxpose.xlu0.b32.end [16/16] 0.0, 128
        %v1241 = vpop.trf.xlu0
        %v1242 = vpop.trf.xlu0
        %v1243 = vpop.trf.xlu0
        %v1244 = vpop.trf.xlu0
        %v1245 = vpop.trf.xlu0
        %v1246 = vpop.trf.xlu0
        %v1247 = vpop.trf.xlu0
        %v1248 = vpop.trf.xlu0
        %v1249 = vpop.trf.xlu0
        %v1250 = vpop.trf.xlu0
        %v1251 = vpop.trf.xlu0
        %v1252 = vpop.trf.xlu0
        %v1253 = vpop.trf.xlu0
        %v1254 = vpop.trf.xlu0
        %v1255 = vpop.trf.xlu0
        %v1256 = vpop.trf.xlu0
        %1257 = vxpose.xlu0.b32.start [1/16] %v199, 128
        %1258 = vxpose.xlu0.b32.cont [2/16] 0.0, 128
        %1259 = vxpose.xlu0.b32.cont [3/16] 0.0, 128
        %1260 = vxpose.xlu0.b32.cont [4/16] 0.0, 128
        %1261 = vxpose.xlu0.b32.cont [5/16] 0.0, 128
        %1262 = vxpose.xlu0.b32.cont [6/16] 0.0, 128
        %1263 = vxpose.xlu0.b32.cont [7/16] 0.0, 128
        %1264 = vxpose.xlu0.b32.cont [8/16] 0.0, 128
        %1265 = vxpose.xlu0.b32.cont [9/16] 0.0, 128
        %1266 = vxpose.xlu0.b32.cont [10/16] 0.0, 128
        %1267 = vxpose.xlu0.b32.cont [11/16] 0.0, 128
        %1268 = vxpose.xlu0.b32.cont [12/16] 0.0, 128
        %1269 = vxpose.xlu0.b32.cont [13/16] 0.0, 128
        %1270 = vxpose.xlu0.b32.cont [14/16] 0.0, 128
        %1271 = vxpose.xlu0.b32.cont [15/16] 0.0, 128
        %1272 = vxpose.xlu0.b32.end [16/16] 0.0, 128
        %v1273 = vpop.trf.xlu0
        %v1274 = vpop.trf.xlu0
        %v1275 = vpop.trf.xlu0
        %v1276 = vpop.trf.xlu0
        %v1277 = vpop.trf.xlu0
        %v1278 = vpop.trf.xlu0
        %v1279 = vpop.trf.xlu0
        %v1280 = vpop.trf.xlu0
        %v1281 = vpop.trf.xlu0
        %v1282 = vpop.trf.xlu0
        %v1283 = vpop.trf.xlu0
        %v1284 = vpop.trf.xlu0
        %v1285 = vpop.trf.xlu0
        %v1286 = vpop.trf.xlu0
        %v1287 = vpop.trf.xlu0
        %v1288 = vpop.trf.xlu0
        %1289 = vxpose.xlu0.b32.start [1/16] %v200, 128
        %1290 = vxpose.xlu0.b32.cont [2/16] 0.0, 128
        %1291 = vxpose.xlu0.b32.cont [3/16] 0.0, 128
        %1292 = vxpose.xlu0.b32.cont [4/16] 0.0, 128
        %1293 = vxpose.xlu0.b32.cont [5/16] 0.0, 128
        %1294 = vxpose.xlu0.b32.cont [6/16] 0.0, 128
        %1295 = vxpose.xlu0.b32.cont [7/16] 0.0, 128
        %1296 = vxpose.xlu0.b32.cont [8/16] 0.0, 128
        %1297 = vxpose.xlu0.b32.cont [9/16] 0.0, 128
        %1298 = vxpose.xlu0.b32.cont [10/16] 0.0, 128
        %1299 = vxpose.xlu0.b32.cont [11/16] 0.0, 128
        %1300 = vxpose.xlu0.b32.cont [12/16] 0.0, 128
        %1301 = vxpose.xlu0.b32.cont [13/16] 0.0, 128
        %1302 = vxpose.xlu0.b32.cont [14/16] 0.0, 128
        %1303 = vxpose.xlu0.b32.cont [15/16] 0.0, 128
        %1304 = vxpose.xlu0.b32.end [16/16] 0.0, 128
        %v1305 = vpop.trf.xlu0
        %v1306 = vpop.trf.xlu0
        %v1307 = vpop.trf.xlu0
        %v1308 = vpop.trf.xlu0
        %v1309 = vpop.trf.xlu0
        %v1310 = vpop.trf.xlu0
        %v1311 = vpop.trf.xlu0
        %v1312 = vpop.trf.xlu0
        %v1313 = vpop.trf.xlu0
        %v1314 = vpop.trf.xlu0
        %v1315 = vpop.trf.xlu0
        %v1316 = vpop.trf.xlu0
        %v1317 = vpop.trf.xlu0
        %v1318 = vpop.trf.xlu0
        %v1319 = vpop.trf.xlu0
        %v1320 = vpop.trf.xlu0
        %1321 = vxpose.xlu0.b32.start [1/16] %v201, 128
        %1322 = vxpose.xlu0.b32.cont [2/16] 0.0, 128
        %1323 = vxpose.xlu0.b32.cont [3/16] 0.0, 128
        %1324 = vxpose.xlu0.b32.cont [4/16] 0.0, 128
        %1325 = vxpose.xlu0.b32.cont [5/16] 0.0, 128
        %1326 = vxpose.xlu0.b32.cont [6/16] 0.0, 128
        %1327 = vxpose.xlu0.b32.cont [7/16] 0.0, 128
        %1328 = vxpose.xlu0.b32.cont [8/16] 0.0, 128
        %1329 = vxpose.xlu0.b32.cont [9/16] 0.0, 128
        %1330 = vxpose.xlu0.b32.cont [10/16] 0.0, 128
        %1331 = vxpose.xlu0.b32.cont [11/16] 0.0, 128
        %1332 = vxpose.xlu0.b32.cont [12/16] 0.0, 128
        %1333 = vxpose.xlu0.b32.cont [13/16] 0.0, 128
        %1334 = vxpose.xlu0.b32.cont [14/16] 0.0, 128
        %1335 = vxpose.xlu0.b32.cont [15/16] 0.0, 128
        %1336 = vxpose.xlu0.b32.end [16/16] 0.0, 128
        %v1337 = vpop.trf.xlu0
        %v1338 = vpop.trf.xlu0
        %v1339 = vpop.trf.xlu0
        %v1340 = vpop.trf.xlu0
        %v1341 = vpop.trf.xlu0
        %v1342 = vpop.trf.xlu0
        %v1343 = vpop.trf.xlu0
        %v1344 = vpop.trf.xlu0
        %v1345 = vpop.trf.xlu0
        %v1346 = vpop.trf.xlu0
        %v1347 = vpop.trf.xlu0
        %v1348 = vpop.trf.xlu0
        %v1349 = vpop.trf.xlu0
        %v1350 = vpop.trf.xlu0
        %v1351 = vpop.trf.xlu0
        %v1352 = vpop.trf.xlu0
        %1353 = vxpose.xlu0.b32.start [1/16] %v202, 128
        %1354 = vxpose.xlu0.b32.cont [2/16] 0.0, 128
        %1355 = vxpose.xlu0.b32.cont [3/16] 0.0, 128
        %1356 = vxpose.xlu0.b32.cont [4/16] 0.0, 128
        %1357 = vxpose.xlu0.b32.cont [5/16] 0.0, 128
        %1358 = vxpose.xlu0.b32.cont [6/16] 0.0, 128
        %1359 = vxpose.xlu0.b32.cont [7/16] 0.0, 128
        %1360 = vxpose.xlu0.b32.cont [8/16] 0.0, 128
        %1361 = vxpose.xlu0.b32.cont [9/16] 0.0, 128
        %1362 = vxpose.xlu0.b32.cont [10/16] 0.0, 128
        %1363 = vxpose.xlu0.b32.cont [11/16] 0.0, 128
        %1364 = vxpose.xlu0.b32.cont [12/16] 0.0, 128
        %1365 = vxpose.xlu0.b32.cont [13/16] 0.0, 128
        %1366 = vxpose.xlu0.b32.cont [14/16] 0.0, 128
        %1367 = vxpose.xlu0.b32.cont [15/16] 0.0, 128
        %1368 = vxpose.xlu0.b32.end [16/16] 0.0, 128
        %v1369 = vpop.trf.xlu0
        %v1370 = vpop.trf.xlu0
        %v1371 = vpop.trf.xlu0
        %v1372 = vpop.trf.xlu0
        %v1373 = vpop.trf.xlu0
        %v1374 = vpop.trf.xlu0
        %v1375 = vpop.trf.xlu0
        %v1376 = vpop.trf.xlu0
        %v1377 = vpop.trf.xlu0
        %v1378 = vpop.trf.xlu0
        %v1379 = vpop.trf.xlu0
        %v1380 = vpop.trf.xlu0
        %v1381 = vpop.trf.xlu0
        %v1382 = vpop.trf.xlu0
        %v1383 = vpop.trf.xlu0
        %v1384 = vpop.trf.xlu0
        %1385 = vxpose.xlu0.b32.start [1/16] %v203, 128
        %1386 = vxpose.xlu0.b32.cont [2/16] 0.0, 128
        %1387 = vxpose.xlu0.b32.cont [3/16] 0.0, 128
        %1388 = vxpose.xlu0.b32.cont [4/16] 0.0, 128
        %1389 = vxpose.xlu0.b32.cont [5/16] 0.0, 128
        %1390 = vxpose.xlu0.b32.cont [6/16] 0.0, 128
        %1391 = vxpose.xlu0.b32.cont [7/16] 0.0, 128
        %1392 = vxpose.xlu0.b32.cont [8/16] 0.0, 128
        %1393 = vxpose.xlu0.b32.cont [9/16] 0.0, 128
        %1394 = vxpose.xlu0.b32.cont [10/16] 0.0, 128
        %1395 = vxpose.xlu0.b32.cont [11/16] 0.0, 128
        %1396 = vxpose.xlu0.b32.cont [12/16] 0.0, 128
        %1397 = vxpose.xlu0.b32.cont [13/16] 0.0, 128
        %1398 = vxpose.xlu0.b32.cont [14/16] 0.0, 128
        %1399 = vxpose.xlu0.b32.cont [15/16] 0.0, 128
        %1400 = vxpose.xlu0.b32.end [16/16] 0.0, 128
        %v1401 = vpop.trf.xlu0
        %v1402 = vpop.trf.xlu0
        %v1403 = vpop.trf.xlu0
        %v1404 = vpop.trf.xlu0
        %v1405 = vpop.trf.xlu0
        %v1406 = vpop.trf.xlu0
        %v1407 = vpop.trf.xlu0
        %v1408 = vpop.trf.xlu0
        %v1409 = vpop.trf.xlu0
        %v1410 = vpop.trf.xlu0
        %v1411 = vpop.trf.xlu0
        %v1412 = vpop.trf.xlu0
        %v1413 = vpop.trf.xlu0
        %v1414 = vpop.trf.xlu0
        %v1415 = vpop.trf.xlu0
        %v1416 = vpop.trf.xlu0
        %1417 = vxpose.xlu0.b32.start [1/16] %v204, 128
        %1418 = vxpose.xlu0.b32.cont [2/16] 0.0, 128
        %1419 = vxpose.xlu0.b32.cont [3/16] 0.0, 128
        %1420 = vxpose.xlu0.b32.cont [4/16] 0.0, 128
        %1421 = vxpose.xlu0.b32.cont [5/16] 0.0, 128
        %1422 = vxpose.xlu0.b32.cont [6/16] 0.0, 128
        %1423 = vxpose.xlu0.b32.cont [7/16] 0.0, 128
        %1424 = vxpose.xlu0.b32.cont [8/16] 0.0, 128
        %1425 = vxpose.xlu0.b32.cont [9/16] 0.0, 128
        %1426 = vxpose.xlu0.b32.cont [10/16] 0.0, 128
        %1427 = vxpose.xlu0.b32.cont [11/16] 0.0, 128
        %1428 = vxpose.xlu0.b32.cont [12/16] 0.0, 128
        %1429 = vxpose.xlu0.b32.cont [13/16] 0.0, 128
        %1430 = vxpose.xlu0.b32.cont [14/16] 0.0, 128
        %1431 = vxpose.xlu0.b32.cont [15/16] 0.0, 128
        %1432 = vxpose.xlu0.b32.end [16/16] 0.0, 128
        %v1433 = vpop.trf.xlu0
        %v1434 = vpop.trf.xlu0
        %v1435 = vpop.trf.xlu0
        %v1436 = vpop.trf.xlu0
        %v1437 = vpop.trf.xlu0
        %v1438 = vpop.trf.xlu0
        %v1439 = vpop.trf.xlu0
        %v1440 = vpop.trf.xlu0
        %v1441 = vpop.trf.xlu0
        %v1442 = vpop.trf.xlu0
        %v1443 = vpop.trf.xlu0
        %v1444 = vpop.trf.xlu0
        %v1445 = vpop.trf.xlu0
        %v1446 = vpop.trf.xlu0
        %v1447 = vpop.trf.xlu0
        %v1448 = vpop.trf.xlu0
        %1449 = vxpose.xlu0.b32.start [1/16] %v205, 128
        %1450 = vxpose.xlu0.b32.cont [2/16] 0.0, 128
        %1451 = vxpose.xlu0.b32.cont [3/16] 0.0, 128
        %1452 = vxpose.xlu0.b32.cont [4/16] 0.0, 128
        %1453 = vxpose.xlu0.b32.cont [5/16] 0.0, 128
        %1454 = vxpose.xlu0.b32.cont [6/16] 0.0, 128
        %1455 = vxpose.xlu0.b32.cont [7/16] 0.0, 128
        %1456 = vxpose.xlu0.b32.cont [8/16] 0.0, 128
        %1457 = vxpose.xlu0.b32.cont [9/16] 0.0, 128
        %1458 = vxpose.xlu0.b32.cont [10/16] 0.0, 128
        %1459 = vxpose.xlu0.b32.cont [11/16] 0.0, 128
        %1460 = vxpose.xlu0.b32.cont [12/16] 0.0, 128
        %1461 = vxpose.xlu0.b32.cont [13/16] 0.0, 128
        %1462 = vxpose.xlu0.b32.cont [14/16] 0.0, 128
        %1463 = vxpose.xlu0.b32.cont [15/16] 0.0, 128
        %1464 = vxpose.xlu0.b32.end [16/16] 0.0, 128
        %v1465 = vpop.trf.xlu0
        %v1466 = vpop.trf.xlu0
        %v1467 = vpop.trf.xlu0
        %v1468 = vpop.trf.xlu0
        %v1469 = vpop.trf.xlu0
        %v1470 = vpop.trf.xlu0
        %v1471 = vpop.trf.xlu0
        %v1472 = vpop.trf.xlu0
        %v1473 = vpop.trf.xlu0
        %v1474 = vpop.trf.xlu0
        %v1475 = vpop.trf.xlu0
        %v1476 = vpop.trf.xlu0
        %v1477 = vpop.trf.xlu0
        %v1478 = vpop.trf.xlu0
        %v1479 = vpop.trf.xlu0
        %v1480 = vpop.trf.xlu0
        %1481 = vxpose.xlu0.b32.start [1/16] %v206, 128
        %1482 = vxpose.xlu0.b32.cont [2/16] 0.0, 128
        %1483 = vxpose.xlu0.b32.cont [3/16] 0.0, 128
        %1484 = vxpose.xlu0.b32.cont [4/16] 0.0, 128
        %1485 = vxpose.xlu0.b32.cont [5/16] 0.0, 128
        %1486 = vxpose.xlu0.b32.cont [6/16] 0.0, 128
        %1487 = vxpose.xlu0.b32.cont [7/16] 0.0, 128
        %1488 = vxpose.xlu0.b32.cont [8/16] 0.0, 128
        %1489 = vxpose.xlu0.b32.cont [9/16] 0.0, 128
        %1490 = vxpose.xlu0.b32.cont [10/16] 0.0, 128
        %1491 = vxpose.xlu0.b32.cont [11/16] 0.0, 128
        %1492 = vxpose.xlu0.b32.cont [12/16] 0.0, 128
        %1493 = vxpose.xlu0.b32.cont [13/16] 0.0, 128
        %1494 = vxpose.xlu0.b32.cont [14/16] 0.0, 128
        %1495 = vxpose.xlu0.b32.cont [15/16] 0.0, 128
        %1496 = vxpose.xlu0.b32.end [16/16] 0.0, 128
        %v1497 = vpop.trf.xlu0
        %v1498 = vpop.trf.xlu0
        %v1499 = vpop.trf.xlu0
        %v1500 = vpop.trf.xlu0
        %v1501 = vpop.trf.xlu0
        %v1502 = vpop.trf.xlu0
        %v1503 = vpop.trf.xlu0
        %v1504 = vpop.trf.xlu0
        %v1505 = vpop.trf.xlu0
        %v1506 = vpop.trf.xlu0
        %v1507 = vpop.trf.xlu0
        %v1508 = vpop.trf.xlu0
        %v1509 = vpop.trf.xlu0
        %v1510 = vpop.trf.xlu0
        %v1511 = vpop.trf.xlu0
        %v1512 = vpop.trf.xlu0
        %1513 = vxpose.xlu0.b32.start [1/16] %v207, 128
        %1514 = vxpose.xlu0.b32.cont [2/16] 0.0, 128
        %1515 = vxpose.xlu0.b32.cont [3/16] 0.0, 128
        %1516 = vxpose.xlu0.b32.cont [4/16] 0.0, 128
        %1517 = vxpose.xlu0.b32.cont [5/16] 0.0, 128
        %1518 = vxpose.xlu0.b32.cont [6/16] 0.0, 128
        %1519 = vxpose.xlu0.b32.cont [7/16] 0.0, 128
        %1520 = vxpose.xlu0.b32.cont [8/16] 0.0, 128
        %1521 = vxpose.xlu0.b32.cont [9/16] 0.0, 128
        %1522 = vxpose.xlu0.b32.cont [10/16] 0.0, 128
        %1523 = vxpose.xlu0.b32.cont [11/16] 0.0, 128
        %1524 = vxpose.xlu0.b32.cont [12/16] 0.0, 128
        %1525 = vxpose.xlu0.b32.cont [13/16] 0.0, 128
        %1526 = vxpose.xlu0.b32.cont [14/16] 0.0, 128
        %1527 = vxpose.xlu0.b32.cont [15/16] 0.0, 128
        %1528 = vxpose.xlu0.b32.end [16/16] 0.0, 128
        %v1529 = vpop.trf.xlu0
        %v1530 = vpop.trf.xlu0
        %v1531 = vpop.trf.xlu0
        %v1532 = vpop.trf.xlu0
        %v1533 = vpop.trf.xlu0
        %v1534 = vpop.trf.xlu0
        %v1535 = vpop.trf.xlu0
        %v1536 = vpop.trf.xlu0
        %v1537 = vpop.trf.xlu0
        %v1538 = vpop.trf.xlu0
        %v1539 = vpop.trf.xlu0
        %v1540 = vpop.trf.xlu0
        %v1541 = vpop.trf.xlu0
        %v1542 = vpop.trf.xlu0
        %v1543 = vpop.trf.xlu0
        %v1544 = vpop.trf.xlu0
        %1545 = vxpose.xlu0.b32.start [1/16] %v208, 128
        %1546 = vxpose.xlu0.b32.cont [2/16] 0.0, 128
        %1547 = vxpose.xlu0.b32.cont [3/16] 0.0, 128
        %1548 = vxpose.xlu0.b32.cont [4/16] 0.0, 128
        %1549 = vxpose.xlu0.b32.cont [5/16] 0.0, 128
        %1550 = vxpose.xlu0.b32.cont [6/16] 0.0, 128
        %1551 = vxpose.xlu0.b32.cont [7/16] 0.0, 128
        %1552 = vxpose.xlu0.b32.cont [8/16] 0.0, 128
        %1553 = vxpose.xlu0.b32.cont [9/16] 0.0, 128
        %1554 = vxpose.xlu0.b32.cont [10/16] 0.0, 128
        %1555 = vxpose.xlu0.b32.cont [11/16] 0.0, 128
        %1556 = vxpose.xlu0.b32.cont [12/16] 0.0, 128
        %1557 = vxpose.xlu0.b32.cont [13/16] 0.0, 128
        %1558 = vxpose.xlu0.b32.cont [14/16] 0.0, 128
        %1559 = vxpose.xlu0.b32.cont [15/16] 0.0, 128
        %1560 = vxpose.xlu0.b32.end [16/16] 0.0, 128
        %v1561 = vpop.trf.xlu0
        %v1562 = vpop.trf.xlu0
        %v1563 = vpop.trf.xlu0
        %v1564 = vpop.trf.xlu0
        %v1565 = vpop.trf.xlu0
        %v1566 = vpop.trf.xlu0
        %v1567 = vpop.trf.xlu0
        %v1568 = vpop.trf.xlu0
        %v1569 = vpop.trf.xlu0
        %v1570 = vpop.trf.xlu0
        %v1571 = vpop.trf.xlu0
        %v1572 = vpop.trf.xlu0
        %v1573 = vpop.trf.xlu0
        %v1574 = vpop.trf.xlu0
        %v1575 = vpop.trf.xlu0
        %v1576 = vpop.trf.xlu0
        %1577 = vxpose.xlu0.b32.start [1/16] %v209, 128
        %1578 = vxpose.xlu0.b32.cont [2/16] 0.0, 128
        %1579 = vxpose.xlu0.b32.cont [3/16] 0.0, 128
        %1580 = vxpose.xlu0.b32.cont [4/16] 0.0, 128
        %1581 = vxpose.xlu0.b32.cont [5/16] 0.0, 128
        %1582 = vxpose.xlu0.b32.cont [6/16] 0.0, 128
        %1583 = vxpose.xlu0.b32.cont [7/16] 0.0, 128
        %1584 = vxpose.xlu0.b32.cont [8/16] 0.0, 128
        %1585 = vxpose.xlu0.b32.cont [9/16] 0.0, 128
        %1586 = vxpose.xlu0.b32.cont [10/16] 0.0, 128
        %1587 = vxpose.xlu0.b32.cont [11/16] 0.0, 128
        %1588 = vxpose.xlu0.b32.cont [12/16] 0.0, 128
        %1589 = vxpose.xlu0.b32.cont [13/16] 0.0, 128
        %1590 = vxpose.xlu0.b32.cont [14/16] 0.0, 128
        %1591 = vxpose.xlu0.b32.cont [15/16] 0.0, 128
        %1592 = vxpose.xlu0.b32.end [16/16] 0.0, 128
        %v1593 = vpop.trf.xlu0
        %v1594 = vpop.trf.xlu0
        %v1595 = vpop.trf.xlu0
        %v1596 = vpop.trf.xlu0
        %v1597 = vpop.trf.xlu0
        %v1598 = vpop.trf.xlu0
        %v1599 = vpop.trf.xlu0
        %v1600 = vpop.trf.xlu0
        %v1601 = vpop.trf.xlu0
        %v1602 = vpop.trf.xlu0
        %v1603 = vpop.trf.xlu0
        %v1604 = vpop.trf.xlu0
        %v1605 = vpop.trf.xlu0
        %v1606 = vpop.trf.xlu0
        %v1607 = vpop.trf.xlu0
        %v1608 = vpop.trf.xlu0
        %1609 = vxpose.xlu0.b32.start [1/16] %v210, 128
        %1610 = vxpose.xlu0.b32.cont [2/16] 0.0, 128
        %1611 = vxpose.xlu0.b32.cont [3/16] 0.0, 128
        %1612 = vxpose.xlu0.b32.cont [4/16] 0.0, 128
        %1613 = vxpose.xlu0.b32.cont [5/16] 0.0, 128
        %1614 = vxpose.xlu0.b32.cont [6/16] 0.0, 128
        %1615 = vxpose.xlu0.b32.cont [7/16] 0.0, 128
        %1616 = vxpose.xlu0.b32.cont [8/16] 0.0, 128
        %1617 = vxpose.xlu0.b32.cont [9/16] 0.0, 128
        %1618 = vxpose.xlu0.b32.cont [10/16] 0.0, 128
        %1619 = vxpose.xlu0.b32.cont [11/16] 0.0, 128
        %1620 = vxpose.xlu0.b32.cont [12/16] 0.0, 128
        %1621 = vxpose.xlu0.b32.cont [13/16] 0.0, 128
        %1622 = vxpose.xlu0.b32.cont [14/16] 0.0, 128
        %1623 = vxpose.xlu0.b32.cont [15/16] 0.0, 128
        %1624 = vxpose.xlu0.b32.end [16/16] 0.0, 128
        %v1625 = vpop.trf.xlu0
        %v1626 = vpop.trf.xlu0
        %v1627 = vpop.trf.xlu0
        %v1628 = vpop.trf.xlu0
        %v1629 = vpop.trf.xlu0
        %v1630 = vpop.trf.xlu0
        %v1631 = vpop.trf.xlu0
        %v1632 = vpop.trf.xlu0
        %v1633 = vpop.trf.xlu0
        %v1634 = vpop.trf.xlu0
        %v1635 = vpop.trf.xlu0
        %v1636 = vpop.trf.xlu0
        %v1637 = vpop.trf.xlu0
        %v1638 = vpop.trf.xlu0
        %v1639 = vpop.trf.xlu0
        %v1640 = vpop.trf.xlu0
        %1641 = vxpose.xlu0.b32.start [1/16] %v211, 128
        %1642 = vxpose.xlu0.b32.cont [2/16] 0.0, 128
        %1643 = vxpose.xlu0.b32.cont [3/16] 0.0, 128
        %1644 = vxpose.xlu0.b32.cont [4/16] 0.0, 128
        %1645 = vxpose.xlu0.b32.cont [5/16] 0.0, 128
        %1646 = vxpose.xlu0.b32.cont [6/16] 0.0, 128
        %1647 = vxpose.xlu0.b32.cont [7/16] 0.0, 128
        %1648 = vxpose.xlu0.b32.cont [8/16] 0.0, 128
        %1649 = vxpose.xlu0.b32.cont [9/16] 0.0, 128
        %1650 = vxpose.xlu0.b32.cont [10/16] 0.0, 128
        %1651 = vxpose.xlu0.b32.cont [11/16] 0.0, 128
        %1652 = vxpose.xlu0.b32.cont [12/16] 0.0, 128
        %1653 = vxpose.xlu0.b32.cont [13/16] 0.0, 128
        %1654 = vxpose.xlu0.b32.cont [14/16] 0.0, 128
        %1655 = vxpose.xlu0.b32.cont [15/16] 0.0, 128
        %1656 = vxpose.xlu0.b32.end [16/16] 0.0, 128
        %v1657 = vpop.trf.xlu0
        %v1658 = vpop.trf.xlu0
        %v1659 = vpop.trf.xlu0
        %v1660 = vpop.trf.xlu0
        %v1661 = vpop.trf.xlu0
        %v1662 = vpop.trf.xlu0
        %v1663 = vpop.trf.xlu0
        %v1664 = vpop.trf.xlu0
        %v1665 = vpop.trf.xlu0
        %v1666 = vpop.trf.xlu0
        %v1667 = vpop.trf.xlu0
        %v1668 = vpop.trf.xlu0
        %v1669 = vpop.trf.xlu0
        %v1670 = vpop.trf.xlu0
        %v1671 = vpop.trf.xlu0
        %v1672 = vpop.trf.xlu0
        %1673 = vxpose.xlu0.b32.start [1/16] %v212, 128
        %1674 = vxpose.xlu0.b32.cont [2/16] 0.0, 128
        %1675 = vxpose.xlu0.b32.cont [3/16] 0.0, 128
        %1676 = vxpose.xlu0.b32.cont [4/16] 0.0, 128
        %1677 = vxpose.xlu0.b32.cont [5/16] 0.0, 128
        %1678 = vxpose.xlu0.b32.cont [6/16] 0.0, 128
        %1679 = vxpose.xlu0.b32.cont [7/16] 0.0, 128
        %1680 = vxpose.xlu0.b32.cont [8/16] 0.0, 128
        %1681 = vxpose.xlu0.b32.cont [9/16] 0.0, 128
        %1682 = vxpose.xlu0.b32.cont [10/16] 0.0, 128
        %1683 = vxpose.xlu0.b32.cont [11/16] 0.0, 128
        %1684 = vxpose.xlu0.b32.cont [12/16] 0.0, 128
        %1685 = vxpose.xlu0.b32.cont [13/16] 0.0, 128
        %1686 = vxpose.xlu0.b32.cont [14/16] 0.0, 128
        %1687 = vxpose.xlu0.b32.cont [15/16] 0.0, 128
        %1688 = vxpose.xlu0.b32.end [16/16] 0.0, 128
        %v1689 = vpop.trf.xlu0
        %v1690 = vpop.trf.xlu0
        %v1691 = vpop.trf.xlu0
        %v1692 = vpop.trf.xlu0
        %v1693 = vpop.trf.xlu0
        %v1694 = vpop.trf.xlu0
        %v1695 = vpop.trf.xlu0
        %v1696 = vpop.trf.xlu0
        %v1697 = vpop.trf.xlu0
        %v1698 = vpop.trf.xlu0
        %v1699 = vpop.trf.xlu0
        %v1700 = vpop.trf.xlu0
        %v1701 = vpop.trf.xlu0
        %v1702 = vpop.trf.xlu0
        %v1703 = vpop.trf.xlu0
        %v1704 = vpop.trf.xlu0
        %1705 = vxpose.xlu0.b32.start [1/16] %v213, 128
        %1706 = vxpose.xlu0.b32.cont [2/16] 0.0, 128
        %1707 = vxpose.xlu0.b32.cont [3/16] 0.0, 128
        %1708 = vxpose.xlu0.b32.cont [4/16] 0.0, 128
        %1709 = vxpose.xlu0.b32.cont [5/16] 0.0, 128
        %1710 = vxpose.xlu0.b32.cont [6/16] 0.0, 128
        %1711 = vxpose.xlu0.b32.cont [7/16] 0.0, 128
        %1712 = vxpose.xlu0.b32.cont [8/16] 0.0, 128
        %1713 = vxpose.xlu0.b32.cont [9/16] 0.0, 128
        %1714 = vxpose.xlu0.b32.cont [10/16] 0.0, 128
        %1715 = vxpose.xlu0.b32.cont [11/16] 0.0, 128
        %1716 = vxpose.xlu0.b32.cont [12/16] 0.0, 128
        %1717 = vxpose.xlu0.b32.cont [13/16] 0.0, 128
        %1718 = vxpose.xlu0.b32.cont [14/16] 0.0, 128
        %1719 = vxpose.xlu0.b32.cont [15/16] 0.0, 128
        %1720 = vxpose.xlu0.b32.end [16/16] 0.0, 128
        %v1721 = vpop.trf.xlu0
        %v1722 = vpop.trf.xlu0
        %v1723 = vpop.trf.xlu0
        %v1724 = vpop.trf.xlu0
        %v1725 = vpop.trf.xlu0
        %v1726 = vpop.trf.xlu0
        %v1727 = vpop.trf.xlu0
        %v1728 = vpop.trf.xlu0
        %v1729 = vpop.trf.xlu0
        %v1730 = vpop.trf.xlu0
        %v1731 = vpop.trf.xlu0
        %v1732 = vpop.trf.xlu0
        %v1733 = vpop.trf.xlu0
        %v1734 = vpop.trf.xlu0
        %v1735 = vpop.trf.xlu0
        %v1736 = vpop.trf.xlu0
        %1737 = vxpose.xlu0.b32.start [1/16] %v214, 128
        %1738 = vxpose.xlu0.b32.cont [2/16] 0.0, 128
        %1739 = vxpose.xlu0.b32.cont [3/16] 0.0, 128
        %1740 = vxpose.xlu0.b32.cont [4/16] 0.0, 128
        %1741 = vxpose.xlu0.b32.cont [5/16] 0.0, 128
        %1742 = vxpose.xlu0.b32.cont [6/16] 0.0, 128
        %1743 = vxpose.xlu0.b32.cont [7/16] 0.0, 128
        %1744 = vxpose.xlu0.b32.cont [8/16] 0.0, 128
        %1745 = vxpose.xlu0.b32.cont [9/16] 0.0, 128
        %1746 = vxpose.xlu0.b32.cont [10/16] 0.0, 128
        %1747 = vxpose.xlu0.b32.cont [11/16] 0.0, 128
        %1748 = vxpose.xlu0.b32.cont [12/16] 0.0, 128
        %1749 = vxpose.xlu0.b32.cont [13/16] 0.0, 128
        %1750 = vxpose.xlu0.b32.cont [14/16] 0.0, 128
        %1751 = vxpose.xlu0.b32.cont [15/16] 0.0, 128
        %1752 = vxpose.xlu0.b32.end [16/16] 0.0, 128
        %v1753 = vpop.trf.xlu0
        %v1754 = vpop.trf.xlu0
        %v1755 = vpop.trf.xlu0
        %v1756 = vpop.trf.xlu0
        %v1757 = vpop.trf.xlu0
        %v1758 = vpop.trf.xlu0
        %v1759 = vpop.trf.xlu0
        %v1760 = vpop.trf.xlu0
        %v1761 = vpop.trf.xlu0
        %v1762 = vpop.trf.xlu0
        %v1763 = vpop.trf.xlu0
        %v1764 = vpop.trf.xlu0
        %v1765 = vpop.trf.xlu0
        %v1766 = vpop.trf.xlu0
        %v1767 = vpop.trf.xlu0
        %v1768 = vpop.trf.xlu0
        %1769 = vxpose.xlu0.b32.start [1/16] %v215, 128
        %1770 = vxpose.xlu0.b32.cont [2/16] 0.0, 128
        %1771 = vxpose.xlu0.b32.cont [3/16] 0.0, 128
        %1772 = vxpose.xlu0.b32.cont [4/16] 0.0, 128
        %1773 = vxpose.xlu0.b32.cont [5/16] 0.0, 128
        %1774 = vxpose.xlu0.b32.cont [6/16] 0.0, 128
        %1775 = vxpose.xlu0.b32.cont [7/16] 0.0, 128
        %1776 = vxpose.xlu0.b32.cont [8/16] 0.0, 128
        %1777 = vxpose.xlu0.b32.cont [9/16] 0.0, 128
        %1778 = vxpose.xlu0.b32.cont [10/16] 0.0, 128
        %1779 = vxpose.xlu0.b32.cont [11/16] 0.0, 128
        %1780 = vxpose.xlu0.b32.cont [12/16] 0.0, 128
        %1781 = vxpose.xlu0.b32.cont [13/16] 0.0, 128
        %1782 = vxpose.xlu0.b32.cont [14/16] 0.0, 128
        %1783 = vxpose.xlu0.b32.cont [15/16] 0.0, 128
        %1784 = vxpose.xlu0.b32.end [16/16] 0.0, 128
        %v1785 = vpop.trf.xlu0
        %v1786 = vpop.trf.xlu0
        %v1787 = vpop.trf.xlu0
        %v1788 = vpop.trf.xlu0
        %v1789 = vpop.trf.xlu0
        %v1790 = vpop.trf.xlu0
        %v1791 = vpop.trf.xlu0
        %v1792 = vpop.trf.xlu0
        %v1793 = vpop.trf.xlu0
        %v1794 = vpop.trf.xlu0
        %v1795 = vpop.trf.xlu0
        %v1796 = vpop.trf.xlu0
        %v1797 = vpop.trf.xlu0
        %v1798 = vpop.trf.xlu0
        %v1799 = vpop.trf.xlu0
        %v1800 = vpop.trf.xlu0
        %1801 = vxpose.xlu0.b32.start [1/16] %v216, 128
        %1802 = vxpose.xlu0.b32.cont [2/16] 0.0, 128
        %1803 = vxpose.xlu0.b32.cont [3/16] 0.0, 128
        %1804 = vxpose.xlu0.b32.cont [4/16] 0.0, 128
        %1805 = vxpose.xlu0.b32.cont [5/16] 0.0, 128
        %1806 = vxpose.xlu0.b32.cont [6/16] 0.0, 128
        %1807 = vxpose.xlu0.b32.cont [7/16] 0.0, 128
        %1808 = vxpose.xlu0.b32.cont [8/16] 0.0, 128
        %1809 = vxpose.xlu0.b32.cont [9/16] 0.0, 128
        %1810 = vxpose.xlu0.b32.cont [10/16] 0.0, 128
        %1811 = vxpose.xlu0.b32.cont [11/16] 0.0, 128
        %1812 = vxpose.xlu0.b32.cont [12/16] 0.0, 128
        %1813 = vxpose.xlu0.b32.cont [13/16] 0.0, 128
        %1814 = vxpose.xlu0.b32.cont [14/16] 0.0, 128
        %1815 = vxpose.xlu0.b32.cont [15/16] 0.0, 128
        %1816 = vxpose.xlu0.b32.end [16/16] 0.0, 128
        %v1817 = vpop.trf.xlu0
        %v1818 = vpop.trf.xlu0
        %v1819 = vpop.trf.xlu0
        %v1820 = vpop.trf.xlu0
        %v1821 = vpop.trf.xlu0
        %v1822 = vpop.trf.xlu0
        %v1823 = vpop.trf.xlu0
        %v1824 = vpop.trf.xlu0
        %v1825 = vpop.trf.xlu0
        %v1826 = vpop.trf.xlu0
        %v1827 = vpop.trf.xlu0
        %v1828 = vpop.trf.xlu0
        %v1829 = vpop.trf.xlu0
        %v1830 = vpop.trf.xlu0
        %v1831 = vpop.trf.xlu0
        %v1832 = vpop.trf.xlu0
        %1833 = vxpose.xlu0.b32.start [1/16] %v217, 128
        %1834 = vxpose.xlu0.b32.cont [2/16] 0.0, 128
        %1835 = vxpose.xlu0.b32.cont [3/16] 0.0, 128
        %1836 = vxpose.xlu0.b32.cont [4/16] 0.0, 128
        %1837 = vxpose.xlu0.b32.cont [5/16] 0.0, 128
        %1838 = vxpose.xlu0.b32.cont [6/16] 0.0, 128
        %1839 = vxpose.xlu0.b32.cont [7/16] 0.0, 128
        %1840 = vxpose.xlu0.b32.cont [8/16] 0.0, 128
        %1841 = vxpose.xlu0.b32.cont [9/16] 0.0, 128
        %1842 = vxpose.xlu0.b32.cont [10/16] 0.0, 128
        %1843 = vxpose.xlu0.b32.cont [11/16] 0.0, 128
        %1844 = vxpose.xlu0.b32.cont [12/16] 0.0, 128
        %1845 = vxpose.xlu0.b32.cont [13/16] 0.0, 128
        %1846 = vxpose.xlu0.b32.cont [14/16] 0.0, 128
        %1847 = vxpose.xlu0.b32.cont [15/16] 0.0, 128
        %1848 = vxpose.xlu0.b32.end [16/16] 0.0, 128
        %v1849 = vpop.trf.xlu0
        %v1850 = vpop.trf.xlu0
        %v1851 = vpop.trf.xlu0
        %v1852 = vpop.trf.xlu0
        %v1853 = vpop.trf.xlu0
        %v1854 = vpop.trf.xlu0
        %v1855 = vpop.trf.xlu0
        %v1856 = vpop.trf.xlu0
        %v1857 = vpop.trf.xlu0
        %v1858 = vpop.trf.xlu0
        %v1859 = vpop.trf.xlu0
        %v1860 = vpop.trf.xlu0
        %v1861 = vpop.trf.xlu0
        %v1862 = vpop.trf.xlu0
        %v1863 = vpop.trf.xlu0
        %v1864 = vpop.trf.xlu0
        %1865 = vxpose.xlu0.b32.start [1/16] %v218, 128
        %1866 = vxpose.xlu0.b32.cont [2/16] 0.0, 128
        %1867 = vxpose.xlu0.b32.cont [3/16] 0.0, 128
        %1868 = vxpose.xlu0.b32.cont [4/16] 0.0, 128
        %1869 = vxpose.xlu0.b32.cont [5/16] 0.0, 128
        %1870 = vxpose.xlu0.b32.cont [6/16] 0.0, 128
        %1871 = vxpose.xlu0.b32.cont [7/16] 0.0, 128
        %1872 = vxpose.xlu0.b32.cont [8/16] 0.0, 128
        %1873 = vxpose.xlu0.b32.cont [9/16] 0.0, 128
        %1874 = vxpose.xlu0.b32.cont [10/16] 0.0, 128
        %1875 = vxpose.xlu0.b32.cont [11/16] 0.0, 128
        %1876 = vxpose.xlu0.b32.cont [12/16] 0.0, 128
        %1877 = vxpose.xlu0.b32.cont [13/16] 0.0, 128
        %1878 = vxpose.xlu0.b32.cont [14/16] 0.0, 128
        %1879 = vxpose.xlu0.b32.cont [15/16] 0.0, 128
        %1880 = vxpose.xlu0.b32.end [16/16] 0.0, 128
        %v1881 = vpop.trf.xlu0
        %v1882 = vpop.trf.xlu0
        %v1883 = vpop.trf.xlu0
        %v1884 = vpop.trf.xlu0
        %v1885 = vpop.trf.xlu0
        %v1886 = vpop.trf.xlu0
        %v1887 = vpop.trf.xlu0
        %v1888 = vpop.trf.xlu0
        %v1889 = vpop.trf.xlu0
        %v1890 = vpop.trf.xlu0
        %v1891 = vpop.trf.xlu0
        %v1892 = vpop.trf.xlu0
        %v1893 = vpop.trf.xlu0
        %v1894 = vpop.trf.xlu0
        %v1895 = vpop.trf.xlu0
        %v1896 = vpop.trf.xlu0
        %1897 = vxpose.xlu0.b32.start [1/16] %v219, 128
        %1898 = vxpose.xlu0.b32.cont [2/16] 0.0, 128
        %1899 = vxpose.xlu0.b32.cont [3/16] 0.0, 128
        %1900 = vxpose.xlu0.b32.cont [4/16] 0.0, 128
        %1901 = vxpose.xlu0.b32.cont [5/16] 0.0, 128
        %1902 = vxpose.xlu0.b32.cont [6/16] 0.0, 128
        %1903 = vxpose.xlu0.b32.cont [7/16] 0.0, 128
        %1904 = vxpose.xlu0.b32.cont [8/16] 0.0, 128
        %1905 = vxpose.xlu0.b32.cont [9/16] 0.0, 128
        %1906 = vxpose.xlu0.b32.cont [10/16] 0.0, 128
        %1907 = vxpose.xlu0.b32.cont [11/16] 0.0, 128
        %1908 = vxpose.xlu0.b32.cont [12/16] 0.0, 128
        %1909 = vxpose.xlu0.b32.cont [13/16] 0.0, 128
        %1910 = vxpose.xlu0.b32.cont [14/16] 0.0, 128
        %1911 = vxpose.xlu0.b32.cont [15/16] 0.0, 128
        %1912 = vxpose.xlu0.b32.end [16/16] 0.0, 128
        %v1913 = vpop.trf.xlu0
        %v1914 = vpop.trf.xlu0
        %v1915 = vpop.trf.xlu0
        %v1916 = vpop.trf.xlu0
        %v1917 = vpop.trf.xlu0
        %v1918 = vpop.trf.xlu0
        %v1919 = vpop.trf.xlu0
        %v1920 = vpop.trf.xlu0
        %v1921 = vpop.trf.xlu0
        %v1922 = vpop.trf.xlu0
        %v1923 = vpop.trf.xlu0
        %v1924 = vpop.trf.xlu0
        %v1925 = vpop.trf.xlu0
        %v1926 = vpop.trf.xlu0
        %v1927 = vpop.trf.xlu0
        %v1928 = vpop.trf.xlu0
        %1929 = vxpose.xlu0.b32.start [1/16] %v220, 128
        %1930 = vxpose.xlu0.b32.cont [2/16] 0.0, 128
        %1931 = vxpose.xlu0.b32.cont [3/16] 0.0, 128
        %1932 = vxpose.xlu0.b32.cont [4/16] 0.0, 128
        %1933 = vxpose.xlu0.b32.cont [5/16] 0.0, 128
        %1934 = vxpose.xlu0.b32.cont [6/16] 0.0, 128
        %1935 = vxpose.xlu0.b32.cont [7/16] 0.0, 128
        %1936 = vxpose.xlu0.b32.cont [8/16] 0.0, 128
        %1937 = vxpose.xlu0.b32.cont [9/16] 0.0, 128
        %1938 = vxpose.xlu0.b32.cont [10/16] 0.0, 128
        %1939 = vxpose.xlu0.b32.cont [11/16] 0.0, 128
        %1940 = vxpose.xlu0.b32.cont [12/16] 0.0, 128
        %1941 = vxpose.xlu0.b32.cont [13/16] 0.0, 128
        %1942 = vxpose.xlu0.b32.cont [14/16] 0.0, 128
        %1943 = vxpose.xlu0.b32.cont [15/16] 0.0, 128
        %1944 = vxpose.xlu0.b32.end [16/16] 0.0, 128
        %v1945 = vpop.trf.xlu0
        %v1946 = vpop.trf.xlu0
        %v1947 = vpop.trf.xlu0
        %v1948 = vpop.trf.xlu0
        %v1949 = vpop.trf.xlu0
        %v1950 = vpop.trf.xlu0
        %v1951 = vpop.trf.xlu0
        %v1952 = vpop.trf.xlu0
        %v1953 = vpop.trf.xlu0
        %v1954 = vpop.trf.xlu0
        %v1955 = vpop.trf.xlu0
        %v1956 = vpop.trf.xlu0
        %v1957 = vpop.trf.xlu0
        %v1958 = vpop.trf.xlu0
        %v1959 = vpop.trf.xlu0
        %v1960 = vpop.trf.xlu0
        %1961 = vxpose.xlu0.b32.start [1/16] %v221, 128
        %1962 = vxpose.xlu0.b32.cont [2/16] 0.0, 128
        %1963 = vxpose.xlu0.b32.cont [3/16] 0.0, 128
        %1964 = vxpose.xlu0.b32.cont [4/16] 0.0, 128
        %1965 = vxpose.xlu0.b32.cont [5/16] 0.0, 128
        %1966 = vxpose.xlu0.b32.cont [6/16] 0.0, 128
        %1967 = vxpose.xlu0.b32.cont [7/16] 0.0, 128
        %1968 = vxpose.xlu0.b32.cont [8/16] 0.0, 128
        %1969 = vxpose.xlu0.b32.cont [9/16] 0.0, 128
        %1970 = vxpose.xlu0.b32.cont [10/16] 0.0, 128
        %1971 = vxpose.xlu0.b32.cont [11/16] 0.0, 128
        %1972 = vxpose.xlu0.b32.cont [12/16] 0.0, 128
        %1973 = vxpose.xlu0.b32.cont [13/16] 0.0, 128
        %1974 = vxpose.xlu0.b32.cont [14/16] 0.0, 128
        %1975 = vxpose.xlu0.b32.cont [15/16] 0.0, 128
        %1976 = vxpose.xlu0.b32.end [16/16] 0.0, 128
        %v1977 = vpop.trf.xlu0
        %v1978 = vpop.trf.xlu0
        %v1979 = vpop.trf.xlu0
        %v1980 = vpop.trf.xlu0
        %v1981 = vpop.trf.xlu0
        %v1982 = vpop.trf.xlu0
        %v1983 = vpop.trf.xlu0
        %v1984 = vpop.trf.xlu0
        %v1985 = vpop.trf.xlu0
        %v1986 = vpop.trf.xlu0
        %v1987 = vpop.trf.xlu0
        %v1988 = vpop.trf.xlu0
        %v1989 = vpop.trf.xlu0
        %v1990 = vpop.trf.xlu0
        %v1991 = vpop.trf.xlu0
        %v1992 = vpop.trf.xlu0
        %1993 = vxpose.xlu0.b32.start [1/16] %v222, 128
        %1994 = vxpose.xlu0.b32.cont [2/16] 0.0, 128
        %1995 = vxpose.xlu0.b32.cont [3/16] 0.0, 128
        %1996 = vxpose.xlu0.b32.cont [4/16] 0.0, 128
        %1997 = vxpose.xlu0.b32.cont [5/16] 0.0, 128
        %1998 = vxpose.xlu0.b32.cont [6/16] 0.0, 128
        %1999 = vxpose.xlu0.b32.cont [7/16] 0.0, 128
        %2000 = vxpose.xlu0.b32.cont [8/16] 0.0, 128
        %2001 = vxpose.xlu0.b32.cont [9/16] 0.0, 128
        %2002 = vxpose.xlu0.b32.cont [10/16] 0.0, 128
        %2003 = vxpose.xlu0.b32.cont [11/16] 0.0, 128
        %2004 = vxpose.xlu0.b32.cont [12/16] 0.0, 128
        %2005 = vxpose.xlu0.b32.cont [13/16] 0.0, 128
        %2006 = vxpose.xlu0.b32.cont [14/16] 0.0, 128
        %2007 = vxpose.xlu0.b32.cont [15/16] 0.0, 128
        %2008 = vxpose.xlu0.b32.end [16/16] 0.0, 128
        %v2009 = vpop.trf.xlu0
        %v2010 = vpop.trf.xlu0
        %v2011 = vpop.trf.xlu0
        %v2012 = vpop.trf.xlu0
        %v2013 = vpop.trf.xlu0
        %v2014 = vpop.trf.xlu0
        %v2015 = vpop.trf.xlu0
        %v2016 = vpop.trf.xlu0
        %v2017 = vpop.trf.xlu0
        %v2018 = vpop.trf.xlu0
        %v2019 = vpop.trf.xlu0
        %v2020 = vpop.trf.xlu0
        %v2021 = vpop.trf.xlu0
        %v2022 = vpop.trf.xlu0
        %v2023 = vpop.trf.xlu0
        %v2024 = vpop.trf.xlu0
        %2025 = vxpose.xlu0.b32.start [1/16] %v223, 128
        %2026 = vxpose.xlu0.b32.cont [2/16] 0.0, 128
        %2027 = vxpose.xlu0.b32.cont [3/16] 0.0, 128
        %2028 = vxpose.xlu0.b32.cont [4/16] 0.0, 128
        %2029 = vxpose.xlu0.b32.cont [5/16] 0.0, 128
        %2030 = vxpose.xlu0.b32.cont [6/16] 0.0, 128
        %2031 = vxpose.xlu0.b32.cont [7/16] 0.0, 128
        %2032 = vxpose.xlu0.b32.cont [8/16] 0.0, 128
        %2033 = vxpose.xlu0.b32.cont [9/16] 0.0, 128
        %2034 = vxpose.xlu0.b32.cont [10/16] 0.0, 128
        %2035 = vxpose.xlu0.b32.cont [11/16] 0.0, 128
        %2036 = vxpose.xlu0.b32.cont [12/16] 0.0, 128
        %2037 = vxpose.xlu0.b32.cont [13/16] 0.0, 128
        %2038 = vxpose.xlu0.b32.cont [14/16] 0.0, 128
        %2039 = vxpose.xlu0.b32.cont [15/16] 0.0, 128
        %2040 = vxpose.xlu0.b32.end [16/16] 0.0, 128
        %v2041 = vpop.trf.xlu0
        %v2042 = vpop.trf.xlu0
        %v2043 = vpop.trf.xlu0
        %v2044 = vpop.trf.xlu0
        %v2045 = vpop.trf.xlu0
        %v2046 = vpop.trf.xlu0
        %v2047 = vpop.trf.xlu0
        %v2048 = vpop.trf.xlu0
        %v2049 = vpop.trf.xlu0
        %v2050 = vpop.trf.xlu0
        %v2051 = vpop.trf.xlu0
        %v2052 = vpop.trf.xlu0
        %v2053 = vpop.trf.xlu0
        %v2054 = vpop.trf.xlu0
        %v2055 = vpop.trf.xlu0
        %v2056 = vpop.trf.xlu0
        %2057 = vxpose.xlu0.b32.start [1/16] %v224, 128
        %2058 = vxpose.xlu0.b32.cont [2/16] 0.0, 128
        %2059 = vxpose.xlu0.b32.cont [3/16] 0.0, 128
        %2060 = vxpose.xlu0.b32.cont [4/16] 0.0, 128
        %2061 = vxpose.xlu0.b32.cont [5/16] 0.0, 128
        %2062 = vxpose.xlu0.b32.cont [6/16] 0.0, 128
        %2063 = vxpose.xlu0.b32.cont [7/16] 0.0, 128
        %2064 = vxpose.xlu0.b32.cont [8/16] 0.0, 128
        %2065 = vxpose.xlu0.b32.cont [9/16] 0.0, 128
        %2066 = vxpose.xlu0.b32.cont [10/16] 0.0, 128
        %2067 = vxpose.xlu0.b32.cont [11/16] 0.0, 128
        %2068 = vxpose.xlu0.b32.cont [12/16] 0.0, 128
        %2069 = vxpose.xlu0.b32.cont [13/16] 0.0, 128
        %2070 = vxpose.xlu0.b32.cont [14/16] 0.0, 128
        %2071 = vxpose.xlu0.b32.cont [15/16] 0.0, 128
        %2072 = vxpose.xlu0.b32.end [16/16] 0.0, 128
        %v2073 = vpop.trf.xlu0
        %v2074 = vpop.trf.xlu0
        %v2075 = vpop.trf.xlu0
        %v2076 = vpop.trf.xlu0
        %v2077 = vpop.trf.xlu0
        %v2078 = vpop.trf.xlu0
        %v2079 = vpop.trf.xlu0
        %v2080 = vpop.trf.xlu0
        %v2081 = vpop.trf.xlu0
        %v2082 = vpop.trf.xlu0
        %v2083 = vpop.trf.xlu0
        %v2084 = vpop.trf.xlu0
        %v2085 = vpop.trf.xlu0
        %v2086 = vpop.trf.xlu0
        %v2087 = vpop.trf.xlu0
        %v2088 = vpop.trf.xlu0
        %2089 = vxpose.xlu0.b32.start [1/16] %v225, 128
        %2090 = vxpose.xlu0.b32.cont [2/16] 0.0, 128
        %2091 = vxpose.xlu0.b32.cont [3/16] 0.0, 128
        %2092 = vxpose.xlu0.b32.cont [4/16] 0.0, 128
        %2093 = vxpose.xlu0.b32.cont [5/16] 0.0, 128
        %2094 = vxpose.xlu0.b32.cont [6/16] 0.0, 128
        %2095 = vxpose.xlu0.b32.cont [7/16] 0.0, 128
        %2096 = vxpose.xlu0.b32.cont [8/16] 0.0, 128
        %2097 = vxpose.xlu0.b32.cont [9/16] 0.0, 128
        %2098 = vxpose.xlu0.b32.cont [10/16] 0.0, 128
        %2099 = vxpose.xlu0.b32.cont [11/16] 0.0, 128
        %2100 = vxpose.xlu0.b32.cont [12/16] 0.0, 128
        %2101 = vxpose.xlu0.b32.cont [13/16] 0.0, 128
        %2102 = vxpose.xlu0.b32.cont [14/16] 0.0, 128
        %2103 = vxpose.xlu0.b32.cont [15/16] 0.0, 128
        %2104 = vxpose.xlu0.b32.end [16/16] 0.0, 128
        %v2105 = vpop.trf.xlu0
        %v2106 = vpop.trf.xlu0
        %v2107 = vpop.trf.xlu0
        %v2108 = vpop.trf.xlu0
        %v2109 = vpop.trf.xlu0
        %v2110 = vpop.trf.xlu0
        %v2111 = vpop.trf.xlu0
        %v2112 = vpop.trf.xlu0
        %v2113 = vpop.trf.xlu0
        %v2114 = vpop.trf.xlu0
        %v2115 = vpop.trf.xlu0
        %v2116 = vpop.trf.xlu0
        %v2117 = vpop.trf.xlu0
        %v2118 = vpop.trf.xlu0
        %v2119 = vpop.trf.xlu0
        %v2120 = vpop.trf.xlu0
        %2121 = vxpose.xlu0.b32.start [1/16] %v226, 128
        %2122 = vxpose.xlu0.b32.cont [2/16] 0.0, 128
        %2123 = vxpose.xlu0.b32.cont [3/16] 0.0, 128
        %2124 = vxpose.xlu0.b32.cont [4/16] 0.0, 128
        %2125 = vxpose.xlu0.b32.cont [5/16] 0.0, 128
        %2126 = vxpose.xlu0.b32.cont [6/16] 0.0, 128
        %2127 = vxpose.xlu0.b32.cont [7/16] 0.0, 128
        %2128 = vxpose.xlu0.b32.cont [8/16] 0.0, 128
        %2129 = vxpose.xlu0.b32.cont [9/16] 0.0, 128
        %2130 = vxpose.xlu0.b32.cont [10/16] 0.0, 128
        %2131 = vxpose.xlu0.b32.cont [11/16] 0.0, 128
        %2132 = vxpose.xlu0.b32.cont [12/16] 0.0, 128
        %2133 = vxpose.xlu0.b32.cont [13/16] 0.0, 128
        %2134 = vxpose.xlu0.b32.cont [14/16] 0.0, 128
        %2135 = vxpose.xlu0.b32.cont [15/16] 0.0, 128
        %2136 = vxpose.xlu0.b32.end [16/16] 0.0, 128
        %v2137 = vpop.trf.xlu0
        %v2138 = vpop.trf.xlu0
        %v2139 = vpop.trf.xlu0
        %v2140 = vpop.trf.xlu0
        %v2141 = vpop.trf.xlu0
        %v2142 = vpop.trf.xlu0
        %v2143 = vpop.trf.xlu0
        %v2144 = vpop.trf.xlu0
        %v2145 = vpop.trf.xlu0
        %v2146 = vpop.trf.xlu0
        %v2147 = vpop.trf.xlu0
        %v2148 = vpop.trf.xlu0
        %v2149 = vpop.trf.xlu0
        %v2150 = vpop.trf.xlu0
        %v2151 = vpop.trf.xlu0
        %v2152 = vpop.trf.xlu0
        %2153 = vxpose.xlu0.b32.start [1/16] %v227, 128
        %2154 = vxpose.xlu0.b32.cont [2/16] 0.0, 128
        %2155 = vxpose.xlu0.b32.cont [3/16] 0.0, 128
        %2156 = vxpose.xlu0.b32.cont [4/16] 0.0, 128
        %2157 = vxpose.xlu0.b32.cont [5/16] 0.0, 128
        %2158 = vxpose.xlu0.b32.cont [6/16] 0.0, 128
        %2159 = vxpose.xlu0.b32.cont [7/16] 0.0, 128
        %2160 = vxpose.xlu0.b32.cont [8/16] 0.0, 128
        %2161 = vxpose.xlu0.b32.cont [9/16] 0.0, 128
        %2162 = vxpose.xlu0.b32.cont [10/16] 0.0, 128
        %2163 = vxpose.xlu0.b32.cont [11/16] 0.0, 128
        %2164 = vxpose.xlu0.b32.cont [12/16] 0.0, 128
        %2165 = vxpose.xlu0.b32.cont [13/16] 0.0, 128
        %2166 = vxpose.xlu0.b32.cont [14/16] 0.0, 128
        %2167 = vxpose.xlu0.b32.cont [15/16] 0.0, 128
        %2168 = vxpose.xlu0.b32.end [16/16] 0.0, 128
        %v2169 = vpop.trf.xlu0
        %v2170 = vpop.trf.xlu0
        %v2171 = vpop.trf.xlu0
        %v2172 = vpop.trf.xlu0
        %v2173 = vpop.trf.xlu0
        %v2174 = vpop.trf.xlu0
        %v2175 = vpop.trf.xlu0
        %v2176 = vpop.trf.xlu0
        %v2177 = vpop.trf.xlu0
        %v2178 = vpop.trf.xlu0
        %v2179 = vpop.trf.xlu0
        %v2180 = vpop.trf.xlu0
        %v2181 = vpop.trf.xlu0
        %v2182 = vpop.trf.xlu0
        %v2183 = vpop.trf.xlu0
        %v2184 = vpop.trf.xlu0
        %2185 = vxpose.xlu0.b32.start [1/16] %v228, 128
        %2186 = vxpose.xlu0.b32.cont [2/16] 0.0, 128
        %2187 = vxpose.xlu0.b32.cont [3/16] 0.0, 128
        %2188 = vxpose.xlu0.b32.cont [4/16] 0.0, 128
        %2189 = vxpose.xlu0.b32.cont [5/16] 0.0, 128
        %2190 = vxpose.xlu0.b32.cont [6/16] 0.0, 128
        %2191 = vxpose.xlu0.b32.cont [7/16] 0.0, 128
        %2192 = vxpose.xlu0.b32.cont [8/16] 0.0, 128
        %2193 = vxpose.xlu0.b32.cont [9/16] 0.0, 128
        %2194 = vxpose.xlu0.b32.cont [10/16] 0.0, 128
        %2195 = vxpose.xlu0.b32.cont [11/16] 0.0, 128
        %2196 = vxpose.xlu0.b32.cont [12/16] 0.0, 128
        %2197 = vxpose.xlu0.b32.cont [13/16] 0.0, 128
        %2198 = vxpose.xlu0.b32.cont [14/16] 0.0, 128
        %2199 = vxpose.xlu0.b32.cont [15/16] 0.0, 128
        %2200 = vxpose.xlu0.b32.end [16/16] 0.0, 128
        %v2201 = vpop.trf.xlu0
        %v2202 = vpop.trf.xlu0
        %v2203 = vpop.trf.xlu0
        %v2204 = vpop.trf.xlu0
        %v2205 = vpop.trf.xlu0
        %v2206 = vpop.trf.xlu0
        %v2207 = vpop.trf.xlu0
        %v2208 = vpop.trf.xlu0
        %v2209 = vpop.trf.xlu0
        %v2210 = vpop.trf.xlu0
        %v2211 = vpop.trf.xlu0
        %v2212 = vpop.trf.xlu0
        %v2213 = vpop.trf.xlu0
        %v2214 = vpop.trf.xlu0
        %v2215 = vpop.trf.xlu0
        %v2216 = vpop.trf.xlu0
        %2217 = vxpose.xlu0.b32.start [1/16] %v229, 128
        %2218 = vxpose.xlu0.b32.cont [2/16] 0.0, 128
        %2219 = vxpose.xlu0.b32.cont [3/16] 0.0, 128
        %2220 = vxpose.xlu0.b32.cont [4/16] 0.0, 128
        %2221 = vxpose.xlu0.b32.cont [5/16] 0.0, 128
        %2222 = vxpose.xlu0.b32.cont [6/16] 0.0, 128
        %2223 = vxpose.xlu0.b32.cont [7/16] 0.0, 128
        %2224 = vxpose.xlu0.b32.cont [8/16] 0.0, 128
        %2225 = vxpose.xlu0.b32.cont [9/16] 0.0, 128
        %2226 = vxpose.xlu0.b32.cont [10/16] 0.0, 128
        %2227 = vxpose.xlu0.b32.cont [11/16] 0.0, 128
        %2228 = vxpose.xlu0.b32.cont [12/16] 0.0, 128
        %2229 = vxpose.xlu0.b32.cont [13/16] 0.0, 128
        %2230 = vxpose.xlu0.b32.cont [14/16] 0.0, 128
        %2231 = vxpose.xlu0.b32.cont [15/16] 0.0, 128
        %2232 = vxpose.xlu0.b32.end [16/16] 0.0, 128
        %v2233 = vpop.trf.xlu0
        %v2234 = vpop.trf.xlu0
        %v2235 = vpop.trf.xlu0
        %v2236 = vpop.trf.xlu0
        %v2237 = vpop.trf.xlu0
        %v2238 = vpop.trf.xlu0
        %v2239 = vpop.trf.xlu0
        %v2240 = vpop.trf.xlu0
        %v2241 = vpop.trf.xlu0
        %v2242 = vpop.trf.xlu0
        %v2243 = vpop.trf.xlu0
        %v2244 = vpop.trf.xlu0
        %v2245 = vpop.trf.xlu0
        %v2246 = vpop.trf.xlu0
        %v2247 = vpop.trf.xlu0
        %v2248 = vpop.trf.xlu0
        %2249 = vxpose.xlu0.b32.start [1/16] %v230, 128
        %2250 = vxpose.xlu0.b32.cont [2/16] 0.0, 128
        %2251 = vxpose.xlu0.b32.cont [3/16] 0.0, 128
        %2252 = vxpose.xlu0.b32.cont [4/16] 0.0, 128
        %2253 = vxpose.xlu0.b32.cont [5/16] 0.0, 128
        %2254 = vxpose.xlu0.b32.cont [6/16] 0.0, 128
        %2255 = vxpose.xlu0.b32.cont [7/16] 0.0, 128
        %2256 = vxpose.xlu0.b32.cont [8/16] 0.0, 128
        %2257 = vxpose.xlu0.b32.cont [9/16] 0.0, 128
        %2258 = vxpose.xlu0.b32.cont [10/16] 0.0, 128
        %2259 = vxpose.xlu0.b32.cont [11/16] 0.0, 128
        %2260 = vxpose.xlu0.b32.cont [12/16] 0.0, 128
        %2261 = vxpose.xlu0.b32.cont [13/16] 0.0, 128
        %2262 = vxpose.xlu0.b32.cont [14/16] 0.0, 128
        %2263 = vxpose.xlu0.b32.cont [15/16] 0.0, 128
        %2264 = vxpose.xlu0.b32.end [16/16] 0.0, 128
        %v2265 = vpop.trf.xlu0
        %v2266 = vpop.trf.xlu0
        %v2267 = vpop.trf.xlu0
        %v2268 = vpop.trf.xlu0
        %v2269 = vpop.trf.xlu0
        %v2270 = vpop.trf.xlu0
        %v2271 = vpop.trf.xlu0
        %v2272 = vpop.trf.xlu0
        %v2273 = vpop.trf.xlu0
        %v2274 = vpop.trf.xlu0
        %v2275 = vpop.trf.xlu0
        %v2276 = vpop.trf.xlu0
        %v2277 = vpop.trf.xlu0
        %v2278 = vpop.trf.xlu0
        %v2279 = vpop.trf.xlu0
        %v2280 = vpop.trf.xlu0
        %2281 = vxpose.xlu0.b32.start [1/16] %v231, 128
        %2282 = vxpose.xlu0.b32.cont [2/16] 0.0, 128
        %2283 = vxpose.xlu0.b32.cont [3/16] 0.0, 128
        %2284 = vxpose.xlu0.b32.cont [4/16] 0.0, 128
        %2285 = vxpose.xlu0.b32.cont [5/16] 0.0, 128
        %2286 = vxpose.xlu0.b32.cont [6/16] 0.0, 128
        %2287 = vxpose.xlu0.b32.cont [7/16] 0.0, 128
        %2288 = vxpose.xlu0.b32.cont [8/16] 0.0, 128
        %2289 = vxpose.xlu0.b32.cont [9/16] 0.0, 128
        %2290 = vxpose.xlu0.b32.cont [10/16] 0.0, 128
        %2291 = vxpose.xlu0.b32.cont [11/16] 0.0, 128
        %2292 = vxpose.xlu0.b32.cont [12/16] 0.0, 128
        %2293 = vxpose.xlu0.b32.cont [13/16] 0.0, 128
        %2294 = vxpose.xlu0.b32.cont [14/16] 0.0, 128
        %2295 = vxpose.xlu0.b32.cont [15/16] 0.0, 128
        %2296 = vxpose.xlu0.b32.end [16/16] 0.0, 128
        %v2297 = vpop.trf.xlu0
        %v2298 = vpop.trf.xlu0
        %v2299 = vpop.trf.xlu0
        %v2300 = vpop.trf.xlu0
        %v2301 = vpop.trf.xlu0
        %v2302 = vpop.trf.xlu0
        %v2303 = vpop.trf.xlu0
        %v2304 = vpop.trf.xlu0
        %v2305 = vpop.trf.xlu0
        %v2306 = vpop.trf.xlu0
        %v2307 = vpop.trf.xlu0
        %v2308 = vpop.trf.xlu0
        %v2309 = vpop.trf.xlu0
        %v2310 = vpop.trf.xlu0
        %v2311 = vpop.trf.xlu0
        %v2312 = vpop.trf.xlu0
        %2313 = vxpose.xlu0.b32.start [1/16] %v232, 128
        %2314 = vxpose.xlu0.b32.cont [2/16] 0.0, 128
        %2315 = vxpose.xlu0.b32.cont [3/16] 0.0, 128
        %2316 = vxpose.xlu0.b32.cont [4/16] 0.0, 128
        %2317 = vxpose.xlu0.b32.cont [5/16] 0.0, 128
        %2318 = vxpose.xlu0.b32.cont [6/16] 0.0, 128
        %2319 = vxpose.xlu0.b32.cont [7/16] 0.0, 128
        %2320 = vxpose.xlu0.b32.cont [8/16] 0.0, 128
        %2321 = vxpose.xlu0.b32.cont [9/16] 0.0, 128
        %2322 = vxpose.xlu0.b32.cont [10/16] 0.0, 128
        %2323 = vxpose.xlu0.b32.cont [11/16] 0.0, 128
        %2324 = vxpose.xlu0.b32.cont [12/16] 0.0, 128
        %2325 = vxpose.xlu0.b32.cont [13/16] 0.0, 128
        %2326 = vxpose.xlu0.b32.cont [14/16] 0.0, 128
        %2327 = vxpose.xlu0.b32.cont [15/16] 0.0, 128
        %2328 = vxpose.xlu0.b32.end [16/16] 0.0, 128
        %v2329 = vpop.trf.xlu0
        %v2330 = vpop.trf.xlu0
        %v2331 = vpop.trf.xlu0
        %v2332 = vpop.trf.xlu0
        %v2333 = vpop.trf.xlu0
        %v2334 = vpop.trf.xlu0
        %v2335 = vpop.trf.xlu0
        %v2336 = vpop.trf.xlu0
        %v2337 = vpop.trf.xlu0
        %v2338 = vpop.trf.xlu0
        %v2339 = vpop.trf.xlu0
        %v2340 = vpop.trf.xlu0
        %v2341 = vpop.trf.xlu0
        %v2342 = vpop.trf.xlu0
        %v2343 = vpop.trf.xlu0
        %v2344 = vpop.trf.xlu0
        %2345 = vxpose.xlu0.b32.start [1/16] %v233, 128
        %2346 = vxpose.xlu0.b32.cont [2/16] 0.0, 128
        %2347 = vxpose.xlu0.b32.cont [3/16] 0.0, 128
        %2348 = vxpose.xlu0.b32.cont [4/16] 0.0, 128
        %2349 = vxpose.xlu0.b32.cont [5/16] 0.0, 128
        %2350 = vxpose.xlu0.b32.cont [6/16] 0.0, 128
        %2351 = vxpose.xlu0.b32.cont [7/16] 0.0, 128
        %2352 = vxpose.xlu0.b32.cont [8/16] 0.0, 128
        %2353 = vxpose.xlu0.b32.cont [9/16] 0.0, 128
        %2354 = vxpose.xlu0.b32.cont [10/16] 0.0, 128
        %2355 = vxpose.xlu0.b32.cont [11/16] 0.0, 128
        %2356 = vxpose.xlu0.b32.cont [12/16] 0.0, 128
        %2357 = vxpose.xlu0.b32.cont [13/16] 0.0, 128
        %2358 = vxpose.xlu0.b32.cont [14/16] 0.0, 128
        %2359 = vxpose.xlu0.b32.cont [15/16] 0.0, 128
        %2360 = vxpose.xlu0.b32.end [16/16] 0.0, 128
        %v2361 = vpop.trf.xlu0
        %v2362 = vpop.trf.xlu0
        %v2363 = vpop.trf.xlu0
        %v2364 = vpop.trf.xlu0
        %v2365 = vpop.trf.xlu0
        %v2366 = vpop.trf.xlu0
        %v2367 = vpop.trf.xlu0
        %v2368 = vpop.trf.xlu0
        %v2369 = vpop.trf.xlu0
        %v2370 = vpop.trf.xlu0
        %v2371 = vpop.trf.xlu0
        %v2372 = vpop.trf.xlu0
        %v2373 = vpop.trf.xlu0
        %v2374 = vpop.trf.xlu0
        %v2375 = vpop.trf.xlu0
        %v2376 = vpop.trf.xlu0
        %2377 = vxpose.xlu0.b32.start [1/16] %v234, 128
        %2378 = vxpose.xlu0.b32.cont [2/16] 0.0, 128
        %2379 = vxpose.xlu0.b32.cont [3/16] 0.0, 128
        %2380 = vxpose.xlu0.b32.cont [4/16] 0.0, 128
        %2381 = vxpose.xlu0.b32.cont [5/16] 0.0, 128
        %2382 = vxpose.xlu0.b32.cont [6/16] 0.0, 128
        %2383 = vxpose.xlu0.b32.cont [7/16] 0.0, 128
        %2384 = vxpose.xlu0.b32.cont [8/16] 0.0, 128
        %2385 = vxpose.xlu0.b32.cont [9/16] 0.0, 128
        %2386 = vxpose.xlu0.b32.cont [10/16] 0.0, 128
        %2387 = vxpose.xlu0.b32.cont [11/16] 0.0, 128
        %2388 = vxpose.xlu0.b32.cont [12/16] 0.0, 128
        %2389 = vxpose.xlu0.b32.cont [13/16] 0.0, 128
        %2390 = vxpose.xlu0.b32.cont [14/16] 0.0, 128
        %2391 = vxpose.xlu0.b32.cont [15/16] 0.0, 128
        %2392 = vxpose.xlu0.b32.end [16/16] 0.0, 128
        %v2393 = vpop.trf.xlu0
        %v2394 = vpop.trf.xlu0
        %v2395 = vpop.trf.xlu0
        %v2396 = vpop.trf.xlu0
        %v2397 = vpop.trf.xlu0
        %v2398 = vpop.trf.xlu0
        %v2399 = vpop.trf.xlu0
        %v2400 = vpop.trf.xlu0
        %v2401 = vpop.trf.xlu0
        %v2402 = vpop.trf.xlu0
        %v2403 = vpop.trf.xlu0
        %v2404 = vpop.trf.xlu0
        %v2405 = vpop.trf.xlu0
        %v2406 = vpop.trf.xlu0
        %v2407 = vpop.trf.xlu0
        %v2408 = vpop.trf.xlu0
        %2409 = vxpose.xlu0.b32.start [1/16] %v235, 128
        %2410 = vxpose.xlu0.b32.cont [2/16] 0.0, 128
        %2411 = vxpose.xlu0.b32.cont [3/16] 0.0, 128
        %2412 = vxpose.xlu0.b32.cont [4/16] 0.0, 128
        %2413 = vxpose.xlu0.b32.cont [5/16] 0.0, 128
        %2414 = vxpose.xlu0.b32.cont [6/16] 0.0, 128
        %2415 = vxpose.xlu0.b32.cont [7/16] 0.0, 128
        %2416 = vxpose.xlu0.b32.cont [8/16] 0.0, 128
        %2417 = vxpose.xlu0.b32.cont [9/16] 0.0, 128
        %2418 = vxpose.xlu0.b32.cont [10/16] 0.0, 128
        %2419 = vxpose.xlu0.b32.cont [11/16] 0.0, 128
        %2420 = vxpose.xlu0.b32.cont [12/16] 0.0, 128
        %2421 = vxpose.xlu0.b32.cont [13/16] 0.0, 128
        %2422 = vxpose.xlu0.b32.cont [14/16] 0.0, 128
        %2423 = vxpose.xlu0.b32.cont [15/16] 0.0, 128
        %2424 = vxpose.xlu0.b32.end [16/16] 0.0, 128
        %v2425 = vpop.trf.xlu0
        %v2426 = vpop.trf.xlu0
        %v2427 = vpop.trf.xlu0
        %v2428 = vpop.trf.xlu0
        %v2429 = vpop.trf.xlu0
        %v2430 = vpop.trf.xlu0
        %v2431 = vpop.trf.xlu0
        %v2432 = vpop.trf.xlu0
        %v2433 = vpop.trf.xlu0
        %v2434 = vpop.trf.xlu0
        %v2435 = vpop.trf.xlu0
        %v2436 = vpop.trf.xlu0
        %v2437 = vpop.trf.xlu0
        %v2438 = vpop.trf.xlu0
        %v2439 = vpop.trf.xlu0
        %v2440 = vpop.trf.xlu0
        %2441 = vxpose.xlu0.b32.start [1/16] %v236, 128
        %2442 = vxpose.xlu0.b32.cont [2/16] 0.0, 128
        %2443 = vxpose.xlu0.b32.cont [3/16] 0.0, 128
        %2444 = vxpose.xlu0.b32.cont [4/16] 0.0, 128
        %2445 = vxpose.xlu0.b32.cont [5/16] 0.0, 128
        %2446 = vxpose.xlu0.b32.cont [6/16] 0.0, 128
        %2447 = vxpose.xlu0.b32.cont [7/16] 0.0, 128
        %2448 = vxpose.xlu0.b32.cont [8/16] 0.0, 128
        %2449 = vxpose.xlu0.b32.cont [9/16] 0.0, 128
        %2450 = vxpose.xlu0.b32.cont [10/16] 0.0, 128
        %2451 = vxpose.xlu0.b32.cont [11/16] 0.0, 128
        %2452 = vxpose.xlu0.b32.cont [12/16] 0.0, 128
        %2453 = vxpose.xlu0.b32.cont [13/16] 0.0, 128
        %2454 = vxpose.xlu0.b32.cont [14/16] 0.0, 128
        %2455 = vxpose.xlu0.b32.cont [15/16] 0.0, 128
        %2456 = vxpose.xlu0.b32.end [16/16] 0.0, 128
        %v2457 = vpop.trf.xlu0
        %v2458 = vpop.trf.xlu0
        %v2459 = vpop.trf.xlu0
        %v2460 = vpop.trf.xlu0
        %v2461 = vpop.trf.xlu0
        %v2462 = vpop.trf.xlu0
        %v2463 = vpop.trf.xlu0
        %v2464 = vpop.trf.xlu0
        %v2465 = vpop.trf.xlu0
        %v2466 = vpop.trf.xlu0
        %v2467 = vpop.trf.xlu0
        %v2468 = vpop.trf.xlu0
        %v2469 = vpop.trf.xlu0
        %v2470 = vpop.trf.xlu0
        %v2471 = vpop.trf.xlu0
        %v2472 = vpop.trf.xlu0
        %2473 = vxpose.xlu0.b32.start [1/16] %v237, 128
        %2474 = vxpose.xlu0.b32.cont [2/16] 0.0, 128
        %2475 = vxpose.xlu0.b32.cont [3/16] 0.0, 128
        %2476 = vxpose.xlu0.b32.cont [4/16] 0.0, 128
        %2477 = vxpose.xlu0.b32.cont [5/16] 0.0, 128
        %2478 = vxpose.xlu0.b32.cont [6/16] 0.0, 128
        %2479 = vxpose.xlu0.b32.cont [7/16] 0.0, 128
        %2480 = vxpose.xlu0.b32.cont [8/16] 0.0, 128
        %2481 = vxpose.xlu0.b32.cont [9/16] 0.0, 128
        %2482 = vxpose.xlu0.b32.cont [10/16] 0.0, 128
        %2483 = vxpose.xlu0.b32.cont [11/16] 0.0, 128
        %2484 = vxpose.xlu0.b32.cont [12/16] 0.0, 128
        %2485 = vxpose.xlu0.b32.cont [13/16] 0.0, 128
        %2486 = vxpose.xlu0.b32.cont [14/16] 0.0, 128
        %2487 = vxpose.xlu0.b32.cont [15/16] 0.0, 128
        %2488 = vxpose.xlu0.b32.end [16/16] 0.0, 128
        %v2489 = vpop.trf.xlu0
        %v2490 = vpop.trf.xlu0
        %v2491 = vpop.trf.xlu0
        %v2492 = vpop.trf.xlu0
        %v2493 = vpop.trf.xlu0
        %v2494 = vpop.trf.xlu0
        %v2495 = vpop.trf.xlu0
        %v2496 = vpop.trf.xlu0
        %v2497 = vpop.trf.xlu0
        %v2498 = vpop.trf.xlu0
        %v2499 = vpop.trf.xlu0
        %v2500 = vpop.trf.xlu0
        %v2501 = vpop.trf.xlu0
        %v2502 = vpop.trf.xlu0
        %v2503 = vpop.trf.xlu0
        %v2504 = vpop.trf.xlu0
        %2505 = vxpose.xlu0.b32.start [1/16] %v238, 128
        %2506 = vxpose.xlu0.b32.cont [2/16] 0.0, 128
        %2507 = vxpose.xlu0.b32.cont [3/16] 0.0, 128
        %2508 = vxpose.xlu0.b32.cont [4/16] 0.0, 128
        %2509 = vxpose.xlu0.b32.cont [5/16] 0.0, 128
        %2510 = vxpose.xlu0.b32.cont [6/16] 0.0, 128
        %2511 = vxpose.xlu0.b32.cont [7/16] 0.0, 128
        %2512 = vxpose.xlu0.b32.cont [8/16] 0.0, 128
        %2513 = vxpose.xlu0.b32.cont [9/16] 0.0, 128
        %2514 = vxpose.xlu0.b32.cont [10/16] 0.0, 128
        %2515 = vxpose.xlu0.b32.cont [11/16] 0.0, 128
        %2516 = vxpose.xlu0.b32.cont [12/16] 0.0, 128
        %2517 = vxpose.xlu0.b32.cont [13/16] 0.0, 128
        %2518 = vxpose.xlu0.b32.cont [14/16] 0.0, 128
        %2519 = vxpose.xlu0.b32.cont [15/16] 0.0, 128
        %2520 = vxpose.xlu0.b32.end [16/16] 0.0, 128
        %v2521 = vpop.trf.xlu0
        %v2522 = vpop.trf.xlu0
        %v2523 = vpop.trf.xlu0
        %v2524 = vpop.trf.xlu0
        %v2525 = vpop.trf.xlu0
        %v2526 = vpop.trf.xlu0
        %v2527 = vpop.trf.xlu0
        %v2528 = vpop.trf.xlu0
        %v2529 = vpop.trf.xlu0
        %v2530 = vpop.trf.xlu0
        %v2531 = vpop.trf.xlu0
        %v2532 = vpop.trf.xlu0
        %v2533 = vpop.trf.xlu0
        %v2534 = vpop.trf.xlu0
        %v2535 = vpop.trf.xlu0
        %v2536 = vpop.trf.xlu0
        %2537 = vxpose.xlu0.b32.start [1/16] %v239, 128
        %2538 = vxpose.xlu0.b32.cont [2/16] 0.0, 128
        %2539 = vxpose.xlu0.b32.cont [3/16] 0.0, 128
        %2540 = vxpose.xlu0.b32.cont [4/16] 0.0, 128
        %2541 = vxpose.xlu0.b32.cont [5/16] 0.0, 128
        %2542 = vxpose.xlu0.b32.cont [6/16] 0.0, 128
        %2543 = vxpose.xlu0.b32.cont [7/16] 0.0, 128
        %2544 = vxpose.xlu0.b32.cont [8/16] 0.0, 128
        %2545 = vxpose.xlu0.b32.cont [9/16] 0.0, 128
        %2546 = vxpose.xlu0.b32.cont [10/16] 0.0, 128
        %2547 = vxpose.xlu0.b32.cont [11/16] 0.0, 128
        %2548 = vxpose.xlu0.b32.cont [12/16] 0.0, 128
        %2549 = vxpose.xlu0.b32.cont [13/16] 0.0, 128
        %2550 = vxpose.xlu0.b32.cont [14/16] 0.0, 128
        %2551 = vxpose.xlu0.b32.cont [15/16] 0.0, 128
        %2552 = vxpose.xlu0.b32.end [16/16] 0.0, 128
        %v2553 = vpop.trf.xlu0
        %v2554 = vpop.trf.xlu0
        %v2555 = vpop.trf.xlu0
        %v2556 = vpop.trf.xlu0
        %v2557 = vpop.trf.xlu0
        %v2558 = vpop.trf.xlu0
        %v2559 = vpop.trf.xlu0
        %v2560 = vpop.trf.xlu0
        %v2561 = vpop.trf.xlu0
        %v2562 = vpop.trf.xlu0
        %v2563 = vpop.trf.xlu0
        %v2564 = vpop.trf.xlu0
        %v2565 = vpop.trf.xlu0
        %v2566 = vpop.trf.xlu0
        %v2567 = vpop.trf.xlu0
        %v2568 = vpop.trf.xlu0
        %2569 = vxpose.xlu0.b32.start [1/16] %v240, 128
        %2570 = vxpose.xlu0.b32.cont [2/16] 0.0, 128
        %2571 = vxpose.xlu0.b32.cont [3/16] 0.0, 128
        %2572 = vxpose.xlu0.b32.cont [4/16] 0.0, 128
        %2573 = vxpose.xlu0.b32.cont [5/16] 0.0, 128
        %2574 = vxpose.xlu0.b32.cont [6/16] 0.0, 128
        %2575 = vxpose.xlu0.b32.cont [7/16] 0.0, 128
        %2576 = vxpose.xlu0.b32.cont [8/16] 0.0, 128
        %2577 = vxpose.xlu0.b32.cont [9/16] 0.0, 128
        %2578 = vxpose.xlu0.b32.cont [10/16] 0.0, 128
        %2579 = vxpose.xlu0.b32.cont [11/16] 0.0, 128
        %2580 = vxpose.xlu0.b32.cont [12/16] 0.0, 128
        %2581 = vxpose.xlu0.b32.cont [13/16] 0.0, 128
        %2582 = vxpose.xlu0.b32.cont [14/16] 0.0, 128
        %2583 = vxpose.xlu0.b32.cont [15/16] 0.0, 128
        %2584 = vxpose.xlu0.b32.end [16/16] 0.0, 128
        %v2585 = vpop.trf.xlu0
        %v2586 = vpop.trf.xlu0
        %v2587 = vpop.trf.xlu0
        %v2588 = vpop.trf.xlu0
        %v2589 = vpop.trf.xlu0
        %v2590 = vpop.trf.xlu0
        %v2591 = vpop.trf.xlu0
        %v2592 = vpop.trf.xlu0
        %v2593 = vpop.trf.xlu0
        %v2594 = vpop.trf.xlu0
        %v2595 = vpop.trf.xlu0
        %v2596 = vpop.trf.xlu0
        %v2597 = vpop.trf.xlu0
        %v2598 = vpop.trf.xlu0
        %v2599 = vpop.trf.xlu0
        %v2600 = vpop.trf.xlu0
        %2601 = vxpose.xlu0.b32.start [1/16] %v241, 128
        %2602 = vxpose.xlu0.b32.cont [2/16] 0.0, 128
        %2603 = vxpose.xlu0.b32.cont [3/16] 0.0, 128
        %2604 = vxpose.xlu0.b32.cont [4/16] 0.0, 128
        %2605 = vxpose.xlu0.b32.cont [5/16] 0.0, 128
        %2606 = vxpose.xlu0.b32.cont [6/16] 0.0, 128
        %2607 = vxpose.xlu0.b32.cont [7/16] 0.0, 128
        %2608 = vxpose.xlu0.b32.cont [8/16] 0.0, 128
        %2609 = vxpose.xlu0.b32.cont [9/16] 0.0, 128
        %2610 = vxpose.xlu0.b32.cont [10/16] 0.0, 128
        %2611 = vxpose.xlu0.b32.cont [11/16] 0.0, 128
        %2612 = vxpose.xlu0.b32.cont [12/16] 0.0, 128
        %2613 = vxpose.xlu0.b32.cont [13/16] 0.0, 128
        %2614 = vxpose.xlu0.b32.cont [14/16] 0.0, 128
        %2615 = vxpose.xlu0.b32.cont [15/16] 0.0, 128
        %2616 = vxpose.xlu0.b32.end [16/16] 0.0, 128
        %v2617 = vpop.trf.xlu0
        %v2618 = vpop.trf.xlu0
        %v2619 = vpop.trf.xlu0
        %v2620 = vpop.trf.xlu0
        %v2621 = vpop.trf.xlu0
        %v2622 = vpop.trf.xlu0
        %v2623 = vpop.trf.xlu0
        %v2624 = vpop.trf.xlu0
        %v2625 = vpop.trf.xlu0
        %v2626 = vpop.trf.xlu0
        %v2627 = vpop.trf.xlu0
        %v2628 = vpop.trf.xlu0
        %v2629 = vpop.trf.xlu0
        %v2630 = vpop.trf.xlu0
        %v2631 = vpop.trf.xlu0
        %v2632 = vpop.trf.xlu0
        %2633 = vxpose.xlu0.b32.start [1/16] %v242, 128
        %2634 = vxpose.xlu0.b32.cont [2/16] 0.0, 128
        %2635 = vxpose.xlu0.b32.cont [3/16] 0.0, 128
        %2636 = vxpose.xlu0.b32.cont [4/16] 0.0, 128
        %2637 = vxpose.xlu0.b32.cont [5/16] 0.0, 128
        %2638 = vxpose.xlu0.b32.cont [6/16] 0.0, 128
        %2639 = vxpose.xlu0.b32.cont [7/16] 0.0, 128
        %2640 = vxpose.xlu0.b32.cont [8/16] 0.0, 128
        %2641 = vxpose.xlu0.b32.cont [9/16] 0.0, 128
        %2642 = vxpose.xlu0.b32.cont [10/16] 0.0, 128
        %2643 = vxpose.xlu0.b32.cont [11/16] 0.0, 128
        %2644 = vxpose.xlu0.b32.cont [12/16] 0.0, 128
        %2645 = vxpose.xlu0.b32.cont [13/16] 0.0, 128
        %2646 = vxpose.xlu0.b32.cont [14/16] 0.0, 128
        %2647 = vxpose.xlu0.b32.cont [15/16] 0.0, 128
        %2648 = vxpose.xlu0.b32.end [16/16] 0.0, 128
        %v2649 = vpop.trf.xlu0
        %v2650 = vpop.trf.xlu0
        %v2651 = vpop.trf.xlu0
        %v2652 = vpop.trf.xlu0
        %v2653 = vpop.trf.xlu0
        %v2654 = vpop.trf.xlu0
        %v2655 = vpop.trf.xlu0
        %v2656 = vpop.trf.xlu0
        %v2657 = vpop.trf.xlu0
        %v2658 = vpop.trf.xlu0
        %v2659 = vpop.trf.xlu0
        %v2660 = vpop.trf.xlu0
        %v2661 = vpop.trf.xlu0
        %v2662 = vpop.trf.xlu0
        %v2663 = vpop.trf.xlu0
        %v2664 = vpop.trf.xlu0
        %2665 = vxpose.xlu0.b32.start [1/16] %v243, 128
        %2666 = vxpose.xlu0.b32.cont [2/16] 0.0, 128
        %2667 = vxpose.xlu0.b32.cont [3/16] 0.0, 128
        %2668 = vxpose.xlu0.b32.cont [4/16] 0.0, 128
        %2669 = vxpose.xlu0.b32.cont [5/16] 0.0, 128
        %2670 = vxpose.xlu0.b32.cont [6/16] 0.0, 128
        %2671 = vxpose.xlu0.b32.cont [7/16] 0.0, 128
        %2672 = vxpose.xlu0.b32.cont [8/16] 0.0, 128
        %2673 = vxpose.xlu0.b32.cont [9/16] 0.0, 128
        %2674 = vxpose.xlu0.b32.cont [10/16] 0.0, 128
        %2675 = vxpose.xlu0.b32.cont [11/16] 0.0, 128
        %2676 = vxpose.xlu0.b32.cont [12/16] 0.0, 128
        %2677 = vxpose.xlu0.b32.cont [13/16] 0.0, 128
        %2678 = vxpose.xlu0.b32.cont [14/16] 0.0, 128
        %2679 = vxpose.xlu0.b32.cont [15/16] 0.0, 128
        %2680 = vxpose.xlu0.b32.end [16/16] 0.0, 128
        %v2681 = vpop.trf.xlu0
        %v2682 = vpop.trf.xlu0
        %v2683 = vpop.trf.xlu0
        %v2684 = vpop.trf.xlu0
        %v2685 = vpop.trf.xlu0
        %v2686 = vpop.trf.xlu0
        %v2687 = vpop.trf.xlu0
        %v2688 = vpop.trf.xlu0
        %v2689 = vpop.trf.xlu0
        %v2690 = vpop.trf.xlu0
        %v2691 = vpop.trf.xlu0
        %v2692 = vpop.trf.xlu0
        %v2693 = vpop.trf.xlu0
        %v2694 = vpop.trf.xlu0
        %v2695 = vpop.trf.xlu0
        %v2696 = vpop.trf.xlu0
        %2697 = vxpose.xlu0.b32.start [1/16] %v244, 128
        %2698 = vxpose.xlu0.b32.cont [2/16] 0.0, 128
        %2699 = vxpose.xlu0.b32.cont [3/16] 0.0, 128
        %2700 = vxpose.xlu0.b32.cont [4/16] 0.0, 128
        %2701 = vxpose.xlu0.b32.cont [5/16] 0.0, 128
        %2702 = vxpose.xlu0.b32.cont [6/16] 0.0, 128
        %2703 = vxpose.xlu0.b32.cont [7/16] 0.0, 128
        %2704 = vxpose.xlu0.b32.cont [8/16] 0.0, 128
        %2705 = vxpose.xlu0.b32.cont [9/16] 0.0, 128
        %2706 = vxpose.xlu0.b32.cont [10/16] 0.0, 128
        %2707 = vxpose.xlu0.b32.cont [11/16] 0.0, 128
        %2708 = vxpose.xlu0.b32.cont [12/16] 0.0, 128
        %2709 = vxpose.xlu0.b32.cont [13/16] 0.0, 128
        %2710 = vxpose.xlu0.b32.cont [14/16] 0.0, 128
        %2711 = vxpose.xlu0.b32.cont [15/16] 0.0, 128
        %2712 = vxpose.xlu0.b32.end [16/16] 0.0, 128
        %v2713 = vpop.trf.xlu0
        %v2714 = vpop.trf.xlu0
        %v2715 = vpop.trf.xlu0
        %v2716 = vpop.trf.xlu0
        %v2717 = vpop.trf.xlu0
        %v2718 = vpop.trf.xlu0
        %v2719 = vpop.trf.xlu0
        %v2720 = vpop.trf.xlu0
        %v2721 = vpop.trf.xlu0
        %v2722 = vpop.trf.xlu0
        %v2723 = vpop.trf.xlu0
        %v2724 = vpop.trf.xlu0
        %v2725 = vpop.trf.xlu0
        %v2726 = vpop.trf.xlu0
        %v2727 = vpop.trf.xlu0
        %v2728 = vpop.trf.xlu0
        %2729 = vxpose.xlu0.b32.start [1/16] %v245, 128
        %2730 = vxpose.xlu0.b32.cont [2/16] 0.0, 128
        %2731 = vxpose.xlu0.b32.cont [3/16] 0.0, 128
        %2732 = vxpose.xlu0.b32.cont [4/16] 0.0, 128
        %2733 = vxpose.xlu0.b32.cont [5/16] 0.0, 128
        %2734 = vxpose.xlu0.b32.cont [6/16] 0.0, 128
        %2735 = vxpose.xlu0.b32.cont [7/16] 0.0, 128
        %2736 = vxpose.xlu0.b32.cont [8/16] 0.0, 128
        %2737 = vxpose.xlu0.b32.cont [9/16] 0.0, 128
        %2738 = vxpose.xlu0.b32.cont [10/16] 0.0, 128
        %2739 = vxpose.xlu0.b32.cont [11/16] 0.0, 128
        %2740 = vxpose.xlu0.b32.cont [12/16] 0.0, 128
        %2741 = vxpose.xlu0.b32.cont [13/16] 0.0, 128
        %2742 = vxpose.xlu0.b32.cont [14/16] 0.0, 128
        %2743 = vxpose.xlu0.b32.cont [15/16] 0.0, 128
        %2744 = vxpose.xlu0.b32.end [16/16] 0.0, 128
        %v2745 = vpop.trf.xlu0
        %v2746 = vpop.trf.xlu0
        %v2747 = vpop.trf.xlu0
        %v2748 = vpop.trf.xlu0
        %v2749 = vpop.trf.xlu0
        %v2750 = vpop.trf.xlu0
        %v2751 = vpop.trf.xlu0
        %v2752 = vpop.trf.xlu0
        %v2753 = vpop.trf.xlu0
        %v2754 = vpop.trf.xlu0
        %v2755 = vpop.trf.xlu0
        %v2756 = vpop.trf.xlu0
        %v2757 = vpop.trf.xlu0
        %v2758 = vpop.trf.xlu0
        %v2759 = vpop.trf.xlu0
        %v2760 = vpop.trf.xlu0
        %2761 = vxpose.xlu0.b32.start [1/16] %v246, 128
        %2762 = vxpose.xlu0.b32.cont [2/16] 0.0, 128
        %2763 = vxpose.xlu0.b32.cont [3/16] 0.0, 128
        %2764 = vxpose.xlu0.b32.cont [4/16] 0.0, 128
        %2765 = vxpose.xlu0.b32.cont [5/16] 0.0, 128
        %2766 = vxpose.xlu0.b32.cont [6/16] 0.0, 128
        %2767 = vxpose.xlu0.b32.cont [7/16] 0.0, 128
        %2768 = vxpose.xlu0.b32.cont [8/16] 0.0, 128
        %2769 = vxpose.xlu0.b32.cont [9/16] 0.0, 128
        %2770 = vxpose.xlu0.b32.cont [10/16] 0.0, 128
        %2771 = vxpose.xlu0.b32.cont [11/16] 0.0, 128
        %2772 = vxpose.xlu0.b32.cont [12/16] 0.0, 128
        %2773 = vxpose.xlu0.b32.cont [13/16] 0.0, 128
        %2774 = vxpose.xlu0.b32.cont [14/16] 0.0, 128
        %2775 = vxpose.xlu0.b32.cont [15/16] 0.0, 128
        %2776 = vxpose.xlu0.b32.end [16/16] 0.0, 128
        %v2777 = vpop.trf.xlu0
        %v2778 = vpop.trf.xlu0
        %v2779 = vpop.trf.xlu0
        %v2780 = vpop.trf.xlu0
        %v2781 = vpop.trf.xlu0
        %v2782 = vpop.trf.xlu0
        %v2783 = vpop.trf.xlu0
        %v2784 = vpop.trf.xlu0
        %v2785 = vpop.trf.xlu0
        %v2786 = vpop.trf.xlu0
        %v2787 = vpop.trf.xlu0
        %v2788 = vpop.trf.xlu0
        %v2789 = vpop.trf.xlu0
        %v2790 = vpop.trf.xlu0
        %v2791 = vpop.trf.xlu0
        %v2792 = vpop.trf.xlu0
        %2793 = vxpose.xlu0.b32.start [1/16] %v247, 128
        %2794 = vxpose.xlu0.b32.cont [2/16] 0.0, 128
        %2795 = vxpose.xlu0.b32.cont [3/16] 0.0, 128
        %2796 = vxpose.xlu0.b32.cont [4/16] 0.0, 128
        %2797 = vxpose.xlu0.b32.cont [5/16] 0.0, 128
        %2798 = vxpose.xlu0.b32.cont [6/16] 0.0, 128
        %2799 = vxpose.xlu0.b32.cont [7/16] 0.0, 128
        %2800 = vxpose.xlu0.b32.cont [8/16] 0.0, 128
        %2801 = vxpose.xlu0.b32.cont [9/16] 0.0, 128
        %2802 = vxpose.xlu0.b32.cont [10/16] 0.0, 128
        %2803 = vxpose.xlu0.b32.cont [11/16] 0.0, 128
        %2804 = vxpose.xlu0.b32.cont [12/16] 0.0, 128
        %2805 = vxpose.xlu0.b32.cont [13/16] 0.0, 128
        %2806 = vxpose.xlu0.b32.cont [14/16] 0.0, 128
        %2807 = vxpose.xlu0.b32.cont [15/16] 0.0, 128
        %2808 = vxpose.xlu0.b32.end [16/16] 0.0, 128
        %v2809 = vpop.trf.xlu0
        %v2810 = vpop.trf.xlu0
        %v2811 = vpop.trf.xlu0
        %v2812 = vpop.trf.xlu0
        %v2813 = vpop.trf.xlu0
        %v2814 = vpop.trf.xlu0
        %v2815 = vpop.trf.xlu0
        %v2816 = vpop.trf.xlu0
        %v2817 = vpop.trf.xlu0
        %v2818 = vpop.trf.xlu0
        %v2819 = vpop.trf.xlu0
        %v2820 = vpop.trf.xlu0
        %v2821 = vpop.trf.xlu0
        %v2822 = vpop.trf.xlu0
        %v2823 = vpop.trf.xlu0
        %v2824 = vpop.trf.xlu0
        %2825 = vxpose.xlu0.b32.start [1/16] %v248, 128
        %2826 = vxpose.xlu0.b32.cont [2/16] 0.0, 128
        %2827 = vxpose.xlu0.b32.cont [3/16] 0.0, 128
        %2828 = vxpose.xlu0.b32.cont [4/16] 0.0, 128
        %2829 = vxpose.xlu0.b32.cont [5/16] 0.0, 128
        %2830 = vxpose.xlu0.b32.cont [6/16] 0.0, 128
        %2831 = vxpose.xlu0.b32.cont [7/16] 0.0, 128
        %2832 = vxpose.xlu0.b32.cont [8/16] 0.0, 128
        %2833 = vxpose.xlu0.b32.cont [9/16] 0.0, 128
        %2834 = vxpose.xlu0.b32.cont [10/16] 0.0, 128
        %2835 = vxpose.xlu0.b32.cont [11/16] 0.0, 128
        %2836 = vxpose.xlu0.b32.cont [12/16] 0.0, 128
        %2837 = vxpose.xlu0.b32.cont [13/16] 0.0, 128
        %2838 = vxpose.xlu0.b32.cont [14/16] 0.0, 128
        %2839 = vxpose.xlu0.b32.cont [15/16] 0.0, 128
        %2840 = vxpose.xlu0.b32.end [16/16] 0.0, 128
        %v2841 = vpop.trf.xlu0
        %v2842 = vpop.trf.xlu0
        %v2843 = vpop.trf.xlu0
        %v2844 = vpop.trf.xlu0
        %v2845 = vpop.trf.xlu0
        %v2846 = vpop.trf.xlu0
        %v2847 = vpop.trf.xlu0
        %v2848 = vpop.trf.xlu0
        %v2849 = vpop.trf.xlu0
        %v2850 = vpop.trf.xlu0
        %v2851 = vpop.trf.xlu0
        %v2852 = vpop.trf.xlu0
        %v2853 = vpop.trf.xlu0
        %v2854 = vpop.trf.xlu0
        %v2855 = vpop.trf.xlu0
        %v2856 = vpop.trf.xlu0
        %2857 = vxpose.xlu0.b32.start [1/16] %v249, 128
        %2858 = vxpose.xlu0.b32.cont [2/16] 0.0, 128
        %2859 = vxpose.xlu0.b32.cont [3/16] 0.0, 128
        %2860 = vxpose.xlu0.b32.cont [4/16] 0.0, 128
        %2861 = vxpose.xlu0.b32.cont [5/16] 0.0, 128
        %2862 = vxpose.xlu0.b32.cont [6/16] 0.0, 128
        %2863 = vxpose.xlu0.b32.cont [7/16] 0.0, 128
        %2864 = vxpose.xlu0.b32.cont [8/16] 0.0, 128
        %2865 = vxpose.xlu0.b32.cont [9/16] 0.0, 128
        %2866 = vxpose.xlu0.b32.cont [10/16] 0.0, 128
        %2867 = vxpose.xlu0.b32.cont [11/16] 0.0, 128
        %2868 = vxpose.xlu0.b32.cont [12/16] 0.0, 128
        %2869 = vxpose.xlu0.b32.cont [13/16] 0.0, 128
        %2870 = vxpose.xlu0.b32.cont [14/16] 0.0, 128
        %2871 = vxpose.xlu0.b32.cont [15/16] 0.0, 128
        %2872 = vxpose.xlu0.b32.end [16/16] 0.0, 128
        %v2873 = vpop.trf.xlu0
        %v2874 = vpop.trf.xlu0
        %v2875 = vpop.trf.xlu0
        %v2876 = vpop.trf.xlu0
        %v2877 = vpop.trf.xlu0
        %v2878 = vpop.trf.xlu0
        %v2879 = vpop.trf.xlu0
        %v2880 = vpop.trf.xlu0
        %v2881 = vpop.trf.xlu0
        %v2882 = vpop.trf.xlu0
        %v2883 = vpop.trf.xlu0
        %v2884 = vpop.trf.xlu0
        %v2885 = vpop.trf.xlu0
        %v2886 = vpop.trf.xlu0
        %v2887 = vpop.trf.xlu0
        %v2888 = vpop.trf.xlu0
        %2889 = vxpose.xlu0.b32.start [1/16] %v250, 128
        %2890 = vxpose.xlu0.b32.cont [2/16] 0.0, 128
        %2891 = vxpose.xlu0.b32.cont [3/16] 0.0, 128
        %2892 = vxpose.xlu0.b32.cont [4/16] 0.0, 128
        %2893 = vxpose.xlu0.b32.cont [5/16] 0.0, 128
        %2894 = vxpose.xlu0.b32.cont [6/16] 0.0, 128
        %2895 = vxpose.xlu0.b32.cont [7/16] 0.0, 128
        %2896 = vxpose.xlu0.b32.cont [8/16] 0.0, 128
        %2897 = vxpose.xlu0.b32.cont [9/16] 0.0, 128
        %2898 = vxpose.xlu0.b32.cont [10/16] 0.0, 128
        %2899 = vxpose.xlu0.b32.cont [11/16] 0.0, 128
        %2900 = vxpose.xlu0.b32.cont [12/16] 0.0, 128
        %2901 = vxpose.xlu0.b32.cont [13/16] 0.0, 128
        %2902 = vxpose.xlu0.b32.cont [14/16] 0.0, 128
        %2903 = vxpose.xlu0.b32.cont [15/16] 0.0, 128
        %2904 = vxpose.xlu0.b32.end [16/16] 0.0, 128
        %v2905 = vpop.trf.xlu0
        %v2906 = vpop.trf.xlu0
        %v2907 = vpop.trf.xlu0
        %v2908 = vpop.trf.xlu0
        %v2909 = vpop.trf.xlu0
        %v2910 = vpop.trf.xlu0
        %v2911 = vpop.trf.xlu0
        %v2912 = vpop.trf.xlu0
        %v2913 = vpop.trf.xlu0
        %v2914 = vpop.trf.xlu0
        %v2915 = vpop.trf.xlu0
        %v2916 = vpop.trf.xlu0
        %v2917 = vpop.trf.xlu0
        %v2918 = vpop.trf.xlu0
        %v2919 = vpop.trf.xlu0
        %v2920 = vpop.trf.xlu0
        %2921 = vxpose.xlu0.b32.start [1/16] %v251, 128
        %2922 = vxpose.xlu0.b32.cont [2/16] 0.0, 128
        %2923 = vxpose.xlu0.b32.cont [3/16] 0.0, 128
        %2924 = vxpose.xlu0.b32.cont [4/16] 0.0, 128
        %2925 = vxpose.xlu0.b32.cont [5/16] 0.0, 128
        %2926 = vxpose.xlu0.b32.cont [6/16] 0.0, 128
        %2927 = vxpose.xlu0.b32.cont [7/16] 0.0, 128
        %2928 = vxpose.xlu0.b32.cont [8/16] 0.0, 128
        %2929 = vxpose.xlu0.b32.cont [9/16] 0.0, 128
        %2930 = vxpose.xlu0.b32.cont [10/16] 0.0, 128
        %2931 = vxpose.xlu0.b32.cont [11/16] 0.0, 128
        %2932 = vxpose.xlu0.b32.cont [12/16] 0.0, 128
        %2933 = vxpose.xlu0.b32.cont [13/16] 0.0, 128
        %2934 = vxpose.xlu0.b32.cont [14/16] 0.0, 128
        %2935 = vxpose.xlu0.b32.cont [15/16] 0.0, 128
        %2936 = vxpose.xlu0.b32.end [16/16] 0.0, 128
        %v2937 = vpop.trf.xlu0
        %v2938 = vpop.trf.xlu0
        %v2939 = vpop.trf.xlu0
        %v2940 = vpop.trf.xlu0
        %v2941 = vpop.trf.xlu0
        %v2942 = vpop.trf.xlu0
        %v2943 = vpop.trf.xlu0
        %v2944 = vpop.trf.xlu0
        %v2945 = vpop.trf.xlu0
        %v2946 = vpop.trf.xlu0
        %v2947 = vpop.trf.xlu0
        %v2948 = vpop.trf.xlu0
        %v2949 = vpop.trf.xlu0
        %v2950 = vpop.trf.xlu0
        %v2951 = vpop.trf.xlu0
        %v2952 = vpop.trf.xlu0
        %2953 = vxpose.xlu0.b32.start [1/16] %v252, 128
        %2954 = vxpose.xlu0.b32.cont [2/16] 0.0, 128
        %2955 = vxpose.xlu0.b32.cont [3/16] 0.0, 128
        %2956 = vxpose.xlu0.b32.cont [4/16] 0.0, 128
        %2957 = vxpose.xlu0.b32.cont [5/16] 0.0, 128
        %2958 = vxpose.xlu0.b32.cont [6/16] 0.0, 128
        %2959 = vxpose.xlu0.b32.cont [7/16] 0.0, 128
        %2960 = vxpose.xlu0.b32.cont [8/16] 0.0, 128
        %2961 = vxpose.xlu0.b32.cont [9/16] 0.0, 128
        %2962 = vxpose.xlu0.b32.cont [10/16] 0.0, 128
        %2963 = vxpose.xlu0.b32.cont [11/16] 0.0, 128
        %2964 = vxpose.xlu0.b32.cont [12/16] 0.0, 128
        %2965 = vxpose.xlu0.b32.cont [13/16] 0.0, 128
        %2966 = vxpose.xlu0.b32.cont [14/16] 0.0, 128
        %2967 = vxpose.xlu0.b32.cont [15/16] 0.0, 128
        %2968 = vxpose.xlu0.b32.end [16/16] 0.0, 128
        %v2969 = vpop.trf.xlu0
        %v2970 = vpop.trf.xlu0
        %v2971 = vpop.trf.xlu0
        %v2972 = vpop.trf.xlu0
        %v2973 = vpop.trf.xlu0
        %v2974 = vpop.trf.xlu0
        %v2975 = vpop.trf.xlu0
        %v2976 = vpop.trf.xlu0
        %v2977 = vpop.trf.xlu0
        %v2978 = vpop.trf.xlu0
        %v2979 = vpop.trf.xlu0
        %v2980 = vpop.trf.xlu0
        %v2981 = vpop.trf.xlu0
        %v2982 = vpop.trf.xlu0
        %v2983 = vpop.trf.xlu0
        %v2984 = vpop.trf.xlu0
        %2985 = vxpose.xlu0.b32.start [1/16] %v253, 128
        %2986 = vxpose.xlu0.b32.cont [2/16] 0.0, 128
        %2987 = vxpose.xlu0.b32.cont [3/16] 0.0, 128
        %2988 = vxpose.xlu0.b32.cont [4/16] 0.0, 128
        %2989 = vxpose.xlu0.b32.cont [5/16] 0.0, 128
        %2990 = vxpose.xlu0.b32.cont [6/16] 0.0, 128
        %2991 = vxpose.xlu0.b32.cont [7/16] 0.0, 128
        %2992 = vxpose.xlu0.b32.cont [8/16] 0.0, 128
        %2993 = vxpose.xlu0.b32.cont [9/16] 0.0, 128
        %2994 = vxpose.xlu0.b32.cont [10/16] 0.0, 128
        %2995 = vxpose.xlu0.b32.cont [11/16] 0.0, 128
        %2996 = vxpose.xlu0.b32.cont [12/16] 0.0, 128
        %2997 = vxpose.xlu0.b32.cont [13/16] 0.0, 128
        %2998 = vxpose.xlu0.b32.cont [14/16] 0.0, 128
        %2999 = vxpose.xlu0.b32.cont [15/16] 0.0, 128
        %3000 = vxpose.xlu0.b32.end [16/16] 0.0, 128
        %v3001 = vpop.trf.xlu0
        %v3002 = vpop.trf.xlu0
        %v3003 = vpop.trf.xlu0
        %v3004 = vpop.trf.xlu0
        %v3005 = vpop.trf.xlu0
        %v3006 = vpop.trf.xlu0
        %v3007 = vpop.trf.xlu0
        %v3008 = vpop.trf.xlu0
        %v3009 = vpop.trf.xlu0
        %v3010 = vpop.trf.xlu0
        %v3011 = vpop.trf.xlu0
        %v3012 = vpop.trf.xlu0
        %v3013 = vpop.trf.xlu0
        %v3014 = vpop.trf.xlu0
        %v3015 = vpop.trf.xlu0
        %v3016 = vpop.trf.xlu0
        %3017 = vxpose.xlu0.b32.start [1/16] %v254, 128
        %3018 = vxpose.xlu0.b32.cont [2/16] 0.0, 128
        %3019 = vxpose.xlu0.b32.cont [3/16] 0.0, 128
        %3020 = vxpose.xlu0.b32.cont [4/16] 0.0, 128
        %3021 = vxpose.xlu0.b32.cont [5/16] 0.0, 128
        %3022 = vxpose.xlu0.b32.cont [6/16] 0.0, 128
        %3023 = vxpose.xlu0.b32.cont [7/16] 0.0, 128
        %3024 = vxpose.xlu0.b32.cont [8/16] 0.0, 128
        %3025 = vxpose.xlu0.b32.cont [9/16] 0.0, 128
        %3026 = vxpose.xlu0.b32.cont [10/16] 0.0, 128
        %3027 = vxpose.xlu0.b32.cont [11/16] 0.0, 128
        %3028 = vxpose.xlu0.b32.cont [12/16] 0.0, 128
        %3029 = vxpose.xlu0.b32.cont [13/16] 0.0, 128
        %3030 = vxpose.xlu0.b32.cont [14/16] 0.0, 128
        %3031 = vxpose.xlu0.b32.cont [15/16] 0.0, 128
        %3032 = vxpose.xlu0.b32.end [16/16] 0.0, 128
        %v3033 = vpop.trf.xlu0
        %v3034 = vpop.trf.xlu0
        %v3035 = vpop.trf.xlu0
        %v3036 = vpop.trf.xlu0
        %v3037 = vpop.trf.xlu0
        %v3038 = vpop.trf.xlu0
        %v3039 = vpop.trf.xlu0
        %v3040 = vpop.trf.xlu0
        %v3041 = vpop.trf.xlu0
        %v3042 = vpop.trf.xlu0
        %v3043 = vpop.trf.xlu0
        %v3044 = vpop.trf.xlu0
        %v3045 = vpop.trf.xlu0
        %v3046 = vpop.trf.xlu0
        %v3047 = vpop.trf.xlu0
        %v3048 = vpop.trf.xlu0
        %3049 = vxpose.xlu0.b32.start [1/16] %v255, 128
        %3050 = vxpose.xlu0.b32.cont [2/16] 0.0, 128
        %3051 = vxpose.xlu0.b32.cont [3/16] 0.0, 128
        %3052 = vxpose.xlu0.b32.cont [4/16] 0.0, 128
        %3053 = vxpose.xlu0.b32.cont [5/16] 0.0, 128
        %3054 = vxpose.xlu0.b32.cont [6/16] 0.0, 128
        %3055 = vxpose.xlu0.b32.cont [7/16] 0.0, 128
        %3056 = vxpose.xlu0.b32.cont [8/16] 0.0, 128
        %3057 = vxpose.xlu0.b32.cont [9/16] 0.0, 128
        %3058 = vxpose.xlu0.b32.cont [10/16] 0.0, 128
        %3059 = vxpose.xlu0.b32.cont [11/16] 0.0, 128
        %3060 = vxpose.xlu0.b32.cont [12/16] 0.0, 128
        %3061 = vxpose.xlu0.b32.cont [13/16] 0.0, 128
        %3062 = vxpose.xlu0.b32.cont [14/16] 0.0, 128
        %3063 = vxpose.xlu0.b32.cont [15/16] 0.0, 128
        %3064 = vxpose.xlu0.b32.end [16/16] 0.0, 128
        %v3065 = vpop.trf.xlu0
        %v3066 = vpop.trf.xlu0
        %v3067 = vpop.trf.xlu0
        %v3068 = vpop.trf.xlu0
        %v3069 = vpop.trf.xlu0
        %v3070 = vpop.trf.xlu0
        %v3071 = vpop.trf.xlu0
        %v3072 = vpop.trf.xlu0
        %v3073 = vpop.trf.xlu0
        %v3074 = vpop.trf.xlu0
        %v3075 = vpop.trf.xlu0
        %v3076 = vpop.trf.xlu0
        %v3077 = vpop.trf.xlu0
        %v3078 = vpop.trf.xlu0
        %v3079 = vpop.trf.xlu0
        %v3080 = vpop.trf.xlu0
        %3081 = vxpose.xlu0.b32.start [1/16] %v256, 128
        %3082 = vxpose.xlu0.b32.cont [2/16] 0.0, 128
        %3083 = vxpose.xlu0.b32.cont [3/16] 0.0, 128
        %3084 = vxpose.xlu0.b32.cont [4/16] 0.0, 128
        %3085 = vxpose.xlu0.b32.cont [5/16] 0.0, 128
        %3086 = vxpose.xlu0.b32.cont [6/16] 0.0, 128
        %3087 = vxpose.xlu0.b32.cont [7/16] 0.0, 128
        %3088 = vxpose.xlu0.b32.cont [8/16] 0.0, 128
        %3089 = vxpose.xlu0.b32.cont [9/16] 0.0, 128
        %3090 = vxpose.xlu0.b32.cont [10/16] 0.0, 128
        %3091 = vxpose.xlu0.b32.cont [11/16] 0.0, 128
        %3092 = vxpose.xlu0.b32.cont [12/16] 0.0, 128
        %3093 = vxpose.xlu0.b32.cont [13/16] 0.0, 128
        %3094 = vxpose.xlu0.b32.cont [14/16] 0.0, 128
        %3095 = vxpose.xlu0.b32.cont [15/16] 0.0, 128
        %3096 = vxpose.xlu0.b32.end [16/16] 0.0, 128
        %v3097 = vpop.trf.xlu0
        %v3098 = vpop.trf.xlu0
        %v3099 = vpop.trf.xlu0
        %v3100 = vpop.trf.xlu0
        %v3101 = vpop.trf.xlu0
        %v3102 = vpop.trf.xlu0
        %v3103 = vpop.trf.xlu0
        %v3104 = vpop.trf.xlu0
        %v3105 = vpop.trf.xlu0
        %v3106 = vpop.trf.xlu0
        %v3107 = vpop.trf.xlu0
        %v3108 = vpop.trf.xlu0
        %v3109 = vpop.trf.xlu0
        %v3110 = vpop.trf.xlu0
        %v3111 = vpop.trf.xlu0
        %v3112 = vpop.trf.xlu0
        %3113 = vxpose.xlu0.b32.start [1/16] %v257, 128
        %3114 = vxpose.xlu0.b32.cont [2/16] 0.0, 128
        %3115 = vxpose.xlu0.b32.cont [3/16] 0.0, 128
        %3116 = vxpose.xlu0.b32.cont [4/16] 0.0, 128
        %3117 = vxpose.xlu0.b32.cont [5/16] 0.0, 128
        %3118 = vxpose.xlu0.b32.cont [6/16] 0.0, 128
        %3119 = vxpose.xlu0.b32.cont [7/16] 0.0, 128
        %3120 = vxpose.xlu0.b32.cont [8/16] 0.0, 128
        %3121 = vxpose.xlu0.b32.cont [9/16] 0.0, 128
        %3122 = vxpose.xlu0.b32.cont [10/16] 0.0, 128
        %3123 = vxpose.xlu0.b32.cont [11/16] 0.0, 128
        %3124 = vxpose.xlu0.b32.cont [12/16] 0.0, 128
        %3125 = vxpose.xlu0.b32.cont [13/16] 0.0, 128
        %3126 = vxpose.xlu0.b32.cont [14/16] 0.0, 128
        %3127 = vxpose.xlu0.b32.cont [15/16] 0.0, 128
        %3128 = vxpose.xlu0.b32.end [16/16] 0.0, 128
        %v3129 = vpop.trf.xlu0
        %v3130 = vpop.trf.xlu0
        %v3131 = vpop.trf.xlu0
        %v3132 = vpop.trf.xlu0
        %v3133 = vpop.trf.xlu0
        %v3134 = vpop.trf.xlu0
        %v3135 = vpop.trf.xlu0
        %v3136 = vpop.trf.xlu0
        %v3137 = vpop.trf.xlu0
        %v3138 = vpop.trf.xlu0
        %v3139 = vpop.trf.xlu0
        %v3140 = vpop.trf.xlu0
        %v3141 = vpop.trf.xlu0
        %v3142 = vpop.trf.xlu0
        %v3143 = vpop.trf.xlu0
        %v3144 = vpop.trf.xlu0
        %3145 = vxpose.xlu0.b32.start [1/16] %v258, 128
        %3146 = vxpose.xlu0.b32.cont [2/16] 0.0, 128
        %3147 = vxpose.xlu0.b32.cont [3/16] 0.0, 128
        %3148 = vxpose.xlu0.b32.cont [4/16] 0.0, 128
        %3149 = vxpose.xlu0.b32.cont [5/16] 0.0, 128
        %3150 = vxpose.xlu0.b32.cont [6/16] 0.0, 128
        %3151 = vxpose.xlu0.b32.cont [7/16] 0.0, 128
        %3152 = vxpose.xlu0.b32.cont [8/16] 0.0, 128
        %3153 = vxpose.xlu0.b32.cont [9/16] 0.0, 128
        %3154 = vxpose.xlu0.b32.cont [10/16] 0.0, 128
        %3155 = vxpose.xlu0.b32.cont [11/16] 0.0, 128
        %3156 = vxpose.xlu0.b32.cont [12/16] 0.0, 128
        %3157 = vxpose.xlu0.b32.cont [13/16] 0.0, 128
        %3158 = vxpose.xlu0.b32.cont [14/16] 0.0, 128
        %3159 = vxpose.xlu0.b32.cont [15/16] 0.0, 128
        %3160 = vxpose.xlu0.b32.end [16/16] 0.0, 128
        %v3161 = vpop.trf.xlu0
        %v3162 = vpop.trf.xlu0
        %v3163 = vpop.trf.xlu0
        %v3164 = vpop.trf.xlu0
        %v3165 = vpop.trf.xlu0
        %v3166 = vpop.trf.xlu0
        %v3167 = vpop.trf.xlu0
        %v3168 = vpop.trf.xlu0
        %v3169 = vpop.trf.xlu0
        %v3170 = vpop.trf.xlu0
        %v3171 = vpop.trf.xlu0
        %v3172 = vpop.trf.xlu0
        %v3173 = vpop.trf.xlu0
        %v3174 = vpop.trf.xlu0
        %v3175 = vpop.trf.xlu0
        %v3176 = vpop.trf.xlu0
        %3177 = vxpose.xlu0.b32.start [1/16] %v259, 128
        %3178 = vxpose.xlu0.b32.cont [2/16] 0.0, 128
        %3179 = vxpose.xlu0.b32.cont [3/16] 0.0, 128
        %3180 = vxpose.xlu0.b32.cont [4/16] 0.0, 128
        %3181 = vxpose.xlu0.b32.cont [5/16] 0.0, 128
        %3182 = vxpose.xlu0.b32.cont [6/16] 0.0, 128
        %3183 = vxpose.xlu0.b32.cont [7/16] 0.0, 128
        %3184 = vxpose.xlu0.b32.cont [8/16] 0.0, 128
        %3185 = vxpose.xlu0.b32.cont [9/16] 0.0, 128
        %3186 = vxpose.xlu0.b32.cont [10/16] 0.0, 128
        %3187 = vxpose.xlu0.b32.cont [11/16] 0.0, 128
        %3188 = vxpose.xlu0.b32.cont [12/16] 0.0, 128
        %3189 = vxpose.xlu0.b32.cont [13/16] 0.0, 128
        %3190 = vxpose.xlu0.b32.cont [14/16] 0.0, 128
        %3191 = vxpose.xlu0.b32.cont [15/16] 0.0, 128
        %3192 = vxpose.xlu0.b32.end [16/16] 0.0, 128
        %v3193 = vpop.trf.xlu0
        %v3194 = vpop.trf.xlu0
        %v3195 = vpop.trf.xlu0
        %v3196 = vpop.trf.xlu0
        %v3197 = vpop.trf.xlu0
        %v3198 = vpop.trf.xlu0
        %v3199 = vpop.trf.xlu0
        %v3200 = vpop.trf.xlu0
        %v3201 = vpop.trf.xlu0
        %v3202 = vpop.trf.xlu0
        %v3203 = vpop.trf.xlu0
        %v3204 = vpop.trf.xlu0
        %v3205 = vpop.trf.xlu0
        %v3206 = vpop.trf.xlu0
        %v3207 = vpop.trf.xlu0
        %v3208 = vpop.trf.xlu0
        %3209 = vxpose.xlu0.b32.start [1/16] %v260, 128
        %3210 = vxpose.xlu0.b32.cont [2/16] 0.0, 128
        %3211 = vxpose.xlu0.b32.cont [3/16] 0.0, 128
        %3212 = vxpose.xlu0.b32.cont [4/16] 0.0, 128
        %3213 = vxpose.xlu0.b32.cont [5/16] 0.0, 128
        %3214 = vxpose.xlu0.b32.cont [6/16] 0.0, 128
        %3215 = vxpose.xlu0.b32.cont [7/16] 0.0, 128
        %3216 = vxpose.xlu0.b32.cont [8/16] 0.0, 128
        %3217 = vxpose.xlu0.b32.cont [9/16] 0.0, 128
        %3218 = vxpose.xlu0.b32.cont [10/16] 0.0, 128
        %3219 = vxpose.xlu0.b32.cont [11/16] 0.0, 128
        %3220 = vxpose.xlu0.b32.cont [12/16] 0.0, 128
        %3221 = vxpose.xlu0.b32.cont [13/16] 0.0, 128
        %3222 = vxpose.xlu0.b32.cont [14/16] 0.0, 128
        %3223 = vxpose.xlu0.b32.cont [15/16] 0.0, 128
        %3224 = vxpose.xlu0.b32.end [16/16] 0.0, 128
        %v3225 = vpop.trf.xlu0
        %v3226 = vpop.trf.xlu0
        %v3227 = vpop.trf.xlu0
        %v3228 = vpop.trf.xlu0
        %v3229 = vpop.trf.xlu0
        %v3230 = vpop.trf.xlu0
        %v3231 = vpop.trf.xlu0
        %v3232 = vpop.trf.xlu0
        %v3233 = vpop.trf.xlu0
        %v3234 = vpop.trf.xlu0
        %v3235 = vpop.trf.xlu0
        %v3236 = vpop.trf.xlu0
        %v3237 = vpop.trf.xlu0
        %v3238 = vpop.trf.xlu0
        %v3239 = vpop.trf.xlu0
        %v3240 = vpop.trf.xlu0
        %3241 = vxpose.xlu0.b32.start [1/16] %v261, 128
        %3242 = vxpose.xlu0.b32.cont [2/16] 0.0, 128
        %3243 = vxpose.xlu0.b32.cont [3/16] 0.0, 128
        %3244 = vxpose.xlu0.b32.cont [4/16] 0.0, 128
        %3245 = vxpose.xlu0.b32.cont [5/16] 0.0, 128
        %3246 = vxpose.xlu0.b32.cont [6/16] 0.0, 128
        %3247 = vxpose.xlu0.b32.cont [7/16] 0.0, 128
        %3248 = vxpose.xlu0.b32.cont [8/16] 0.0, 128
        %3249 = vxpose.xlu0.b32.cont [9/16] 0.0, 128
        %3250 = vxpose.xlu0.b32.cont [10/16] 0.0, 128
        %3251 = vxpose.xlu0.b32.cont [11/16] 0.0, 128
        %3252 = vxpose.xlu0.b32.cont [12/16] 0.0, 128
        %3253 = vxpose.xlu0.b32.cont [13/16] 0.0, 128
        %3254 = vxpose.xlu0.b32.cont [14/16] 0.0, 128
        %3255 = vxpose.xlu0.b32.cont [15/16] 0.0, 128
        %3256 = vxpose.xlu0.b32.end [16/16] 0.0, 128
        %v3257 = vpop.trf.xlu0
        %v3258 = vpop.trf.xlu0
        %v3259 = vpop.trf.xlu0
        %v3260 = vpop.trf.xlu0
        %v3261 = vpop.trf.xlu0
        %v3262 = vpop.trf.xlu0
        %v3263 = vpop.trf.xlu0
        %v3264 = vpop.trf.xlu0
        %v3265 = vpop.trf.xlu0
        %v3266 = vpop.trf.xlu0
        %v3267 = vpop.trf.xlu0
        %v3268 = vpop.trf.xlu0
        %v3269 = vpop.trf.xlu0
        %v3270 = vpop.trf.xlu0
        %v3271 = vpop.trf.xlu0
        %v3272 = vpop.trf.xlu0
        %3273 = vxpose.xlu0.b32.start [1/16] %v262, 128
        %3274 = vxpose.xlu0.b32.cont [2/16] 0.0, 128
        %3275 = vxpose.xlu0.b32.cont [3/16] 0.0, 128
        %3276 = vxpose.xlu0.b32.cont [4/16] 0.0, 128
        %3277 = vxpose.xlu0.b32.cont [5/16] 0.0, 128
        %3278 = vxpose.xlu0.b32.cont [6/16] 0.0, 128
        %3279 = vxpose.xlu0.b32.cont [7/16] 0.0, 128
        %3280 = vxpose.xlu0.b32.cont [8/16] 0.0, 128
        %3281 = vxpose.xlu0.b32.cont [9/16] 0.0, 128
        %3282 = vxpose.xlu0.b32.cont [10/16] 0.0, 128
        %3283 = vxpose.xlu0.b32.cont [11/16] 0.0, 128
        %3284 = vxpose.xlu0.b32.cont [12/16] 0.0, 128
        %3285 = vxpose.xlu0.b32.cont [13/16] 0.0, 128
        %3286 = vxpose.xlu0.b32.cont [14/16] 0.0, 128
        %3287 = vxpose.xlu0.b32.cont [15/16] 0.0, 128
        %3288 = vxpose.xlu0.b32.end [16/16] 0.0, 128
        %v3289 = vpop.trf.xlu0
        %v3290 = vpop.trf.xlu0
        %v3291 = vpop.trf.xlu0
        %v3292 = vpop.trf.xlu0
        %v3293 = vpop.trf.xlu0
        %v3294 = vpop.trf.xlu0
        %v3295 = vpop.trf.xlu0
        %v3296 = vpop.trf.xlu0
        %v3297 = vpop.trf.xlu0
        %v3298 = vpop.trf.xlu0
        %v3299 = vpop.trf.xlu0
        %v3300 = vpop.trf.xlu0
        %v3301 = vpop.trf.xlu0
        %v3302 = vpop.trf.xlu0
        %v3303 = vpop.trf.xlu0
        %v3304 = vpop.trf.xlu0
        %3305 = vxpose.xlu0.b32.start [1/16] %v263, 128
        %3306 = vxpose.xlu0.b32.cont [2/16] 0.0, 128
        %3307 = vxpose.xlu0.b32.cont [3/16] 0.0, 128
        %3308 = vxpose.xlu0.b32.cont [4/16] 0.0, 128
        %3309 = vxpose.xlu0.b32.cont [5/16] 0.0, 128
        %3310 = vxpose.xlu0.b32.cont [6/16] 0.0, 128
        %3311 = vxpose.xlu0.b32.cont [7/16] 0.0, 128
        %3312 = vxpose.xlu0.b32.cont [8/16] 0.0, 128
        %3313 = vxpose.xlu0.b32.cont [9/16] 0.0, 128
        %3314 = vxpose.xlu0.b32.cont [10/16] 0.0, 128
        %3315 = vxpose.xlu0.b32.cont [11/16] 0.0, 128
        %3316 = vxpose.xlu0.b32.cont [12/16] 0.0, 128
        %3317 = vxpose.xlu0.b32.cont [13/16] 0.0, 128
        %3318 = vxpose.xlu0.b32.cont [14/16] 0.0, 128
        %3319 = vxpose.xlu0.b32.cont [15/16] 0.0, 128
        %3320 = vxpose.xlu0.b32.end [16/16] 0.0, 128
        %v3321 = vpop.trf.xlu0
        %v3322 = vpop.trf.xlu0
        %v3323 = vpop.trf.xlu0
        %v3324 = vpop.trf.xlu0
        %v3325 = vpop.trf.xlu0
        %v3326 = vpop.trf.xlu0
        %v3327 = vpop.trf.xlu0
        %v3328 = vpop.trf.xlu0
        %v3329 = vpop.trf.xlu0
        %v3330 = vpop.trf.xlu0
        %v3331 = vpop.trf.xlu0
        %v3332 = vpop.trf.xlu0
        %v3333 = vpop.trf.xlu0
        %v3334 = vpop.trf.xlu0
        %v3335 = vpop.trf.xlu0
        %v3336 = vpop.trf.xlu0
        %3337 = vxpose.xlu0.b32.start [1/16] %v264, 128
        %3338 = vxpose.xlu0.b32.cont [2/16] 0.0, 128
        %3339 = vxpose.xlu0.b32.cont [3/16] 0.0, 128
        %3340 = vxpose.xlu0.b32.cont [4/16] 0.0, 128
        %3341 = vxpose.xlu0.b32.cont [5/16] 0.0, 128
        %3342 = vxpose.xlu0.b32.cont [6/16] 0.0, 128
        %3343 = vxpose.xlu0.b32.cont [7/16] 0.0, 128
        %3344 = vxpose.xlu0.b32.cont [8/16] 0.0, 128
        %3345 = vxpose.xlu0.b32.cont [9/16] 0.0, 128
        %3346 = vxpose.xlu0.b32.cont [10/16] 0.0, 128
        %3347 = vxpose.xlu0.b32.cont [11/16] 0.0, 128
        %3348 = vxpose.xlu0.b32.cont [12/16] 0.0, 128
        %3349 = vxpose.xlu0.b32.cont [13/16] 0.0, 128
        %3350 = vxpose.xlu0.b32.cont [14/16] 0.0, 128
        %3351 = vxpose.xlu0.b32.cont [15/16] 0.0, 128
        %3352 = vxpose.xlu0.b32.end [16/16] 0.0, 128
        %v3353 = vpop.trf.xlu0
        %v3354 = vpop.trf.xlu0
        %v3355 = vpop.trf.xlu0
        %v3356 = vpop.trf.xlu0
        %v3357 = vpop.trf.xlu0
        %v3358 = vpop.trf.xlu0
        %v3359 = vpop.trf.xlu0
        %v3360 = vpop.trf.xlu0
        %v3361 = vpop.trf.xlu0
        %v3362 = vpop.trf.xlu0
        %v3363 = vpop.trf.xlu0
        %v3364 = vpop.trf.xlu0
        %v3365 = vpop.trf.xlu0
        %v3366 = vpop.trf.xlu0
        %v3367 = vpop.trf.xlu0
        %v3368 = vpop.trf.xlu0
        %3369 = vxpose.xlu0.b32.start [1/16] %v265, 128
        %3370 = vxpose.xlu0.b32.cont [2/16] 0.0, 128
        %3371 = vxpose.xlu0.b32.cont [3/16] 0.0, 128
        %3372 = vxpose.xlu0.b32.cont [4/16] 0.0, 128
        %3373 = vxpose.xlu0.b32.cont [5/16] 0.0, 128
        %3374 = vxpose.xlu0.b32.cont [6/16] 0.0, 128
        %3375 = vxpose.xlu0.b32.cont [7/16] 0.0, 128
        %3376 = vxpose.xlu0.b32.cont [8/16] 0.0, 128
        %3377 = vxpose.xlu0.b32.cont [9/16] 0.0, 128
        %3378 = vxpose.xlu0.b32.cont [10/16] 0.0, 128
        %3379 = vxpose.xlu0.b32.cont [11/16] 0.0, 128
        %3380 = vxpose.xlu0.b32.cont [12/16] 0.0, 128
        %3381 = vxpose.xlu0.b32.cont [13/16] 0.0, 128
        %3382 = vxpose.xlu0.b32.cont [14/16] 0.0, 128
        %3383 = vxpose.xlu0.b32.cont [15/16] 0.0, 128
        %3384 = vxpose.xlu0.b32.end [16/16] 0.0, 128
        %v3385 = vpop.trf.xlu0
        %v3386 = vpop.trf.xlu0
        %v3387 = vpop.trf.xlu0
        %v3388 = vpop.trf.xlu0
        %v3389 = vpop.trf.xlu0
        %v3390 = vpop.trf.xlu0
        %v3391 = vpop.trf.xlu0
        %v3392 = vpop.trf.xlu0
        %v3393 = vpop.trf.xlu0
        %v3394 = vpop.trf.xlu0
        %v3395 = vpop.trf.xlu0
        %v3396 = vpop.trf.xlu0
        %v3397 = vpop.trf.xlu0
        %v3398 = vpop.trf.xlu0
        %v3399 = vpop.trf.xlu0
        %v3400 = vpop.trf.xlu0
        %3401 = vxpose.xlu0.b32.start [1/16] %v266, 128
        %3402 = vxpose.xlu0.b32.cont [2/16] 0.0, 128
        %3403 = vxpose.xlu0.b32.cont [3/16] 0.0, 128
        %3404 = vxpose.xlu0.b32.cont [4/16] 0.0, 128
        %3405 = vxpose.xlu0.b32.cont [5/16] 0.0, 128
        %3406 = vxpose.xlu0.b32.cont [6/16] 0.0, 128
        %3407 = vxpose.xlu0.b32.cont [7/16] 0.0, 128
        %3408 = vxpose.xlu0.b32.cont [8/16] 0.0, 128
        %3409 = vxpose.xlu0.b32.cont [9/16] 0.0, 128
        %3410 = vxpose.xlu0.b32.cont [10/16] 0.0, 128
        %3411 = vxpose.xlu0.b32.cont [11/16] 0.0, 128
        %3412 = vxpose.xlu0.b32.cont [12/16] 0.0, 128
        %3413 = vxpose.xlu0.b32.cont [13/16] 0.0, 128
        %3414 = vxpose.xlu0.b32.cont [14/16] 0.0, 128
        %3415 = vxpose.xlu0.b32.cont [15/16] 0.0, 128
        %3416 = vxpose.xlu0.b32.end [16/16] 0.0, 128
        %v3417 = vpop.trf.xlu0
        %v3418 = vpop.trf.xlu0
        %v3419 = vpop.trf.xlu0
        %v3420 = vpop.trf.xlu0
        %v3421 = vpop.trf.xlu0
        %v3422 = vpop.trf.xlu0
        %v3423 = vpop.trf.xlu0
        %v3424 = vpop.trf.xlu0
        %v3425 = vpop.trf.xlu0
        %v3426 = vpop.trf.xlu0
        %v3427 = vpop.trf.xlu0
        %v3428 = vpop.trf.xlu0
        %v3429 = vpop.trf.xlu0
        %v3430 = vpop.trf.xlu0
        %v3431 = vpop.trf.xlu0
        %v3432 = vpop.trf.xlu0
        %3433 = vxpose.xlu0.b32.start [1/16] %v267, 128
        %3434 = vxpose.xlu0.b32.cont [2/16] 0.0, 128
        %3435 = vxpose.xlu0.b32.cont [3/16] 0.0, 128
        %3436 = vxpose.xlu0.b32.cont [4/16] 0.0, 128
        %3437 = vxpose.xlu0.b32.cont [5/16] 0.0, 128
        %3438 = vxpose.xlu0.b32.cont [6/16] 0.0, 128
        %3439 = vxpose.xlu0.b32.cont [7/16] 0.0, 128
        %3440 = vxpose.xlu0.b32.cont [8/16] 0.0, 128
        %3441 = vxpose.xlu0.b32.cont [9/16] 0.0, 128
        %3442 = vxpose.xlu0.b32.cont [10/16] 0.0, 128
        %3443 = vxpose.xlu0.b32.cont [11/16] 0.0, 128
        %3444 = vxpose.xlu0.b32.cont [12/16] 0.0, 128
        %3445 = vxpose.xlu0.b32.cont [13/16] 0.0, 128
        %3446 = vxpose.xlu0.b32.cont [14/16] 0.0, 128
        %3447 = vxpose.xlu0.b32.cont [15/16] 0.0, 128
        %3448 = vxpose.xlu0.b32.end [16/16] 0.0, 128
        %v3449 = vpop.trf.xlu0
        %v3450 = vpop.trf.xlu0
        %v3451 = vpop.trf.xlu0
        %v3452 = vpop.trf.xlu0
        %v3453 = vpop.trf.xlu0
        %v3454 = vpop.trf.xlu0
        %v3455 = vpop.trf.xlu0
        %v3456 = vpop.trf.xlu0
        %v3457 = vpop.trf.xlu0
        %v3458 = vpop.trf.xlu0
        %v3459 = vpop.trf.xlu0
        %v3460 = vpop.trf.xlu0
        %v3461 = vpop.trf.xlu0
        %v3462 = vpop.trf.xlu0
        %v3463 = vpop.trf.xlu0
        %v3464 = vpop.trf.xlu0
        %3465 = vxpose.xlu0.b32.start [1/16] %v268, 128
        %3466 = vxpose.xlu0.b32.cont [2/16] 0.0, 128
        %3467 = vxpose.xlu0.b32.cont [3/16] 0.0, 128
        %3468 = vxpose.xlu0.b32.cont [4/16] 0.0, 128
        %3469 = vxpose.xlu0.b32.cont [5/16] 0.0, 128
        %3470 = vxpose.xlu0.b32.cont [6/16] 0.0, 128
        %3471 = vxpose.xlu0.b32.cont [7/16] 0.0, 128
        %3472 = vxpose.xlu0.b32.cont [8/16] 0.0, 128
        %3473 = vxpose.xlu0.b32.cont [9/16] 0.0, 128
        %3474 = vxpose.xlu0.b32.cont [10/16] 0.0, 128
        %3475 = vxpose.xlu0.b32.cont [11/16] 0.0, 128
        %3476 = vxpose.xlu0.b32.cont [12/16] 0.0, 128
        %3477 = vxpose.xlu0.b32.cont [13/16] 0.0, 128
        %3478 = vxpose.xlu0.b32.cont [14/16] 0.0, 128
        %3479 = vxpose.xlu0.b32.cont [15/16] 0.0, 128
        %3480 = vxpose.xlu0.b32.end [16/16] 0.0, 128
        %v3481 = vpop.trf.xlu0
        %v3482 = vpop.trf.xlu0
        %v3483 = vpop.trf.xlu0
        %v3484 = vpop.trf.xlu0
        %v3485 = vpop.trf.xlu0
        %v3486 = vpop.trf.xlu0
        %v3487 = vpop.trf.xlu0
        %v3488 = vpop.trf.xlu0
        %v3489 = vpop.trf.xlu0
        %v3490 = vpop.trf.xlu0
        %v3491 = vpop.trf.xlu0
        %v3492 = vpop.trf.xlu0
        %v3493 = vpop.trf.xlu0
        %v3494 = vpop.trf.xlu0
        %v3495 = vpop.trf.xlu0
        %v3496 = vpop.trf.xlu0
        %3497 = vxpose.xlu0.b32.start [1/16] %v269, 128
        %3498 = vxpose.xlu0.b32.cont [2/16] 0.0, 128
        %3499 = vxpose.xlu0.b32.cont [3/16] 0.0, 128
        %3500 = vxpose.xlu0.b32.cont [4/16] 0.0, 128
        %3501 = vxpose.xlu0.b32.cont [5/16] 0.0, 128
        %3502 = vxpose.xlu0.b32.cont [6/16] 0.0, 128
        %3503 = vxpose.xlu0.b32.cont [7/16] 0.0, 128
        %3504 = vxpose.xlu0.b32.cont [8/16] 0.0, 128
        %3505 = vxpose.xlu0.b32.cont [9/16] 0.0, 128
        %3506 = vxpose.xlu0.b32.cont [10/16] 0.0, 128
        %3507 = vxpose.xlu0.b32.cont [11/16] 0.0, 128
        %3508 = vxpose.xlu0.b32.cont [12/16] 0.0, 128
        %3509 = vxpose.xlu0.b32.cont [13/16] 0.0, 128
        %3510 = vxpose.xlu0.b32.cont [14/16] 0.0, 128
        %3511 = vxpose.xlu0.b32.cont [15/16] 0.0, 128
        %3512 = vxpose.xlu0.b32.end [16/16] 0.0, 128
        %v3513 = vpop.trf.xlu0
        %v3514 = vpop.trf.xlu0
        %v3515 = vpop.trf.xlu0
        %v3516 = vpop.trf.xlu0
        %v3517 = vpop.trf.xlu0
        %v3518 = vpop.trf.xlu0
        %v3519 = vpop.trf.xlu0
        %v3520 = vpop.trf.xlu0
        %v3521 = vpop.trf.xlu0
        %v3522 = vpop.trf.xlu0
        %v3523 = vpop.trf.xlu0
        %v3524 = vpop.trf.xlu0
        %v3525 = vpop.trf.xlu0
        %v3526 = vpop.trf.xlu0
        %v3527 = vpop.trf.xlu0
        %v3528 = vpop.trf.xlu0
        %3529 = vxpose.xlu0.b32.start [1/16] %v270, 128
        %3530 = vxpose.xlu0.b32.cont [2/16] 0.0, 128
        %3531 = vxpose.xlu0.b32.cont [3/16] 0.0, 128
        %3532 = vxpose.xlu0.b32.cont [4/16] 0.0, 128
        %3533 = vxpose.xlu0.b32.cont [5/16] 0.0, 128
        %3534 = vxpose.xlu0.b32.cont [6/16] 0.0, 128
        %3535 = vxpose.xlu0.b32.cont [7/16] 0.0, 128
        %3536 = vxpose.xlu0.b32.cont [8/16] 0.0, 128
        %3537 = vxpose.xlu0.b32.cont [9/16] 0.0, 128
        %3538 = vxpose.xlu0.b32.cont [10/16] 0.0, 128
        %3539 = vxpose.xlu0.b32.cont [11/16] 0.0, 128
        %3540 = vxpose.xlu0.b32.cont [12/16] 0.0, 128
        %3541 = vxpose.xlu0.b32.cont [13/16] 0.0, 128
        %3542 = vxpose.xlu0.b32.cont [14/16] 0.0, 128
        %3543 = vxpose.xlu0.b32.cont [15/16] 0.0, 128
        %3544 = vxpose.xlu0.b32.end [16/16] 0.0, 128
        %v3545 = vpop.trf.xlu0
        %v3546 = vpop.trf.xlu0
        %v3547 = vpop.trf.xlu0
        %v3548 = vpop.trf.xlu0
        %v3549 = vpop.trf.xlu0
        %v3550 = vpop.trf.xlu0
        %v3551 = vpop.trf.xlu0
        %v3552 = vpop.trf.xlu0
        %v3553 = vpop.trf.xlu0
        %v3554 = vpop.trf.xlu0
        %v3555 = vpop.trf.xlu0
        %v3556 = vpop.trf.xlu0
        %v3557 = vpop.trf.xlu0
        %v3558 = vpop.trf.xlu0
        %v3559 = vpop.trf.xlu0
        %v3560 = vpop.trf.xlu0
        %3561 = vxpose.xlu0.b32.start [1/16] %v271, 128
        %3562 = vxpose.xlu0.b32.cont [2/16] 0.0, 128
        %3563 = vxpose.xlu0.b32.cont [3/16] 0.0, 128
        %3564 = vxpose.xlu0.b32.cont [4/16] 0.0, 128
        %3565 = vxpose.xlu0.b32.cont [5/16] 0.0, 128
        %3566 = vxpose.xlu0.b32.cont [6/16] 0.0, 128
        %3567 = vxpose.xlu0.b32.cont [7/16] 0.0, 128
        %3568 = vxpose.xlu0.b32.cont [8/16] 0.0, 128
        %3569 = vxpose.xlu0.b32.cont [9/16] 0.0, 128
        %3570 = vxpose.xlu0.b32.cont [10/16] 0.0, 128
        %3571 = vxpose.xlu0.b32.cont [11/16] 0.0, 128
        %3572 = vxpose.xlu0.b32.cont [12/16] 0.0, 128
        %3573 = vxpose.xlu0.b32.cont [13/16] 0.0, 128
        %3574 = vxpose.xlu0.b32.cont [14/16] 0.0, 128
        %3575 = vxpose.xlu0.b32.cont [15/16] 0.0, 128
        %3576 = vxpose.xlu0.b32.end [16/16] 0.0, 128
        %v3577 = vpop.trf.xlu0
        %v3578 = vpop.trf.xlu0
        %v3579 = vpop.trf.xlu0
        %v3580 = vpop.trf.xlu0
        %v3581 = vpop.trf.xlu0
        %v3582 = vpop.trf.xlu0
        %v3583 = vpop.trf.xlu0
        %v3584 = vpop.trf.xlu0
        %v3585 = vpop.trf.xlu0
        %v3586 = vpop.trf.xlu0
        %v3587 = vpop.trf.xlu0
        %v3588 = vpop.trf.xlu0
        %v3589 = vpop.trf.xlu0
        %v3590 = vpop.trf.xlu0
        %v3591 = vpop.trf.xlu0
        %v3592 = vpop.trf.xlu0
        %3593 = vxpose.xlu0.b32.start [1/16] %v272, 128
        %3594 = vxpose.xlu0.b32.cont [2/16] 0.0, 128
        %3595 = vxpose.xlu0.b32.cont [3/16] 0.0, 128
        %3596 = vxpose.xlu0.b32.cont [4/16] 0.0, 128
        %3597 = vxpose.xlu0.b32.cont [5/16] 0.0, 128
        %3598 = vxpose.xlu0.b32.cont [6/16] 0.0, 128
        %3599 = vxpose.xlu0.b32.cont [7/16] 0.0, 128
        %3600 = vxpose.xlu0.b32.cont [8/16] 0.0, 128
        %3601 = vxpose.xlu0.b32.cont [9/16] 0.0, 128
        %3602 = vxpose.xlu0.b32.cont [10/16] 0.0, 128
        %3603 = vxpose.xlu0.b32.cont [11/16] 0.0, 128
        %3604 = vxpose.xlu0.b32.cont [12/16] 0.0, 128
        %3605 = vxpose.xlu0.b32.cont [13/16] 0.0, 128
        %3606 = vxpose.xlu0.b32.cont [14/16] 0.0, 128
        %3607 = vxpose.xlu0.b32.cont [15/16] 0.0, 128
        %3608 = vxpose.xlu0.b32.end [16/16] 0.0, 128
        %v3609 = vpop.trf.xlu0
        %v3610 = vpop.trf.xlu0
        %v3611 = vpop.trf.xlu0
        %v3612 = vpop.trf.xlu0
        %v3613 = vpop.trf.xlu0
        %v3614 = vpop.trf.xlu0
        %v3615 = vpop.trf.xlu0
        %v3616 = vpop.trf.xlu0
        %v3617 = vpop.trf.xlu0
        %v3618 = vpop.trf.xlu0
        %v3619 = vpop.trf.xlu0
        %v3620 = vpop.trf.xlu0
        %v3621 = vpop.trf.xlu0
        %v3622 = vpop.trf.xlu0
        %v3623 = vpop.trf.xlu0
        %v3624 = vpop.trf.xlu0
        %3625 = vxpose.xlu0.b32.start [1/16] %v273, 128
        %3626 = vxpose.xlu0.b32.cont [2/16] 0.0, 128
        %3627 = vxpose.xlu0.b32.cont [3/16] 0.0, 128
        %3628 = vxpose.xlu0.b32.cont [4/16] 0.0, 128
        %3629 = vxpose.xlu0.b32.cont [5/16] 0.0, 128
        %3630 = vxpose.xlu0.b32.cont [6/16] 0.0, 128
        %3631 = vxpose.xlu0.b32.cont [7/16] 0.0, 128
        %3632 = vxpose.xlu0.b32.cont [8/16] 0.0, 128
        %3633 = vxpose.xlu0.b32.cont [9/16] 0.0, 128
        %3634 = vxpose.xlu0.b32.cont [10/16] 0.0, 128
        %3635 = vxpose.xlu0.b32.cont [11/16] 0.0, 128
        %3636 = vxpose.xlu0.b32.cont [12/16] 0.0, 128
        %3637 = vxpose.xlu0.b32.cont [13/16] 0.0, 128
        %3638 = vxpose.xlu0.b32.cont [14/16] 0.0, 128
        %3639 = vxpose.xlu0.b32.cont [15/16] 0.0, 128
        %3640 = vxpose.xlu0.b32.end [16/16] 0.0, 128
        %v3641 = vpop.trf.xlu0
        %v3642 = vpop.trf.xlu0
        %v3643 = vpop.trf.xlu0
        %v3644 = vpop.trf.xlu0
        %v3645 = vpop.trf.xlu0
        %v3646 = vpop.trf.xlu0
        %v3647 = vpop.trf.xlu0
        %v3648 = vpop.trf.xlu0
        %v3649 = vpop.trf.xlu0
        %v3650 = vpop.trf.xlu0
        %v3651 = vpop.trf.xlu0
        %v3652 = vpop.trf.xlu0
        %v3653 = vpop.trf.xlu0
        %v3654 = vpop.trf.xlu0
        %v3655 = vpop.trf.xlu0
        %v3656 = vpop.trf.xlu0
        %3657 = vxpose.xlu0.b32.start [1/16] %v274, 128
        %3658 = vxpose.xlu0.b32.cont [2/16] 0.0, 128
        %3659 = vxpose.xlu0.b32.cont [3/16] 0.0, 128
        %3660 = vxpose.xlu0.b32.cont [4/16] 0.0, 128
        %3661 = vxpose.xlu0.b32.cont [5/16] 0.0, 128
        %3662 = vxpose.xlu0.b32.cont [6/16] 0.0, 128
        %3663 = vxpose.xlu0.b32.cont [7/16] 0.0, 128
        %3664 = vxpose.xlu0.b32.cont [8/16] 0.0, 128
        %3665 = vxpose.xlu0.b32.cont [9/16] 0.0, 128
        %3666 = vxpose.xlu0.b32.cont [10/16] 0.0, 128
        %3667 = vxpose.xlu0.b32.cont [11/16] 0.0, 128
        %3668 = vxpose.xlu0.b32.cont [12/16] 0.0, 128
        %3669 = vxpose.xlu0.b32.cont [13/16] 0.0, 128
        %3670 = vxpose.xlu0.b32.cont [14/16] 0.0, 128
        %3671 = vxpose.xlu0.b32.cont [15/16] 0.0, 128
        %3672 = vxpose.xlu0.b32.end [16/16] 0.0, 128
        %v3673 = vpop.trf.xlu0
        %v3674 = vpop.trf.xlu0
        %v3675 = vpop.trf.xlu0
        %v3676 = vpop.trf.xlu0
        %v3677 = vpop.trf.xlu0
        %v3678 = vpop.trf.xlu0
        %v3679 = vpop.trf.xlu0
        %v3680 = vpop.trf.xlu0
        %v3681 = vpop.trf.xlu0
        %v3682 = vpop.trf.xlu0
        %v3683 = vpop.trf.xlu0
        %v3684 = vpop.trf.xlu0
        %v3685 = vpop.trf.xlu0
        %v3686 = vpop.trf.xlu0
        %v3687 = vpop.trf.xlu0
        %v3688 = vpop.trf.xlu0
        %3689 = vxpose.xlu0.b32.start [1/16] %v275, 128
        %3690 = vxpose.xlu0.b32.cont [2/16] 0.0, 128
        %3691 = vxpose.xlu0.b32.cont [3/16] 0.0, 128
        %3692 = vxpose.xlu0.b32.cont [4/16] 0.0, 128
        %3693 = vxpose.xlu0.b32.cont [5/16] 0.0, 128
        %3694 = vxpose.xlu0.b32.cont [6/16] 0.0, 128
        %3695 = vxpose.xlu0.b32.cont [7/16] 0.0, 128
        %3696 = vxpose.xlu0.b32.cont [8/16] 0.0, 128
        %3697 = vxpose.xlu0.b32.cont [9/16] 0.0, 128
        %3698 = vxpose.xlu0.b32.cont [10/16] 0.0, 128
        %3699 = vxpose.xlu0.b32.cont [11/16] 0.0, 128
        %3700 = vxpose.xlu0.b32.cont [12/16] 0.0, 128
        %3701 = vxpose.xlu0.b32.cont [13/16] 0.0, 128
        %3702 = vxpose.xlu0.b32.cont [14/16] 0.0, 128
        %3703 = vxpose.xlu0.b32.cont [15/16] 0.0, 128
        %3704 = vxpose.xlu0.b32.end [16/16] 0.0, 128
        %v3705 = vpop.trf.xlu0
        %v3706 = vpop.trf.xlu0
        %v3707 = vpop.trf.xlu0
        %v3708 = vpop.trf.xlu0
        %v3709 = vpop.trf.xlu0
        %v3710 = vpop.trf.xlu0
        %v3711 = vpop.trf.xlu0
        %v3712 = vpop.trf.xlu0
        %v3713 = vpop.trf.xlu0
        %v3714 = vpop.trf.xlu0
        %v3715 = vpop.trf.xlu0
        %v3716 = vpop.trf.xlu0
        %v3717 = vpop.trf.xlu0
        %v3718 = vpop.trf.xlu0
        %v3719 = vpop.trf.xlu0
        %v3720 = vpop.trf.xlu0
        %3721 = vxpose.xlu0.b32.start [1/16] %v276, 128
        %3722 = vxpose.xlu0.b32.cont [2/16] 0.0, 128
        %3723 = vxpose.xlu0.b32.cont [3/16] 0.0, 128
        %3724 = vxpose.xlu0.b32.cont [4/16] 0.0, 128
        %3725 = vxpose.xlu0.b32.cont [5/16] 0.0, 128
        %3726 = vxpose.xlu0.b32.cont [6/16] 0.0, 128
        %3727 = vxpose.xlu0.b32.cont [7/16] 0.0, 128
        %3728 = vxpose.xlu0.b32.cont [8/16] 0.0, 128
        %3729 = vxpose.xlu0.b32.cont [9/16] 0.0, 128
        %3730 = vxpose.xlu0.b32.cont [10/16] 0.0, 128
        %3731 = vxpose.xlu0.b32.cont [11/16] 0.0, 128
        %3732 = vxpose.xlu0.b32.cont [12/16] 0.0, 128
        %3733 = vxpose.xlu0.b32.cont [13/16] 0.0, 128
        %3734 = vxpose.xlu0.b32.cont [14/16] 0.0, 128
        %3735 = vxpose.xlu0.b32.cont [15/16] 0.0, 128
        %3736 = vxpose.xlu0.b32.end [16/16] 0.0, 128
        %v3737 = vpop.trf.xlu0
        %v3738 = vpop.trf.xlu0
        %v3739 = vpop.trf.xlu0
        %v3740 = vpop.trf.xlu0
        %v3741 = vpop.trf.xlu0
        %v3742 = vpop.trf.xlu0
        %v3743 = vpop.trf.xlu0
        %v3744 = vpop.trf.xlu0
        %v3745 = vpop.trf.xlu0
        %v3746 = vpop.trf.xlu0
        %v3747 = vpop.trf.xlu0
        %v3748 = vpop.trf.xlu0
        %v3749 = vpop.trf.xlu0
        %v3750 = vpop.trf.xlu0
        %v3751 = vpop.trf.xlu0
        %v3752 = vpop.trf.xlu0
        %3753 = vxpose.xlu0.b32.start [1/16] %v277, 128
        %3754 = vxpose.xlu0.b32.cont [2/16] 0.0, 128
        %3755 = vxpose.xlu0.b32.cont [3/16] 0.0, 128
        %3756 = vxpose.xlu0.b32.cont [4/16] 0.0, 128
        %3757 = vxpose.xlu0.b32.cont [5/16] 0.0, 128
        %3758 = vxpose.xlu0.b32.cont [6/16] 0.0, 128
        %3759 = vxpose.xlu0.b32.cont [7/16] 0.0, 128
        %3760 = vxpose.xlu0.b32.cont [8/16] 0.0, 128
        %3761 = vxpose.xlu0.b32.cont [9/16] 0.0, 128
        %3762 = vxpose.xlu0.b32.cont [10/16] 0.0, 128
        %3763 = vxpose.xlu0.b32.cont [11/16] 0.0, 128
        %3764 = vxpose.xlu0.b32.cont [12/16] 0.0, 128
        %3765 = vxpose.xlu0.b32.cont [13/16] 0.0, 128
        %3766 = vxpose.xlu0.b32.cont [14/16] 0.0, 128
        %3767 = vxpose.xlu0.b32.cont [15/16] 0.0, 128
        %3768 = vxpose.xlu0.b32.end [16/16] 0.0, 128
        %v3769 = vpop.trf.xlu0
        %v3770 = vpop.trf.xlu0
        %v3771 = vpop.trf.xlu0
        %v3772 = vpop.trf.xlu0
        %v3773 = vpop.trf.xlu0
        %v3774 = vpop.trf.xlu0
        %v3775 = vpop.trf.xlu0
        %v3776 = vpop.trf.xlu0
        %v3777 = vpop.trf.xlu0
        %v3778 = vpop.trf.xlu0
        %v3779 = vpop.trf.xlu0
        %v3780 = vpop.trf.xlu0
        %v3781 = vpop.trf.xlu0
        %v3782 = vpop.trf.xlu0
        %v3783 = vpop.trf.xlu0
        %v3784 = vpop.trf.xlu0
        %3785 = vxpose.xlu0.b32.start [1/16] %v278, 128
        %3786 = vxpose.xlu0.b32.cont [2/16] 0.0, 128
        %3787 = vxpose.xlu0.b32.cont [3/16] 0.0, 128
        %3788 = vxpose.xlu0.b32.cont [4/16] 0.0, 128
        %3789 = vxpose.xlu0.b32.cont [5/16] 0.0, 128
        %3790 = vxpose.xlu0.b32.cont [6/16] 0.0, 128
        %3791 = vxpose.xlu0.b32.cont [7/16] 0.0, 128
        %3792 = vxpose.xlu0.b32.cont [8/16] 0.0, 128
        %3793 = vxpose.xlu0.b32.cont [9/16] 0.0, 128
        %3794 = vxpose.xlu0.b32.cont [10/16] 0.0, 128
        %3795 = vxpose.xlu0.b32.cont [11/16] 0.0, 128
        %3796 = vxpose.xlu0.b32.cont [12/16] 0.0, 128
        %3797 = vxpose.xlu0.b32.cont [13/16] 0.0, 128
        %3798 = vxpose.xlu0.b32.cont [14/16] 0.0, 128
        %3799 = vxpose.xlu0.b32.cont [15/16] 0.0, 128
        %3800 = vxpose.xlu0.b32.end [16/16] 0.0, 128
        %v3801 = vpop.trf.xlu0
        %v3802 = vpop.trf.xlu0
        %v3803 = vpop.trf.xlu0
        %v3804 = vpop.trf.xlu0
        %v3805 = vpop.trf.xlu0
        %v3806 = vpop.trf.xlu0
        %v3807 = vpop.trf.xlu0
        %v3808 = vpop.trf.xlu0
        %v3809 = vpop.trf.xlu0
        %v3810 = vpop.trf.xlu0
        %v3811 = vpop.trf.xlu0
        %v3812 = vpop.trf.xlu0
        %v3813 = vpop.trf.xlu0
        %v3814 = vpop.trf.xlu0
        %v3815 = vpop.trf.xlu0
        %v3816 = vpop.trf.xlu0
        %3817 = vxpose.xlu0.b32.start [1/16] %v279, 128
        %3818 = vxpose.xlu0.b32.cont [2/16] 0.0, 128
        %3819 = vxpose.xlu0.b32.cont [3/16] 0.0, 128
        %3820 = vxpose.xlu0.b32.cont [4/16] 0.0, 128
        %3821 = vxpose.xlu0.b32.cont [5/16] 0.0, 128
        %3822 = vxpose.xlu0.b32.cont [6/16] 0.0, 128
        %3823 = vxpose.xlu0.b32.cont [7/16] 0.0, 128
        %3824 = vxpose.xlu0.b32.cont [8/16] 0.0, 128
        %3825 = vxpose.xlu0.b32.cont [9/16] 0.0, 128
        %3826 = vxpose.xlu0.b32.cont [10/16] 0.0, 128
        %3827 = vxpose.xlu0.b32.cont [11/16] 0.0, 128
        %3828 = vxpose.xlu0.b32.cont [12/16] 0.0, 128
        %3829 = vxpose.xlu0.b32.cont [13/16] 0.0, 128
        %3830 = vxpose.xlu0.b32.cont [14/16] 0.0, 128
        %3831 = vxpose.xlu0.b32.cont [15/16] 0.0, 128
        %3832 = vxpose.xlu0.b32.end [16/16] 0.0, 128
        %v3833 = vpop.trf.xlu0
        %v3834 = vpop.trf.xlu0
        %v3835 = vpop.trf.xlu0
        %v3836 = vpop.trf.xlu0
        %v3837 = vpop.trf.xlu0
        %v3838 = vpop.trf.xlu0
        %v3839 = vpop.trf.xlu0
        %v3840 = vpop.trf.xlu0
        %v3841 = vpop.trf.xlu0
        %v3842 = vpop.trf.xlu0
        %v3843 = vpop.trf.xlu0
        %v3844 = vpop.trf.xlu0
        %v3845 = vpop.trf.xlu0
        %v3846 = vpop.trf.xlu0
        %v3847 = vpop.trf.xlu0
        %v3848 = vpop.trf.xlu0
        %3849 = vxpose.xlu0.b32.start [1/16] %v280, 128
        %3850 = vxpose.xlu0.b32.cont [2/16] 0.0, 128
        %3851 = vxpose.xlu0.b32.cont [3/16] 0.0, 128
        %3852 = vxpose.xlu0.b32.cont [4/16] 0.0, 128
        %3853 = vxpose.xlu0.b32.cont [5/16] 0.0, 128
        %3854 = vxpose.xlu0.b32.cont [6/16] 0.0, 128
        %3855 = vxpose.xlu0.b32.cont [7/16] 0.0, 128
        %3856 = vxpose.xlu0.b32.cont [8/16] 0.0, 128
        %3857 = vxpose.xlu0.b32.cont [9/16] 0.0, 128
        %3858 = vxpose.xlu0.b32.cont [10/16] 0.0, 128
        %3859 = vxpose.xlu0.b32.cont [11/16] 0.0, 128
        %3860 = vxpose.xlu0.b32.cont [12/16] 0.0, 128
        %3861 = vxpose.xlu0.b32.cont [13/16] 0.0, 128
        %3862 = vxpose.xlu0.b32.cont [14/16] 0.0, 128
        %3863 = vxpose.xlu0.b32.cont [15/16] 0.0, 128
        %3864 = vxpose.xlu0.b32.end [16/16] 0.0, 128
        %v3865 = vpop.trf.xlu0
        %v3866 = vpop.trf.xlu0
        %v3867 = vpop.trf.xlu0
        %v3868 = vpop.trf.xlu0
        %v3869 = vpop.trf.xlu0
        %v3870 = vpop.trf.xlu0
        %v3871 = vpop.trf.xlu0
        %v3872 = vpop.trf.xlu0
        %v3873 = vpop.trf.xlu0
        %v3874 = vpop.trf.xlu0
        %v3875 = vpop.trf.xlu0
        %v3876 = vpop.trf.xlu0
        %v3877 = vpop.trf.xlu0
        %v3878 = vpop.trf.xlu0
        %v3879 = vpop.trf.xlu0
        %v3880 = vpop.trf.xlu0
        %3881 = vxpose.xlu0.b32.start [1/16] %v281, 128
        %3882 = vxpose.xlu0.b32.cont [2/16] 0.0, 128
        %3883 = vxpose.xlu0.b32.cont [3/16] 0.0, 128
        %3884 = vxpose.xlu0.b32.cont [4/16] 0.0, 128
        %3885 = vxpose.xlu0.b32.cont [5/16] 0.0, 128
        %3886 = vxpose.xlu0.b32.cont [6/16] 0.0, 128
        %3887 = vxpose.xlu0.b32.cont [7/16] 0.0, 128
        %3888 = vxpose.xlu0.b32.cont [8/16] 0.0, 128
        %3889 = vxpose.xlu0.b32.cont [9/16] 0.0, 128
        %3890 = vxpose.xlu0.b32.cont [10/16] 0.0, 128
        %3891 = vxpose.xlu0.b32.cont [11/16] 0.0, 128
        %3892 = vxpose.xlu0.b32.cont [12/16] 0.0, 128
        %3893 = vxpose.xlu0.b32.cont [13/16] 0.0, 128
        %3894 = vxpose.xlu0.b32.cont [14/16] 0.0, 128
        %3895 = vxpose.xlu0.b32.cont [15/16] 0.0, 128
        %3896 = vxpose.xlu0.b32.end [16/16] 0.0, 128
        %v3897 = vpop.trf.xlu0
        %v3898 = vpop.trf.xlu0
        %v3899 = vpop.trf.xlu0
        %v3900 = vpop.trf.xlu0
        %v3901 = vpop.trf.xlu0
        %v3902 = vpop.trf.xlu0
        %v3903 = vpop.trf.xlu0
        %v3904 = vpop.trf.xlu0
        %v3905 = vpop.trf.xlu0
        %v3906 = vpop.trf.xlu0
        %v3907 = vpop.trf.xlu0
        %v3908 = vpop.trf.xlu0
        %v3909 = vpop.trf.xlu0
        %v3910 = vpop.trf.xlu0
        %v3911 = vpop.trf.xlu0
        %v3912 = vpop.trf.xlu0
        %3913 = vxpose.xlu0.b32.start [1/16] %v282, 128
        %3914 = vxpose.xlu0.b32.cont [2/16] 0.0, 128
        %3915 = vxpose.xlu0.b32.cont [3/16] 0.0, 128
        %3916 = vxpose.xlu0.b32.cont [4/16] 0.0, 128
        %3917 = vxpose.xlu0.b32.cont [5/16] 0.0, 128
        %3918 = vxpose.xlu0.b32.cont [6/16] 0.0, 128
        %3919 = vxpose.xlu0.b32.cont [7/16] 0.0, 128
        %3920 = vxpose.xlu0.b32.cont [8/16] 0.0, 128
        %3921 = vxpose.xlu0.b32.cont [9/16] 0.0, 128
        %3922 = vxpose.xlu0.b32.cont [10/16] 0.0, 128
        %3923 = vxpose.xlu0.b32.cont [11/16] 0.0, 128
        %3924 = vxpose.xlu0.b32.cont [12/16] 0.0, 128
        %3925 = vxpose.xlu0.b32.cont [13/16] 0.0, 128
        %3926 = vxpose.xlu0.b32.cont [14/16] 0.0, 128
        %3927 = vxpose.xlu0.b32.cont [15/16] 0.0, 128
        %3928 = vxpose.xlu0.b32.end [16/16] 0.0, 128
        %v3929 = vpop.trf.xlu0
        %v3930 = vpop.trf.xlu0
        %v3931 = vpop.trf.xlu0
        %v3932 = vpop.trf.xlu0
        %v3933 = vpop.trf.xlu0
        %v3934 = vpop.trf.xlu0
        %v3935 = vpop.trf.xlu0
        %v3936 = vpop.trf.xlu0
        %v3937 = vpop.trf.xlu0
        %v3938 = vpop.trf.xlu0
        %v3939 = vpop.trf.xlu0
        %v3940 = vpop.trf.xlu0
        %v3941 = vpop.trf.xlu0
        %v3942 = vpop.trf.xlu0
        %v3943 = vpop.trf.xlu0
        %v3944 = vpop.trf.xlu0
        %3945 = vxpose.xlu0.b32.start [1/16] %v283, 128
        %3946 = vxpose.xlu0.b32.cont [2/16] 0.0, 128
        %3947 = vxpose.xlu0.b32.cont [3/16] 0.0, 128
        %3948 = vxpose.xlu0.b32.cont [4/16] 0.0, 128
        %3949 = vxpose.xlu0.b32.cont [5/16] 0.0, 128
        %3950 = vxpose.xlu0.b32.cont [6/16] 0.0, 128
        %3951 = vxpose.xlu0.b32.cont [7/16] 0.0, 128
        %3952 = vxpose.xlu0.b32.cont [8/16] 0.0, 128
        %3953 = vxpose.xlu0.b32.cont [9/16] 0.0, 128
        %3954 = vxpose.xlu0.b32.cont [10/16] 0.0, 128
        %3955 = vxpose.xlu0.b32.cont [11/16] 0.0, 128
        %3956 = vxpose.xlu0.b32.cont [12/16] 0.0, 128
        %3957 = vxpose.xlu0.b32.cont [13/16] 0.0, 128
        %3958 = vxpose.xlu0.b32.cont [14/16] 0.0, 128
        %3959 = vxpose.xlu0.b32.cont [15/16] 0.0, 128
        %3960 = vxpose.xlu0.b32.end [16/16] 0.0, 128
        %v3961 = vpop.trf.xlu0
        %v3962 = vpop.trf.xlu0
        %v3963 = vpop.trf.xlu0
        %v3964 = vpop.trf.xlu0
        %v3965 = vpop.trf.xlu0
        %v3966 = vpop.trf.xlu0
        %v3967 = vpop.trf.xlu0
        %v3968 = vpop.trf.xlu0
        %v3969 = vpop.trf.xlu0
        %v3970 = vpop.trf.xlu0
        %v3971 = vpop.trf.xlu0
        %v3972 = vpop.trf.xlu0
        %v3973 = vpop.trf.xlu0
        %v3974 = vpop.trf.xlu0
        %v3975 = vpop.trf.xlu0
        %v3976 = vpop.trf.xlu0
        %3977 = vxpose.xlu0.b32.start [1/16] %v284, 128
        %3978 = vxpose.xlu0.b32.cont [2/16] 0.0, 128
        %3979 = vxpose.xlu0.b32.cont [3/16] 0.0, 128
        %3980 = vxpose.xlu0.b32.cont [4/16] 0.0, 128
        %3981 = vxpose.xlu0.b32.cont [5/16] 0.0, 128
        %3982 = vxpose.xlu0.b32.cont [6/16] 0.0, 128
        %3983 = vxpose.xlu0.b32.cont [7/16] 0.0, 128
        %3984 = vxpose.xlu0.b32.cont [8/16] 0.0, 128
        %3985 = vxpose.xlu0.b32.cont [9/16] 0.0, 128
        %3986 = vxpose.xlu0.b32.cont [10/16] 0.0, 128
        %3987 = vxpose.xlu0.b32.cont [11/16] 0.0, 128
        %3988 = vxpose.xlu0.b32.cont [12/16] 0.0, 128
        %3989 = vxpose.xlu0.b32.cont [13/16] 0.0, 128
        %3990 = vxpose.xlu0.b32.cont [14/16] 0.0, 128
        %3991 = vxpose.xlu0.b32.cont [15/16] 0.0, 128
        %3992 = vxpose.xlu0.b32.end [16/16] 0.0, 128
        %v3993 = vpop.trf.xlu0
        %v3994 = vpop.trf.xlu0
        %v3995 = vpop.trf.xlu0
        %v3996 = vpop.trf.xlu0
        %v3997 = vpop.trf.xlu0
        %v3998 = vpop.trf.xlu0
        %v3999 = vpop.trf.xlu0
        %v4000 = vpop.trf.xlu0
        %v4001 = vpop.trf.xlu0
        %v4002 = vpop.trf.xlu0
        %v4003 = vpop.trf.xlu0
        %v4004 = vpop.trf.xlu0
        %v4005 = vpop.trf.xlu0
        %v4006 = vpop.trf.xlu0
        %v4007 = vpop.trf.xlu0
        %v4008 = vpop.trf.xlu0
        %4009 = vxpose.xlu0.b32.start [1/16] %v285, 128
        %4010 = vxpose.xlu0.b32.cont [2/16] 0.0, 128
        %4011 = vxpose.xlu0.b32.cont [3/16] 0.0, 128
        %4012 = vxpose.xlu0.b32.cont [4/16] 0.0, 128
        %4013 = vxpose.xlu0.b32.cont [5/16] 0.0, 128
        %4014 = vxpose.xlu0.b32.cont [6/16] 0.0, 128
        %4015 = vxpose.xlu0.b32.cont [7/16] 0.0, 128
        %4016 = vxpose.xlu0.b32.cont [8/16] 0.0, 128
        %4017 = vxpose.xlu0.b32.cont [9/16] 0.0, 128
        %4018 = vxpose.xlu0.b32.cont [10/16] 0.0, 128
        %4019 = vxpose.xlu0.b32.cont [11/16] 0.0, 128
        %4020 = vxpose.xlu0.b32.cont [12/16] 0.0, 128
        %4021 = vxpose.xlu0.b32.cont [13/16] 0.0, 128
        %4022 = vxpose.xlu0.b32.cont [14/16] 0.0, 128
        %4023 = vxpose.xlu0.b32.cont [15/16] 0.0, 128
        %4024 = vxpose.xlu0.b32.end [16/16] 0.0, 128
        %v4025 = vpop.trf.xlu0
        %v4026 = vpop.trf.xlu0
        %v4027 = vpop.trf.xlu0
        %v4028 = vpop.trf.xlu0
        %v4029 = vpop.trf.xlu0
        %v4030 = vpop.trf.xlu0
        %v4031 = vpop.trf.xlu0
        %v4032 = vpop.trf.xlu0
        %v4033 = vpop.trf.xlu0
        %v4034 = vpop.trf.xlu0
        %v4035 = vpop.trf.xlu0
        %v4036 = vpop.trf.xlu0
        %v4037 = vpop.trf.xlu0
        %v4038 = vpop.trf.xlu0
        %v4039 = vpop.trf.xlu0
        %v4040 = vpop.trf.xlu0
        %4041 = vxpose.xlu0.b32.start [1/16] %v286, 128
        %4042 = vxpose.xlu0.b32.cont [2/16] 0.0, 128
        %4043 = vxpose.xlu0.b32.cont [3/16] 0.0, 128
        %4044 = vxpose.xlu0.b32.cont [4/16] 0.0, 128
        %4045 = vxpose.xlu0.b32.cont [5/16] 0.0, 128
        %4046 = vxpose.xlu0.b32.cont [6/16] 0.0, 128
        %4047 = vxpose.xlu0.b32.cont [7/16] 0.0, 128
        %4048 = vxpose.xlu0.b32.cont [8/16] 0.0, 128
        %4049 = vxpose.xlu0.b32.cont [9/16] 0.0, 128
        %4050 = vxpose.xlu0.b32.cont [10/16] 0.0, 128
        %4051 = vxpose.xlu0.b32.cont [11/16] 0.0, 128
        %4052 = vxpose.xlu0.b32.cont [12/16] 0.0, 128
        %4053 = vxpose.xlu0.b32.cont [13/16] 0.0, 128
        %4054 = vxpose.xlu0.b32.cont [14/16] 0.0, 128
        %4055 = vxpose.xlu0.b32.cont [15/16] 0.0, 128
        %4056 = vxpose.xlu0.b32.end [16/16] 0.0, 128
        %v4057 = vpop.trf.xlu0
        %v4058 = vpop.trf.xlu0
        %v4059 = vpop.trf.xlu0
        %v4060 = vpop.trf.xlu0
        %v4061 = vpop.trf.xlu0
        %v4062 = vpop.trf.xlu0
        %v4063 = vpop.trf.xlu0
        %v4064 = vpop.trf.xlu0
        %v4065 = vpop.trf.xlu0
        %v4066 = vpop.trf.xlu0
        %v4067 = vpop.trf.xlu0
        %v4068 = vpop.trf.xlu0
        %v4069 = vpop.trf.xlu0
        %v4070 = vpop.trf.xlu0
        %v4071 = vpop.trf.xlu0
        %v4072 = vpop.trf.xlu0
        %4073 = vxpose.xlu0.b32.start [1/16] %v287, 128
        %4074 = vxpose.xlu0.b32.cont [2/16] 0.0, 128
        %4075 = vxpose.xlu0.b32.cont [3/16] 0.0, 128
        %4076 = vxpose.xlu0.b32.cont [4/16] 0.0, 128
        %4077 = vxpose.xlu0.b32.cont [5/16] 0.0, 128
        %4078 = vxpose.xlu0.b32.cont [6/16] 0.0, 128
        %4079 = vxpose.xlu0.b32.cont [7/16] 0.0, 128
        %4080 = vxpose.xlu0.b32.cont [8/16] 0.0, 128
        %4081 = vxpose.xlu0.b32.cont [9/16] 0.0, 128
        %4082 = vxpose.xlu0.b32.cont [10/16] 0.0, 128
        %4083 = vxpose.xlu0.b32.cont [11/16] 0.0, 128
        %4084 = vxpose.xlu0.b32.cont [12/16] 0.0, 128
        %4085 = vxpose.xlu0.b32.cont [13/16] 0.0, 128
        %4086 = vxpose.xlu0.b32.cont [14/16] 0.0, 128
        %4087 = vxpose.xlu0.b32.cont [15/16] 0.0, 128
        %4088 = vxpose.xlu0.b32.end [16/16] 0.0, 128
        %v4089 = vpop.trf.xlu0
        %v4090 = vpop.trf.xlu0
        %v4091 = vpop.trf.xlu0
        %v4092 = vpop.trf.xlu0
        %v4093 = vpop.trf.xlu0
        %v4094 = vpop.trf.xlu0
        %v4095 = vpop.trf.xlu0
        %v4096 = vpop.trf.xlu0
        %v4097 = vpop.trf.xlu0
        %v4098 = vpop.trf.xlu0
        %v4099 = vpop.trf.xlu0
        %v4100 = vpop.trf.xlu0
        %v4101 = vpop.trf.xlu0
        %v4102 = vpop.trf.xlu0
        %v4103 = vpop.trf.xlu0
        %v4104 = vpop.trf.xlu0
        %4105 = vxpose.xlu0.b32.start [1/16] %v288, 128
        %4106 = vxpose.xlu0.b32.cont [2/16] 0.0, 128
        %4107 = vxpose.xlu0.b32.cont [3/16] 0.0, 128
        %4108 = vxpose.xlu0.b32.cont [4/16] 0.0, 128
        %4109 = vxpose.xlu0.b32.cont [5/16] 0.0, 128
        %4110 = vxpose.xlu0.b32.cont [6/16] 0.0, 128
        %4111 = vxpose.xlu0.b32.cont [7/16] 0.0, 128
        %4112 = vxpose.xlu0.b32.cont [8/16] 0.0, 128
        %4113 = vxpose.xlu0.b32.cont [9/16] 0.0, 128
        %4114 = vxpose.xlu0.b32.cont [10/16] 0.0, 128
        %4115 = vxpose.xlu0.b32.cont [11/16] 0.0, 128
        %4116 = vxpose.xlu0.b32.cont [12/16] 0.0, 128
        %4117 = vxpose.xlu0.b32.cont [13/16] 0.0, 128
        %4118 = vxpose.xlu0.b32.cont [14/16] 0.0, 128
        %4119 = vxpose.xlu0.b32.cont [15/16] 0.0, 128
        %4120 = vxpose.xlu0.b32.end [16/16] 0.0, 128
        %v4121 = vpop.trf.xlu0
        %v4122 = vpop.trf.xlu0
        %v4123 = vpop.trf.xlu0
        %v4124 = vpop.trf.xlu0
        %v4125 = vpop.trf.xlu0
        %v4126 = vpop.trf.xlu0
        %v4127 = vpop.trf.xlu0
        %v4128 = vpop.trf.xlu0
        %v4129 = vpop.trf.xlu0
        %v4130 = vpop.trf.xlu0
        %v4131 = vpop.trf.xlu0
        %v4132 = vpop.trf.xlu0
        %v4133 = vpop.trf.xlu0
        %v4134 = vpop.trf.xlu0
        %v4135 = vpop.trf.xlu0
        %v4136 = vpop.trf.xlu0
        %4137 = vxpose.xlu0.b32.start [1/16] %v289, 128
        %4138 = vxpose.xlu0.b32.cont [2/16] 0.0, 128
        %4139 = vxpose.xlu0.b32.cont [3/16] 0.0, 128
        %4140 = vxpose.xlu0.b32.cont [4/16] 0.0, 128
        %4141 = vxpose.xlu0.b32.cont [5/16] 0.0, 128
        %4142 = vxpose.xlu0.b32.cont [6/16] 0.0, 128
        %4143 = vxpose.xlu0.b32.cont [7/16] 0.0, 128
        %4144 = vxpose.xlu0.b32.cont [8/16] 0.0, 128
        %4145 = vxpose.xlu0.b32.cont [9/16] 0.0, 128
        %4146 = vxpose.xlu0.b32.cont [10/16] 0.0, 128
        %4147 = vxpose.xlu0.b32.cont [11/16] 0.0, 128
        %4148 = vxpose.xlu0.b32.cont [12/16] 0.0, 128
        %4149 = vxpose.xlu0.b32.cont [13/16] 0.0, 128
        %4150 = vxpose.xlu0.b32.cont [14/16] 0.0, 128
        %4151 = vxpose.xlu0.b32.cont [15/16] 0.0, 128
        %4152 = vxpose.xlu0.b32.end [16/16] 0.0, 128
        %v4153 = vpop.trf.xlu0
        %v4154 = vpop.trf.xlu0
        %v4155 = vpop.trf.xlu0
        %v4156 = vpop.trf.xlu0
        %v4157 = vpop.trf.xlu0
        %v4158 = vpop.trf.xlu0
        %v4159 = vpop.trf.xlu0
        %v4160 = vpop.trf.xlu0
        %v4161 = vpop.trf.xlu0
        %v4162 = vpop.trf.xlu0
        %v4163 = vpop.trf.xlu0
        %v4164 = vpop.trf.xlu0
        %v4165 = vpop.trf.xlu0
        %v4166 = vpop.trf.xlu0
        %v4167 = vpop.trf.xlu0
        %v4168 = vpop.trf.xlu0
        %4169 = vxpose.xlu0.b32.start [1/16] %v290, 128
        %4170 = vxpose.xlu0.b32.cont [2/16] 0.0, 128
        %4171 = vxpose.xlu0.b32.cont [3/16] 0.0, 128
        %4172 = vxpose.xlu0.b32.cont [4/16] 0.0, 128
        %4173 = vxpose.xlu0.b32.cont [5/16] 0.0, 128
        %4174 = vxpose.xlu0.b32.cont [6/16] 0.0, 128
        %4175 = vxpose.xlu0.b32.cont [7/16] 0.0, 128
        %4176 = vxpose.xlu0.b32.cont [8/16] 0.0, 128
        %4177 = vxpose.xlu0.b32.cont [9/16] 0.0, 128
        %4178 = vxpose.xlu0.b32.cont [10/16] 0.0, 128
        %4179 = vxpose.xlu0.b32.cont [11/16] 0.0, 128
        %4180 = vxpose.xlu0.b32.cont [12/16] 0.0, 128
        %4181 = vxpose.xlu0.b32.cont [13/16] 0.0, 128
        %4182 = vxpose.xlu0.b32.cont [14/16] 0.0, 128
        %4183 = vxpose.xlu0.b32.cont [15/16] 0.0, 128
        %4184 = vxpose.xlu0.b32.end [16/16] 0.0, 128
        %v4185 = vpop.trf.xlu0
        %v4186 = vpop.trf.xlu0
        %v4187 = vpop.trf.xlu0
        %v4188 = vpop.trf.xlu0
        %v4189 = vpop.trf.xlu0
        %v4190 = vpop.trf.xlu0
        %v4191 = vpop.trf.xlu0
        %v4192 = vpop.trf.xlu0
        %v4193 = vpop.trf.xlu0
        %v4194 = vpop.trf.xlu0
        %v4195 = vpop.trf.xlu0
        %v4196 = vpop.trf.xlu0
        %v4197 = vpop.trf.xlu0
        %v4198 = vpop.trf.xlu0
        %v4199 = vpop.trf.xlu0
        %v4200 = vpop.trf.xlu0
        %4201 = vxpose.xlu0.b32.start [1/16] %v291, 128
        %4202 = vxpose.xlu0.b32.cont [2/16] 0.0, 128
        %4203 = vxpose.xlu0.b32.cont [3/16] 0.0, 128
        %4204 = vxpose.xlu0.b32.cont [4/16] 0.0, 128
        %4205 = vxpose.xlu0.b32.cont [5/16] 0.0, 128
        %4206 = vxpose.xlu0.b32.cont [6/16] 0.0, 128
        %4207 = vxpose.xlu0.b32.cont [7/16] 0.0, 128
        %4208 = vxpose.xlu0.b32.cont [8/16] 0.0, 128
        %4209 = vxpose.xlu0.b32.cont [9/16] 0.0, 128
        %4210 = vxpose.xlu0.b32.cont [10/16] 0.0, 128
        %4211 = vxpose.xlu0.b32.cont [11/16] 0.0, 128
        %4212 = vxpose.xlu0.b32.cont [12/16] 0.0, 128
        %4213 = vxpose.xlu0.b32.cont [13/16] 0.0, 128
        %4214 = vxpose.xlu0.b32.cont [14/16] 0.0, 128
        %4215 = vxpose.xlu0.b32.cont [15/16] 0.0, 128
        %4216 = vxpose.xlu0.b32.end [16/16] 0.0, 128
        %v4217 = vpop.trf.xlu0
        %v4218 = vpop.trf.xlu0
        %v4219 = vpop.trf.xlu0
        %v4220 = vpop.trf.xlu0
        %v4221 = vpop.trf.xlu0
        %v4222 = vpop.trf.xlu0
        %v4223 = vpop.trf.xlu0
        %v4224 = vpop.trf.xlu0
        %v4225 = vpop.trf.xlu0
        %v4226 = vpop.trf.xlu0
        %v4227 = vpop.trf.xlu0
        %v4228 = vpop.trf.xlu0
        %v4229 = vpop.trf.xlu0
        %v4230 = vpop.trf.xlu0
        %v4231 = vpop.trf.xlu0
        %v4232 = vpop.trf.xlu0
        %4233 = vxpose.xlu0.b32.start [1/16] %v292, 128
        %4234 = vxpose.xlu0.b32.cont [2/16] 0.0, 128
        %4235 = vxpose.xlu0.b32.cont [3/16] 0.0, 128
        %4236 = vxpose.xlu0.b32.cont [4/16] 0.0, 128
        %4237 = vxpose.xlu0.b32.cont [5/16] 0.0, 128
        %4238 = vxpose.xlu0.b32.cont [6/16] 0.0, 128
        %4239 = vxpose.xlu0.b32.cont [7/16] 0.0, 128
        %4240 = vxpose.xlu0.b32.cont [8/16] 0.0, 128
        %4241 = vxpose.xlu0.b32.cont [9/16] 0.0, 128
        %4242 = vxpose.xlu0.b32.cont [10/16] 0.0, 128
        %4243 = vxpose.xlu0.b32.cont [11/16] 0.0, 128
        %4244 = vxpose.xlu0.b32.cont [12/16] 0.0, 128
        %4245 = vxpose.xlu0.b32.cont [13/16] 0.0, 128
        %4246 = vxpose.xlu0.b32.cont [14/16] 0.0, 128
        %4247 = vxpose.xlu0.b32.cont [15/16] 0.0, 128
        %4248 = vxpose.xlu0.b32.end [16/16] 0.0, 128
        %v4249 = vpop.trf.xlu0
        %v4250 = vpop.trf.xlu0
        %v4251 = vpop.trf.xlu0
        %v4252 = vpop.trf.xlu0
        %v4253 = vpop.trf.xlu0
        %v4254 = vpop.trf.xlu0
        %v4255 = vpop.trf.xlu0
        %v4256 = vpop.trf.xlu0
        %v4257 = vpop.trf.xlu0
        %v4258 = vpop.trf.xlu0
        %v4259 = vpop.trf.xlu0
        %v4260 = vpop.trf.xlu0
        %v4261 = vpop.trf.xlu0
        %v4262 = vpop.trf.xlu0
        %v4263 = vpop.trf.xlu0
        %v4264 = vpop.trf.xlu0
        %4265 = vxpose.xlu0.b32.start [1/16] %v293, 128
        %4266 = vxpose.xlu0.b32.cont [2/16] 0.0, 128
        %4267 = vxpose.xlu0.b32.cont [3/16] 0.0, 128
        %4268 = vxpose.xlu0.b32.cont [4/16] 0.0, 128
        %4269 = vxpose.xlu0.b32.cont [5/16] 0.0, 128
        %4270 = vxpose.xlu0.b32.cont [6/16] 0.0, 128
        %4271 = vxpose.xlu0.b32.cont [7/16] 0.0, 128
        %4272 = vxpose.xlu0.b32.cont [8/16] 0.0, 128
        %4273 = vxpose.xlu0.b32.cont [9/16] 0.0, 128
        %4274 = vxpose.xlu0.b32.cont [10/16] 0.0, 128
        %4275 = vxpose.xlu0.b32.cont [11/16] 0.0, 128
        %4276 = vxpose.xlu0.b32.cont [12/16] 0.0, 128
        %4277 = vxpose.xlu0.b32.cont [13/16] 0.0, 128
        %4278 = vxpose.xlu0.b32.cont [14/16] 0.0, 128
        %4279 = vxpose.xlu0.b32.cont [15/16] 0.0, 128
        %4280 = vxpose.xlu0.b32.end [16/16] 0.0, 128
        %v4281 = vpop.trf.xlu0
        %v4282 = vpop.trf.xlu0
        %v4283 = vpop.trf.xlu0
        %v4284 = vpop.trf.xlu0
        %v4285 = vpop.trf.xlu0
        %v4286 = vpop.trf.xlu0
        %v4287 = vpop.trf.xlu0
        %v4288 = vpop.trf.xlu0
        %v4289 = vpop.trf.xlu0
        %v4290 = vpop.trf.xlu0
        %v4291 = vpop.trf.xlu0
        %v4292 = vpop.trf.xlu0
        %v4293 = vpop.trf.xlu0
        %v4294 = vpop.trf.xlu0
        %v4295 = vpop.trf.xlu0
        %v4296 = vpop.trf.xlu0
        %4297 = vxpose.xlu0.b32.start [1/16] %v294, 128
        %4298 = vxpose.xlu0.b32.cont [2/16] 0.0, 128
        %4299 = vxpose.xlu0.b32.cont [3/16] 0.0, 128
        %4300 = vxpose.xlu0.b32.cont [4/16] 0.0, 128
        %4301 = vxpose.xlu0.b32.cont [5/16] 0.0, 128
        %4302 = vxpose.xlu0.b32.cont [6/16] 0.0, 128
        %4303 = vxpose.xlu0.b32.cont [7/16] 0.0, 128
        %4304 = vxpose.xlu0.b32.cont [8/16] 0.0, 128
        %4305 = vxpose.xlu0.b32.cont [9/16] 0.0, 128
        %4306 = vxpose.xlu0.b32.cont [10/16] 0.0, 128
        %4307 = vxpose.xlu0.b32.cont [11/16] 0.0, 128
        %4308 = vxpose.xlu0.b32.cont [12/16] 0.0, 128
        %4309 = vxpose.xlu0.b32.cont [13/16] 0.0, 128
        %4310 = vxpose.xlu0.b32.cont [14/16] 0.0, 128
        %4311 = vxpose.xlu0.b32.cont [15/16] 0.0, 128
        %4312 = vxpose.xlu0.b32.end [16/16] 0.0, 128
        %v4313 = vpop.trf.xlu0
        %v4314 = vpop.trf.xlu0
        %v4315 = vpop.trf.xlu0
        %v4316 = vpop.trf.xlu0
        %v4317 = vpop.trf.xlu0
        %v4318 = vpop.trf.xlu0
        %v4319 = vpop.trf.xlu0
        %v4320 = vpop.trf.xlu0
        %v4321 = vpop.trf.xlu0
        %v4322 = vpop.trf.xlu0
        %v4323 = vpop.trf.xlu0
        %v4324 = vpop.trf.xlu0
        %v4325 = vpop.trf.xlu0
        %v4326 = vpop.trf.xlu0
        %v4327 = vpop.trf.xlu0
        %v4328 = vpop.trf.xlu0
        %4329 = vxpose.xlu0.b32.start [1/16] %v295, 128
        %4330 = vxpose.xlu0.b32.cont [2/16] 0.0, 128
        %4331 = vxpose.xlu0.b32.cont [3/16] 0.0, 128
        %4332 = vxpose.xlu0.b32.cont [4/16] 0.0, 128
        %4333 = vxpose.xlu0.b32.cont [5/16] 0.0, 128
        %4334 = vxpose.xlu0.b32.cont [6/16] 0.0, 128
        %4335 = vxpose.xlu0.b32.cont [7/16] 0.0, 128
        %4336 = vxpose.xlu0.b32.cont [8/16] 0.0, 128
        %4337 = vxpose.xlu0.b32.cont [9/16] 0.0, 128
        %4338 = vxpose.xlu0.b32.cont [10/16] 0.0, 128
        %4339 = vxpose.xlu0.b32.cont [11/16] 0.0, 128
        %4340 = vxpose.xlu0.b32.cont [12/16] 0.0, 128
        %4341 = vxpose.xlu0.b32.cont [13/16] 0.0, 128
        %4342 = vxpose.xlu0.b32.cont [14/16] 0.0, 128
        %4343 = vxpose.xlu0.b32.cont [15/16] 0.0, 128
        %4344 = vxpose.xlu0.b32.end [16/16] 0.0, 128
        %v4345 = vpop.trf.xlu0
        %v4346 = vpop.trf.xlu0
        %v4347 = vpop.trf.xlu0
        %v4348 = vpop.trf.xlu0
        %v4349 = vpop.trf.xlu0
        %v4350 = vpop.trf.xlu0
        %v4351 = vpop.trf.xlu0
        %v4352 = vpop.trf.xlu0
        %v4353 = vpop.trf.xlu0
        %v4354 = vpop.trf.xlu0
        %v4355 = vpop.trf.xlu0
        %v4356 = vpop.trf.xlu0
        %v4357 = vpop.trf.xlu0
        %v4358 = vpop.trf.xlu0
        %v4359 = vpop.trf.xlu0
        %v4360 = vpop.trf.xlu0
        %4361 = vxpose.xlu0.b32.start [1/16] %v296, 128
        %4362 = vxpose.xlu0.b32.cont [2/16] 0.0, 128
        %4363 = vxpose.xlu0.b32.cont [3/16] 0.0, 128
        %4364 = vxpose.xlu0.b32.cont [4/16] 0.0, 128
        %4365 = vxpose.xlu0.b32.cont [5/16] 0.0, 128
        %4366 = vxpose.xlu0.b32.cont [6/16] 0.0, 128
        %4367 = vxpose.xlu0.b32.cont [7/16] 0.0, 128
        %4368 = vxpose.xlu0.b32.cont [8/16] 0.0, 128
        %4369 = vxpose.xlu0.b32.cont [9/16] 0.0, 128
        %4370 = vxpose.xlu0.b32.cont [10/16] 0.0, 128
        %4371 = vxpose.xlu0.b32.cont [11/16] 0.0, 128
        %4372 = vxpose.xlu0.b32.cont [12/16] 0.0, 128
        %4373 = vxpose.xlu0.b32.cont [13/16] 0.0, 128
        %4374 = vxpose.xlu0.b32.cont [14/16] 0.0, 128
        %4375 = vxpose.xlu0.b32.cont [15/16] 0.0, 128
        %4376 = vxpose.xlu0.b32.end [16/16] 0.0, 128
        %v4377 = vpop.trf.xlu0
        %v4378 = vpop.trf.xlu0
        %v4379 = vpop.trf.xlu0
        %v4380 = vpop.trf.xlu0
        %v4381 = vpop.trf.xlu0
        %v4382 = vpop.trf.xlu0
        %v4383 = vpop.trf.xlu0
        %v4384 = vpop.trf.xlu0
        %v4385 = vpop.trf.xlu0
        %v4386 = vpop.trf.xlu0
        %v4387 = vpop.trf.xlu0
        %v4388 = vpop.trf.xlu0
        %v4389 = vpop.trf.xlu0
        %v4390 = vpop.trf.xlu0
        %v4391 = vpop.trf.xlu0
        %v4392 = vpop.trf.xlu0
        %vm4393 = vcmask 64512
        %4394 = vst.msk [vmem:[%s153] sm:$0xff] %vm4393, %v313
        %4395 = vst.msk [vmem:[%s153 + $0x8] sm:$0xff] %vm4393, %v314
        %4396 = vst.msk [vmem:[%s153 + $0x10] sm:$0xff] %vm4393, %v315
        %4397 = vst.msk [vmem:[%s153 + $0x18] sm:$0xff] %vm4393, %v316
        %4398 = vst.msk [vmem:[%s153 + $0x20] sm:$0xff] %vm4393, %v317
        %4399 = vst.msk [vmem:[%s153 + $0x28] sm:$0xff] %vm4393, %v318
        %4400 = vst.msk [vmem:[%s153 + $0x30] sm:$0xff] %vm4393, %v319
        %4401 = vst.msk [vmem:[%s153 + $0x38] sm:$0xff] %vm4393, %v320
        %4402 = vst.msk [vmem:[%s153 + $0x40] sm:$0xff] %vm4393, %v321
        %4403 = vst.msk [vmem:[%s153 + $0x48] sm:$0xff] %vm4393, %v322
        %4404 = vst.msk [vmem:[%s153 + $0x50] sm:$0xff] %vm4393, %v323
        %4405 = vst.msk [vmem:[%s153 + $0x58] sm:$0xff] %vm4393, %v324
        %4406 = vst.msk [vmem:[%s153 + $0x60] sm:$0xff] %vm4393, %v325
        %4407 = vst.msk [vmem:[%s153 + $0x68] sm:$0xff] %vm4393, %v326
        %4408 = vst.msk [vmem:[%s153 + $0x70] sm:$0xff] %vm4393, %v327
        %4409 = vst.msk [vmem:[%s153 + $0x78] sm:$0xff] %vm4393, %v328
        %4410 = vst.msk [vmem:[%s153 + $0x80] sm:$0xff] %vm4393, %v345
        %4411 = vst.msk [vmem:[%s153 + $0x88] sm:$0xff] %vm4393, %v346
        %4412 = vst.msk [vmem:[%s153 + $0x90] sm:$0xff] %vm4393, %v347
        %4413 = vst.msk [vmem:[%s153 + $0x98] sm:$0xff] %vm4393, %v348
        %4414 = vst.msk [vmem:[%s153 + $0xa0] sm:$0xff] %vm4393, %v349
        %4415 = vst.msk [vmem:[%s153 + $0xa8] sm:$0xff] %vm4393, %v350
        %4416 = vst.msk [vmem:[%s153 + $0xb0] sm:$0xff] %vm4393, %v351
        %4417 = vst.msk [vmem:[%s153 + $0xb8] sm:$0xff] %vm4393, %v352
        %4418 = vst.msk [vmem:[%s153 + $0xc0] sm:$0xff] %vm4393, %v353
        %4419 = vst.msk [vmem:[%s153 + $0xc8] sm:$0xff] %vm4393, %v354
        %4420 = vst.msk [vmem:[%s153 + $0xd0] sm:$0xff] %vm4393, %v355
        %4421 = vst.msk [vmem:[%s153 + $0xd8] sm:$0xff] %vm4393, %v356
        %4422 = vst.msk [vmem:[%s153 + $0xe0] sm:$0xff] %vm4393, %v357
        %4423 = vst.msk [vmem:[%s153 + $0xe8] sm:$0xff] %vm4393, %v358
        %4424 = vst.msk [vmem:[%s153 + $0xf0] sm:$0xff] %vm4393, %v359
        %4425 = vst.msk [vmem:[%s153 + $0xf8] sm:$0xff] %vm4393, %v360
        %4426 = vst.msk [vmem:[%s153 + $0x100] sm:$0xff] %vm4393, %v377
        %4427 = vst.msk [vmem:[%s153 + $0x108] sm:$0xff] %vm4393, %v378
        %4428 = vst.msk [vmem:[%s153 + $0x110] sm:$0xff] %vm4393, %v379
        %4429 = vst.msk [vmem:[%s153 + $0x118] sm:$0xff] %vm4393, %v380
        %4430 = vst.msk [vmem:[%s153 + $0x120] sm:$0xff] %vm4393, %v381
        %4431 = vst.msk [vmem:[%s153 + $0x128] sm:$0xff] %vm4393, %v382
        %4432 = vst.msk [vmem:[%s153 + $0x130] sm:$0xff] %vm4393, %v383
        %4433 = vst.msk [vmem:[%s153 + $0x138] sm:$0xff] %vm4393, %v384
        %4434 = vst.msk [vmem:[%s153 + $0x140] sm:$0xff] %vm4393, %v385
        %4435 = vst.msk [vmem:[%s153 + $0x148] sm:$0xff] %vm4393, %v386
        %4436 = vst.msk [vmem:[%s153 + $0x150] sm:$0xff] %vm4393, %v387
        %4437 = vst.msk [vmem:[%s153 + $0x158] sm:$0xff] %vm4393, %v388
        %4438 = vst.msk [vmem:[%s153 + $0x160] sm:$0xff] %vm4393, %v389
        %4439 = vst.msk [vmem:[%s153 + $0x168] sm:$0xff] %vm4393, %v390
        %4440 = vst.msk [vmem:[%s153 + $0x170] sm:$0xff] %vm4393, %v391
        %4441 = vst.msk [vmem:[%s153 + $0x178] sm:$0xff] %vm4393, %v392
        %4442 = vst.msk [vmem:[%s153 + $0x180] sm:$0xff] %vm4393, %v409
        %4443 = vst.msk [vmem:[%s153 + $0x188] sm:$0xff] %vm4393, %v410
        %4444 = vst.msk [vmem:[%s153 + $0x190] sm:$0xff] %vm4393, %v411
        %4445 = vst.msk [vmem:[%s153 + $0x198] sm:$0xff] %vm4393, %v412
        %4446 = vst.msk [vmem:[%s153 + $0x1a0] sm:$0xff] %vm4393, %v413
        %4447 = vst.msk [vmem:[%s153 + $0x1a8] sm:$0xff] %vm4393, %v414
        %4448 = vst.msk [vmem:[%s153 + $0x1b0] sm:$0xff] %vm4393, %v415
        %4449 = vst.msk [vmem:[%s153 + $0x1b8] sm:$0xff] %vm4393, %v416
        %4450 = vst.msk [vmem:[%s153 + $0x1c0] sm:$0xff] %vm4393, %v417
        %4451 = vst.msk [vmem:[%s153 + $0x1c8] sm:$0xff] %vm4393, %v418
        %4452 = vst.msk [vmem:[%s153 + $0x1d0] sm:$0xff] %vm4393, %v419
        %4453 = vst.msk [vmem:[%s153 + $0x1d8] sm:$0xff] %vm4393, %v420
        %4454 = vst.msk [vmem:[%s153 + $0x1e0] sm:$0xff] %vm4393, %v421
        %4455 = vst.msk [vmem:[%s153 + $0x1e8] sm:$0xff] %vm4393, %v422
        %4456 = vst.msk [vmem:[%s153 + $0x1f0] sm:$0xff] %vm4393, %v423
        %4457 = vst.msk [vmem:[%s153 + $0x1f8] sm:$0xff] %vm4393, %v424
        %4458 = vst.msk [vmem:[%s153 + $0x200] sm:$0xff] %vm4393, %v441
        %4459 = vst.msk [vmem:[%s153 + $0x208] sm:$0xff] %vm4393, %v442
        %4460 = vst.msk [vmem:[%s153 + $0x210] sm:$0xff] %vm4393, %v443
        %4461 = vst.msk [vmem:[%s153 + $0x218] sm:$0xff] %vm4393, %v444
        %4462 = vst.msk [vmem:[%s153 + $0x220] sm:$0xff] %vm4393, %v445
        %4463 = vst.msk [vmem:[%s153 + $0x228] sm:$0xff] %vm4393, %v446
        %4464 = vst.msk [vmem:[%s153 + $0x230] sm:$0xff] %vm4393, %v447
        %4465 = vst.msk [vmem:[%s153 + $0x238] sm:$0xff] %vm4393, %v448
        %4466 = vst.msk [vmem:[%s153 + $0x240] sm:$0xff] %vm4393, %v449
        %4467 = vst.msk [vmem:[%s153 + $0x248] sm:$0xff] %vm4393, %v450
        %4468 = vst.msk [vmem:[%s153 + $0x250] sm:$0xff] %vm4393, %v451
        %4469 = vst.msk [vmem:[%s153 + $0x258] sm:$0xff] %vm4393, %v452
        %4470 = vst.msk [vmem:[%s153 + $0x260] sm:$0xff] %vm4393, %v453
        %4471 = vst.msk [vmem:[%s153 + $0x268] sm:$0xff] %vm4393, %v454
        %4472 = vst.msk [vmem:[%s153 + $0x270] sm:$0xff] %vm4393, %v455
        %4473 = vst.msk [vmem:[%s153 + $0x278] sm:$0xff] %vm4393, %v456
        %4474 = vst.msk [vmem:[%s153 + $0x280] sm:$0xff] %vm4393, %v473
        %4475 = vst.msk [vmem:[%s153 + $0x288] sm:$0xff] %vm4393, %v474
        %4476 = vst.msk [vmem:[%s153 + $0x290] sm:$0xff] %vm4393, %v475
        %4477 = vst.msk [vmem:[%s153 + $0x298] sm:$0xff] %vm4393, %v476
        %4478 = vst.msk [vmem:[%s153 + $0x2a0] sm:$0xff] %vm4393, %v477
        %4479 = vst.msk [vmem:[%s153 + $0x2a8] sm:$0xff] %vm4393, %v478
        %4480 = vst.msk [vmem:[%s153 + $0x2b0] sm:$0xff] %vm4393, %v479
        %4481 = vst.msk [vmem:[%s153 + $0x2b8] sm:$0xff] %vm4393, %v480
        %4482 = vst.msk [vmem:[%s153 + $0x2c0] sm:$0xff] %vm4393, %v481
        %4483 = vst.msk [vmem:[%s153 + $0x2c8] sm:$0xff] %vm4393, %v482
        %4484 = vst.msk [vmem:[%s153 + $0x2d0] sm:$0xff] %vm4393, %v483
        %4485 = vst.msk [vmem:[%s153 + $0x2d8] sm:$0xff] %vm4393, %v484
        %4486 = vst.msk [vmem:[%s153 + $0x2e0] sm:$0xff] %vm4393, %v485
        %4487 = vst.msk [vmem:[%s153 + $0x2e8] sm:$0xff] %vm4393, %v486
        %4488 = vst.msk [vmem:[%s153 + $0x2f0] sm:$0xff] %vm4393, %v487
        %4489 = vst.msk [vmem:[%s153 + $0x2f8] sm:$0xff] %vm4393, %v488
        %4490 = vst.msk [vmem:[%s153 + $0x300] sm:$0xff] %vm4393, %v505
        %4491 = vst.msk [vmem:[%s153 + $0x308] sm:$0xff] %vm4393, %v506
        %4492 = vst.msk [vmem:[%s153 + $0x310] sm:$0xff] %vm4393, %v507
        %4493 = vst.msk [vmem:[%s153 + $0x318] sm:$0xff] %vm4393, %v508
        %4494 = vst.msk [vmem:[%s153 + $0x320] sm:$0xff] %vm4393, %v509
        %4495 = vst.msk [vmem:[%s153 + $0x328] sm:$0xff] %vm4393, %v510
        %4496 = vst.msk [vmem:[%s153 + $0x330] sm:$0xff] %vm4393, %v511
        %4497 = vst.msk [vmem:[%s153 + $0x338] sm:$0xff] %vm4393, %v512
        %4498 = vst.msk [vmem:[%s153 + $0x340] sm:$0xff] %vm4393, %v513
        %4499 = vst.msk [vmem:[%s153 + $0x348] sm:$0xff] %vm4393, %v514
        %4500 = vst.msk [vmem:[%s153 + $0x350] sm:$0xff] %vm4393, %v515
        %4501 = vst.msk [vmem:[%s153 + $0x358] sm:$0xff] %vm4393, %v516
        %4502 = vst.msk [vmem:[%s153 + $0x360] sm:$0xff] %vm4393, %v517
        %4503 = vst.msk [vmem:[%s153 + $0x368] sm:$0xff] %vm4393, %v518
        %4504 = vst.msk [vmem:[%s153 + $0x370] sm:$0xff] %vm4393, %v519
        %4505 = vst.msk [vmem:[%s153 + $0x378] sm:$0xff] %vm4393, %v520
        %4506 = vst.msk [vmem:[%s153 + $0x380] sm:$0xff] %vm4393, %v537
        %4507 = vst.msk [vmem:[%s153 + $0x388] sm:$0xff] %vm4393, %v538
        %4508 = vst.msk [vmem:[%s153 + $0x390] sm:$0xff] %vm4393, %v539
        %4509 = vst.msk [vmem:[%s153 + $0x398] sm:$0xff] %vm4393, %v540
        %4510 = vst.msk [vmem:[%s153 + $0x3a0] sm:$0xff] %vm4393, %v541
        %4511 = vst.msk [vmem:[%s153 + $0x3a8] sm:$0xff] %vm4393, %v542
        %4512 = vst.msk [vmem:[%s153 + $0x3b0] sm:$0xff] %vm4393, %v543
        %4513 = vst.msk [vmem:[%s153 + $0x3b8] sm:$0xff] %vm4393, %v544
        %4514 = vst.msk [vmem:[%s153 + $0x3c0] sm:$0xff] %vm4393, %v545
        %4515 = vst.msk [vmem:[%s153 + $0x3c8] sm:$0xff] %vm4393, %v546
        %4516 = vst.msk [vmem:[%s153 + $0x3d0] sm:$0xff] %vm4393, %v547
        %4517 = vst.msk [vmem:[%s153 + $0x3d8] sm:$0xff] %vm4393, %v548
        %4518 = vst.msk [vmem:[%s153 + $0x3e0] sm:$0xff] %vm4393, %v549
        %4519 = vst.msk [vmem:[%s153 + $0x3e8] sm:$0xff] %vm4393, %v550
        %4520 = vst.msk [vmem:[%s153 + $0x3f0] sm:$0xff] %vm4393, %v551
        %4521 = vst.msk [vmem:[%s153 + $0x3f8] sm:$0xff] %vm4393, %v552
        %4522 = vst.msk [vmem:[%s153 + $0x400] sm:$0xff] %vm4393, %v569
        %4523 = vst.msk [vmem:[%s153 + $0x408] sm:$0xff] %vm4393, %v570
        %4524 = vst.msk [vmem:[%s153 + $0x410] sm:$0xff] %vm4393, %v571
        %4525 = vst.msk [vmem:[%s153 + $0x418] sm:$0xff] %vm4393, %v572
        %4526 = vst.msk [vmem:[%s153 + $0x420] sm:$0xff] %vm4393, %v573
        %4527 = vst.msk [vmem:[%s153 + $0x428] sm:$0xff] %vm4393, %v574
        %4528 = vst.msk [vmem:[%s153 + $0x430] sm:$0xff] %vm4393, %v575
        %4529 = vst.msk [vmem:[%s153 + $0x438] sm:$0xff] %vm4393, %v576
        %4530 = vst.msk [vmem:[%s153 + $0x440] sm:$0xff] %vm4393, %v577
        %4531 = vst.msk [vmem:[%s153 + $0x448] sm:$0xff] %vm4393, %v578
        %4532 = vst.msk [vmem:[%s153 + $0x450] sm:$0xff] %vm4393, %v579
        %4533 = vst.msk [vmem:[%s153 + $0x458] sm:$0xff] %vm4393, %v580
        %4534 = vst.msk [vmem:[%s153 + $0x460] sm:$0xff] %vm4393, %v581
        %4535 = vst.msk [vmem:[%s153 + $0x468] sm:$0xff] %vm4393, %v582
        %4536 = vst.msk [vmem:[%s153 + $0x470] sm:$0xff] %vm4393, %v583
        %4537 = vst.msk [vmem:[%s153 + $0x478] sm:$0xff] %vm4393, %v584
        %4538 = vst.msk [vmem:[%s153 + $0x480] sm:$0xff] %vm4393, %v601
        %4539 = vst.msk [vmem:[%s153 + $0x488] sm:$0xff] %vm4393, %v602
        %4540 = vst.msk [vmem:[%s153 + $0x490] sm:$0xff] %vm4393, %v603
        %4541 = vst.msk [vmem:[%s153 + $0x498] sm:$0xff] %vm4393, %v604
        %4542 = vst.msk [vmem:[%s153 + $0x4a0] sm:$0xff] %vm4393, %v605
        %4543 = vst.msk [vmem:[%s153 + $0x4a8] sm:$0xff] %vm4393, %v606
        %4544 = vst.msk [vmem:[%s153 + $0x4b0] sm:$0xff] %vm4393, %v607
        %4545 = vst.msk [vmem:[%s153 + $0x4b8] sm:$0xff] %vm4393, %v608
        %4546 = vst.msk [vmem:[%s153 + $0x4c0] sm:$0xff] %vm4393, %v609
        %4547 = vst.msk [vmem:[%s153 + $0x4c8] sm:$0xff] %vm4393, %v610
        %4548 = vst.msk [vmem:[%s153 + $0x4d0] sm:$0xff] %vm4393, %v611
        %4549 = vst.msk [vmem:[%s153 + $0x4d8] sm:$0xff] %vm4393, %v612
        %4550 = vst.msk [vmem:[%s153 + $0x4e0] sm:$0xff] %vm4393, %v613
        %4551 = vst.msk [vmem:[%s153 + $0x4e8] sm:$0xff] %vm4393, %v614
        %4552 = vst.msk [vmem:[%s153 + $0x4f0] sm:$0xff] %vm4393, %v615
        %4553 = vst.msk [vmem:[%s153 + $0x4f8] sm:$0xff] %vm4393, %v616
        %4554 = vst.msk [vmem:[%s153 + $0x500] sm:$0xff] %vm4393, %v633
        %4555 = vst.msk [vmem:[%s153 + $0x508] sm:$0xff] %vm4393, %v634
        %4556 = vst.msk [vmem:[%s153 + $0x510] sm:$0xff] %vm4393, %v635
        %4557 = vst.msk [vmem:[%s153 + $0x518] sm:$0xff] %vm4393, %v636
        %4558 = vst.msk [vmem:[%s153 + $0x520] sm:$0xff] %vm4393, %v637
        %4559 = vst.msk [vmem:[%s153 + $0x528] sm:$0xff] %vm4393, %v638
        %4560 = vst.msk [vmem:[%s153 + $0x530] sm:$0xff] %vm4393, %v639
        %4561 = vst.msk [vmem:[%s153 + $0x538] sm:$0xff] %vm4393, %v640
        %4562 = vst.msk [vmem:[%s153 + $0x540] sm:$0xff] %vm4393, %v641
        %4563 = vst.msk [vmem:[%s153 + $0x548] sm:$0xff] %vm4393, %v642
        %4564 = vst.msk [vmem:[%s153 + $0x550] sm:$0xff] %vm4393, %v643
        %4565 = vst.msk [vmem:[%s153 + $0x558] sm:$0xff] %vm4393, %v644
        %4566 = vst.msk [vmem:[%s153 + $0x560] sm:$0xff] %vm4393, %v645
        %4567 = vst.msk [vmem:[%s153 + $0x568] sm:$0xff] %vm4393, %v646
        %4568 = vst.msk [vmem:[%s153 + $0x570] sm:$0xff] %vm4393, %v647
        %4569 = vst.msk [vmem:[%s153 + $0x578] sm:$0xff] %vm4393, %v648
        %4570 = vst.msk [vmem:[%s153 + $0x580] sm:$0xff] %vm4393, %v665
        %4571 = vst.msk [vmem:[%s153 + $0x588] sm:$0xff] %vm4393, %v666
        %4572 = vst.msk [vmem:[%s153 + $0x590] sm:$0xff] %vm4393, %v667
        %4573 = vst.msk [vmem:[%s153 + $0x598] sm:$0xff] %vm4393, %v668
        %4574 = vst.msk [vmem:[%s153 + $0x5a0] sm:$0xff] %vm4393, %v669
        %4575 = vst.msk [vmem:[%s153 + $0x5a8] sm:$0xff] %vm4393, %v670
        %4576 = vst.msk [vmem:[%s153 + $0x5b0] sm:$0xff] %vm4393, %v671
        %4577 = vst.msk [vmem:[%s153 + $0x5b8] sm:$0xff] %vm4393, %v672
        %4578 = vst.msk [vmem:[%s153 + $0x5c0] sm:$0xff] %vm4393, %v673
        %4579 = vst.msk [vmem:[%s153 + $0x5c8] sm:$0xff] %vm4393, %v674
        %4580 = vst.msk [vmem:[%s153 + $0x5d0] sm:$0xff] %vm4393, %v675
        %4581 = vst.msk [vmem:[%s153 + $0x5d8] sm:$0xff] %vm4393, %v676
        %4582 = vst.msk [vmem:[%s153 + $0x5e0] sm:$0xff] %vm4393, %v677
        %4583 = vst.msk [vmem:[%s153 + $0x5e8] sm:$0xff] %vm4393, %v678
        %4584 = vst.msk [vmem:[%s153 + $0x5f0] sm:$0xff] %vm4393, %v679
        %4585 = vst.msk [vmem:[%s153 + $0x5f8] sm:$0xff] %vm4393, %v680
        %4586 = vst.msk [vmem:[%s153 + $0x600] sm:$0xff] %vm4393, %v697
        %4587 = vst.msk [vmem:[%s153 + $0x608] sm:$0xff] %vm4393, %v698
        %4588 = vst.msk [vmem:[%s153 + $0x610] sm:$0xff] %vm4393, %v699
        %4589 = vst.msk [vmem:[%s153 + $0x618] sm:$0xff] %vm4393, %v700
        %4590 = vst.msk [vmem:[%s153 + $0x620] sm:$0xff] %vm4393, %v701
        %4591 = vst.msk [vmem:[%s153 + $0x628] sm:$0xff] %vm4393, %v702
        %4592 = vst.msk [vmem:[%s153 + $0x630] sm:$0xff] %vm4393, %v703
        %4593 = vst.msk [vmem:[%s153 + $0x638] sm:$0xff] %vm4393, %v704
        %4594 = vst.msk [vmem:[%s153 + $0x640] sm:$0xff] %vm4393, %v705
        %4595 = vst.msk [vmem:[%s153 + $0x648] sm:$0xff] %vm4393, %v706
        %4596 = vst.msk [vmem:[%s153 + $0x650] sm:$0xff] %vm4393, %v707
        %4597 = vst.msk [vmem:[%s153 + $0x658] sm:$0xff] %vm4393, %v708
        %4598 = vst.msk [vmem:[%s153 + $0x660] sm:$0xff] %vm4393, %v709
        %4599 = vst.msk [vmem:[%s153 + $0x668] sm:$0xff] %vm4393, %v710
        %4600 = vst.msk [vmem:[%s153 + $0x670] sm:$0xff] %vm4393, %v711
        %4601 = vst.msk [vmem:[%s153 + $0x678] sm:$0xff] %vm4393, %v712
        %4602 = vst.msk [vmem:[%s153 + $0x680] sm:$0xff] %vm4393, %v729
        %4603 = vst.msk [vmem:[%s153 + $0x688] sm:$0xff] %vm4393, %v730
        %4604 = vst.msk [vmem:[%s153 + $0x690] sm:$0xff] %vm4393, %v731
        %4605 = vst.msk [vmem:[%s153 + $0x698] sm:$0xff] %vm4393, %v732
        %4606 = vst.msk [vmem:[%s153 + $0x6a0] sm:$0xff] %vm4393, %v733
        %4607 = vst.msk [vmem:[%s153 + $0x6a8] sm:$0xff] %vm4393, %v734
        %4608 = vst.msk [vmem:[%s153 + $0x6b0] sm:$0xff] %vm4393, %v735
        %4609 = vst.msk [vmem:[%s153 + $0x6b8] sm:$0xff] %vm4393, %v736
        %4610 = vst.msk [vmem:[%s153 + $0x6c0] sm:$0xff] %vm4393, %v737
        %4611 = vst.msk [vmem:[%s153 + $0x6c8] sm:$0xff] %vm4393, %v738
        %4612 = vst.msk [vmem:[%s153 + $0x6d0] sm:$0xff] %vm4393, %v739
        %4613 = vst.msk [vmem:[%s153 + $0x6d8] sm:$0xff] %vm4393, %v740
        %4614 = vst.msk [vmem:[%s153 + $0x6e0] sm:$0xff] %vm4393, %v741
        %4615 = vst.msk [vmem:[%s153 + $0x6e8] sm:$0xff] %vm4393, %v742
        %4616 = vst.msk [vmem:[%s153 + $0x6f0] sm:$0xff] %vm4393, %v743
        %4617 = vst.msk [vmem:[%s153 + $0x6f8] sm:$0xff] %vm4393, %v744
        %4618 = vst.msk [vmem:[%s153 + $0x700] sm:$0xff] %vm4393, %v761
        %4619 = vst.msk [vmem:[%s153 + $0x708] sm:$0xff] %vm4393, %v762
        %4620 = vst.msk [vmem:[%s153 + $0x710] sm:$0xff] %vm4393, %v763
        %4621 = vst.msk [vmem:[%s153 + $0x718] sm:$0xff] %vm4393, %v764
        %4622 = vst.msk [vmem:[%s153 + $0x720] sm:$0xff] %vm4393, %v765
        %4623 = vst.msk [vmem:[%s153 + $0x728] sm:$0xff] %vm4393, %v766
        %4624 = vst.msk [vmem:[%s153 + $0x730] sm:$0xff] %vm4393, %v767
        %4625 = vst.msk [vmem:[%s153 + $0x738] sm:$0xff] %vm4393, %v768
        %4626 = vst.msk [vmem:[%s153 + $0x740] sm:$0xff] %vm4393, %v769
        %4627 = vst.msk [vmem:[%s153 + $0x748] sm:$0xff] %vm4393, %v770
        %4628 = vst.msk [vmem:[%s153 + $0x750] sm:$0xff] %vm4393, %v771
        %4629 = vst.msk [vmem:[%s153 + $0x758] sm:$0xff] %vm4393, %v772
        %4630 = vst.msk [vmem:[%s153 + $0x760] sm:$0xff] %vm4393, %v773
        %4631 = vst.msk [vmem:[%s153 + $0x768] sm:$0xff] %vm4393, %v774
        %4632 = vst.msk [vmem:[%s153 + $0x770] sm:$0xff] %vm4393, %v775
        %4633 = vst.msk [vmem:[%s153 + $0x778] sm:$0xff] %vm4393, %v776
        %4634 = vst.msk [vmem:[%s153 + $0x780] sm:$0xff] %vm4393, %v793
        %4635 = vst.msk [vmem:[%s153 + $0x788] sm:$0xff] %vm4393, %v794
        %4636 = vst.msk [vmem:[%s153 + $0x790] sm:$0xff] %vm4393, %v795
        %4637 = vst.msk [vmem:[%s153 + $0x798] sm:$0xff] %vm4393, %v796
        %4638 = vst.msk [vmem:[%s153 + $0x7a0] sm:$0xff] %vm4393, %v797
        %4639 = vst.msk [vmem:[%s153 + $0x7a8] sm:$0xff] %vm4393, %v798
        %4640 = vst.msk [vmem:[%s153 + $0x7b0] sm:$0xff] %vm4393, %v799
        %4641 = vst.msk [vmem:[%s153 + $0x7b8] sm:$0xff] %vm4393, %v800
        %4642 = vst.msk [vmem:[%s153 + $0x7c0] sm:$0xff] %vm4393, %v801
        %4643 = vst.msk [vmem:[%s153 + $0x7c8] sm:$0xff] %vm4393, %v802
        %4644 = vst.msk [vmem:[%s153 + $0x7d0] sm:$0xff] %vm4393, %v803
        %4645 = vst.msk [vmem:[%s153 + $0x7d8] sm:$0xff] %vm4393, %v804
        %4646 = vst.msk [vmem:[%s153 + $0x7e0] sm:$0xff] %vm4393, %v805
        %4647 = vst.msk [vmem:[%s153 + $0x7e8] sm:$0xff] %vm4393, %v806
        %4648 = vst.msk [vmem:[%s153 + $0x7f0] sm:$0xff] %vm4393, %v807
        %4649 = vst.msk [vmem:[%s153 + $0x7f8] sm:$0xff] %vm4393, %v808
        %4650 = vst.msk [vmem:[%s153 + $0x800] sm:$0xff] %vm4393, %v825
        %4651 = vst.msk [vmem:[%s153 + $0x808] sm:$0xff] %vm4393, %v826
        %4652 = vst.msk [vmem:[%s153 + $0x810] sm:$0xff] %vm4393, %v827
        %4653 = vst.msk [vmem:[%s153 + $0x818] sm:$0xff] %vm4393, %v828
        %4654 = vst.msk [vmem:[%s153 + $0x820] sm:$0xff] %vm4393, %v829
        %4655 = vst.msk [vmem:[%s153 + $0x828] sm:$0xff] %vm4393, %v830
        %4656 = vst.msk [vmem:[%s153 + $0x830] sm:$0xff] %vm4393, %v831
        %4657 = vst.msk [vmem:[%s153 + $0x838] sm:$0xff] %vm4393, %v832
        %4658 = vst.msk [vmem:[%s153 + $0x840] sm:$0xff] %vm4393, %v833
        %4659 = vst.msk [vmem:[%s153 + $0x848] sm:$0xff] %vm4393, %v834
        %4660 = vst.msk [vmem:[%s153 + $0x850] sm:$0xff] %vm4393, %v835
        %4661 = vst.msk [vmem:[%s153 + $0x858] sm:$0xff] %vm4393, %v836
        %4662 = vst.msk [vmem:[%s153 + $0x860] sm:$0xff] %vm4393, %v837
        %4663 = vst.msk [vmem:[%s153 + $0x868] sm:$0xff] %vm4393, %v838
        %4664 = vst.msk [vmem:[%s153 + $0x870] sm:$0xff] %vm4393, %v839
        %4665 = vst.msk [vmem:[%s153 + $0x878] sm:$0xff] %vm4393, %v840
        %4666 = vst.msk [vmem:[%s153 + $0x880] sm:$0xff] %vm4393, %v857
        %4667 = vst.msk [vmem:[%s153 + $0x888] sm:$0xff] %vm4393, %v858
        %4668 = vst.msk [vmem:[%s153 + $0x890] sm:$0xff] %vm4393, %v859
        %4669 = vst.msk [vmem:[%s153 + $0x898] sm:$0xff] %vm4393, %v860
        %4670 = vst.msk [vmem:[%s153 + $0x8a0] sm:$0xff] %vm4393, %v861
        %4671 = vst.msk [vmem:[%s153 + $0x8a8] sm:$0xff] %vm4393, %v862
        %4672 = vst.msk [vmem:[%s153 + $0x8b0] sm:$0xff] %vm4393, %v863
        %4673 = vst.msk [vmem:[%s153 + $0x8b8] sm:$0xff] %vm4393, %v864
        %4674 = vst.msk [vmem:[%s153 + $0x8c0] sm:$0xff] %vm4393, %v865
        %4675 = vst.msk [vmem:[%s153 + $0x8c8] sm:$0xff] %vm4393, %v866
        %4676 = vst.msk [vmem:[%s153 + $0x8d0] sm:$0xff] %vm4393, %v867
        %4677 = vst.msk [vmem:[%s153 + $0x8d8] sm:$0xff] %vm4393, %v868
        %4678 = vst.msk [vmem:[%s153 + $0x8e0] sm:$0xff] %vm4393, %v869
        %4679 = vst.msk [vmem:[%s153 + $0x8e8] sm:$0xff] %vm4393, %v870
        %4680 = vst.msk [vmem:[%s153 + $0x8f0] sm:$0xff] %vm4393, %v871
        %4681 = vst.msk [vmem:[%s153 + $0x8f8] sm:$0xff] %vm4393, %v872
        %4682 = vst.msk [vmem:[%s153 + $0x900] sm:$0xff] %vm4393, %v889
        %4683 = vst.msk [vmem:[%s153 + $0x908] sm:$0xff] %vm4393, %v890
        %4684 = vst.msk [vmem:[%s153 + $0x910] sm:$0xff] %vm4393, %v891
        %4685 = vst.msk [vmem:[%s153 + $0x918] sm:$0xff] %vm4393, %v892
        %4686 = vst.msk [vmem:[%s153 + $0x920] sm:$0xff] %vm4393, %v893
        %4687 = vst.msk [vmem:[%s153 + $0x928] sm:$0xff] %vm4393, %v894
        %4688 = vst.msk [vmem:[%s153 + $0x930] sm:$0xff] %vm4393, %v895
        %4689 = vst.msk [vmem:[%s153 + $0x938] sm:$0xff] %vm4393, %v896
        %4690 = vst.msk [vmem:[%s153 + $0x940] sm:$0xff] %vm4393, %v897
        %4691 = vst.msk [vmem:[%s153 + $0x948] sm:$0xff] %vm4393, %v898
        %4692 = vst.msk [vmem:[%s153 + $0x950] sm:$0xff] %vm4393, %v899
        %4693 = vst.msk [vmem:[%s153 + $0x958] sm:$0xff] %vm4393, %v900
        %4694 = vst.msk [vmem:[%s153 + $0x960] sm:$0xff] %vm4393, %v901
        %4695 = vst.msk [vmem:[%s153 + $0x968] sm:$0xff] %vm4393, %v902
        %4696 = vst.msk [vmem:[%s153 + $0x970] sm:$0xff] %vm4393, %v903
        %4697 = vst.msk [vmem:[%s153 + $0x978] sm:$0xff] %vm4393, %v904
        %4698 = vst.msk [vmem:[%s153 + $0x980] sm:$0xff] %vm4393, %v921
        %4699 = vst.msk [vmem:[%s153 + $0x988] sm:$0xff] %vm4393, %v922
        %4700 = vst.msk [vmem:[%s153 + $0x990] sm:$0xff] %vm4393, %v923
        %4701 = vst.msk [vmem:[%s153 + $0x998] sm:$0xff] %vm4393, %v924
        %4702 = vst.msk [vmem:[%s153 + $0x9a0] sm:$0xff] %vm4393, %v925
        %4703 = vst.msk [vmem:[%s153 + $0x9a8] sm:$0xff] %vm4393, %v926
        %4704 = vst.msk [vmem:[%s153 + $0x9b0] sm:$0xff] %vm4393, %v927
        %4705 = vst.msk [vmem:[%s153 + $0x9b8] sm:$0xff] %vm4393, %v928
        %4706 = vst.msk [vmem:[%s153 + $0x9c0] sm:$0xff] %vm4393, %v929
        %4707 = vst.msk [vmem:[%s153 + $0x9c8] sm:$0xff] %vm4393, %v930
        %4708 = vst.msk [vmem:[%s153 + $0x9d0] sm:$0xff] %vm4393, %v931
        %4709 = vst.msk [vmem:[%s153 + $0x9d8] sm:$0xff] %vm4393, %v932
        %4710 = vst.msk [vmem:[%s153 + $0x9e0] sm:$0xff] %vm4393, %v933
        %4711 = vst.msk [vmem:[%s153 + $0x9e8] sm:$0xff] %vm4393, %v934
        %4712 = vst.msk [vmem:[%s153 + $0x9f0] sm:$0xff] %vm4393, %v935
        %4713 = vst.msk [vmem:[%s153 + $0x9f8] sm:$0xff] %vm4393, %v936
        %4714 = vst.msk [vmem:[%s153 + $0xa00] sm:$0xff] %vm4393, %v953
        %4715 = vst.msk [vmem:[%s153 + $0xa08] sm:$0xff] %vm4393, %v954
        %4716 = vst.msk [vmem:[%s153 + $0xa10] sm:$0xff] %vm4393, %v955
        %4717 = vst.msk [vmem:[%s153 + $0xa18] sm:$0xff] %vm4393, %v956
        %4718 = vst.msk [vmem:[%s153 + $0xa20] sm:$0xff] %vm4393, %v957
        %4719 = vst.msk [vmem:[%s153 + $0xa28] sm:$0xff] %vm4393, %v958
        %4720 = vst.msk [vmem:[%s153 + $0xa30] sm:$0xff] %vm4393, %v959
        %4721 = vst.msk [vmem:[%s153 + $0xa38] sm:$0xff] %vm4393, %v960
        %4722 = vst.msk [vmem:[%s153 + $0xa40] sm:$0xff] %vm4393, %v961
        %4723 = vst.msk [vmem:[%s153 + $0xa48] sm:$0xff] %vm4393, %v962
        %4724 = vst.msk [vmem:[%s153 + $0xa50] sm:$0xff] %vm4393, %v963
        %4725 = vst.msk [vmem:[%s153 + $0xa58] sm:$0xff] %vm4393, %v964
        %4726 = vst.msk [vmem:[%s153 + $0xa60] sm:$0xff] %vm4393, %v965
        %4727 = vst.msk [vmem:[%s153 + $0xa68] sm:$0xff] %vm4393, %v966
        %4728 = vst.msk [vmem:[%s153 + $0xa70] sm:$0xff] %vm4393, %v967
        %4729 = vst.msk [vmem:[%s153 + $0xa78] sm:$0xff] %vm4393, %v968
        %4730 = vst.msk [vmem:[%s153 + $0xa80] sm:$0xff] %vm4393, %v985
        %4731 = vst.msk [vmem:[%s153 + $0xa88] sm:$0xff] %vm4393, %v986
        %4732 = vst.msk [vmem:[%s153 + $0xa90] sm:$0xff] %vm4393, %v987
        %4733 = vst.msk [vmem:[%s153 + $0xa98] sm:$0xff] %vm4393, %v988
        %4734 = vst.msk [vmem:[%s153 + $0xaa0] sm:$0xff] %vm4393, %v989
        %4735 = vst.msk [vmem:[%s153 + $0xaa8] sm:$0xff] %vm4393, %v990
        %4736 = vst.msk [vmem:[%s153 + $0xab0] sm:$0xff] %vm4393, %v991
        %4737 = vst.msk [vmem:[%s153 + $0xab8] sm:$0xff] %vm4393, %v992
        %4738 = vst.msk [vmem:[%s153 + $0xac0] sm:$0xff] %vm4393, %v993
        %4739 = vst.msk [vmem:[%s153 + $0xac8] sm:$0xff] %vm4393, %v994
        %4740 = vst.msk [vmem:[%s153 + $0xad0] sm:$0xff] %vm4393, %v995
        %4741 = vst.msk [vmem:[%s153 + $0xad8] sm:$0xff] %vm4393, %v996
        %4742 = vst.msk [vmem:[%s153 + $0xae0] sm:$0xff] %vm4393, %v997
        %4743 = vst.msk [vmem:[%s153 + $0xae8] sm:$0xff] %vm4393, %v998
        %4744 = vst.msk [vmem:[%s153 + $0xaf0] sm:$0xff] %vm4393, %v999
        %4745 = vst.msk [vmem:[%s153 + $0xaf8] sm:$0xff] %vm4393, %v1000
        %4746 = vst.msk [vmem:[%s153 + $0xb00] sm:$0xff] %vm4393, %v1017
        %4747 = vst.msk [vmem:[%s153 + $0xb08] sm:$0xff] %vm4393, %v1018
        %4748 = vst.msk [vmem:[%s153 + $0xb10] sm:$0xff] %vm4393, %v1019
        %4749 = vst.msk [vmem:[%s153 + $0xb18] sm:$0xff] %vm4393, %v1020
        %4750 = vst.msk [vmem:[%s153 + $0xb20] sm:$0xff] %vm4393, %v1021
        %4751 = vst.msk [vmem:[%s153 + $0xb28] sm:$0xff] %vm4393, %v1022
        %4752 = vst.msk [vmem:[%s153 + $0xb30] sm:$0xff] %vm4393, %v1023
        %4753 = vst.msk [vmem:[%s153 + $0xb38] sm:$0xff] %vm4393, %v1024
        %4754 = vst.msk [vmem:[%s153 + $0xb40] sm:$0xff] %vm4393, %v1025
        %4755 = vst.msk [vmem:[%s153 + $0xb48] sm:$0xff] %vm4393, %v1026
        %4756 = vst.msk [vmem:[%s153 + $0xb50] sm:$0xff] %vm4393, %v1027
        %4757 = vst.msk [vmem:[%s153 + $0xb58] sm:$0xff] %vm4393, %v1028
        %4758 = vst.msk [vmem:[%s153 + $0xb60] sm:$0xff] %vm4393, %v1029
        %4759 = vst.msk [vmem:[%s153 + $0xb68] sm:$0xff] %vm4393, %v1030
        %4760 = vst.msk [vmem:[%s153 + $0xb70] sm:$0xff] %vm4393, %v1031
        %4761 = vst.msk [vmem:[%s153 + $0xb78] sm:$0xff] %vm4393, %v1032
        %4762 = vst.msk [vmem:[%s153 + $0xb80] sm:$0xff] %vm4393, %v1049
        %4763 = vst.msk [vmem:[%s153 + $0xb88] sm:$0xff] %vm4393, %v1050
        %4764 = vst.msk [vmem:[%s153 + $0xb90] sm:$0xff] %vm4393, %v1051
        %4765 = vst.msk [vmem:[%s153 + $0xb98] sm:$0xff] %vm4393, %v1052
        %4766 = vst.msk [vmem:[%s153 + $0xba0] sm:$0xff] %vm4393, %v1053
        %4767 = vst.msk [vmem:[%s153 + $0xba8] sm:$0xff] %vm4393, %v1054
        %4768 = vst.msk [vmem:[%s153 + $0xbb0] sm:$0xff] %vm4393, %v1055
        %4769 = vst.msk [vmem:[%s153 + $0xbb8] sm:$0xff] %vm4393, %v1056
        %4770 = vst.msk [vmem:[%s153 + $0xbc0] sm:$0xff] %vm4393, %v1057
        %4771 = vst.msk [vmem:[%s153 + $0xbc8] sm:$0xff] %vm4393, %v1058
        %4772 = vst.msk [vmem:[%s153 + $0xbd0] sm:$0xff] %vm4393, %v1059
        %4773 = vst.msk [vmem:[%s153 + $0xbd8] sm:$0xff] %vm4393, %v1060
        %4774 = vst.msk [vmem:[%s153 + $0xbe0] sm:$0xff] %vm4393, %v1061
        %4775 = vst.msk [vmem:[%s153 + $0xbe8] sm:$0xff] %vm4393, %v1062
        %4776 = vst.msk [vmem:[%s153 + $0xbf0] sm:$0xff] %vm4393, %v1063
        %4777 = vst.msk [vmem:[%s153 + $0xbf8] sm:$0xff] %vm4393, %v1064
        %4778 = vst.msk [vmem:[%s153 + $0xc00] sm:$0xff] %vm4393, %v1081
        %4779 = vst.msk [vmem:[%s153 + $0xc08] sm:$0xff] %vm4393, %v1082
        %4780 = vst.msk [vmem:[%s153 + $0xc10] sm:$0xff] %vm4393, %v1083
        %4781 = vst.msk [vmem:[%s153 + $0xc18] sm:$0xff] %vm4393, %v1084
        %4782 = vst.msk [vmem:[%s153 + $0xc20] sm:$0xff] %vm4393, %v1085
        %4783 = vst.msk [vmem:[%s153 + $0xc28] sm:$0xff] %vm4393, %v1086
        %4784 = vst.msk [vmem:[%s153 + $0xc30] sm:$0xff] %vm4393, %v1087
        %4785 = vst.msk [vmem:[%s153 + $0xc38] sm:$0xff] %vm4393, %v1088
        %4786 = vst.msk [vmem:[%s153 + $0xc40] sm:$0xff] %vm4393, %v1089
        %4787 = vst.msk [vmem:[%s153 + $0xc48] sm:$0xff] %vm4393, %v1090
        %4788 = vst.msk [vmem:[%s153 + $0xc50] sm:$0xff] %vm4393, %v1091
        %4789 = vst.msk [vmem:[%s153 + $0xc58] sm:$0xff] %vm4393, %v1092
        %4790 = vst.msk [vmem:[%s153 + $0xc60] sm:$0xff] %vm4393, %v1093
        %4791 = vst.msk [vmem:[%s153 + $0xc68] sm:$0xff] %vm4393, %v1094
        %4792 = vst.msk [vmem:[%s153 + $0xc70] sm:$0xff] %vm4393, %v1095
        %4793 = vst.msk [vmem:[%s153 + $0xc78] sm:$0xff] %vm4393, %v1096
        %4794 = vst.msk [vmem:[%s153 + $0xc80] sm:$0xff] %vm4393, %v1113
        %4795 = vst.msk [vmem:[%s153 + $0xc88] sm:$0xff] %vm4393, %v1114
        %4796 = vst.msk [vmem:[%s153 + $0xc90] sm:$0xff] %vm4393, %v1115
        %4797 = vst.msk [vmem:[%s153 + $0xc98] sm:$0xff] %vm4393, %v1116
        %4798 = vst.msk [vmem:[%s153 + $0xca0] sm:$0xff] %vm4393, %v1117
        %4799 = vst.msk [vmem:[%s153 + $0xca8] sm:$0xff] %vm4393, %v1118
        %4800 = vst.msk [vmem:[%s153 + $0xcb0] sm:$0xff] %vm4393, %v1119
        %4801 = vst.msk [vmem:[%s153 + $0xcb8] sm:$0xff] %vm4393, %v1120
        %4802 = vst.msk [vmem:[%s153 + $0xcc0] sm:$0xff] %vm4393, %v1121
        %4803 = vst.msk [vmem:[%s153 + $0xcc8] sm:$0xff] %vm4393, %v1122
        %4804 = vst.msk [vmem:[%s153 + $0xcd0] sm:$0xff] %vm4393, %v1123
        %4805 = vst.msk [vmem:[%s153 + $0xcd8] sm:$0xff] %vm4393, %v1124
        %4806 = vst.msk [vmem:[%s153 + $0xce0] sm:$0xff] %vm4393, %v1125
        %4807 = vst.msk [vmem:[%s153 + $0xce8] sm:$0xff] %vm4393, %v1126
        %4808 = vst.msk [vmem:[%s153 + $0xcf0] sm:$0xff] %vm4393, %v1127
        %4809 = vst.msk [vmem:[%s153 + $0xcf8] sm:$0xff] %vm4393, %v1128
        %4810 = vst.msk [vmem:[%s153 + $0xd00] sm:$0xff] %vm4393, %v1145
        %4811 = vst.msk [vmem:[%s153 + $0xd08] sm:$0xff] %vm4393, %v1146
        %4812 = vst.msk [vmem:[%s153 + $0xd10] sm:$0xff] %vm4393, %v1147
        %4813 = vst.msk [vmem:[%s153 + $0xd18] sm:$0xff] %vm4393, %v1148
        %4814 = vst.msk [vmem:[%s153 + $0xd20] sm:$0xff] %vm4393, %v1149
        %4815 = vst.msk [vmem:[%s153 + $0xd28] sm:$0xff] %vm4393, %v1150
        %4816 = vst.msk [vmem:[%s153 + $0xd30] sm:$0xff] %vm4393, %v1151
        %4817 = vst.msk [vmem:[%s153 + $0xd38] sm:$0xff] %vm4393, %v1152
        %4818 = vst.msk [vmem:[%s153 + $0xd40] sm:$0xff] %vm4393, %v1153
        %4819 = vst.msk [vmem:[%s153 + $0xd48] sm:$0xff] %vm4393, %v1154
        %4820 = vst.msk [vmem:[%s153 + $0xd50] sm:$0xff] %vm4393, %v1155
        %4821 = vst.msk [vmem:[%s153 + $0xd58] sm:$0xff] %vm4393, %v1156
        %4822 = vst.msk [vmem:[%s153 + $0xd60] sm:$0xff] %vm4393, %v1157
        %4823 = vst.msk [vmem:[%s153 + $0xd68] sm:$0xff] %vm4393, %v1158
        %4824 = vst.msk [vmem:[%s153 + $0xd70] sm:$0xff] %vm4393, %v1159
        %4825 = vst.msk [vmem:[%s153 + $0xd78] sm:$0xff] %vm4393, %v1160
        %4826 = vst.msk [vmem:[%s153 + $0xd80] sm:$0xff] %vm4393, %v1177
        %4827 = vst.msk [vmem:[%s153 + $0xd88] sm:$0xff] %vm4393, %v1178
        %4828 = vst.msk [vmem:[%s153 + $0xd90] sm:$0xff] %vm4393, %v1179
        %4829 = vst.msk [vmem:[%s153 + $0xd98] sm:$0xff] %vm4393, %v1180
        %4830 = vst.msk [vmem:[%s153 + $0xda0] sm:$0xff] %vm4393, %v1181
        %4831 = vst.msk [vmem:[%s153 + $0xda8] sm:$0xff] %vm4393, %v1182
        %4832 = vst.msk [vmem:[%s153 + $0xdb0] sm:$0xff] %vm4393, %v1183
        %4833 = vst.msk [vmem:[%s153 + $0xdb8] sm:$0xff] %vm4393, %v1184
        %4834 = vst.msk [vmem:[%s153 + $0xdc0] sm:$0xff] %vm4393, %v1185
        %4835 = vst.msk [vmem:[%s153 + $0xdc8] sm:$0xff] %vm4393, %v1186
        %4836 = vst.msk [vmem:[%s153 + $0xdd0] sm:$0xff] %vm4393, %v1187
        %4837 = vst.msk [vmem:[%s153 + $0xdd8] sm:$0xff] %vm4393, %v1188
        %4838 = vst.msk [vmem:[%s153 + $0xde0] sm:$0xff] %vm4393, %v1189
        %4839 = vst.msk [vmem:[%s153 + $0xde8] sm:$0xff] %vm4393, %v1190
        %4840 = vst.msk [vmem:[%s153 + $0xdf0] sm:$0xff] %vm4393, %v1191
        %4841 = vst.msk [vmem:[%s153 + $0xdf8] sm:$0xff] %vm4393, %v1192
        %4842 = vst.msk [vmem:[%s153 + $0xe00] sm:$0xff] %vm4393, %v1209
        %4843 = vst.msk [vmem:[%s153 + $0xe08] sm:$0xff] %vm4393, %v1210
        %4844 = vst.msk [vmem:[%s153 + $0xe10] sm:$0xff] %vm4393, %v1211
        %4845 = vst.msk [vmem:[%s153 + $0xe18] sm:$0xff] %vm4393, %v1212
        %4846 = vst.msk [vmem:[%s153 + $0xe20] sm:$0xff] %vm4393, %v1213
        %4847 = vst.msk [vmem:[%s153 + $0xe28] sm:$0xff] %vm4393, %v1214
        %4848 = vst.msk [vmem:[%s153 + $0xe30] sm:$0xff] %vm4393, %v1215
        %4849 = vst.msk [vmem:[%s153 + $0xe38] sm:$0xff] %vm4393, %v1216
        %4850 = vst.msk [vmem:[%s153 + $0xe40] sm:$0xff] %vm4393, %v1217
        %4851 = vst.msk [vmem:[%s153 + $0xe48] sm:$0xff] %vm4393, %v1218
        %4852 = vst.msk [vmem:[%s153 + $0xe50] sm:$0xff] %vm4393, %v1219
        %4853 = vst.msk [vmem:[%s153 + $0xe58] sm:$0xff] %vm4393, %v1220
        %4854 = vst.msk [vmem:[%s153 + $0xe60] sm:$0xff] %vm4393, %v1221
        %4855 = vst.msk [vmem:[%s153 + $0xe68] sm:$0xff] %vm4393, %v1222
        %4856 = vst.msk [vmem:[%s153 + $0xe70] sm:$0xff] %vm4393, %v1223
        %4857 = vst.msk [vmem:[%s153 + $0xe78] sm:$0xff] %vm4393, %v1224
        %4858 = vst.msk [vmem:[%s153 + $0xe80] sm:$0xff] %vm4393, %v1241
        %4859 = vst.msk [vmem:[%s153 + $0xe88] sm:$0xff] %vm4393, %v1242
        %4860 = vst.msk [vmem:[%s153 + $0xe90] sm:$0xff] %vm4393, %v1243
        %4861 = vst.msk [vmem:[%s153 + $0xe98] sm:$0xff] %vm4393, %v1244
        %4862 = vst.msk [vmem:[%s153 + $0xea0] sm:$0xff] %vm4393, %v1245
        %4863 = vst.msk [vmem:[%s153 + $0xea8] sm:$0xff] %vm4393, %v1246
        %4864 = vst.msk [vmem:[%s153 + $0xeb0] sm:$0xff] %vm4393, %v1247
        %4865 = vst.msk [vmem:[%s153 + $0xeb8] sm:$0xff] %vm4393, %v1248
        %4866 = vst.msk [vmem:[%s153 + $0xec0] sm:$0xff] %vm4393, %v1249
        %4867 = vst.msk [vmem:[%s153 + $0xec8] sm:$0xff] %vm4393, %v1250
        %4868 = vst.msk [vmem:[%s153 + $0xed0] sm:$0xff] %vm4393, %v1251
        %4869 = vst.msk [vmem:[%s153 + $0xed8] sm:$0xff] %vm4393, %v1252
        %4870 = vst.msk [vmem:[%s153 + $0xee0] sm:$0xff] %vm4393, %v1253
        %4871 = vst.msk [vmem:[%s153 + $0xee8] sm:$0xff] %vm4393, %v1254
        %4872 = vst.msk [vmem:[%s153 + $0xef0] sm:$0xff] %vm4393, %v1255
        %4873 = vst.msk [vmem:[%s153 + $0xef8] sm:$0xff] %vm4393, %v1256
        %4874 = vst.msk [vmem:[%s153 + $0xf00] sm:$0xff] %vm4393, %v1273
        %4875 = vst.msk [vmem:[%s153 + $0xf08] sm:$0xff] %vm4393, %v1274
        %4876 = vst.msk [vmem:[%s153 + $0xf10] sm:$0xff] %vm4393, %v1275
        %4877 = vst.msk [vmem:[%s153 + $0xf18] sm:$0xff] %vm4393, %v1276
        %4878 = vst.msk [vmem:[%s153 + $0xf20] sm:$0xff] %vm4393, %v1277
        %4879 = vst.msk [vmem:[%s153 + $0xf28] sm:$0xff] %vm4393, %v1278
        %4880 = vst.msk [vmem:[%s153 + $0xf30] sm:$0xff] %vm4393, %v1279
        %4881 = vst.msk [vmem:[%s153 + $0xf38] sm:$0xff] %vm4393, %v1280
        %4882 = vst.msk [vmem:[%s153 + $0xf40] sm:$0xff] %vm4393, %v1281
        %4883 = vst.msk [vmem:[%s153 + $0xf48] sm:$0xff] %vm4393, %v1282
        %4884 = vst.msk [vmem:[%s153 + $0xf50] sm:$0xff] %vm4393, %v1283
        %4885 = vst.msk [vmem:[%s153 + $0xf58] sm:$0xff] %vm4393, %v1284
        %4886 = vst.msk [vmem:[%s153 + $0xf60] sm:$0xff] %vm4393, %v1285
        %4887 = vst.msk [vmem:[%s153 + $0xf68] sm:$0xff] %vm4393, %v1286
        %4888 = vst.msk [vmem:[%s153 + $0xf70] sm:$0xff] %vm4393, %v1287
        %4889 = vst.msk [vmem:[%s153 + $0xf78] sm:$0xff] %vm4393, %v1288
        %4890 = vst.msk [vmem:[%s153 + $0xf80] sm:$0xff] %vm4393, %v1305
        %4891 = vst.msk [vmem:[%s153 + $0xf88] sm:$0xff] %vm4393, %v1306
        %4892 = vst.msk [vmem:[%s153 + $0xf90] sm:$0xff] %vm4393, %v1307
        %4893 = vst.msk [vmem:[%s153 + $0xf98] sm:$0xff] %vm4393, %v1308
        %4894 = vst.msk [vmem:[%s153 + $0xfa0] sm:$0xff] %vm4393, %v1309
        %4895 = vst.msk [vmem:[%s153 + $0xfa8] sm:$0xff] %vm4393, %v1310
        %4896 = vst.msk [vmem:[%s153 + $0xfb0] sm:$0xff] %vm4393, %v1311
        %4897 = vst.msk [vmem:[%s153 + $0xfb8] sm:$0xff] %vm4393, %v1312
        %4898 = vst.msk [vmem:[%s153 + $0xfc0] sm:$0xff] %vm4393, %v1313
        %4899 = vst.msk [vmem:[%s153 + $0xfc8] sm:$0xff] %vm4393, %v1314
        %4900 = vst.msk [vmem:[%s153 + $0xfd0] sm:$0xff] %vm4393, %v1315
        %4901 = vst.msk [vmem:[%s153 + $0xfd8] sm:$0xff] %vm4393, %v1316
        %4902 = vst.msk [vmem:[%s153 + $0xfe0] sm:$0xff] %vm4393, %v1317
        %4903 = vst.msk [vmem:[%s153 + $0xfe8] sm:$0xff] %vm4393, %v1318
        %4904 = vst.msk [vmem:[%s153 + $0xff0] sm:$0xff] %vm4393, %v1319
        %4905 = vst.msk [vmem:[%s153 + $0xff8] sm:$0xff] %vm4393, %v1320
        %4906 = vst.msk [vmem:[%s153 + $0x1000] sm:$0xff] %vm4393, %v1337
        %4907 = vst.msk [vmem:[%s153 + $0x1008] sm:$0xff] %vm4393, %v1338
        %4908 = vst.msk [vmem:[%s153 + $0x1010] sm:$0xff] %vm4393, %v1339
        %4909 = vst.msk [vmem:[%s153 + $0x1018] sm:$0xff] %vm4393, %v1340
        %4910 = vst.msk [vmem:[%s153 + $0x1020] sm:$0xff] %vm4393, %v1341
        %4911 = vst.msk [vmem:[%s153 + $0x1028] sm:$0xff] %vm4393, %v1342
        %4912 = vst.msk [vmem:[%s153 + $0x1030] sm:$0xff] %vm4393, %v1343
        %4913 = vst.msk [vmem:[%s153 + $0x1038] sm:$0xff] %vm4393, %v1344
        %4914 = vst.msk [vmem:[%s153 + $0x1040] sm:$0xff] %vm4393, %v1345
        %4915 = vst.msk [vmem:[%s153 + $0x1048] sm:$0xff] %vm4393, %v1346
        %4916 = vst.msk [vmem:[%s153 + $0x1050] sm:$0xff] %vm4393, %v1347
        %4917 = vst.msk [vmem:[%s153 + $0x1058] sm:$0xff] %vm4393, %v1348
        %4918 = vst.msk [vmem:[%s153 + $0x1060] sm:$0xff] %vm4393, %v1349
        %4919 = vst.msk [vmem:[%s153 + $0x1068] sm:$0xff] %vm4393, %v1350
        %4920 = vst.msk [vmem:[%s153 + $0x1070] sm:$0xff] %vm4393, %v1351
        %4921 = vst.msk [vmem:[%s153 + $0x1078] sm:$0xff] %vm4393, %v1352
        %4922 = vst.msk [vmem:[%s153 + $0x1080] sm:$0xff] %vm4393, %v1369
        %4923 = vst.msk [vmem:[%s153 + $0x1088] sm:$0xff] %vm4393, %v1370
        %4924 = vst.msk [vmem:[%s153 + $0x1090] sm:$0xff] %vm4393, %v1371
        %4925 = vst.msk [vmem:[%s153 + $0x1098] sm:$0xff] %vm4393, %v1372
        %4926 = vst.msk [vmem:[%s153 + $0x10a0] sm:$0xff] %vm4393, %v1373
        %4927 = vst.msk [vmem:[%s153 + $0x10a8] sm:$0xff] %vm4393, %v1374
        %4928 = vst.msk [vmem:[%s153 + $0x10b0] sm:$0xff] %vm4393, %v1375
        %4929 = vst.msk [vmem:[%s153 + $0x10b8] sm:$0xff] %vm4393, %v1376
        %4930 = vst.msk [vmem:[%s153 + $0x10c0] sm:$0xff] %vm4393, %v1377
        %4931 = vst.msk [vmem:[%s153 + $0x10c8] sm:$0xff] %vm4393, %v1378
        %4932 = vst.msk [vmem:[%s153 + $0x10d0] sm:$0xff] %vm4393, %v1379
        %4933 = vst.msk [vmem:[%s153 + $0x10d8] sm:$0xff] %vm4393, %v1380
        %4934 = vst.msk [vmem:[%s153 + $0x10e0] sm:$0xff] %vm4393, %v1381
        %4935 = vst.msk [vmem:[%s153 + $0x10e8] sm:$0xff] %vm4393, %v1382
        %4936 = vst.msk [vmem:[%s153 + $0x10f0] sm:$0xff] %vm4393, %v1383
        %4937 = vst.msk [vmem:[%s153 + $0x10f8] sm:$0xff] %vm4393, %v1384
        %4938 = vst.msk [vmem:[%s153 + $0x1100] sm:$0xff] %vm4393, %v1401
        %4939 = vst.msk [vmem:[%s153 + $0x1108] sm:$0xff] %vm4393, %v1402
        %4940 = vst.msk [vmem:[%s153 + $0x1110] sm:$0xff] %vm4393, %v1403
        %4941 = vst.msk [vmem:[%s153 + $0x1118] sm:$0xff] %vm4393, %v1404
        %4942 = vst.msk [vmem:[%s153 + $0x1120] sm:$0xff] %vm4393, %v1405
        %4943 = vst.msk [vmem:[%s153 + $0x1128] sm:$0xff] %vm4393, %v1406
        %4944 = vst.msk [vmem:[%s153 + $0x1130] sm:$0xff] %vm4393, %v1407
        %4945 = vst.msk [vmem:[%s153 + $0x1138] sm:$0xff] %vm4393, %v1408
        %4946 = vst.msk [vmem:[%s153 + $0x1140] sm:$0xff] %vm4393, %v1409
        %4947 = vst.msk [vmem:[%s153 + $0x1148] sm:$0xff] %vm4393, %v1410
        %4948 = vst.msk [vmem:[%s153 + $0x1150] sm:$0xff] %vm4393, %v1411
        %4949 = vst.msk [vmem:[%s153 + $0x1158] sm:$0xff] %vm4393, %v1412
        %4950 = vst.msk [vmem:[%s153 + $0x1160] sm:$0xff] %vm4393, %v1413
        %4951 = vst.msk [vmem:[%s153 + $0x1168] sm:$0xff] %vm4393, %v1414
        %4952 = vst.msk [vmem:[%s153 + $0x1170] sm:$0xff] %vm4393, %v1415
        %4953 = vst.msk [vmem:[%s153 + $0x1178] sm:$0xff] %vm4393, %v1416
        %4954 = vst.msk [vmem:[%s153 + $0x1180] sm:$0xff] %vm4393, %v1433
        %4955 = vst.msk [vmem:[%s153 + $0x1188] sm:$0xff] %vm4393, %v1434
        %4956 = vst.msk [vmem:[%s153 + $0x1190] sm:$0xff] %vm4393, %v1435
        %4957 = vst.msk [vmem:[%s153 + $0x1198] sm:$0xff] %vm4393, %v1436
        %4958 = vst.msk [vmem:[%s153 + $0x11a0] sm:$0xff] %vm4393, %v1437
        %4959 = vst.msk [vmem:[%s153 + $0x11a8] sm:$0xff] %vm4393, %v1438
        %4960 = vst.msk [vmem:[%s153 + $0x11b0] sm:$0xff] %vm4393, %v1439
        %4961 = vst.msk [vmem:[%s153 + $0x11b8] sm:$0xff] %vm4393, %v1440
        %4962 = vst.msk [vmem:[%s153 + $0x11c0] sm:$0xff] %vm4393, %v1441
        %4963 = vst.msk [vmem:[%s153 + $0x11c8] sm:$0xff] %vm4393, %v1442
        %4964 = vst.msk [vmem:[%s153 + $0x11d0] sm:$0xff] %vm4393, %v1443
        %4965 = vst.msk [vmem:[%s153 + $0x11d8] sm:$0xff] %vm4393, %v1444
        %4966 = vst.msk [vmem:[%s153 + $0x11e0] sm:$0xff] %vm4393, %v1445
        %4967 = vst.msk [vmem:[%s153 + $0x11e8] sm:$0xff] %vm4393, %v1446
        %4968 = vst.msk [vmem:[%s153 + $0x11f0] sm:$0xff] %vm4393, %v1447
        %4969 = vst.msk [vmem:[%s153 + $0x11f8] sm:$0xff] %vm4393, %v1448
        %4970 = vst.msk [vmem:[%s153 + $0x1200] sm:$0xff] %vm4393, %v1465
        %4971 = vst.msk [vmem:[%s153 + $0x1208] sm:$0xff] %vm4393, %v1466
        %4972 = vst.msk [vmem:[%s153 + $0x1210] sm:$0xff] %vm4393, %v1467
        %4973 = vst.msk [vmem:[%s153 + $0x1218] sm:$0xff] %vm4393, %v1468
        %4974 = vst.msk [vmem:[%s153 + $0x1220] sm:$0xff] %vm4393, %v1469
        %4975 = vst.msk [vmem:[%s153 + $0x1228] sm:$0xff] %vm4393, %v1470
        %4976 = vst.msk [vmem:[%s153 + $0x1230] sm:$0xff] %vm4393, %v1471
        %4977 = vst.msk [vmem:[%s153 + $0x1238] sm:$0xff] %vm4393, %v1472
        %4978 = vst.msk [vmem:[%s153 + $0x1240] sm:$0xff] %vm4393, %v1473
        %4979 = vst.msk [vmem:[%s153 + $0x1248] sm:$0xff] %vm4393, %v1474
        %4980 = vst.msk [vmem:[%s153 + $0x1250] sm:$0xff] %vm4393, %v1475
        %4981 = vst.msk [vmem:[%s153 + $0x1258] sm:$0xff] %vm4393, %v1476
        %4982 = vst.msk [vmem:[%s153 + $0x1260] sm:$0xff] %vm4393, %v1477
        %4983 = vst.msk [vmem:[%s153 + $0x1268] sm:$0xff] %vm4393, %v1478
        %4984 = vst.msk [vmem:[%s153 + $0x1270] sm:$0xff] %vm4393, %v1479
        %4985 = vst.msk [vmem:[%s153 + $0x1278] sm:$0xff] %vm4393, %v1480
        %4986 = vst.msk [vmem:[%s153 + $0x1280] sm:$0xff] %vm4393, %v1497
        %4987 = vst.msk [vmem:[%s153 + $0x1288] sm:$0xff] %vm4393, %v1498
        %4988 = vst.msk [vmem:[%s153 + $0x1290] sm:$0xff] %vm4393, %v1499
        %4989 = vst.msk [vmem:[%s153 + $0x1298] sm:$0xff] %vm4393, %v1500
        %4990 = vst.msk [vmem:[%s153 + $0x12a0] sm:$0xff] %vm4393, %v1501
        %4991 = vst.msk [vmem:[%s153 + $0x12a8] sm:$0xff] %vm4393, %v1502
        %4992 = vst.msk [vmem:[%s153 + $0x12b0] sm:$0xff] %vm4393, %v1503
        %4993 = vst.msk [vmem:[%s153 + $0x12b8] sm:$0xff] %vm4393, %v1504
        %4994 = vst.msk [vmem:[%s153 + $0x12c0] sm:$0xff] %vm4393, %v1505
        %4995 = vst.msk [vmem:[%s153 + $0x12c8] sm:$0xff] %vm4393, %v1506
        %4996 = vst.msk [vmem:[%s153 + $0x12d0] sm:$0xff] %vm4393, %v1507
        %4997 = vst.msk [vmem:[%s153 + $0x12d8] sm:$0xff] %vm4393, %v1508
        %4998 = vst.msk [vmem:[%s153 + $0x12e0] sm:$0xff] %vm4393, %v1509
        %4999 = vst.msk [vmem:[%s153 + $0x12e8] sm:$0xff] %vm4393, %v1510
        %5000 = vst.msk [vmem:[%s153 + $0x12f0] sm:$0xff] %vm4393, %v1511
        %5001 = vst.msk [vmem:[%s153 + $0x12f8] sm:$0xff] %vm4393, %v1512
        %5002 = vst.msk [vmem:[%s153 + $0x1300] sm:$0xff] %vm4393, %v1529
        %5003 = vst.msk [vmem:[%s153 + $0x1308] sm:$0xff] %vm4393, %v1530
        %5004 = vst.msk [vmem:[%s153 + $0x1310] sm:$0xff] %vm4393, %v1531
        %5005 = vst.msk [vmem:[%s153 + $0x1318] sm:$0xff] %vm4393, %v1532
        %5006 = vst.msk [vmem:[%s153 + $0x1320] sm:$0xff] %vm4393, %v1533
        %5007 = vst.msk [vmem:[%s153 + $0x1328] sm:$0xff] %vm4393, %v1534
        %5008 = vst.msk [vmem:[%s153 + $0x1330] sm:$0xff] %vm4393, %v1535
        %5009 = vst.msk [vmem:[%s153 + $0x1338] sm:$0xff] %vm4393, %v1536
        %5010 = vst.msk [vmem:[%s153 + $0x1340] sm:$0xff] %vm4393, %v1537
        %5011 = vst.msk [vmem:[%s153 + $0x1348] sm:$0xff] %vm4393, %v1538
        %5012 = vst.msk [vmem:[%s153 + $0x1350] sm:$0xff] %vm4393, %v1539
        %5013 = vst.msk [vmem:[%s153 + $0x1358] sm:$0xff] %vm4393, %v1540
        %5014 = vst.msk [vmem:[%s153 + $0x1360] sm:$0xff] %vm4393, %v1541
        %5015 = vst.msk [vmem:[%s153 + $0x1368] sm:$0xff] %vm4393, %v1542
        %5016 = vst.msk [vmem:[%s153 + $0x1370] sm:$0xff] %vm4393, %v1543
        %5017 = vst.msk [vmem:[%s153 + $0x1378] sm:$0xff] %vm4393, %v1544
        %5018 = vst.msk [vmem:[%s153 + $0x1380] sm:$0xff] %vm4393, %v1561
        %5019 = vst.msk [vmem:[%s153 + $0x1388] sm:$0xff] %vm4393, %v1562
        %5020 = vst.msk [vmem:[%s153 + $0x1390] sm:$0xff] %vm4393, %v1563
        %5021 = vst.msk [vmem:[%s153 + $0x1398] sm:$0xff] %vm4393, %v1564
        %5022 = vst.msk [vmem:[%s153 + $0x13a0] sm:$0xff] %vm4393, %v1565
        %5023 = vst.msk [vmem:[%s153 + $0x13a8] sm:$0xff] %vm4393, %v1566
        %5024 = vst.msk [vmem:[%s153 + $0x13b0] sm:$0xff] %vm4393, %v1567
        %5025 = vst.msk [vmem:[%s153 + $0x13b8] sm:$0xff] %vm4393, %v1568
        %5026 = vst.msk [vmem:[%s153 + $0x13c0] sm:$0xff] %vm4393, %v1569
        %5027 = vst.msk [vmem:[%s153 + $0x13c8] sm:$0xff] %vm4393, %v1570
        %5028 = vst.msk [vmem:[%s153 + $0x13d0] sm:$0xff] %vm4393, %v1571
        %5029 = vst.msk [vmem:[%s153 + $0x13d8] sm:$0xff] %vm4393, %v1572
        %5030 = vst.msk [vmem:[%s153 + $0x13e0] sm:$0xff] %vm4393, %v1573
        %5031 = vst.msk [vmem:[%s153 + $0x13e8] sm:$0xff] %vm4393, %v1574
        %5032 = vst.msk [vmem:[%s153 + $0x13f0] sm:$0xff] %vm4393, %v1575
        %5033 = vst.msk [vmem:[%s153 + $0x13f8] sm:$0xff] %vm4393, %v1576
        %5034 = vst.msk [vmem:[%s153 + $0x1400] sm:$0xff] %vm4393, %v1593
        %5035 = vst.msk [vmem:[%s153 + $0x1408] sm:$0xff] %vm4393, %v1594
        %5036 = vst.msk [vmem:[%s153 + $0x1410] sm:$0xff] %vm4393, %v1595
        %5037 = vst.msk [vmem:[%s153 + $0x1418] sm:$0xff] %vm4393, %v1596
        %5038 = vst.msk [vmem:[%s153 + $0x1420] sm:$0xff] %vm4393, %v1597
        %5039 = vst.msk [vmem:[%s153 + $0x1428] sm:$0xff] %vm4393, %v1598
        %5040 = vst.msk [vmem:[%s153 + $0x1430] sm:$0xff] %vm4393, %v1599
        %5041 = vst.msk [vmem:[%s153 + $0x1438] sm:$0xff] %vm4393, %v1600
        %5042 = vst.msk [vmem:[%s153 + $0x1440] sm:$0xff] %vm4393, %v1601
        %5043 = vst.msk [vmem:[%s153 + $0x1448] sm:$0xff] %vm4393, %v1602
        %5044 = vst.msk [vmem:[%s153 + $0x1450] sm:$0xff] %vm4393, %v1603
        %5045 = vst.msk [vmem:[%s153 + $0x1458] sm:$0xff] %vm4393, %v1604
        %5046 = vst.msk [vmem:[%s153 + $0x1460] sm:$0xff] %vm4393, %v1605
        %5047 = vst.msk [vmem:[%s153 + $0x1468] sm:$0xff] %vm4393, %v1606
        %5048 = vst.msk [vmem:[%s153 + $0x1470] sm:$0xff] %vm4393, %v1607
        %5049 = vst.msk [vmem:[%s153 + $0x1478] sm:$0xff] %vm4393, %v1608
        %5050 = vst.msk [vmem:[%s153 + $0x1480] sm:$0xff] %vm4393, %v1625
        %5051 = vst.msk [vmem:[%s153 + $0x1488] sm:$0xff] %vm4393, %v1626
        %5052 = vst.msk [vmem:[%s153 + $0x1490] sm:$0xff] %vm4393, %v1627
        %5053 = vst.msk [vmem:[%s153 + $0x1498] sm:$0xff] %vm4393, %v1628
        %5054 = vst.msk [vmem:[%s153 + $0x14a0] sm:$0xff] %vm4393, %v1629
        %5055 = vst.msk [vmem:[%s153 + $0x14a8] sm:$0xff] %vm4393, %v1630
        %5056 = vst.msk [vmem:[%s153 + $0x14b0] sm:$0xff] %vm4393, %v1631
        %5057 = vst.msk [vmem:[%s153 + $0x14b8] sm:$0xff] %vm4393, %v1632
        %5058 = vst.msk [vmem:[%s153 + $0x14c0] sm:$0xff] %vm4393, %v1633
        %5059 = vst.msk [vmem:[%s153 + $0x14c8] sm:$0xff] %vm4393, %v1634
        %5060 = vst.msk [vmem:[%s153 + $0x14d0] sm:$0xff] %vm4393, %v1635
        %5061 = vst.msk [vmem:[%s153 + $0x14d8] sm:$0xff] %vm4393, %v1636
        %5062 = vst.msk [vmem:[%s153 + $0x14e0] sm:$0xff] %vm4393, %v1637
        %5063 = vst.msk [vmem:[%s153 + $0x14e8] sm:$0xff] %vm4393, %v1638
        %5064 = vst.msk [vmem:[%s153 + $0x14f0] sm:$0xff] %vm4393, %v1639
        %5065 = vst.msk [vmem:[%s153 + $0x14f8] sm:$0xff] %vm4393, %v1640
        %5066 = vst.msk [vmem:[%s153 + $0x1500] sm:$0xff] %vm4393, %v1657
        %5067 = vst.msk [vmem:[%s153 + $0x1508] sm:$0xff] %vm4393, %v1658
        %5068 = vst.msk [vmem:[%s153 + $0x1510] sm:$0xff] %vm4393, %v1659
        %5069 = vst.msk [vmem:[%s153 + $0x1518] sm:$0xff] %vm4393, %v1660
        %5070 = vst.msk [vmem:[%s153 + $0x1520] sm:$0xff] %vm4393, %v1661
        %5071 = vst.msk [vmem:[%s153 + $0x1528] sm:$0xff] %vm4393, %v1662
        %5072 = vst.msk [vmem:[%s153 + $0x1530] sm:$0xff] %vm4393, %v1663
        %5073 = vst.msk [vmem:[%s153 + $0x1538] sm:$0xff] %vm4393, %v1664
        %5074 = vst.msk [vmem:[%s153 + $0x1540] sm:$0xff] %vm4393, %v1665
        %5075 = vst.msk [vmem:[%s153 + $0x1548] sm:$0xff] %vm4393, %v1666
        %5076 = vst.msk [vmem:[%s153 + $0x1550] sm:$0xff] %vm4393, %v1667
        %5077 = vst.msk [vmem:[%s153 + $0x1558] sm:$0xff] %vm4393, %v1668
        %5078 = vst.msk [vmem:[%s153 + $0x1560] sm:$0xff] %vm4393, %v1669
        %5079 = vst.msk [vmem:[%s153 + $0x1568] sm:$0xff] %vm4393, %v1670
        %5080 = vst.msk [vmem:[%s153 + $0x1570] sm:$0xff] %vm4393, %v1671
        %5081 = vst.msk [vmem:[%s153 + $0x1578] sm:$0xff] %vm4393, %v1672
        %5082 = vst.msk [vmem:[%s153 + $0x1580] sm:$0xff] %vm4393, %v1689
        %5083 = vst.msk [vmem:[%s153 + $0x1588] sm:$0xff] %vm4393, %v1690
        %5084 = vst.msk [vmem:[%s153 + $0x1590] sm:$0xff] %vm4393, %v1691
        %5085 = vst.msk [vmem:[%s153 + $0x1598] sm:$0xff] %vm4393, %v1692
        %5086 = vst.msk [vmem:[%s153 + $0x15a0] sm:$0xff] %vm4393, %v1693
        %5087 = vst.msk [vmem:[%s153 + $0x15a8] sm:$0xff] %vm4393, %v1694
        %5088 = vst.msk [vmem:[%s153 + $0x15b0] sm:$0xff] %vm4393, %v1695
        %5089 = vst.msk [vmem:[%s153 + $0x15b8] sm:$0xff] %vm4393, %v1696
        %5090 = vst.msk [vmem:[%s153 + $0x15c0] sm:$0xff] %vm4393, %v1697
        %5091 = vst.msk [vmem:[%s153 + $0x15c8] sm:$0xff] %vm4393, %v1698
        %5092 = vst.msk [vmem:[%s153 + $0x15d0] sm:$0xff] %vm4393, %v1699
        %5093 = vst.msk [vmem:[%s153 + $0x15d8] sm:$0xff] %vm4393, %v1700
        %5094 = vst.msk [vmem:[%s153 + $0x15e0] sm:$0xff] %vm4393, %v1701
        %5095 = vst.msk [vmem:[%s153 + $0x15e8] sm:$0xff] %vm4393, %v1702
        %5096 = vst.msk [vmem:[%s153 + $0x15f0] sm:$0xff] %vm4393, %v1703
        %5097 = vst.msk [vmem:[%s153 + $0x15f8] sm:$0xff] %vm4393, %v1704
        %5098 = vst.msk [vmem:[%s153 + $0x1600] sm:$0xff] %vm4393, %v1721
        %5099 = vst.msk [vmem:[%s153 + $0x1608] sm:$0xff] %vm4393, %v1722
        %5100 = vst.msk [vmem:[%s153 + $0x1610] sm:$0xff] %vm4393, %v1723
        %5101 = vst.msk [vmem:[%s153 + $0x1618] sm:$0xff] %vm4393, %v1724
        %5102 = vst.msk [vmem:[%s153 + $0x1620] sm:$0xff] %vm4393, %v1725
        %5103 = vst.msk [vmem:[%s153 + $0x1628] sm:$0xff] %vm4393, %v1726
        %5104 = vst.msk [vmem:[%s153 + $0x1630] sm:$0xff] %vm4393, %v1727
        %5105 = vst.msk [vmem:[%s153 + $0x1638] sm:$0xff] %vm4393, %v1728
        %5106 = vst.msk [vmem:[%s153 + $0x1640] sm:$0xff] %vm4393, %v1729
        %5107 = vst.msk [vmem:[%s153 + $0x1648] sm:$0xff] %vm4393, %v1730
        %5108 = vst.msk [vmem:[%s153 + $0x1650] sm:$0xff] %vm4393, %v1731
        %5109 = vst.msk [vmem:[%s153 + $0x1658] sm:$0xff] %vm4393, %v1732
        %5110 = vst.msk [vmem:[%s153 + $0x1660] sm:$0xff] %vm4393, %v1733
        %5111 = vst.msk [vmem:[%s153 + $0x1668] sm:$0xff] %vm4393, %v1734
        %5112 = vst.msk [vmem:[%s153 + $0x1670] sm:$0xff] %vm4393, %v1735
        %5113 = vst.msk [vmem:[%s153 + $0x1678] sm:$0xff] %vm4393, %v1736
        %5114 = vst.msk [vmem:[%s153 + $0x1680] sm:$0xff] %vm4393, %v1753
        %5115 = vst.msk [vmem:[%s153 + $0x1688] sm:$0xff] %vm4393, %v1754
        %5116 = vst.msk [vmem:[%s153 + $0x1690] sm:$0xff] %vm4393, %v1755
        %5117 = vst.msk [vmem:[%s153 + $0x1698] sm:$0xff] %vm4393, %v1756
        %5118 = vst.msk [vmem:[%s153 + $0x16a0] sm:$0xff] %vm4393, %v1757
        %5119 = vst.msk [vmem:[%s153 + $0x16a8] sm:$0xff] %vm4393, %v1758
        %5120 = vst.msk [vmem:[%s153 + $0x16b0] sm:$0xff] %vm4393, %v1759
        %5121 = vst.msk [vmem:[%s153 + $0x16b8] sm:$0xff] %vm4393, %v1760
        %5122 = vst.msk [vmem:[%s153 + $0x16c0] sm:$0xff] %vm4393, %v1761
        %5123 = vst.msk [vmem:[%s153 + $0x16c8] sm:$0xff] %vm4393, %v1762
        %5124 = vst.msk [vmem:[%s153 + $0x16d0] sm:$0xff] %vm4393, %v1763
        %5125 = vst.msk [vmem:[%s153 + $0x16d8] sm:$0xff] %vm4393, %v1764
        %5126 = vst.msk [vmem:[%s153 + $0x16e0] sm:$0xff] %vm4393, %v1765
        %5127 = vst.msk [vmem:[%s153 + $0x16e8] sm:$0xff] %vm4393, %v1766
        %5128 = vst.msk [vmem:[%s153 + $0x16f0] sm:$0xff] %vm4393, %v1767
        %5129 = vst.msk [vmem:[%s153 + $0x16f8] sm:$0xff] %vm4393, %v1768
        %5130 = vst.msk [vmem:[%s153 + $0x1700] sm:$0xff] %vm4393, %v1785
        %5131 = vst.msk [vmem:[%s153 + $0x1708] sm:$0xff] %vm4393, %v1786
        %5132 = vst.msk [vmem:[%s153 + $0x1710] sm:$0xff] %vm4393, %v1787
        %5133 = vst.msk [vmem:[%s153 + $0x1718] sm:$0xff] %vm4393, %v1788
        %5134 = vst.msk [vmem:[%s153 + $0x1720] sm:$0xff] %vm4393, %v1789
        %5135 = vst.msk [vmem:[%s153 + $0x1728] sm:$0xff] %vm4393, %v1790
        %5136 = vst.msk [vmem:[%s153 + $0x1730] sm:$0xff] %vm4393, %v1791
        %5137 = vst.msk [vmem:[%s153 + $0x1738] sm:$0xff] %vm4393, %v1792
        %5138 = vst.msk [vmem:[%s153 + $0x1740] sm:$0xff] %vm4393, %v1793
        %5139 = vst.msk [vmem:[%s153 + $0x1748] sm:$0xff] %vm4393, %v1794
        %5140 = vst.msk [vmem:[%s153 + $0x1750] sm:$0xff] %vm4393, %v1795
        %5141 = vst.msk [vmem:[%s153 + $0x1758] sm:$0xff] %vm4393, %v1796
        %5142 = vst.msk [vmem:[%s153 + $0x1760] sm:$0xff] %vm4393, %v1797
        %5143 = vst.msk [vmem:[%s153 + $0x1768] sm:$0xff] %vm4393, %v1798
        %5144 = vst.msk [vmem:[%s153 + $0x1770] sm:$0xff] %vm4393, %v1799
        %5145 = vst.msk [vmem:[%s153 + $0x1778] sm:$0xff] %vm4393, %v1800
        %5146 = vst.msk [vmem:[%s153 + $0x1780] sm:$0xff] %vm4393, %v1817
        %5147 = vst.msk [vmem:[%s153 + $0x1788] sm:$0xff] %vm4393, %v1818
        %5148 = vst.msk [vmem:[%s153 + $0x1790] sm:$0xff] %vm4393, %v1819
        %5149 = vst.msk [vmem:[%s153 + $0x1798] sm:$0xff] %vm4393, %v1820
        %5150 = vst.msk [vmem:[%s153 + $0x17a0] sm:$0xff] %vm4393, %v1821
        %5151 = vst.msk [vmem:[%s153 + $0x17a8] sm:$0xff] %vm4393, %v1822
        %5152 = vst.msk [vmem:[%s153 + $0x17b0] sm:$0xff] %vm4393, %v1823
        %5153 = vst.msk [vmem:[%s153 + $0x17b8] sm:$0xff] %vm4393, %v1824
        %5154 = vst.msk [vmem:[%s153 + $0x17c0] sm:$0xff] %vm4393, %v1825
        %5155 = vst.msk [vmem:[%s153 + $0x17c8] sm:$0xff] %vm4393, %v1826
        %5156 = vst.msk [vmem:[%s153 + $0x17d0] sm:$0xff] %vm4393, %v1827
        %5157 = vst.msk [vmem:[%s153 + $0x17d8] sm:$0xff] %vm4393, %v1828
        %5158 = vst.msk [vmem:[%s153 + $0x17e0] sm:$0xff] %vm4393, %v1829
        %5159 = vst.msk [vmem:[%s153 + $0x17e8] sm:$0xff] %vm4393, %v1830
        %5160 = vst.msk [vmem:[%s153 + $0x17f0] sm:$0xff] %vm4393, %v1831
        %5161 = vst.msk [vmem:[%s153 + $0x17f8] sm:$0xff] %vm4393, %v1832
        %5162 = vst.msk [vmem:[%s153 + $0x1800] sm:$0xff] %vm4393, %v1849
        %5163 = vst.msk [vmem:[%s153 + $0x1808] sm:$0xff] %vm4393, %v1850
        %5164 = vst.msk [vmem:[%s153 + $0x1810] sm:$0xff] %vm4393, %v1851
        %5165 = vst.msk [vmem:[%s153 + $0x1818] sm:$0xff] %vm4393, %v1852
        %5166 = vst.msk [vmem:[%s153 + $0x1820] sm:$0xff] %vm4393, %v1853
        %5167 = vst.msk [vmem:[%s153 + $0x1828] sm:$0xff] %vm4393, %v1854
        %5168 = vst.msk [vmem:[%s153 + $0x1830] sm:$0xff] %vm4393, %v1855
        %5169 = vst.msk [vmem:[%s153 + $0x1838] sm:$0xff] %vm4393, %v1856
        %5170 = vst.msk [vmem:[%s153 + $0x1840] sm:$0xff] %vm4393, %v1857
        %5171 = vst.msk [vmem:[%s153 + $0x1848] sm:$0xff] %vm4393, %v1858
        %5172 = vst.msk [vmem:[%s153 + $0x1850] sm:$0xff] %vm4393, %v1859
        %5173 = vst.msk [vmem:[%s153 + $0x1858] sm:$0xff] %vm4393, %v1860
        %5174 = vst.msk [vmem:[%s153 + $0x1860] sm:$0xff] %vm4393, %v1861
        %5175 = vst.msk [vmem:[%s153 + $0x1868] sm:$0xff] %vm4393, %v1862
        %5176 = vst.msk [vmem:[%s153 + $0x1870] sm:$0xff] %vm4393, %v1863
        %5177 = vst.msk [vmem:[%s153 + $0x1878] sm:$0xff] %vm4393, %v1864
        %5178 = vst.msk [vmem:[%s153 + $0x1880] sm:$0xff] %vm4393, %v1881
        %5179 = vst.msk [vmem:[%s153 + $0x1888] sm:$0xff] %vm4393, %v1882
        %5180 = vst.msk [vmem:[%s153 + $0x1890] sm:$0xff] %vm4393, %v1883
        %5181 = vst.msk [vmem:[%s153 + $0x1898] sm:$0xff] %vm4393, %v1884
        %5182 = vst.msk [vmem:[%s153 + $0x18a0] sm:$0xff] %vm4393, %v1885
        %5183 = vst.msk [vmem:[%s153 + $0x18a8] sm:$0xff] %vm4393, %v1886
        %5184 = vst.msk [vmem:[%s153 + $0x18b0] sm:$0xff] %vm4393, %v1887
        %5185 = vst.msk [vmem:[%s153 + $0x18b8] sm:$0xff] %vm4393, %v1888
        %5186 = vst.msk [vmem:[%s153 + $0x18c0] sm:$0xff] %vm4393, %v1889
        %5187 = vst.msk [vmem:[%s153 + $0x18c8] sm:$0xff] %vm4393, %v1890
        %5188 = vst.msk [vmem:[%s153 + $0x18d0] sm:$0xff] %vm4393, %v1891
        %5189 = vst.msk [vmem:[%s153 + $0x18d8] sm:$0xff] %vm4393, %v1892
        %5190 = vst.msk [vmem:[%s153 + $0x18e0] sm:$0xff] %vm4393, %v1893
        %5191 = vst.msk [vmem:[%s153 + $0x18e8] sm:$0xff] %vm4393, %v1894
        %5192 = vst.msk [vmem:[%s153 + $0x18f0] sm:$0xff] %vm4393, %v1895
        %5193 = vst.msk [vmem:[%s153 + $0x18f8] sm:$0xff] %vm4393, %v1896
        %5194 = vst.msk [vmem:[%s153 + $0x1900] sm:$0xff] %vm4393, %v1913
        %5195 = vst.msk [vmem:[%s153 + $0x1908] sm:$0xff] %vm4393, %v1914
        %5196 = vst.msk [vmem:[%s153 + $0x1910] sm:$0xff] %vm4393, %v1915
        %5197 = vst.msk [vmem:[%s153 + $0x1918] sm:$0xff] %vm4393, %v1916
        %5198 = vst.msk [vmem:[%s153 + $0x1920] sm:$0xff] %vm4393, %v1917
        %5199 = vst.msk [vmem:[%s153 + $0x1928] sm:$0xff] %vm4393, %v1918
        %5200 = vst.msk [vmem:[%s153 + $0x1930] sm:$0xff] %vm4393, %v1919
        %5201 = vst.msk [vmem:[%s153 + $0x1938] sm:$0xff] %vm4393, %v1920
        %5202 = vst.msk [vmem:[%s153 + $0x1940] sm:$0xff] %vm4393, %v1921
        %5203 = vst.msk [vmem:[%s153 + $0x1948] sm:$0xff] %vm4393, %v1922
        %5204 = vst.msk [vmem:[%s153 + $0x1950] sm:$0xff] %vm4393, %v1923
        %5205 = vst.msk [vmem:[%s153 + $0x1958] sm:$0xff] %vm4393, %v1924
        %5206 = vst.msk [vmem:[%s153 + $0x1960] sm:$0xff] %vm4393, %v1925
        %5207 = vst.msk [vmem:[%s153 + $0x1968] sm:$0xff] %vm4393, %v1926
        %5208 = vst.msk [vmem:[%s153 + $0x1970] sm:$0xff] %vm4393, %v1927
        %5209 = vst.msk [vmem:[%s153 + $0x1978] sm:$0xff] %vm4393, %v1928
        %5210 = vst.msk [vmem:[%s153 + $0x1980] sm:$0xff] %vm4393, %v1945
        %5211 = vst.msk [vmem:[%s153 + $0x1988] sm:$0xff] %vm4393, %v1946
        %5212 = vst.msk [vmem:[%s153 + $0x1990] sm:$0xff] %vm4393, %v1947
        %5213 = vst.msk [vmem:[%s153 + $0x1998] sm:$0xff] %vm4393, %v1948
        %5214 = vst.msk [vmem:[%s153 + $0x19a0] sm:$0xff] %vm4393, %v1949
        %5215 = vst.msk [vmem:[%s153 + $0x19a8] sm:$0xff] %vm4393, %v1950
        %5216 = vst.msk [vmem:[%s153 + $0x19b0] sm:$0xff] %vm4393, %v1951
        %5217 = vst.msk [vmem:[%s153 + $0x19b8] sm:$0xff] %vm4393, %v1952
        %5218 = vst.msk [vmem:[%s153 + $0x19c0] sm:$0xff] %vm4393, %v1953
        %5219 = vst.msk [vmem:[%s153 + $0x19c8] sm:$0xff] %vm4393, %v1954
        %5220 = vst.msk [vmem:[%s153 + $0x19d0] sm:$0xff] %vm4393, %v1955
        %5221 = vst.msk [vmem:[%s153 + $0x19d8] sm:$0xff] %vm4393, %v1956
        %5222 = vst.msk [vmem:[%s153 + $0x19e0] sm:$0xff] %vm4393, %v1957
        %5223 = vst.msk [vmem:[%s153 + $0x19e8] sm:$0xff] %vm4393, %v1958
        %5224 = vst.msk [vmem:[%s153 + $0x19f0] sm:$0xff] %vm4393, %v1959
        %5225 = vst.msk [vmem:[%s153 + $0x19f8] sm:$0xff] %vm4393, %v1960
        %5226 = vst.msk [vmem:[%s153 + $0x1a00] sm:$0xff] %vm4393, %v1977
        %5227 = vst.msk [vmem:[%s153 + $0x1a08] sm:$0xff] %vm4393, %v1978
        %5228 = vst.msk [vmem:[%s153 + $0x1a10] sm:$0xff] %vm4393, %v1979
        %5229 = vst.msk [vmem:[%s153 + $0x1a18] sm:$0xff] %vm4393, %v1980
        %5230 = vst.msk [vmem:[%s153 + $0x1a20] sm:$0xff] %vm4393, %v1981
        %5231 = vst.msk [vmem:[%s153 + $0x1a28] sm:$0xff] %vm4393, %v1982
        %5232 = vst.msk [vmem:[%s153 + $0x1a30] sm:$0xff] %vm4393, %v1983
        %5233 = vst.msk [vmem:[%s153 + $0x1a38] sm:$0xff] %vm4393, %v1984
        %5234 = vst.msk [vmem:[%s153 + $0x1a40] sm:$0xff] %vm4393, %v1985
        %5235 = vst.msk [vmem:[%s153 + $0x1a48] sm:$0xff] %vm4393, %v1986
        %5236 = vst.msk [vmem:[%s153 + $0x1a50] sm:$0xff] %vm4393, %v1987
        %5237 = vst.msk [vmem:[%s153 + $0x1a58] sm:$0xff] %vm4393, %v1988
        %5238 = vst.msk [vmem:[%s153 + $0x1a60] sm:$0xff] %vm4393, %v1989
        %5239 = vst.msk [vmem:[%s153 + $0x1a68] sm:$0xff] %vm4393, %v1990
        %5240 = vst.msk [vmem:[%s153 + $0x1a70] sm:$0xff] %vm4393, %v1991
        %5241 = vst.msk [vmem:[%s153 + $0x1a78] sm:$0xff] %vm4393, %v1992
        %5242 = vst.msk [vmem:[%s153 + $0x1a80] sm:$0xff] %vm4393, %v2009
        %5243 = vst.msk [vmem:[%s153 + $0x1a88] sm:$0xff] %vm4393, %v2010
        %5244 = vst.msk [vmem:[%s153 + $0x1a90] sm:$0xff] %vm4393, %v2011
        %5245 = vst.msk [vmem:[%s153 + $0x1a98] sm:$0xff] %vm4393, %v2012
        %5246 = vst.msk [vmem:[%s153 + $0x1aa0] sm:$0xff] %vm4393, %v2013
        %5247 = vst.msk [vmem:[%s153 + $0x1aa8] sm:$0xff] %vm4393, %v2014
        %5248 = vst.msk [vmem:[%s153 + $0x1ab0] sm:$0xff] %vm4393, %v2015
        %5249 = vst.msk [vmem:[%s153 + $0x1ab8] sm:$0xff] %vm4393, %v2016
        %5250 = vst.msk [vmem:[%s153 + $0x1ac0] sm:$0xff] %vm4393, %v2017
        %5251 = vst.msk [vmem:[%s153 + $0x1ac8] sm:$0xff] %vm4393, %v2018
        %5252 = vst.msk [vmem:[%s153 + $0x1ad0] sm:$0xff] %vm4393, %v2019
        %5253 = vst.msk [vmem:[%s153 + $0x1ad8] sm:$0xff] %vm4393, %v2020
        %5254 = vst.msk [vmem:[%s153 + $0x1ae0] sm:$0xff] %vm4393, %v2021
        %5255 = vst.msk [vmem:[%s153 + $0x1ae8] sm:$0xff] %vm4393, %v2022
        %5256 = vst.msk [vmem:[%s153 + $0x1af0] sm:$0xff] %vm4393, %v2023
        %5257 = vst.msk [vmem:[%s153 + $0x1af8] sm:$0xff] %vm4393, %v2024
        %5258 = vst.msk [vmem:[%s153 + $0x1b00] sm:$0xff] %vm4393, %v2041
        %5259 = vst.msk [vmem:[%s153 + $0x1b08] sm:$0xff] %vm4393, %v2042
        %5260 = vst.msk [vmem:[%s153 + $0x1b10] sm:$0xff] %vm4393, %v2043
        %5261 = vst.msk [vmem:[%s153 + $0x1b18] sm:$0xff] %vm4393, %v2044
        %5262 = vst.msk [vmem:[%s153 + $0x1b20] sm:$0xff] %vm4393, %v2045
        %5263 = vst.msk [vmem:[%s153 + $0x1b28] sm:$0xff] %vm4393, %v2046
        %5264 = vst.msk [vmem:[%s153 + $0x1b30] sm:$0xff] %vm4393, %v2047
        %5265 = vst.msk [vmem:[%s153 + $0x1b38] sm:$0xff] %vm4393, %v2048
        %5266 = vst.msk [vmem:[%s153 + $0x1b40] sm:$0xff] %vm4393, %v2049
        %5267 = vst.msk [vmem:[%s153 + $0x1b48] sm:$0xff] %vm4393, %v2050
        %5268 = vst.msk [vmem:[%s153 + $0x1b50] sm:$0xff] %vm4393, %v2051
        %5269 = vst.msk [vmem:[%s153 + $0x1b58] sm:$0xff] %vm4393, %v2052
        %5270 = vst.msk [vmem:[%s153 + $0x1b60] sm:$0xff] %vm4393, %v2053
        %5271 = vst.msk [vmem:[%s153 + $0x1b68] sm:$0xff] %vm4393, %v2054
        %5272 = vst.msk [vmem:[%s153 + $0x1b70] sm:$0xff] %vm4393, %v2055
        %5273 = vst.msk [vmem:[%s153 + $0x1b78] sm:$0xff] %vm4393, %v2056
        %5274 = vst.msk [vmem:[%s153 + $0x1b80] sm:$0xff] %vm4393, %v2073
        %5275 = vst.msk [vmem:[%s153 + $0x1b88] sm:$0xff] %vm4393, %v2074
        %5276 = vst.msk [vmem:[%s153 + $0x1b90] sm:$0xff] %vm4393, %v2075
        %5277 = vst.msk [vmem:[%s153 + $0x1b98] sm:$0xff] %vm4393, %v2076
        %5278 = vst.msk [vmem:[%s153 + $0x1ba0] sm:$0xff] %vm4393, %v2077
        %5279 = vst.msk [vmem:[%s153 + $0x1ba8] sm:$0xff] %vm4393, %v2078
        %5280 = vst.msk [vmem:[%s153 + $0x1bb0] sm:$0xff] %vm4393, %v2079
        %5281 = vst.msk [vmem:[%s153 + $0x1bb8] sm:$0xff] %vm4393, %v2080
        %5282 = vst.msk [vmem:[%s153 + $0x1bc0] sm:$0xff] %vm4393, %v2081
        %5283 = vst.msk [vmem:[%s153 + $0x1bc8] sm:$0xff] %vm4393, %v2082
        %5284 = vst.msk [vmem:[%s153 + $0x1bd0] sm:$0xff] %vm4393, %v2083
        %5285 = vst.msk [vmem:[%s153 + $0x1bd8] sm:$0xff] %vm4393, %v2084
        %5286 = vst.msk [vmem:[%s153 + $0x1be0] sm:$0xff] %vm4393, %v2085
        %5287 = vst.msk [vmem:[%s153 + $0x1be8] sm:$0xff] %vm4393, %v2086
        %5288 = vst.msk [vmem:[%s153 + $0x1bf0] sm:$0xff] %vm4393, %v2087
        %5289 = vst.msk [vmem:[%s153 + $0x1bf8] sm:$0xff] %vm4393, %v2088
        %5290 = vst.msk [vmem:[%s153 + $0x1c00] sm:$0xff] %vm4393, %v2105
        %5291 = vst.msk [vmem:[%s153 + $0x1c08] sm:$0xff] %vm4393, %v2106
        %5292 = vst.msk [vmem:[%s153 + $0x1c10] sm:$0xff] %vm4393, %v2107
        %5293 = vst.msk [vmem:[%s153 + $0x1c18] sm:$0xff] %vm4393, %v2108
        %5294 = vst.msk [vmem:[%s153 + $0x1c20] sm:$0xff] %vm4393, %v2109
        %5295 = vst.msk [vmem:[%s153 + $0x1c28] sm:$0xff] %vm4393, %v2110
        %5296 = vst.msk [vmem:[%s153 + $0x1c30] sm:$0xff] %vm4393, %v2111
        %5297 = vst.msk [vmem:[%s153 + $0x1c38] sm:$0xff] %vm4393, %v2112
        %5298 = vst.msk [vmem:[%s153 + $0x1c40] sm:$0xff] %vm4393, %v2113
        %5299 = vst.msk [vmem:[%s153 + $0x1c48] sm:$0xff] %vm4393, %v2114
        %5300 = vst.msk [vmem:[%s153 + $0x1c50] sm:$0xff] %vm4393, %v2115
        %5301 = vst.msk [vmem:[%s153 + $0x1c58] sm:$0xff] %vm4393, %v2116
        %5302 = vst.msk [vmem:[%s153 + $0x1c60] sm:$0xff] %vm4393, %v2117
        %5303 = vst.msk [vmem:[%s153 + $0x1c68] sm:$0xff] %vm4393, %v2118
        %5304 = vst.msk [vmem:[%s153 + $0x1c70] sm:$0xff] %vm4393, %v2119
        %5305 = vst.msk [vmem:[%s153 + $0x1c78] sm:$0xff] %vm4393, %v2120
        %5306 = vst.msk [vmem:[%s153 + $0x1c80] sm:$0xff] %vm4393, %v2137
        %5307 = vst.msk [vmem:[%s153 + $0x1c88] sm:$0xff] %vm4393, %v2138
        %5308 = vst.msk [vmem:[%s153 + $0x1c90] sm:$0xff] %vm4393, %v2139
        %5309 = vst.msk [vmem:[%s153 + $0x1c98] sm:$0xff] %vm4393, %v2140
        %5310 = vst.msk [vmem:[%s153 + $0x1ca0] sm:$0xff] %vm4393, %v2141
        %5311 = vst.msk [vmem:[%s153 + $0x1ca8] sm:$0xff] %vm4393, %v2142
        %5312 = vst.msk [vmem:[%s153 + $0x1cb0] sm:$0xff] %vm4393, %v2143
        %5313 = vst.msk [vmem:[%s153 + $0x1cb8] sm:$0xff] %vm4393, %v2144
        %5314 = vst.msk [vmem:[%s153 + $0x1cc0] sm:$0xff] %vm4393, %v2145
        %5315 = vst.msk [vmem:[%s153 + $0x1cc8] sm:$0xff] %vm4393, %v2146
        %5316 = vst.msk [vmem:[%s153 + $0x1cd0] sm:$0xff] %vm4393, %v2147
        %5317 = vst.msk [vmem:[%s153 + $0x1cd8] sm:$0xff] %vm4393, %v2148
        %5318 = vst.msk [vmem:[%s153 + $0x1ce0] sm:$0xff] %vm4393, %v2149
        %5319 = vst.msk [vmem:[%s153 + $0x1ce8] sm:$0xff] %vm4393, %v2150
        %5320 = vst.msk [vmem:[%s153 + $0x1cf0] sm:$0xff] %vm4393, %v2151
        %5321 = vst.msk [vmem:[%s153 + $0x1cf8] sm:$0xff] %vm4393, %v2152
        %5322 = vst.msk [vmem:[%s153 + $0x1d00] sm:$0xff] %vm4393, %v2169
        %5323 = vst.msk [vmem:[%s153 + $0x1d08] sm:$0xff] %vm4393, %v2170
        %5324 = vst.msk [vmem:[%s153 + $0x1d10] sm:$0xff] %vm4393, %v2171
        %5325 = vst.msk [vmem:[%s153 + $0x1d18] sm:$0xff] %vm4393, %v2172
        %5326 = vst.msk [vmem:[%s153 + $0x1d20] sm:$0xff] %vm4393, %v2173
        %5327 = vst.msk [vmem:[%s153 + $0x1d28] sm:$0xff] %vm4393, %v2174
        %5328 = vst.msk [vmem:[%s153 + $0x1d30] sm:$0xff] %vm4393, %v2175
        %5329 = vst.msk [vmem:[%s153 + $0x1d38] sm:$0xff] %vm4393, %v2176
        %5330 = vst.msk [vmem:[%s153 + $0x1d40] sm:$0xff] %vm4393, %v2177
        %5331 = vst.msk [vmem:[%s153 + $0x1d48] sm:$0xff] %vm4393, %v2178
        %5332 = vst.msk [vmem:[%s153 + $0x1d50] sm:$0xff] %vm4393, %v2179
        %5333 = vst.msk [vmem:[%s153 + $0x1d58] sm:$0xff] %vm4393, %v2180
        %5334 = vst.msk [vmem:[%s153 + $0x1d60] sm:$0xff] %vm4393, %v2181
        %5335 = vst.msk [vmem:[%s153 + $0x1d68] sm:$0xff] %vm4393, %v2182
        %5336 = vst.msk [vmem:[%s153 + $0x1d70] sm:$0xff] %vm4393, %v2183
        %5337 = vst.msk [vmem:[%s153 + $0x1d78] sm:$0xff] %vm4393, %v2184
        %5338 = vst.msk [vmem:[%s153 + $0x1d80] sm:$0xff] %vm4393, %v2201
        %5339 = vst.msk [vmem:[%s153 + $0x1d88] sm:$0xff] %vm4393, %v2202
        %5340 = vst.msk [vmem:[%s153 + $0x1d90] sm:$0xff] %vm4393, %v2203
        %5341 = vst.msk [vmem:[%s153 + $0x1d98] sm:$0xff] %vm4393, %v2204
        %5342 = vst.msk [vmem:[%s153 + $0x1da0] sm:$0xff] %vm4393, %v2205
        %5343 = vst.msk [vmem:[%s153 + $0x1da8] sm:$0xff] %vm4393, %v2206
        %5344 = vst.msk [vmem:[%s153 + $0x1db0] sm:$0xff] %vm4393, %v2207
        %5345 = vst.msk [vmem:[%s153 + $0x1db8] sm:$0xff] %vm4393, %v2208
        %5346 = vst.msk [vmem:[%s153 + $0x1dc0] sm:$0xff] %vm4393, %v2209
        %5347 = vst.msk [vmem:[%s153 + $0x1dc8] sm:$0xff] %vm4393, %v2210
        %5348 = vst.msk [vmem:[%s153 + $0x1dd0] sm:$0xff] %vm4393, %v2211
        %5349 = vst.msk [vmem:[%s153 + $0x1dd8] sm:$0xff] %vm4393, %v2212
        %5350 = vst.msk [vmem:[%s153 + $0x1de0] sm:$0xff] %vm4393, %v2213
        %5351 = vst.msk [vmem:[%s153 + $0x1de8] sm:$0xff] %vm4393, %v2214
        %5352 = vst.msk [vmem:[%s153 + $0x1df0] sm:$0xff] %vm4393, %v2215
        %5353 = vst.msk [vmem:[%s153 + $0x1df8] sm:$0xff] %vm4393, %v2216
        %5354 = vst.msk [vmem:[%s153 + $0x1e00] sm:$0xff] %vm4393, %v2233
        %5355 = vst.msk [vmem:[%s153 + $0x1e08] sm:$0xff] %vm4393, %v2234
        %5356 = vst.msk [vmem:[%s153 + $0x1e10] sm:$0xff] %vm4393, %v2235
        %5357 = vst.msk [vmem:[%s153 + $0x1e18] sm:$0xff] %vm4393, %v2236
        %5358 = vst.msk [vmem:[%s153 + $0x1e20] sm:$0xff] %vm4393, %v2237
        %5359 = vst.msk [vmem:[%s153 + $0x1e28] sm:$0xff] %vm4393, %v2238
        %5360 = vst.msk [vmem:[%s153 + $0x1e30] sm:$0xff] %vm4393, %v2239
        %5361 = vst.msk [vmem:[%s153 + $0x1e38] sm:$0xff] %vm4393, %v2240
        %5362 = vst.msk [vmem:[%s153 + $0x1e40] sm:$0xff] %vm4393, %v2241
        %5363 = vst.msk [vmem:[%s153 + $0x1e48] sm:$0xff] %vm4393, %v2242
        %5364 = vst.msk [vmem:[%s153 + $0x1e50] sm:$0xff] %vm4393, %v2243
        %5365 = vst.msk [vmem:[%s153 + $0x1e58] sm:$0xff] %vm4393, %v2244
        %5366 = vst.msk [vmem:[%s153 + $0x1e60] sm:$0xff] %vm4393, %v2245
        %5367 = vst.msk [vmem:[%s153 + $0x1e68] sm:$0xff] %vm4393, %v2246
        %5368 = vst.msk [vmem:[%s153 + $0x1e70] sm:$0xff] %vm4393, %v2247
        %5369 = vst.msk [vmem:[%s153 + $0x1e78] sm:$0xff] %vm4393, %v2248
        %5370 = vst.msk [vmem:[%s153 + $0x1e80] sm:$0xff] %vm4393, %v2265
        %5371 = vst.msk [vmem:[%s153 + $0x1e88] sm:$0xff] %vm4393, %v2266
        %5372 = vst.msk [vmem:[%s153 + $0x1e90] sm:$0xff] %vm4393, %v2267
        %5373 = vst.msk [vmem:[%s153 + $0x1e98] sm:$0xff] %vm4393, %v2268
        %5374 = vst.msk [vmem:[%s153 + $0x1ea0] sm:$0xff] %vm4393, %v2269
        %5375 = vst.msk [vmem:[%s153 + $0x1ea8] sm:$0xff] %vm4393, %v2270
        %5376 = vst.msk [vmem:[%s153 + $0x1eb0] sm:$0xff] %vm4393, %v2271
        %5377 = vst.msk [vmem:[%s153 + $0x1eb8] sm:$0xff] %vm4393, %v2272
        %5378 = vst.msk [vmem:[%s153 + $0x1ec0] sm:$0xff] %vm4393, %v2273
        %5379 = vst.msk [vmem:[%s153 + $0x1ec8] sm:$0xff] %vm4393, %v2274
        %5380 = vst.msk [vmem:[%s153 + $0x1ed0] sm:$0xff] %vm4393, %v2275
        %5381 = vst.msk [vmem:[%s153 + $0x1ed8] sm:$0xff] %vm4393, %v2276
        %5382 = vst.msk [vmem:[%s153 + $0x1ee0] sm:$0xff] %vm4393, %v2277
        %5383 = vst.msk [vmem:[%s153 + $0x1ee8] sm:$0xff] %vm4393, %v2278
        %5384 = vst.msk [vmem:[%s153 + $0x1ef0] sm:$0xff] %vm4393, %v2279
        %5385 = vst.msk [vmem:[%s153 + $0x1ef8] sm:$0xff] %vm4393, %v2280
        %5386 = vst.msk [vmem:[%s153 + $0x1f00] sm:$0xff] %vm4393, %v2297
        %5387 = vst.msk [vmem:[%s153 + $0x1f08] sm:$0xff] %vm4393, %v2298
        %5388 = vst.msk [vmem:[%s153 + $0x1f10] sm:$0xff] %vm4393, %v2299
        %5389 = vst.msk [vmem:[%s153 + $0x1f18] sm:$0xff] %vm4393, %v2300
        %5390 = vst.msk [vmem:[%s153 + $0x1f20] sm:$0xff] %vm4393, %v2301
        %5391 = vst.msk [vmem:[%s153 + $0x1f28] sm:$0xff] %vm4393, %v2302
        %5392 = vst.msk [vmem:[%s153 + $0x1f30] sm:$0xff] %vm4393, %v2303
        %5393 = vst.msk [vmem:[%s153 + $0x1f38] sm:$0xff] %vm4393, %v2304
        %5394 = vst.msk [vmem:[%s153 + $0x1f40] sm:$0xff] %vm4393, %v2305
        %5395 = vst.msk [vmem:[%s153 + $0x1f48] sm:$0xff] %vm4393, %v2306
        %5396 = vst.msk [vmem:[%s153 + $0x1f50] sm:$0xff] %vm4393, %v2307
        %5397 = vst.msk [vmem:[%s153 + $0x1f58] sm:$0xff] %vm4393, %v2308
        %5398 = vst.msk [vmem:[%s153 + $0x1f60] sm:$0xff] %vm4393, %v2309
        %5399 = vst.msk [vmem:[%s153 + $0x1f68] sm:$0xff] %vm4393, %v2310
        %5400 = vst.msk [vmem:[%s153 + $0x1f70] sm:$0xff] %vm4393, %v2311
        %5401 = vst.msk [vmem:[%s153 + $0x1f78] sm:$0xff] %vm4393, %v2312
        %5402 = vst.msk [vmem:[%s153 + $0x1f80] sm:$0xff] %vm4393, %v2329
        %5403 = vst.msk [vmem:[%s153 + $0x1f88] sm:$0xff] %vm4393, %v2330
        %5404 = vst.msk [vmem:[%s153 + $0x1f90] sm:$0xff] %vm4393, %v2331
        %5405 = vst.msk [vmem:[%s153 + $0x1f98] sm:$0xff] %vm4393, %v2332
        %5406 = vst.msk [vmem:[%s153 + $0x1fa0] sm:$0xff] %vm4393, %v2333
        %5407 = vst.msk [vmem:[%s153 + $0x1fa8] sm:$0xff] %vm4393, %v2334
        %5408 = vst.msk [vmem:[%s153 + $0x1fb0] sm:$0xff] %vm4393, %v2335
        %5409 = vst.msk [vmem:[%s153 + $0x1fb8] sm:$0xff] %vm4393, %v2336
        %5410 = vst.msk [vmem:[%s153 + $0x1fc0] sm:$0xff] %vm4393, %v2337
        %5411 = vst.msk [vmem:[%s153 + $0x1fc8] sm:$0xff] %vm4393, %v2338
        %5412 = vst.msk [vmem:[%s153 + $0x1fd0] sm:$0xff] %vm4393, %v2339
        %5413 = vst.msk [vmem:[%s153 + $0x1fd8] sm:$0xff] %vm4393, %v2340
        %5414 = vst.msk [vmem:[%s153 + $0x1fe0] sm:$0xff] %vm4393, %v2341
        %5415 = vst.msk [vmem:[%s153 + $0x1fe8] sm:$0xff] %vm4393, %v2342
        %5416 = vst.msk [vmem:[%s153 + $0x1ff0] sm:$0xff] %vm4393, %v2343
        %5417 = vst.msk [vmem:[%s153 + $0x1ff8] sm:$0xff] %vm4393, %v2344
        %5418 = vst.msk [vmem:[%s153 + $0x2000] sm:$0xff] %vm4393, %v2361
        %5419 = vst.msk [vmem:[%s153 + $0x2008] sm:$0xff] %vm4393, %v2362
        %5420 = vst.msk [vmem:[%s153 + $0x2010] sm:$0xff] %vm4393, %v2363
        %5421 = vst.msk [vmem:[%s153 + $0x2018] sm:$0xff] %vm4393, %v2364
        %5422 = vst.msk [vmem:[%s153 + $0x2020] sm:$0xff] %vm4393, %v2365
        %5423 = vst.msk [vmem:[%s153 + $0x2028] sm:$0xff] %vm4393, %v2366
        %5424 = vst.msk [vmem:[%s153 + $0x2030] sm:$0xff] %vm4393, %v2367
        %5425 = vst.msk [vmem:[%s153 + $0x2038] sm:$0xff] %vm4393, %v2368
        %5426 = vst.msk [vmem:[%s153 + $0x2040] sm:$0xff] %vm4393, %v2369
        %5427 = vst.msk [vmem:[%s153 + $0x2048] sm:$0xff] %vm4393, %v2370
        %5428 = vst.msk [vmem:[%s153 + $0x2050] sm:$0xff] %vm4393, %v2371
        %5429 = vst.msk [vmem:[%s153 + $0x2058] sm:$0xff] %vm4393, %v2372
        %5430 = vst.msk [vmem:[%s153 + $0x2060] sm:$0xff] %vm4393, %v2373
        %5431 = vst.msk [vmem:[%s153 + $0x2068] sm:$0xff] %vm4393, %v2374
        %5432 = vst.msk [vmem:[%s153 + $0x2070] sm:$0xff] %vm4393, %v2375
        %5433 = vst.msk [vmem:[%s153 + $0x2078] sm:$0xff] %vm4393, %v2376
        %5434 = vst.msk [vmem:[%s153 + $0x2080] sm:$0xff] %vm4393, %v2393
        %5435 = vst.msk [vmem:[%s153 + $0x2088] sm:$0xff] %vm4393, %v2394
        %5436 = vst.msk [vmem:[%s153 + $0x2090] sm:$0xff] %vm4393, %v2395
        %5437 = vst.msk [vmem:[%s153 + $0x2098] sm:$0xff] %vm4393, %v2396
        %5438 = vst.msk [vmem:[%s153 + $0x20a0] sm:$0xff] %vm4393, %v2397
        %5439 = vst.msk [vmem:[%s153 + $0x20a8] sm:$0xff] %vm4393, %v2398
        %5440 = vst.msk [vmem:[%s153 + $0x20b0] sm:$0xff] %vm4393, %v2399
        %5441 = vst.msk [vmem:[%s153 + $0x20b8] sm:$0xff] %vm4393, %v2400
        %5442 = vst.msk [vmem:[%s153 + $0x20c0] sm:$0xff] %vm4393, %v2401
        %5443 = vst.msk [vmem:[%s153 + $0x20c8] sm:$0xff] %vm4393, %v2402
        %5444 = vst.msk [vmem:[%s153 + $0x20d0] sm:$0xff] %vm4393, %v2403
        %5445 = vst.msk [vmem:[%s153 + $0x20d8] sm:$0xff] %vm4393, %v2404
        %5446 = vst.msk [vmem:[%s153 + $0x20e0] sm:$0xff] %vm4393, %v2405
        %5447 = vst.msk [vmem:[%s153 + $0x20e8] sm:$0xff] %vm4393, %v2406
        %5448 = vst.msk [vmem:[%s153 + $0x20f0] sm:$0xff] %vm4393, %v2407
        %5449 = vst.msk [vmem:[%s153 + $0x20f8] sm:$0xff] %vm4393, %v2408
        %5450 = vst.msk [vmem:[%s153 + $0x2100] sm:$0xff] %vm4393, %v2425
        %5451 = vst.msk [vmem:[%s153 + $0x2108] sm:$0xff] %vm4393, %v2426
        %5452 = vst.msk [vmem:[%s153 + $0x2110] sm:$0xff] %vm4393, %v2427
        %5453 = vst.msk [vmem:[%s153 + $0x2118] sm:$0xff] %vm4393, %v2428
        %5454 = vst.msk [vmem:[%s153 + $0x2120] sm:$0xff] %vm4393, %v2429
        %5455 = vst.msk [vmem:[%s153 + $0x2128] sm:$0xff] %vm4393, %v2430
        %5456 = vst.msk [vmem:[%s153 + $0x2130] sm:$0xff] %vm4393, %v2431
        %5457 = vst.msk [vmem:[%s153 + $0x2138] sm:$0xff] %vm4393, %v2432
        %5458 = vst.msk [vmem:[%s153 + $0x2140] sm:$0xff] %vm4393, %v2433
        %5459 = vst.msk [vmem:[%s153 + $0x2148] sm:$0xff] %vm4393, %v2434
        %5460 = vst.msk [vmem:[%s153 + $0x2150] sm:$0xff] %vm4393, %v2435
        %5461 = vst.msk [vmem:[%s153 + $0x2158] sm:$0xff] %vm4393, %v2436
        %5462 = vst.msk [vmem:[%s153 + $0x2160] sm:$0xff] %vm4393, %v2437
        %5463 = vst.msk [vmem:[%s153 + $0x2168] sm:$0xff] %vm4393, %v2438
        %5464 = vst.msk [vmem:[%s153 + $0x2170] sm:$0xff] %vm4393, %v2439
        %5465 = vst.msk [vmem:[%s153 + $0x2178] sm:$0xff] %vm4393, %v2440
        %5466 = vst.msk [vmem:[%s153 + $0x2180] sm:$0xff] %vm4393, %v2457
        %5467 = vst.msk [vmem:[%s153 + $0x2188] sm:$0xff] %vm4393, %v2458
        %5468 = vst.msk [vmem:[%s153 + $0x2190] sm:$0xff] %vm4393, %v2459
        %5469 = vst.msk [vmem:[%s153 + $0x2198] sm:$0xff] %vm4393, %v2460
        %5470 = vst.msk [vmem:[%s153 + $0x21a0] sm:$0xff] %vm4393, %v2461
        %5471 = vst.msk [vmem:[%s153 + $0x21a8] sm:$0xff] %vm4393, %v2462
        %5472 = vst.msk [vmem:[%s153 + $0x21b0] sm:$0xff] %vm4393, %v2463
        %5473 = vst.msk [vmem:[%s153 + $0x21b8] sm:$0xff] %vm4393, %v2464
        %5474 = vst.msk [vmem:[%s153 + $0x21c0] sm:$0xff] %vm4393, %v2465
        %5475 = vst.msk [vmem:[%s153 + $0x21c8] sm:$0xff] %vm4393, %v2466
        %5476 = vst.msk [vmem:[%s153 + $0x21d0] sm:$0xff] %vm4393, %v2467
        %5477 = vst.msk [vmem:[%s153 + $0x21d8] sm:$0xff] %vm4393, %v2468
        %5478 = vst.msk [vmem:[%s153 + $0x21e0] sm:$0xff] %vm4393, %v2469
        %5479 = vst.msk [vmem:[%s153 + $0x21e8] sm:$0xff] %vm4393, %v2470
        %5480 = vst.msk [vmem:[%s153 + $0x21f0] sm:$0xff] %vm4393, %v2471
        %5481 = vst.msk [vmem:[%s153 + $0x21f8] sm:$0xff] %vm4393, %v2472
        %5482 = vst.msk [vmem:[%s153 + $0x2200] sm:$0xff] %vm4393, %v2489
        %5483 = vst.msk [vmem:[%s153 + $0x2208] sm:$0xff] %vm4393, %v2490
        %5484 = vst.msk [vmem:[%s153 + $0x2210] sm:$0xff] %vm4393, %v2491
        %5485 = vst.msk [vmem:[%s153 + $0x2218] sm:$0xff] %vm4393, %v2492
        %5486 = vst.msk [vmem:[%s153 + $0x2220] sm:$0xff] %vm4393, %v2493
        %5487 = vst.msk [vmem:[%s153 + $0x2228] sm:$0xff] %vm4393, %v2494
        %5488 = vst.msk [vmem:[%s153 + $0x2230] sm:$0xff] %vm4393, %v2495
        %5489 = vst.msk [vmem:[%s153 + $0x2238] sm:$0xff] %vm4393, %v2496
        %5490 = vst.msk [vmem:[%s153 + $0x2240] sm:$0xff] %vm4393, %v2497
        %5491 = vst.msk [vmem:[%s153 + $0x2248] sm:$0xff] %vm4393, %v2498
        %5492 = vst.msk [vmem:[%s153 + $0x2250] sm:$0xff] %vm4393, %v2499
        %5493 = vst.msk [vmem:[%s153 + $0x2258] sm:$0xff] %vm4393, %v2500
        %5494 = vst.msk [vmem:[%s153 + $0x2260] sm:$0xff] %vm4393, %v2501
        %5495 = vst.msk [vmem:[%s153 + $0x2268] sm:$0xff] %vm4393, %v2502
        %5496 = vst.msk [vmem:[%s153 + $0x2270] sm:$0xff] %vm4393, %v2503
        %5497 = vst.msk [vmem:[%s153 + $0x2278] sm:$0xff] %vm4393, %v2504
        %5498 = vst.msk [vmem:[%s153 + $0x2280] sm:$0xff] %vm4393, %v2521
        %5499 = vst.msk [vmem:[%s153 + $0x2288] sm:$0xff] %vm4393, %v2522
        %5500 = vst.msk [vmem:[%s153 + $0x2290] sm:$0xff] %vm4393, %v2523
        %5501 = vst.msk [vmem:[%s153 + $0x2298] sm:$0xff] %vm4393, %v2524
        %5502 = vst.msk [vmem:[%s153 + $0x22a0] sm:$0xff] %vm4393, %v2525
        %5503 = vst.msk [vmem:[%s153 + $0x22a8] sm:$0xff] %vm4393, %v2526
        %5504 = vst.msk [vmem:[%s153 + $0x22b0] sm:$0xff] %vm4393, %v2527
        %5505 = vst.msk [vmem:[%s153 + $0x22b8] sm:$0xff] %vm4393, %v2528
        %5506 = vst.msk [vmem:[%s153 + $0x22c0] sm:$0xff] %vm4393, %v2529
        %5507 = vst.msk [vmem:[%s153 + $0x22c8] sm:$0xff] %vm4393, %v2530
        %5508 = vst.msk [vmem:[%s153 + $0x22d0] sm:$0xff] %vm4393, %v2531
        %5509 = vst.msk [vmem:[%s153 + $0x22d8] sm:$0xff] %vm4393, %v2532
        %5510 = vst.msk [vmem:[%s153 + $0x22e0] sm:$0xff] %vm4393, %v2533
        %5511 = vst.msk [vmem:[%s153 + $0x22e8] sm:$0xff] %vm4393, %v2534
        %5512 = vst.msk [vmem:[%s153 + $0x22f0] sm:$0xff] %vm4393, %v2535
        %5513 = vst.msk [vmem:[%s153 + $0x22f8] sm:$0xff] %vm4393, %v2536
        %5514 = vst.msk [vmem:[%s153 + $0x2300] sm:$0xff] %vm4393, %v2553
        %5515 = vst.msk [vmem:[%s153 + $0x2308] sm:$0xff] %vm4393, %v2554
        %5516 = vst.msk [vmem:[%s153 + $0x2310] sm:$0xff] %vm4393, %v2555
        %5517 = vst.msk [vmem:[%s153 + $0x2318] sm:$0xff] %vm4393, %v2556
        %5518 = vst.msk [vmem:[%s153 + $0x2320] sm:$0xff] %vm4393, %v2557
        %5519 = vst.msk [vmem:[%s153 + $0x2328] sm:$0xff] %vm4393, %v2558
        %5520 = vst.msk [vmem:[%s153 + $0x2330] sm:$0xff] %vm4393, %v2559
        %5521 = vst.msk [vmem:[%s153 + $0x2338] sm:$0xff] %vm4393, %v2560
        %5522 = vst.msk [vmem:[%s153 + $0x2340] sm:$0xff] %vm4393, %v2561
        %5523 = vst.msk [vmem:[%s153 + $0x2348] sm:$0xff] %vm4393, %v2562
        %5524 = vst.msk [vmem:[%s153 + $0x2350] sm:$0xff] %vm4393, %v2563
        %5525 = vst.msk [vmem:[%s153 + $0x2358] sm:$0xff] %vm4393, %v2564
        %5526 = vst.msk [vmem:[%s153 + $0x2360] sm:$0xff] %vm4393, %v2565
        %5527 = vst.msk [vmem:[%s153 + $0x2368] sm:$0xff] %vm4393, %v2566
        %5528 = vst.msk [vmem:[%s153 + $0x2370] sm:$0xff] %vm4393, %v2567
        %5529 = vst.msk [vmem:[%s153 + $0x2378] sm:$0xff] %vm4393, %v2568
        %5530 = vst.msk [vmem:[%s153 + $0x2380] sm:$0xff] %vm4393, %v2585
        %5531 = vst.msk [vmem:[%s153 + $0x2388] sm:$0xff] %vm4393, %v2586
        %5532 = vst.msk [vmem:[%s153 + $0x2390] sm:$0xff] %vm4393, %v2587
        %5533 = vst.msk [vmem:[%s153 + $0x2398] sm:$0xff] %vm4393, %v2588
        %5534 = vst.msk [vmem:[%s153 + $0x23a0] sm:$0xff] %vm4393, %v2589
        %5535 = vst.msk [vmem:[%s153 + $0x23a8] sm:$0xff] %vm4393, %v2590
        %5536 = vst.msk [vmem:[%s153 + $0x23b0] sm:$0xff] %vm4393, %v2591
        %5537 = vst.msk [vmem:[%s153 + $0x23b8] sm:$0xff] %vm4393, %v2592
        %5538 = vst.msk [vmem:[%s153 + $0x23c0] sm:$0xff] %vm4393, %v2593
        %5539 = vst.msk [vmem:[%s153 + $0x23c8] sm:$0xff] %vm4393, %v2594
        %5540 = vst.msk [vmem:[%s153 + $0x23d0] sm:$0xff] %vm4393, %v2595
        %5541 = vst.msk [vmem:[%s153 + $0x23d8] sm:$0xff] %vm4393, %v2596
        %5542 = vst.msk [vmem:[%s153 + $0x23e0] sm:$0xff] %vm4393, %v2597
        %5543 = vst.msk [vmem:[%s153 + $0x23e8] sm:$0xff] %vm4393, %v2598
        %5544 = vst.msk [vmem:[%s153 + $0x23f0] sm:$0xff] %vm4393, %v2599
        %5545 = vst.msk [vmem:[%s153 + $0x23f8] sm:$0xff] %vm4393, %v2600
        %5546 = vst.msk [vmem:[%s153 + $0x2400] sm:$0xff] %vm4393, %v2617
        %5547 = vst.msk [vmem:[%s153 + $0x2408] sm:$0xff] %vm4393, %v2618
        %5548 = vst.msk [vmem:[%s153 + $0x2410] sm:$0xff] %vm4393, %v2619
        %5549 = vst.msk [vmem:[%s153 + $0x2418] sm:$0xff] %vm4393, %v2620
        %5550 = vst.msk [vmem:[%s153 + $0x2420] sm:$0xff] %vm4393, %v2621
        %5551 = vst.msk [vmem:[%s153 + $0x2428] sm:$0xff] %vm4393, %v2622
        %5552 = vst.msk [vmem:[%s153 + $0x2430] sm:$0xff] %vm4393, %v2623
        %5553 = vst.msk [vmem:[%s153 + $0x2438] sm:$0xff] %vm4393, %v2624
        %5554 = vst.msk [vmem:[%s153 + $0x2440] sm:$0xff] %vm4393, %v2625
        %5555 = vst.msk [vmem:[%s153 + $0x2448] sm:$0xff] %vm4393, %v2626
        %5556 = vst.msk [vmem:[%s153 + $0x2450] sm:$0xff] %vm4393, %v2627
        %5557 = vst.msk [vmem:[%s153 + $0x2458] sm:$0xff] %vm4393, %v2628
        %5558 = vst.msk [vmem:[%s153 + $0x2460] sm:$0xff] %vm4393, %v2629
        %5559 = vst.msk [vmem:[%s153 + $0x2468] sm:$0xff] %vm4393, %v2630
        %5560 = vst.msk [vmem:[%s153 + $0x2470] sm:$0xff] %vm4393, %v2631
        %5561 = vst.msk [vmem:[%s153 + $0x2478] sm:$0xff] %vm4393, %v2632
        %5562 = vst.msk [vmem:[%s153 + $0x2480] sm:$0xff] %vm4393, %v2649
        %5563 = vst.msk [vmem:[%s153 + $0x2488] sm:$0xff] %vm4393, %v2650
        %5564 = vst.msk [vmem:[%s153 + $0x2490] sm:$0xff] %vm4393, %v2651
        %5565 = vst.msk [vmem:[%s153 + $0x2498] sm:$0xff] %vm4393, %v2652
        %5566 = vst.msk [vmem:[%s153 + $0x24a0] sm:$0xff] %vm4393, %v2653
        %5567 = vst.msk [vmem:[%s153 + $0x24a8] sm:$0xff] %vm4393, %v2654
        %5568 = vst.msk [vmem:[%s153 + $0x24b0] sm:$0xff] %vm4393, %v2655
        %5569 = vst.msk [vmem:[%s153 + $0x24b8] sm:$0xff] %vm4393, %v2656
        %5570 = vst.msk [vmem:[%s153 + $0x24c0] sm:$0xff] %vm4393, %v2657
        %5571 = vst.msk [vmem:[%s153 + $0x24c8] sm:$0xff] %vm4393, %v2658
        %5572 = vst.msk [vmem:[%s153 + $0x24d0] sm:$0xff] %vm4393, %v2659
        %5573 = vst.msk [vmem:[%s153 + $0x24d8] sm:$0xff] %vm4393, %v2660
        %5574 = vst.msk [vmem:[%s153 + $0x24e0] sm:$0xff] %vm4393, %v2661
        %5575 = vst.msk [vmem:[%s153 + $0x24e8] sm:$0xff] %vm4393, %v2662
        %5576 = vst.msk [vmem:[%s153 + $0x24f0] sm:$0xff] %vm4393, %v2663
        %5577 = vst.msk [vmem:[%s153 + $0x24f8] sm:$0xff] %vm4393, %v2664
        %5578 = vst.msk [vmem:[%s153 + $0x2500] sm:$0xff] %vm4393, %v2681
        %5579 = vst.msk [vmem:[%s153 + $0x2508] sm:$0xff] %vm4393, %v2682
        %5580 = vst.msk [vmem:[%s153 + $0x2510] sm:$0xff] %vm4393, %v2683
        %5581 = vst.msk [vmem:[%s153 + $0x2518] sm:$0xff] %vm4393, %v2684
        %5582 = vst.msk [vmem:[%s153 + $0x2520] sm:$0xff] %vm4393, %v2685
        %5583 = vst.msk [vmem:[%s153 + $0x2528] sm:$0xff] %vm4393, %v2686
        %5584 = vst.msk [vmem:[%s153 + $0x2530] sm:$0xff] %vm4393, %v2687
        %5585 = vst.msk [vmem:[%s153 + $0x2538] sm:$0xff] %vm4393, %v2688
        %5586 = vst.msk [vmem:[%s153 + $0x2540] sm:$0xff] %vm4393, %v2689
        %5587 = vst.msk [vmem:[%s153 + $0x2548] sm:$0xff] %vm4393, %v2690
        %5588 = vst.msk [vmem:[%s153 + $0x2550] sm:$0xff] %vm4393, %v2691
        %5589 = vst.msk [vmem:[%s153 + $0x2558] sm:$0xff] %vm4393, %v2692
        %5590 = vst.msk [vmem:[%s153 + $0x2560] sm:$0xff] %vm4393, %v2693
        %5591 = vst.msk [vmem:[%s153 + $0x2568] sm:$0xff] %vm4393, %v2694
        %5592 = vst.msk [vmem:[%s153 + $0x2570] sm:$0xff] %vm4393, %v2695
        %5593 = vst.msk [vmem:[%s153 + $0x2578] sm:$0xff] %vm4393, %v2696
        %5594 = vst.msk [vmem:[%s153 + $0x2580] sm:$0xff] %vm4393, %v2713
        %5595 = vst.msk [vmem:[%s153 + $0x2588] sm:$0xff] %vm4393, %v2714
        %5596 = vst.msk [vmem:[%s153 + $0x2590] sm:$0xff] %vm4393, %v2715
        %5597 = vst.msk [vmem:[%s153 + $0x2598] sm:$0xff] %vm4393, %v2716
        %5598 = vst.msk [vmem:[%s153 + $0x25a0] sm:$0xff] %vm4393, %v2717
        %5599 = vst.msk [vmem:[%s153 + $0x25a8] sm:$0xff] %vm4393, %v2718
        %5600 = vst.msk [vmem:[%s153 + $0x25b0] sm:$0xff] %vm4393, %v2719
        %5601 = vst.msk [vmem:[%s153 + $0x25b8] sm:$0xff] %vm4393, %v2720
        %5602 = vst.msk [vmem:[%s153 + $0x25c0] sm:$0xff] %vm4393, %v2721
        %5603 = vst.msk [vmem:[%s153 + $0x25c8] sm:$0xff] %vm4393, %v2722
        %5604 = vst.msk [vmem:[%s153 + $0x25d0] sm:$0xff] %vm4393, %v2723
        %5605 = vst.msk [vmem:[%s153 + $0x25d8] sm:$0xff] %vm4393, %v2724
        %5606 = vst.msk [vmem:[%s153 + $0x25e0] sm:$0xff] %vm4393, %v2725
        %5607 = vst.msk [vmem:[%s153 + $0x25e8] sm:$0xff] %vm4393, %v2726
        %5608 = vst.msk [vmem:[%s153 + $0x25f0] sm:$0xff] %vm4393, %v2727
        %5609 = vst.msk [vmem:[%s153 + $0x25f8] sm:$0xff] %vm4393, %v2728
        %5610 = vst.msk [vmem:[%s153 + $0x2600] sm:$0xff] %vm4393, %v2745
        %5611 = vst.msk [vmem:[%s153 + $0x2608] sm:$0xff] %vm4393, %v2746
        %5612 = vst.msk [vmem:[%s153 + $0x2610] sm:$0xff] %vm4393, %v2747
        %5613 = vst.msk [vmem:[%s153 + $0x2618] sm:$0xff] %vm4393, %v2748
        %5614 = vst.msk [vmem:[%s153 + $0x2620] sm:$0xff] %vm4393, %v2749
        %5615 = vst.msk [vmem:[%s153 + $0x2628] sm:$0xff] %vm4393, %v2750
        %5616 = vst.msk [vmem:[%s153 + $0x2630] sm:$0xff] %vm4393, %v2751
        %5617 = vst.msk [vmem:[%s153 + $0x2638] sm:$0xff] %vm4393, %v2752
        %5618 = vst.msk [vmem:[%s153 + $0x2640] sm:$0xff] %vm4393, %v2753
        %5619 = vst.msk [vmem:[%s153 + $0x2648] sm:$0xff] %vm4393, %v2754
        %5620 = vst.msk [vmem:[%s153 + $0x2650] sm:$0xff] %vm4393, %v2755
        %5621 = vst.msk [vmem:[%s153 + $0x2658] sm:$0xff] %vm4393, %v2756
        %5622 = vst.msk [vmem:[%s153 + $0x2660] sm:$0xff] %vm4393, %v2757
        %5623 = vst.msk [vmem:[%s153 + $0x2668] sm:$0xff] %vm4393, %v2758
        %5624 = vst.msk [vmem:[%s153 + $0x2670] sm:$0xff] %vm4393, %v2759
        %5625 = vst.msk [vmem:[%s153 + $0x2678] sm:$0xff] %vm4393, %v2760
        %5626 = vst.msk [vmem:[%s153 + $0x2680] sm:$0xff] %vm4393, %v2777
        %5627 = vst.msk [vmem:[%s153 + $0x2688] sm:$0xff] %vm4393, %v2778
        %5628 = vst.msk [vmem:[%s153 + $0x2690] sm:$0xff] %vm4393, %v2779
        %5629 = vst.msk [vmem:[%s153 + $0x2698] sm:$0xff] %vm4393, %v2780
        %5630 = vst.msk [vmem:[%s153 + $0x26a0] sm:$0xff] %vm4393, %v2781
        %5631 = vst.msk [vmem:[%s153 + $0x26a8] sm:$0xff] %vm4393, %v2782
        %5632 = vst.msk [vmem:[%s153 + $0x26b0] sm:$0xff] %vm4393, %v2783
        %5633 = vst.msk [vmem:[%s153 + $0x26b8] sm:$0xff] %vm4393, %v2784
        %5634 = vst.msk [vmem:[%s153 + $0x26c0] sm:$0xff] %vm4393, %v2785
        %5635 = vst.msk [vmem:[%s153 + $0x26c8] sm:$0xff] %vm4393, %v2786
        %5636 = vst.msk [vmem:[%s153 + $0x26d0] sm:$0xff] %vm4393, %v2787
        %5637 = vst.msk [vmem:[%s153 + $0x26d8] sm:$0xff] %vm4393, %v2788
        %5638 = vst.msk [vmem:[%s153 + $0x26e0] sm:$0xff] %vm4393, %v2789
        %5639 = vst.msk [vmem:[%s153 + $0x26e8] sm:$0xff] %vm4393, %v2790
        %5640 = vst.msk [vmem:[%s153 + $0x26f0] sm:$0xff] %vm4393, %v2791
        %5641 = vst.msk [vmem:[%s153 + $0x26f8] sm:$0xff] %vm4393, %v2792
        %5642 = vst.msk [vmem:[%s153 + $0x2700] sm:$0xff] %vm4393, %v2809
        %5643 = vst.msk [vmem:[%s153 + $0x2708] sm:$0xff] %vm4393, %v2810
        %5644 = vst.msk [vmem:[%s153 + $0x2710] sm:$0xff] %vm4393, %v2811
        %5645 = vst.msk [vmem:[%s153 + $0x2718] sm:$0xff] %vm4393, %v2812
        %5646 = vst.msk [vmem:[%s153 + $0x2720] sm:$0xff] %vm4393, %v2813
        %5647 = vst.msk [vmem:[%s153 + $0x2728] sm:$0xff] %vm4393, %v2814
        %5648 = vst.msk [vmem:[%s153 + $0x2730] sm:$0xff] %vm4393, %v2815
        %5649 = vst.msk [vmem:[%s153 + $0x2738] sm:$0xff] %vm4393, %v2816
        %5650 = vst.msk [vmem:[%s153 + $0x2740] sm:$0xff] %vm4393, %v2817
        %5651 = vst.msk [vmem:[%s153 + $0x2748] sm:$0xff] %vm4393, %v2818
        %5652 = vst.msk [vmem:[%s153 + $0x2750] sm:$0xff] %vm4393, %v2819
        %5653 = vst.msk [vmem:[%s153 + $0x2758] sm:$0xff] %vm4393, %v2820
        %5654 = vst.msk [vmem:[%s153 + $0x2760] sm:$0xff] %vm4393, %v2821
        %5655 = vst.msk [vmem:[%s153 + $0x2768] sm:$0xff] %vm4393, %v2822
        %5656 = vst.msk [vmem:[%s153 + $0x2770] sm:$0xff] %vm4393, %v2823
        %5657 = vst.msk [vmem:[%s153 + $0x2778] sm:$0xff] %vm4393, %v2824
        %5658 = vst.msk [vmem:[%s153 + $0x2780] sm:$0xff] %vm4393, %v2841
        %5659 = vst.msk [vmem:[%s153 + $0x2788] sm:$0xff] %vm4393, %v2842
        %5660 = vst.msk [vmem:[%s153 + $0x2790] sm:$0xff] %vm4393, %v2843
        %5661 = vst.msk [vmem:[%s153 + $0x2798] sm:$0xff] %vm4393, %v2844
        %5662 = vst.msk [vmem:[%s153 + $0x27a0] sm:$0xff] %vm4393, %v2845
        %5663 = vst.msk [vmem:[%s153 + $0x27a8] sm:$0xff] %vm4393, %v2846
        %5664 = vst.msk [vmem:[%s153 + $0x27b0] sm:$0xff] %vm4393, %v2847
        %5665 = vst.msk [vmem:[%s153 + $0x27b8] sm:$0xff] %vm4393, %v2848
        %5666 = vst.msk [vmem:[%s153 + $0x27c0] sm:$0xff] %vm4393, %v2849
        %5667 = vst.msk [vmem:[%s153 + $0x27c8] sm:$0xff] %vm4393, %v2850
        %5668 = vst.msk [vmem:[%s153 + $0x27d0] sm:$0xff] %vm4393, %v2851
        %5669 = vst.msk [vmem:[%s153 + $0x27d8] sm:$0xff] %vm4393, %v2852
        %5670 = vst.msk [vmem:[%s153 + $0x27e0] sm:$0xff] %vm4393, %v2853
        %5671 = vst.msk [vmem:[%s153 + $0x27e8] sm:$0xff] %vm4393, %v2854
        %5672 = vst.msk [vmem:[%s153 + $0x27f0] sm:$0xff] %vm4393, %v2855
        %5673 = vst.msk [vmem:[%s153 + $0x27f8] sm:$0xff] %vm4393, %v2856
        %5674 = vst.msk [vmem:[%s153 + $0x2800] sm:$0xff] %vm4393, %v2873
        %5675 = vst.msk [vmem:[%s153 + $0x2808] sm:$0xff] %vm4393, %v2874
        %5676 = vst.msk [vmem:[%s153 + $0x2810] sm:$0xff] %vm4393, %v2875
        %5677 = vst.msk [vmem:[%s153 + $0x2818] sm:$0xff] %vm4393, %v2876
        %5678 = vst.msk [vmem:[%s153 + $0x2820] sm:$0xff] %vm4393, %v2877
        %5679 = vst.msk [vmem:[%s153 + $0x2828] sm:$0xff] %vm4393, %v2878
        %5680 = vst.msk [vmem:[%s153 + $0x2830] sm:$0xff] %vm4393, %v2879
        %5681 = vst.msk [vmem:[%s153 + $0x2838] sm:$0xff] %vm4393, %v2880
        %5682 = vst.msk [vmem:[%s153 + $0x2840] sm:$0xff] %vm4393, %v2881
        %5683 = vst.msk [vmem:[%s153 + $0x2848] sm:$0xff] %vm4393, %v2882
        %5684 = vst.msk [vmem:[%s153 + $0x2850] sm:$0xff] %vm4393, %v2883
        %5685 = vst.msk [vmem:[%s153 + $0x2858] sm:$0xff] %vm4393, %v2884
        %5686 = vst.msk [vmem:[%s153 + $0x2860] sm:$0xff] %vm4393, %v2885
        %5687 = vst.msk [vmem:[%s153 + $0x2868] sm:$0xff] %vm4393, %v2886
        %5688 = vst.msk [vmem:[%s153 + $0x2870] sm:$0xff] %vm4393, %v2887
        %5689 = vst.msk [vmem:[%s153 + $0x2878] sm:$0xff] %vm4393, %v2888
        %5690 = vst.msk [vmem:[%s153 + $0x2880] sm:$0xff] %vm4393, %v2905
        %5691 = vst.msk [vmem:[%s153 + $0x2888] sm:$0xff] %vm4393, %v2906
        %5692 = vst.msk [vmem:[%s153 + $0x2890] sm:$0xff] %vm4393, %v2907
        %5693 = vst.msk [vmem:[%s153 + $0x2898] sm:$0xff] %vm4393, %v2908
        %5694 = vst.msk [vmem:[%s153 + $0x28a0] sm:$0xff] %vm4393, %v2909
        %5695 = vst.msk [vmem:[%s153 + $0x28a8] sm:$0xff] %vm4393, %v2910
        %5696 = vst.msk [vmem:[%s153 + $0x28b0] sm:$0xff] %vm4393, %v2911
        %5697 = vst.msk [vmem:[%s153 + $0x28b8] sm:$0xff] %vm4393, %v2912
        %5698 = vst.msk [vmem:[%s153 + $0x28c0] sm:$0xff] %vm4393, %v2913
        %5699 = vst.msk [vmem:[%s153 + $0x28c8] sm:$0xff] %vm4393, %v2914
        %5700 = vst.msk [vmem:[%s153 + $0x28d0] sm:$0xff] %vm4393, %v2915
        %5701 = vst.msk [vmem:[%s153 + $0x28d8] sm:$0xff] %vm4393, %v2916
        %5702 = vst.msk [vmem:[%s153 + $0x28e0] sm:$0xff] %vm4393, %v2917
        %5703 = vst.msk [vmem:[%s153 + $0x28e8] sm:$0xff] %vm4393, %v2918
        %5704 = vst.msk [vmem:[%s153 + $0x28f0] sm:$0xff] %vm4393, %v2919
        %5705 = vst.msk [vmem:[%s153 + $0x28f8] sm:$0xff] %vm4393, %v2920
        %5706 = vst.msk [vmem:[%s153 + $0x2900] sm:$0xff] %vm4393, %v2937
        %5707 = vst.msk [vmem:[%s153 + $0x2908] sm:$0xff] %vm4393, %v2938
        %5708 = vst.msk [vmem:[%s153 + $0x2910] sm:$0xff] %vm4393, %v2939
        %5709 = vst.msk [vmem:[%s153 + $0x2918] sm:$0xff] %vm4393, %v2940
        %5710 = vst.msk [vmem:[%s153 + $0x2920] sm:$0xff] %vm4393, %v2941
        %5711 = vst.msk [vmem:[%s153 + $0x2928] sm:$0xff] %vm4393, %v2942
        %5712 = vst.msk [vmem:[%s153 + $0x2930] sm:$0xff] %vm4393, %v2943
        %5713 = vst.msk [vmem:[%s153 + $0x2938] sm:$0xff] %vm4393, %v2944
        %5714 = vst.msk [vmem:[%s153 + $0x2940] sm:$0xff] %vm4393, %v2945
        %5715 = vst.msk [vmem:[%s153 + $0x2948] sm:$0xff] %vm4393, %v2946
        %5716 = vst.msk [vmem:[%s153 + $0x2950] sm:$0xff] %vm4393, %v2947
        %5717 = vst.msk [vmem:[%s153 + $0x2958] sm:$0xff] %vm4393, %v2948
        %5718 = vst.msk [vmem:[%s153 + $0x2960] sm:$0xff] %vm4393, %v2949
        %5719 = vst.msk [vmem:[%s153 + $0x2968] sm:$0xff] %vm4393, %v2950
        %5720 = vst.msk [vmem:[%s153 + $0x2970] sm:$0xff] %vm4393, %v2951
        %5721 = vst.msk [vmem:[%s153 + $0x2978] sm:$0xff] %vm4393, %v2952
        %5722 = vst.msk [vmem:[%s153 + $0x2980] sm:$0xff] %vm4393, %v2969
        %5723 = vst.msk [vmem:[%s153 + $0x2988] sm:$0xff] %vm4393, %v2970
        %5724 = vst.msk [vmem:[%s153 + $0x2990] sm:$0xff] %vm4393, %v2971
        %5725 = vst.msk [vmem:[%s153 + $0x2998] sm:$0xff] %vm4393, %v2972
        %5726 = vst.msk [vmem:[%s153 + $0x29a0] sm:$0xff] %vm4393, %v2973
        %5727 = vst.msk [vmem:[%s153 + $0x29a8] sm:$0xff] %vm4393, %v2974
        %5728 = vst.msk [vmem:[%s153 + $0x29b0] sm:$0xff] %vm4393, %v2975
        %5729 = vst.msk [vmem:[%s153 + $0x29b8] sm:$0xff] %vm4393, %v2976
        %5730 = vst.msk [vmem:[%s153 + $0x29c0] sm:$0xff] %vm4393, %v2977
        %5731 = vst.msk [vmem:[%s153 + $0x29c8] sm:$0xff] %vm4393, %v2978
        %5732 = vst.msk [vmem:[%s153 + $0x29d0] sm:$0xff] %vm4393, %v2979
        %5733 = vst.msk [vmem:[%s153 + $0x29d8] sm:$0xff] %vm4393, %v2980
        %5734 = vst.msk [vmem:[%s153 + $0x29e0] sm:$0xff] %vm4393, %v2981
        %5735 = vst.msk [vmem:[%s153 + $0x29e8] sm:$0xff] %vm4393, %v2982
        %5736 = vst.msk [vmem:[%s153 + $0x29f0] sm:$0xff] %vm4393, %v2983
        %5737 = vst.msk [vmem:[%s153 + $0x29f8] sm:$0xff] %vm4393, %v2984
        %5738 = vst.msk [vmem:[%s153 + $0x2a00] sm:$0xff] %vm4393, %v3001
        %5739 = vst.msk [vmem:[%s153 + $0x2a08] sm:$0xff] %vm4393, %v3002
        %5740 = vst.msk [vmem:[%s153 + $0x2a10] sm:$0xff] %vm4393, %v3003
        %5741 = vst.msk [vmem:[%s153 + $0x2a18] sm:$0xff] %vm4393, %v3004
        %5742 = vst.msk [vmem:[%s153 + $0x2a20] sm:$0xff] %vm4393, %v3005
        %5743 = vst.msk [vmem:[%s153 + $0x2a28] sm:$0xff] %vm4393, %v3006
        %5744 = vst.msk [vmem:[%s153 + $0x2a30] sm:$0xff] %vm4393, %v3007
        %5745 = vst.msk [vmem:[%s153 + $0x2a38] sm:$0xff] %vm4393, %v3008
        %5746 = vst.msk [vmem:[%s153 + $0x2a40] sm:$0xff] %vm4393, %v3009
        %5747 = vst.msk [vmem:[%s153 + $0x2a48] sm:$0xff] %vm4393, %v3010
        %5748 = vst.msk [vmem:[%s153 + $0x2a50] sm:$0xff] %vm4393, %v3011
        %5749 = vst.msk [vmem:[%s153 + $0x2a58] sm:$0xff] %vm4393, %v3012
        %5750 = vst.msk [vmem:[%s153 + $0x2a60] sm:$0xff] %vm4393, %v3013
        %5751 = vst.msk [vmem:[%s153 + $0x2a68] sm:$0xff] %vm4393, %v3014
        %5752 = vst.msk [vmem:[%s153 + $0x2a70] sm:$0xff] %vm4393, %v3015
        %5753 = vst.msk [vmem:[%s153 + $0x2a78] sm:$0xff] %vm4393, %v3016
        %5754 = vst.msk [vmem:[%s153 + $0x2a80] sm:$0xff] %vm4393, %v3033
        %5755 = vst.msk [vmem:[%s153 + $0x2a88] sm:$0xff] %vm4393, %v3034
        %5756 = vst.msk [vmem:[%s153 + $0x2a90] sm:$0xff] %vm4393, %v3035
        %5757 = vst.msk [vmem:[%s153 + $0x2a98] sm:$0xff] %vm4393, %v3036
        %5758 = vst.msk [vmem:[%s153 + $0x2aa0] sm:$0xff] %vm4393, %v3037
        %5759 = vst.msk [vmem:[%s153 + $0x2aa8] sm:$0xff] %vm4393, %v3038
        %5760 = vst.msk [vmem:[%s153 + $0x2ab0] sm:$0xff] %vm4393, %v3039
        %5761 = vst.msk [vmem:[%s153 + $0x2ab8] sm:$0xff] %vm4393, %v3040
        %5762 = vst.msk [vmem:[%s153 + $0x2ac0] sm:$0xff] %vm4393, %v3041
        %5763 = vst.msk [vmem:[%s153 + $0x2ac8] sm:$0xff] %vm4393, %v3042
        %5764 = vst.msk [vmem:[%s153 + $0x2ad0] sm:$0xff] %vm4393, %v3043
        %5765 = vst.msk [vmem:[%s153 + $0x2ad8] sm:$0xff] %vm4393, %v3044
        %5766 = vst.msk [vmem:[%s153 + $0x2ae0] sm:$0xff] %vm4393, %v3045
        %5767 = vst.msk [vmem:[%s153 + $0x2ae8] sm:$0xff] %vm4393, %v3046
        %5768 = vst.msk [vmem:[%s153 + $0x2af0] sm:$0xff] %vm4393, %v3047
        %5769 = vst.msk [vmem:[%s153 + $0x2af8] sm:$0xff] %vm4393, %v3048
        %5770 = vst.msk [vmem:[%s153 + $0x2b00] sm:$0xff] %vm4393, %v3065
        %5771 = vst.msk [vmem:[%s153 + $0x2b08] sm:$0xff] %vm4393, %v3066
        %5772 = vst.msk [vmem:[%s153 + $0x2b10] sm:$0xff] %vm4393, %v3067
        %5773 = vst.msk [vmem:[%s153 + $0x2b18] sm:$0xff] %vm4393, %v3068
        %5774 = vst.msk [vmem:[%s153 + $0x2b20] sm:$0xff] %vm4393, %v3069
        %5775 = vst.msk [vmem:[%s153 + $0x2b28] sm:$0xff] %vm4393, %v3070
        %5776 = vst.msk [vmem:[%s153 + $0x2b30] sm:$0xff] %vm4393, %v3071
        %5777 = vst.msk [vmem:[%s153 + $0x2b38] sm:$0xff] %vm4393, %v3072
        %5778 = vst.msk [vmem:[%s153 + $0x2b40] sm:$0xff] %vm4393, %v3073
        %5779 = vst.msk [vmem:[%s153 + $0x2b48] sm:$0xff] %vm4393, %v3074
        %5780 = vst.msk [vmem:[%s153 + $0x2b50] sm:$0xff] %vm4393, %v3075
        %5781 = vst.msk [vmem:[%s153 + $0x2b58] sm:$0xff] %vm4393, %v3076
        %5782 = vst.msk [vmem:[%s153 + $0x2b60] sm:$0xff] %vm4393, %v3077
        %5783 = vst.msk [vmem:[%s153 + $0x2b68] sm:$0xff] %vm4393, %v3078
        %5784 = vst.msk [vmem:[%s153 + $0x2b70] sm:$0xff] %vm4393, %v3079
        %5785 = vst.msk [vmem:[%s153 + $0x2b78] sm:$0xff] %vm4393, %v3080
        %5786 = vst.msk [vmem:[%s153 + $0x2b80] sm:$0xff] %vm4393, %v3097
        %5787 = vst.msk [vmem:[%s153 + $0x2b88] sm:$0xff] %vm4393, %v3098
        %5788 = vst.msk [vmem:[%s153 + $0x2b90] sm:$0xff] %vm4393, %v3099
        %5789 = vst.msk [vmem:[%s153 + $0x2b98] sm:$0xff] %vm4393, %v3100
        %5790 = vst.msk [vmem:[%s153 + $0x2ba0] sm:$0xff] %vm4393, %v3101
        %5791 = vst.msk [vmem:[%s153 + $0x2ba8] sm:$0xff] %vm4393, %v3102
        %5792 = vst.msk [vmem:[%s153 + $0x2bb0] sm:$0xff] %vm4393, %v3103
        %5793 = vst.msk [vmem:[%s153 + $0x2bb8] sm:$0xff] %vm4393, %v3104
        %5794 = vst.msk [vmem:[%s153 + $0x2bc0] sm:$0xff] %vm4393, %v3105
        %5795 = vst.msk [vmem:[%s153 + $0x2bc8] sm:$0xff] %vm4393, %v3106
        %5796 = vst.msk [vmem:[%s153 + $0x2bd0] sm:$0xff] %vm4393, %v3107
        %5797 = vst.msk [vmem:[%s153 + $0x2bd8] sm:$0xff] %vm4393, %v3108
        %5798 = vst.msk [vmem:[%s153 + $0x2be0] sm:$0xff] %vm4393, %v3109
        %5799 = vst.msk [vmem:[%s153 + $0x2be8] sm:$0xff] %vm4393, %v3110
        %5800 = vst.msk [vmem:[%s153 + $0x2bf0] sm:$0xff] %vm4393, %v3111
        %5801 = vst.msk [vmem:[%s153 + $0x2bf8] sm:$0xff] %vm4393, %v3112
        %5802 = vst.msk [vmem:[%s153 + $0x2c00] sm:$0xff] %vm4393, %v3129
        %5803 = vst.msk [vmem:[%s153 + $0x2c08] sm:$0xff] %vm4393, %v3130
        %5804 = vst.msk [vmem:[%s153 + $0x2c10] sm:$0xff] %vm4393, %v3131
        %5805 = vst.msk [vmem:[%s153 + $0x2c18] sm:$0xff] %vm4393, %v3132
        %5806 = vst.msk [vmem:[%s153 + $0x2c20] sm:$0xff] %vm4393, %v3133
        %5807 = vst.msk [vmem:[%s153 + $0x2c28] sm:$0xff] %vm4393, %v3134
        %5808 = vst.msk [vmem:[%s153 + $0x2c30] sm:$0xff] %vm4393, %v3135
        %5809 = vst.msk [vmem:[%s153 + $0x2c38] sm:$0xff] %vm4393, %v3136
        %5810 = vst.msk [vmem:[%s153 + $0x2c40] sm:$0xff] %vm4393, %v3137
        %5811 = vst.msk [vmem:[%s153 + $0x2c48] sm:$0xff] %vm4393, %v3138
        %5812 = vst.msk [vmem:[%s153 + $0x2c50] sm:$0xff] %vm4393, %v3139
        %5813 = vst.msk [vmem:[%s153 + $0x2c58] sm:$0xff] %vm4393, %v3140
        %5814 = vst.msk [vmem:[%s153 + $0x2c60] sm:$0xff] %vm4393, %v3141
        %5815 = vst.msk [vmem:[%s153 + $0x2c68] sm:$0xff] %vm4393, %v3142
        %5816 = vst.msk [vmem:[%s153 + $0x2c70] sm:$0xff] %vm4393, %v3143
        %5817 = vst.msk [vmem:[%s153 + $0x2c78] sm:$0xff] %vm4393, %v3144
        %5818 = vst.msk [vmem:[%s153 + $0x2c80] sm:$0xff] %vm4393, %v3161
        %5819 = vst.msk [vmem:[%s153 + $0x2c88] sm:$0xff] %vm4393, %v3162
        %5820 = vst.msk [vmem:[%s153 + $0x2c90] sm:$0xff] %vm4393, %v3163
        %5821 = vst.msk [vmem:[%s153 + $0x2c98] sm:$0xff] %vm4393, %v3164
        %5822 = vst.msk [vmem:[%s153 + $0x2ca0] sm:$0xff] %vm4393, %v3165
        %5823 = vst.msk [vmem:[%s153 + $0x2ca8] sm:$0xff] %vm4393, %v3166
        %5824 = vst.msk [vmem:[%s153 + $0x2cb0] sm:$0xff] %vm4393, %v3167
        %5825 = vst.msk [vmem:[%s153 + $0x2cb8] sm:$0xff] %vm4393, %v3168
        %5826 = vst.msk [vmem:[%s153 + $0x2cc0] sm:$0xff] %vm4393, %v3169
        %5827 = vst.msk [vmem:[%s153 + $0x2cc8] sm:$0xff] %vm4393, %v3170
        %5828 = vst.msk [vmem:[%s153 + $0x2cd0] sm:$0xff] %vm4393, %v3171
        %5829 = vst.msk [vmem:[%s153 + $0x2cd8] sm:$0xff] %vm4393, %v3172
        %5830 = vst.msk [vmem:[%s153 + $0x2ce0] sm:$0xff] %vm4393, %v3173
        %5831 = vst.msk [vmem:[%s153 + $0x2ce8] sm:$0xff] %vm4393, %v3174
        %5832 = vst.msk [vmem:[%s153 + $0x2cf0] sm:$0xff] %vm4393, %v3175
        %5833 = vst.msk [vmem:[%s153 + $0x2cf8] sm:$0xff] %vm4393, %v3176
        %5834 = vst.msk [vmem:[%s153 + $0x2d00] sm:$0xff] %vm4393, %v3193
        %5835 = vst.msk [vmem:[%s153 + $0x2d08] sm:$0xff] %vm4393, %v3194
        %5836 = vst.msk [vmem:[%s153 + $0x2d10] sm:$0xff] %vm4393, %v3195
        %5837 = vst.msk [vmem:[%s153 + $0x2d18] sm:$0xff] %vm4393, %v3196
        %5838 = vst.msk [vmem:[%s153 + $0x2d20] sm:$0xff] %vm4393, %v3197
        %5839 = vst.msk [vmem:[%s153 + $0x2d28] sm:$0xff] %vm4393, %v3198
        %5840 = vst.msk [vmem:[%s153 + $0x2d30] sm:$0xff] %vm4393, %v3199
        %5841 = vst.msk [vmem:[%s153 + $0x2d38] sm:$0xff] %vm4393, %v3200
        %5842 = vst.msk [vmem:[%s153 + $0x2d40] sm:$0xff] %vm4393, %v3201
        %5843 = vst.msk [vmem:[%s153 + $0x2d48] sm:$0xff] %vm4393, %v3202
        %5844 = vst.msk [vmem:[%s153 + $0x2d50] sm:$0xff] %vm4393, %v3203
        %5845 = vst.msk [vmem:[%s153 + $0x2d58] sm:$0xff] %vm4393, %v3204
        %5846 = vst.msk [vmem:[%s153 + $0x2d60] sm:$0xff] %vm4393, %v3205
        %5847 = vst.msk [vmem:[%s153 + $0x2d68] sm:$0xff] %vm4393, %v3206
        %5848 = vst.msk [vmem:[%s153 + $0x2d70] sm:$0xff] %vm4393, %v3207
        %5849 = vst.msk [vmem:[%s153 + $0x2d78] sm:$0xff] %vm4393, %v3208
        %5850 = vst.msk [vmem:[%s153 + $0x2d80] sm:$0xff] %vm4393, %v3225
        %5851 = vst.msk [vmem:[%s153 + $0x2d88] sm:$0xff] %vm4393, %v3226
        %5852 = vst.msk [vmem:[%s153 + $0x2d90] sm:$0xff] %vm4393, %v3227
        %5853 = vst.msk [vmem:[%s153 + $0x2d98] sm:$0xff] %vm4393, %v3228
        %5854 = vst.msk [vmem:[%s153 + $0x2da0] sm:$0xff] %vm4393, %v3229
        %5855 = vst.msk [vmem:[%s153 + $0x2da8] sm:$0xff] %vm4393, %v3230
        %5856 = vst.msk [vmem:[%s153 + $0x2db0] sm:$0xff] %vm4393, %v3231
        %5857 = vst.msk [vmem:[%s153 + $0x2db8] sm:$0xff] %vm4393, %v3232
        %5858 = vst.msk [vmem:[%s153 + $0x2dc0] sm:$0xff] %vm4393, %v3233
        %5859 = vst.msk [vmem:[%s153 + $0x2dc8] sm:$0xff] %vm4393, %v3234
        %5860 = vst.msk [vmem:[%s153 + $0x2dd0] sm:$0xff] %vm4393, %v3235
        %5861 = vst.msk [vmem:[%s153 + $0x2dd8] sm:$0xff] %vm4393, %v3236
        %5862 = vst.msk [vmem:[%s153 + $0x2de0] sm:$0xff] %vm4393, %v3237
        %5863 = vst.msk [vmem:[%s153 + $0x2de8] sm:$0xff] %vm4393, %v3238
        %5864 = vst.msk [vmem:[%s153 + $0x2df0] sm:$0xff] %vm4393, %v3239
        %5865 = vst.msk [vmem:[%s153 + $0x2df8] sm:$0xff] %vm4393, %v3240
        %5866 = vst.msk [vmem:[%s153 + $0x2e00] sm:$0xff] %vm4393, %v3257
        %5867 = vst.msk [vmem:[%s153 + $0x2e08] sm:$0xff] %vm4393, %v3258
        %5868 = vst.msk [vmem:[%s153 + $0x2e10] sm:$0xff] %vm4393, %v3259
        %5869 = vst.msk [vmem:[%s153 + $0x2e18] sm:$0xff] %vm4393, %v3260
        %5870 = vst.msk [vmem:[%s153 + $0x2e20] sm:$0xff] %vm4393, %v3261
        %5871 = vst.msk [vmem:[%s153 + $0x2e28] sm:$0xff] %vm4393, %v3262
        %5872 = vst.msk [vmem:[%s153 + $0x2e30] sm:$0xff] %vm4393, %v3263
        %5873 = vst.msk [vmem:[%s153 + $0x2e38] sm:$0xff] %vm4393, %v3264
        %5874 = vst.msk [vmem:[%s153 + $0x2e40] sm:$0xff] %vm4393, %v3265
        %5875 = vst.msk [vmem:[%s153 + $0x2e48] sm:$0xff] %vm4393, %v3266
        %5876 = vst.msk [vmem:[%s153 + $0x2e50] sm:$0xff] %vm4393, %v3267
        %5877 = vst.msk [vmem:[%s153 + $0x2e58] sm:$0xff] %vm4393, %v3268
        %5878 = vst.msk [vmem:[%s153 + $0x2e60] sm:$0xff] %vm4393, %v3269
        %5879 = vst.msk [vmem:[%s153 + $0x2e68] sm:$0xff] %vm4393, %v3270
        %5880 = vst.msk [vmem:[%s153 + $0x2e70] sm:$0xff] %vm4393, %v3271
        %5881 = vst.msk [vmem:[%s153 + $0x2e78] sm:$0xff] %vm4393, %v3272
        %5882 = vst.msk [vmem:[%s153 + $0x2e80] sm:$0xff] %vm4393, %v3289
        %5883 = vst.msk [vmem:[%s153 + $0x2e88] sm:$0xff] %vm4393, %v3290
        %5884 = vst.msk [vmem:[%s153 + $0x2e90] sm:$0xff] %vm4393, %v3291
        %5885 = vst.msk [vmem:[%s153 + $0x2e98] sm:$0xff] %vm4393, %v3292
        %5886 = vst.msk [vmem:[%s153 + $0x2ea0] sm:$0xff] %vm4393, %v3293
        %5887 = vst.msk [vmem:[%s153 + $0x2ea8] sm:$0xff] %vm4393, %v3294
        %5888 = vst.msk [vmem:[%s153 + $0x2eb0] sm:$0xff] %vm4393, %v3295
        %5889 = vst.msk [vmem:[%s153 + $0x2eb8] sm:$0xff] %vm4393, %v3296
        %5890 = vst.msk [vmem:[%s153 + $0x2ec0] sm:$0xff] %vm4393, %v3297
        %5891 = vst.msk [vmem:[%s153 + $0x2ec8] sm:$0xff] %vm4393, %v3298
        %5892 = vst.msk [vmem:[%s153 + $0x2ed0] sm:$0xff] %vm4393, %v3299
        %5893 = vst.msk [vmem:[%s153 + $0x2ed8] sm:$0xff] %vm4393, %v3300
        %5894 = vst.msk [vmem:[%s153 + $0x2ee0] sm:$0xff] %vm4393, %v3301
        %5895 = vst.msk [vmem:[%s153 + $0x2ee8] sm:$0xff] %vm4393, %v3302
        %5896 = vst.msk [vmem:[%s153 + $0x2ef0] sm:$0xff] %vm4393, %v3303
        %5897 = vst.msk [vmem:[%s153 + $0x2ef8] sm:$0xff] %vm4393, %v3304
        %5898 = vst.msk [vmem:[%s153 + $0x2f00] sm:$0xff] %vm4393, %v3321
        %5899 = vst.msk [vmem:[%s153 + $0x2f08] sm:$0xff] %vm4393, %v3322
        %5900 = vst.msk [vmem:[%s153 + $0x2f10] sm:$0xff] %vm4393, %v3323
        %5901 = vst.msk [vmem:[%s153 + $0x2f18] sm:$0xff] %vm4393, %v3324
        %5902 = vst.msk [vmem:[%s153 + $0x2f20] sm:$0xff] %vm4393, %v3325
        %5903 = vst.msk [vmem:[%s153 + $0x2f28] sm:$0xff] %vm4393, %v3326
        %5904 = vst.msk [vmem:[%s153 + $0x2f30] sm:$0xff] %vm4393, %v3327
        %5905 = vst.msk [vmem:[%s153 + $0x2f38] sm:$0xff] %vm4393, %v3328
        %5906 = vst.msk [vmem:[%s153 + $0x2f40] sm:$0xff] %vm4393, %v3329
        %5907 = vst.msk [vmem:[%s153 + $0x2f48] sm:$0xff] %vm4393, %v3330
        %5908 = vst.msk [vmem:[%s153 + $0x2f50] sm:$0xff] %vm4393, %v3331
        %5909 = vst.msk [vmem:[%s153 + $0x2f58] sm:$0xff] %vm4393, %v3332
        %5910 = vst.msk [vmem:[%s153 + $0x2f60] sm:$0xff] %vm4393, %v3333
        %5911 = vst.msk [vmem:[%s153 + $0x2f68] sm:$0xff] %vm4393, %v3334
        %5912 = vst.msk [vmem:[%s153 + $0x2f70] sm:$0xff] %vm4393, %v3335
        %5913 = vst.msk [vmem:[%s153 + $0x2f78] sm:$0xff] %vm4393, %v3336
        %5914 = vst.msk [vmem:[%s153 + $0x2f80] sm:$0xff] %vm4393, %v3353
        %5915 = vst.msk [vmem:[%s153 + $0x2f88] sm:$0xff] %vm4393, %v3354
        %5916 = vst.msk [vmem:[%s153 + $0x2f90] sm:$0xff] %vm4393, %v3355
        %5917 = vst.msk [vmem:[%s153 + $0x2f98] sm:$0xff] %vm4393, %v3356
        %5918 = vst.msk [vmem:[%s153 + $0x2fa0] sm:$0xff] %vm4393, %v3357
        %5919 = vst.msk [vmem:[%s153 + $0x2fa8] sm:$0xff] %vm4393, %v3358
        %5920 = vst.msk [vmem:[%s153 + $0x2fb0] sm:$0xff] %vm4393, %v3359
        %5921 = vst.msk [vmem:[%s153 + $0x2fb8] sm:$0xff] %vm4393, %v3360
        %5922 = vst.msk [vmem:[%s153 + $0x2fc0] sm:$0xff] %vm4393, %v3361
        %5923 = vst.msk [vmem:[%s153 + $0x2fc8] sm:$0xff] %vm4393, %v3362
        %5924 = vst.msk [vmem:[%s153 + $0x2fd0] sm:$0xff] %vm4393, %v3363
        %5925 = vst.msk [vmem:[%s153 + $0x2fd8] sm:$0xff] %vm4393, %v3364
        %5926 = vst.msk [vmem:[%s153 + $0x2fe0] sm:$0xff] %vm4393, %v3365
        %5927 = vst.msk [vmem:[%s153 + $0x2fe8] sm:$0xff] %vm4393, %v3366
        %5928 = vst.msk [vmem:[%s153 + $0x2ff0] sm:$0xff] %vm4393, %v3367
        %5929 = vst.msk [vmem:[%s153 + $0x2ff8] sm:$0xff] %vm4393, %v3368
        %5930 = vst.msk [vmem:[%s153 + $0x3000] sm:$0xff] %vm4393, %v3385
        %5931 = vst.msk [vmem:[%s153 + $0x3008] sm:$0xff] %vm4393, %v3386
        %5932 = vst.msk [vmem:[%s153 + $0x3010] sm:$0xff] %vm4393, %v3387
        %5933 = vst.msk [vmem:[%s153 + $0x3018] sm:$0xff] %vm4393, %v3388
        %5934 = vst.msk [vmem:[%s153 + $0x3020] sm:$0xff] %vm4393, %v3389
        %5935 = vst.msk [vmem:[%s153 + $0x3028] sm:$0xff] %vm4393, %v3390
        %5936 = vst.msk [vmem:[%s153 + $0x3030] sm:$0xff] %vm4393, %v3391
        %5937 = vst.msk [vmem:[%s153 + $0x3038] sm:$0xff] %vm4393, %v3392
        %5938 = vst.msk [vmem:[%s153 + $0x3040] sm:$0xff] %vm4393, %v3393
        %5939 = vst.msk [vmem:[%s153 + $0x3048] sm:$0xff] %vm4393, %v3394
        %5940 = vst.msk [vmem:[%s153 + $0x3050] sm:$0xff] %vm4393, %v3395
        %5941 = vst.msk [vmem:[%s153 + $0x3058] sm:$0xff] %vm4393, %v3396
        %5942 = vst.msk [vmem:[%s153 + $0x3060] sm:$0xff] %vm4393, %v3397
        %5943 = vst.msk [vmem:[%s153 + $0x3068] sm:$0xff] %vm4393, %v3398
        %5944 = vst.msk [vmem:[%s153 + $0x3070] sm:$0xff] %vm4393, %v3399
        %5945 = vst.msk [vmem:[%s153 + $0x3078] sm:$0xff] %vm4393, %v3400
        %5946 = vst.msk [vmem:[%s153 + $0x3080] sm:$0xff] %vm4393, %v3417
        %5947 = vst.msk [vmem:[%s153 + $0x3088] sm:$0xff] %vm4393, %v3418
        %5948 = vst.msk [vmem:[%s153 + $0x3090] sm:$0xff] %vm4393, %v3419
        %5949 = vst.msk [vmem:[%s153 + $0x3098] sm:$0xff] %vm4393, %v3420
        %5950 = vst.msk [vmem:[%s153 + $0x30a0] sm:$0xff] %vm4393, %v3421
        %5951 = vst.msk [vmem:[%s153 + $0x30a8] sm:$0xff] %vm4393, %v3422
        %5952 = vst.msk [vmem:[%s153 + $0x30b0] sm:$0xff] %vm4393, %v3423
        %5953 = vst.msk [vmem:[%s153 + $0x30b8] sm:$0xff] %vm4393, %v3424
        %5954 = vst.msk [vmem:[%s153 + $0x30c0] sm:$0xff] %vm4393, %v3425
        %5955 = vst.msk [vmem:[%s153 + $0x30c8] sm:$0xff] %vm4393, %v3426
        %5956 = vst.msk [vmem:[%s153 + $0x30d0] sm:$0xff] %vm4393, %v3427
        %5957 = vst.msk [vmem:[%s153 + $0x30d8] sm:$0xff] %vm4393, %v3428
        %5958 = vst.msk [vmem:[%s153 + $0x30e0] sm:$0xff] %vm4393, %v3429
        %5959 = vst.msk [vmem:[%s153 + $0x30e8] sm:$0xff] %vm4393, %v3430
        %5960 = vst.msk [vmem:[%s153 + $0x30f0] sm:$0xff] %vm4393, %v3431
        %5961 = vst.msk [vmem:[%s153 + $0x30f8] sm:$0xff] %vm4393, %v3432
        %5962 = vst.msk [vmem:[%s153 + $0x3100] sm:$0xff] %vm4393, %v3449
        %5963 = vst.msk [vmem:[%s153 + $0x3108] sm:$0xff] %vm4393, %v3450
        %5964 = vst.msk [vmem:[%s153 + $0x3110] sm:$0xff] %vm4393, %v3451
        %5965 = vst.msk [vmem:[%s153 + $0x3118] sm:$0xff] %vm4393, %v3452
        %5966 = vst.msk [vmem:[%s153 + $0x3120] sm:$0xff] %vm4393, %v3453
        %5967 = vst.msk [vmem:[%s153 + $0x3128] sm:$0xff] %vm4393, %v3454
        %5968 = vst.msk [vmem:[%s153 + $0x3130] sm:$0xff] %vm4393, %v3455
        %5969 = vst.msk [vmem:[%s153 + $0x3138] sm:$0xff] %vm4393, %v3456
        %5970 = vst.msk [vmem:[%s153 + $0x3140] sm:$0xff] %vm4393, %v3457
        %5971 = vst.msk [vmem:[%s153 + $0x3148] sm:$0xff] %vm4393, %v3458
        %5972 = vst.msk [vmem:[%s153 + $0x3150] sm:$0xff] %vm4393, %v3459
        %5973 = vst.msk [vmem:[%s153 + $0x3158] sm:$0xff] %vm4393, %v3460
        %5974 = vst.msk [vmem:[%s153 + $0x3160] sm:$0xff] %vm4393, %v3461
        %5975 = vst.msk [vmem:[%s153 + $0x3168] sm:$0xff] %vm4393, %v3462
        %5976 = vst.msk [vmem:[%s153 + $0x3170] sm:$0xff] %vm4393, %v3463
        %5977 = vst.msk [vmem:[%s153 + $0x3178] sm:$0xff] %vm4393, %v3464
        %5978 = vst.msk [vmem:[%s153 + $0x3180] sm:$0xff] %vm4393, %v3481
        %5979 = vst.msk [vmem:[%s153 + $0x3188] sm:$0xff] %vm4393, %v3482
        %5980 = vst.msk [vmem:[%s153 + $0x3190] sm:$0xff] %vm4393, %v3483
        %5981 = vst.msk [vmem:[%s153 + $0x3198] sm:$0xff] %vm4393, %v3484
        %5982 = vst.msk [vmem:[%s153 + $0x31a0] sm:$0xff] %vm4393, %v3485
        %5983 = vst.msk [vmem:[%s153 + $0x31a8] sm:$0xff] %vm4393, %v3486
        %5984 = vst.msk [vmem:[%s153 + $0x31b0] sm:$0xff] %vm4393, %v3487
        %5985 = vst.msk [vmem:[%s153 + $0x31b8] sm:$0xff] %vm4393, %v3488
        %5986 = vst.msk [vmem:[%s153 + $0x31c0] sm:$0xff] %vm4393, %v3489
        %5987 = vst.msk [vmem:[%s153 + $0x31c8] sm:$0xff] %vm4393, %v3490
        %5988 = vst.msk [vmem:[%s153 + $0x31d0] sm:$0xff] %vm4393, %v3491
        %5989 = vst.msk [vmem:[%s153 + $0x31d8] sm:$0xff] %vm4393, %v3492
        %5990 = vst.msk [vmem:[%s153 + $0x31e0] sm:$0xff] %vm4393, %v3493
        %5991 = vst.msk [vmem:[%s153 + $0x31e8] sm:$0xff] %vm4393, %v3494
        %5992 = vst.msk [vmem:[%s153 + $0x31f0] sm:$0xff] %vm4393, %v3495
        %5993 = vst.msk [vmem:[%s153 + $0x31f8] sm:$0xff] %vm4393, %v3496
        %5994 = vst.msk [vmem:[%s153 + $0x3200] sm:$0xff] %vm4393, %v3513
        %5995 = vst.msk [vmem:[%s153 + $0x3208] sm:$0xff] %vm4393, %v3514
        %5996 = vst.msk [vmem:[%s153 + $0x3210] sm:$0xff] %vm4393, %v3515
        %5997 = vst.msk [vmem:[%s153 + $0x3218] sm:$0xff] %vm4393, %v3516
        %5998 = vst.msk [vmem:[%s153 + $0x3220] sm:$0xff] %vm4393, %v3517
        %5999 = vst.msk [vmem:[%s153 + $0x3228] sm:$0xff] %vm4393, %v3518
        %6000 = vst.msk [vmem:[%s153 + $0x3230] sm:$0xff] %vm4393, %v3519
        %6001 = vst.msk [vmem:[%s153 + $0x3238] sm:$0xff] %vm4393, %v3520
        %6002 = vst.msk [vmem:[%s153 + $0x3240] sm:$0xff] %vm4393, %v3521
        %6003 = vst.msk [vmem:[%s153 + $0x3248] sm:$0xff] %vm4393, %v3522
        %6004 = vst.msk [vmem:[%s153 + $0x3250] sm:$0xff] %vm4393, %v3523
        %6005 = vst.msk [vmem:[%s153 + $0x3258] sm:$0xff] %vm4393, %v3524
        %6006 = vst.msk [vmem:[%s153 + $0x3260] sm:$0xff] %vm4393, %v3525
        %6007 = vst.msk [vmem:[%s153 + $0x3268] sm:$0xff] %vm4393, %v3526
        %6008 = vst.msk [vmem:[%s153 + $0x3270] sm:$0xff] %vm4393, %v3527
        %6009 = vst.msk [vmem:[%s153 + $0x3278] sm:$0xff] %vm4393, %v3528
        %6010 = vst.msk [vmem:[%s153 + $0x3280] sm:$0xff] %vm4393, %v3545
        %6011 = vst.msk [vmem:[%s153 + $0x3288] sm:$0xff] %vm4393, %v3546
        %6012 = vst.msk [vmem:[%s153 + $0x3290] sm:$0xff] %vm4393, %v3547
        %6013 = vst.msk [vmem:[%s153 + $0x3298] sm:$0xff] %vm4393, %v3548
        %6014 = vst.msk [vmem:[%s153 + $0x32a0] sm:$0xff] %vm4393, %v3549
        %6015 = vst.msk [vmem:[%s153 + $0x32a8] sm:$0xff] %vm4393, %v3550
        %6016 = vst.msk [vmem:[%s153 + $0x32b0] sm:$0xff] %vm4393, %v3551
        %6017 = vst.msk [vmem:[%s153 + $0x32b8] sm:$0xff] %vm4393, %v3552
        %6018 = vst.msk [vmem:[%s153 + $0x32c0] sm:$0xff] %vm4393, %v3553
        %6019 = vst.msk [vmem:[%s153 + $0x32c8] sm:$0xff] %vm4393, %v3554
        %6020 = vst.msk [vmem:[%s153 + $0x32d0] sm:$0xff] %vm4393, %v3555
        %6021 = vst.msk [vmem:[%s153 + $0x32d8] sm:$0xff] %vm4393, %v3556
        %6022 = vst.msk [vmem:[%s153 + $0x32e0] sm:$0xff] %vm4393, %v3557
        %6023 = vst.msk [vmem:[%s153 + $0x32e8] sm:$0xff] %vm4393, %v3558
        %6024 = vst.msk [vmem:[%s153 + $0x32f0] sm:$0xff] %vm4393, %v3559
        %6025 = vst.msk [vmem:[%s153 + $0x32f8] sm:$0xff] %vm4393, %v3560
        %6026 = vst.msk [vmem:[%s153 + $0x3300] sm:$0xff] %vm4393, %v3577
        %6027 = vst.msk [vmem:[%s153 + $0x3308] sm:$0xff] %vm4393, %v3578
        %6028 = vst.msk [vmem:[%s153 + $0x3310] sm:$0xff] %vm4393, %v3579
        %6029 = vst.msk [vmem:[%s153 + $0x3318] sm:$0xff] %vm4393, %v3580
        %6030 = vst.msk [vmem:[%s153 + $0x3320] sm:$0xff] %vm4393, %v3581
        %6031 = vst.msk [vmem:[%s153 + $0x3328] sm:$0xff] %vm4393, %v3582
        %6032 = vst.msk [vmem:[%s153 + $0x3330] sm:$0xff] %vm4393, %v3583
        %6033 = vst.msk [vmem:[%s153 + $0x3338] sm:$0xff] %vm4393, %v3584
        %6034 = vst.msk [vmem:[%s153 + $0x3340] sm:$0xff] %vm4393, %v3585
        %6035 = vst.msk [vmem:[%s153 + $0x3348] sm:$0xff] %vm4393, %v3586
        %6036 = vst.msk [vmem:[%s153 + $0x3350] sm:$0xff] %vm4393, %v3587
        %6037 = vst.msk [vmem:[%s153 + $0x3358] sm:$0xff] %vm4393, %v3588
        %6038 = vst.msk [vmem:[%s153 + $0x3360] sm:$0xff] %vm4393, %v3589
        %6039 = vst.msk [vmem:[%s153 + $0x3368] sm:$0xff] %vm4393, %v3590
        %6040 = vst.msk [vmem:[%s153 + $0x3370] sm:$0xff] %vm4393, %v3591
        %6041 = vst.msk [vmem:[%s153 + $0x3378] sm:$0xff] %vm4393, %v3592
        %6042 = vst.msk [vmem:[%s153 + $0x3380] sm:$0xff] %vm4393, %v3609
        %6043 = vst.msk [vmem:[%s153 + $0x3388] sm:$0xff] %vm4393, %v3610
        %6044 = vst.msk [vmem:[%s153 + $0x3390] sm:$0xff] %vm4393, %v3611
        %6045 = vst.msk [vmem:[%s153 + $0x3398] sm:$0xff] %vm4393, %v3612
        %6046 = vst.msk [vmem:[%s153 + $0x33a0] sm:$0xff] %vm4393, %v3613
        %6047 = vst.msk [vmem:[%s153 + $0x33a8] sm:$0xff] %vm4393, %v3614
        %6048 = vst.msk [vmem:[%s153 + $0x33b0] sm:$0xff] %vm4393, %v3615
        %6049 = vst.msk [vmem:[%s153 + $0x33b8] sm:$0xff] %vm4393, %v3616
        %6050 = vst.msk [vmem:[%s153 + $0x33c0] sm:$0xff] %vm4393, %v3617
        %6051 = vst.msk [vmem:[%s153 + $0x33c8] sm:$0xff] %vm4393, %v3618
        %6052 = vst.msk [vmem:[%s153 + $0x33d0] sm:$0xff] %vm4393, %v3619
        %6053 = vst.msk [vmem:[%s153 + $0x33d8] sm:$0xff] %vm4393, %v3620
        %6054 = vst.msk [vmem:[%s153 + $0x33e0] sm:$0xff] %vm4393, %v3621
        %6055 = vst.msk [vmem:[%s153 + $0x33e8] sm:$0xff] %vm4393, %v3622
        %6056 = vst.msk [vmem:[%s153 + $0x33f0] sm:$0xff] %vm4393, %v3623
        %6057 = vst.msk [vmem:[%s153 + $0x33f8] sm:$0xff] %vm4393, %v3624
        %6058 = vst.msk [vmem:[%s153 + $0x3400] sm:$0xff] %vm4393, %v3641
        %6059 = vst.msk [vmem:[%s153 + $0x3408] sm:$0xff] %vm4393, %v3642
        %6060 = vst.msk [vmem:[%s153 + $0x3410] sm:$0xff] %vm4393, %v3643
        %6061 = vst.msk [vmem:[%s153 + $0x3418] sm:$0xff] %vm4393, %v3644
        %6062 = vst.msk [vmem:[%s153 + $0x3420] sm:$0xff] %vm4393, %v3645
        %6063 = vst.msk [vmem:[%s153 + $0x3428] sm:$0xff] %vm4393, %v3646
        %6064 = vst.msk [vmem:[%s153 + $0x3430] sm:$0xff] %vm4393, %v3647
        %6065 = vst.msk [vmem:[%s153 + $0x3438] sm:$0xff] %vm4393, %v3648
        %6066 = vst.msk [vmem:[%s153 + $0x3440] sm:$0xff] %vm4393, %v3649
        %6067 = vst.msk [vmem:[%s153 + $0x3448] sm:$0xff] %vm4393, %v3650
        %6068 = vst.msk [vmem:[%s153 + $0x3450] sm:$0xff] %vm4393, %v3651
        %6069 = vst.msk [vmem:[%s153 + $0x3458] sm:$0xff] %vm4393, %v3652
        %6070 = vst.msk [vmem:[%s153 + $0x3460] sm:$0xff] %vm4393, %v3653
        %6071 = vst.msk [vmem:[%s153 + $0x3468] sm:$0xff] %vm4393, %v3654
        %6072 = vst.msk [vmem:[%s153 + $0x3470] sm:$0xff] %vm4393, %v3655
        %6073 = vst.msk [vmem:[%s153 + $0x3478] sm:$0xff] %vm4393, %v3656
        %6074 = vst.msk [vmem:[%s153 + $0x3480] sm:$0xff] %vm4393, %v3673
        %6075 = vst.msk [vmem:[%s153 + $0x3488] sm:$0xff] %vm4393, %v3674
        %6076 = vst.msk [vmem:[%s153 + $0x3490] sm:$0xff] %vm4393, %v3675
        %6077 = vst.msk [vmem:[%s153 + $0x3498] sm:$0xff] %vm4393, %v3676
        %6078 = vst.msk [vmem:[%s153 + $0x34a0] sm:$0xff] %vm4393, %v3677
        %6079 = vst.msk [vmem:[%s153 + $0x34a8] sm:$0xff] %vm4393, %v3678
        %6080 = vst.msk [vmem:[%s153 + $0x34b0] sm:$0xff] %vm4393, %v3679
        %6081 = vst.msk [vmem:[%s153 + $0x34b8] sm:$0xff] %vm4393, %v3680
        %6082 = vst.msk [vmem:[%s153 + $0x34c0] sm:$0xff] %vm4393, %v3681
        %6083 = vst.msk [vmem:[%s153 + $0x34c8] sm:$0xff] %vm4393, %v3682
        %6084 = vst.msk [vmem:[%s153 + $0x34d0] sm:$0xff] %vm4393, %v3683
        %6085 = vst.msk [vmem:[%s153 + $0x34d8] sm:$0xff] %vm4393, %v3684
        %6086 = vst.msk [vmem:[%s153 + $0x34e0] sm:$0xff] %vm4393, %v3685
        %6087 = vst.msk [vmem:[%s153 + $0x34e8] sm:$0xff] %vm4393, %v3686
        %6088 = vst.msk [vmem:[%s153 + $0x34f0] sm:$0xff] %vm4393, %v3687
        %6089 = vst.msk [vmem:[%s153 + $0x34f8] sm:$0xff] %vm4393, %v3688
        %6090 = vst.msk [vmem:[%s153 + $0x3500] sm:$0xff] %vm4393, %v3705
        %6091 = vst.msk [vmem:[%s153 + $0x3508] sm:$0xff] %vm4393, %v3706
        %6092 = vst.msk [vmem:[%s153 + $0x3510] sm:$0xff] %vm4393, %v3707
        %6093 = vst.msk [vmem:[%s153 + $0x3518] sm:$0xff] %vm4393, %v3708
        %6094 = vst.msk [vmem:[%s153 + $0x3520] sm:$0xff] %vm4393, %v3709
        %6095 = vst.msk [vmem:[%s153 + $0x3528] sm:$0xff] %vm4393, %v3710
        %6096 = vst.msk [vmem:[%s153 + $0x3530] sm:$0xff] %vm4393, %v3711
        %6097 = vst.msk [vmem:[%s153 + $0x3538] sm:$0xff] %vm4393, %v3712
        %6098 = vst.msk [vmem:[%s153 + $0x3540] sm:$0xff] %vm4393, %v3713
        %6099 = vst.msk [vmem:[%s153 + $0x3548] sm:$0xff] %vm4393, %v3714
        %6100 = vst.msk [vmem:[%s153 + $0x3550] sm:$0xff] %vm4393, %v3715
        %6101 = vst.msk [vmem:[%s153 + $0x3558] sm:$0xff] %vm4393, %v3716
        %6102 = vst.msk [vmem:[%s153 + $0x3560] sm:$0xff] %vm4393, %v3717
        %6103 = vst.msk [vmem:[%s153 + $0x3568] sm:$0xff] %vm4393, %v3718
        %6104 = vst.msk [vmem:[%s153 + $0x3570] sm:$0xff] %vm4393, %v3719
        %6105 = vst.msk [vmem:[%s153 + $0x3578] sm:$0xff] %vm4393, %v3720
        %6106 = vst.msk [vmem:[%s153 + $0x3580] sm:$0xff] %vm4393, %v3737
        %6107 = vst.msk [vmem:[%s153 + $0x3588] sm:$0xff] %vm4393, %v3738
        %6108 = vst.msk [vmem:[%s153 + $0x3590] sm:$0xff] %vm4393, %v3739
        %6109 = vst.msk [vmem:[%s153 + $0x3598] sm:$0xff] %vm4393, %v3740
        %6110 = vst.msk [vmem:[%s153 + $0x35a0] sm:$0xff] %vm4393, %v3741
        %6111 = vst.msk [vmem:[%s153 + $0x35a8] sm:$0xff] %vm4393, %v3742
        %6112 = vst.msk [vmem:[%s153 + $0x35b0] sm:$0xff] %vm4393, %v3743
        %6113 = vst.msk [vmem:[%s153 + $0x35b8] sm:$0xff] %vm4393, %v3744
        %6114 = vst.msk [vmem:[%s153 + $0x35c0] sm:$0xff] %vm4393, %v3745
        %6115 = vst.msk [vmem:[%s153 + $0x35c8] sm:$0xff] %vm4393, %v3746
        %6116 = vst.msk [vmem:[%s153 + $0x35d0] sm:$0xff] %vm4393, %v3747
        %6117 = vst.msk [vmem:[%s153 + $0x35d8] sm:$0xff] %vm4393, %v3748
        %6118 = vst.msk [vmem:[%s153 + $0x35e0] sm:$0xff] %vm4393, %v3749
        %6119 = vst.msk [vmem:[%s153 + $0x35e8] sm:$0xff] %vm4393, %v3750
        %6120 = vst.msk [vmem:[%s153 + $0x35f0] sm:$0xff] %vm4393, %v3751
        %6121 = vst.msk [vmem:[%s153 + $0x35f8] sm:$0xff] %vm4393, %v3752
        %6122 = vst.msk [vmem:[%s153 + $0x3600] sm:$0xff] %vm4393, %v3769
        %6123 = vst.msk [vmem:[%s153 + $0x3608] sm:$0xff] %vm4393, %v3770
        %6124 = vst.msk [vmem:[%s153 + $0x3610] sm:$0xff] %vm4393, %v3771
        %6125 = vst.msk [vmem:[%s153 + $0x3618] sm:$0xff] %vm4393, %v3772
        %6126 = vst.msk [vmem:[%s153 + $0x3620] sm:$0xff] %vm4393, %v3773
        %6127 = vst.msk [vmem:[%s153 + $0x3628] sm:$0xff] %vm4393, %v3774
        %6128 = vst.msk [vmem:[%s153 + $0x3630] sm:$0xff] %vm4393, %v3775
        %6129 = vst.msk [vmem:[%s153 + $0x3638] sm:$0xff] %vm4393, %v3776
        %6130 = vst.msk [vmem:[%s153 + $0x3640] sm:$0xff] %vm4393, %v3777
        %6131 = vst.msk [vmem:[%s153 + $0x3648] sm:$0xff] %vm4393, %v3778
        %6132 = vst.msk [vmem:[%s153 + $0x3650] sm:$0xff] %vm4393, %v3779
        %6133 = vst.msk [vmem:[%s153 + $0x3658] sm:$0xff] %vm4393, %v3780
        %6134 = vst.msk [vmem:[%s153 + $0x3660] sm:$0xff] %vm4393, %v3781
        %6135 = vst.msk [vmem:[%s153 + $0x3668] sm:$0xff] %vm4393, %v3782
        %6136 = vst.msk [vmem:[%s153 + $0x3670] sm:$0xff] %vm4393, %v3783
        %6137 = vst.msk [vmem:[%s153 + $0x3678] sm:$0xff] %vm4393, %v3784
        %6138 = vst.msk [vmem:[%s153 + $0x3680] sm:$0xff] %vm4393, %v3801
        %6139 = vst.msk [vmem:[%s153 + $0x3688] sm:$0xff] %vm4393, %v3802
        %6140 = vst.msk [vmem:[%s153 + $0x3690] sm:$0xff] %vm4393, %v3803
        %6141 = vst.msk [vmem:[%s153 + $0x3698] sm:$0xff] %vm4393, %v3804
        %6142 = vst.msk [vmem:[%s153 + $0x36a0] sm:$0xff] %vm4393, %v3805
        %6143 = vst.msk [vmem:[%s153 + $0x36a8] sm:$0xff] %vm4393, %v3806
        %6144 = vst.msk [vmem:[%s153 + $0x36b0] sm:$0xff] %vm4393, %v3807
        %6145 = vst.msk [vmem:[%s153 + $0x36b8] sm:$0xff] %vm4393, %v3808
        %6146 = vst.msk [vmem:[%s153 + $0x36c0] sm:$0xff] %vm4393, %v3809
        %6147 = vst.msk [vmem:[%s153 + $0x36c8] sm:$0xff] %vm4393, %v3810
        %6148 = vst.msk [vmem:[%s153 + $0x36d0] sm:$0xff] %vm4393, %v3811
        %6149 = vst.msk [vmem:[%s153 + $0x36d8] sm:$0xff] %vm4393, %v3812
        %6150 = vst.msk [vmem:[%s153 + $0x36e0] sm:$0xff] %vm4393, %v3813
        %6151 = vst.msk [vmem:[%s153 + $0x36e8] sm:$0xff] %vm4393, %v3814
        %6152 = vst.msk [vmem:[%s153 + $0x36f0] sm:$0xff] %vm4393, %v3815
        %6153 = vst.msk [vmem:[%s153 + $0x36f8] sm:$0xff] %vm4393, %v3816
        %6154 = vst.msk [vmem:[%s153 + $0x3700] sm:$0xff] %vm4393, %v3833
        %6155 = vst.msk [vmem:[%s153 + $0x3708] sm:$0xff] %vm4393, %v3834
        %6156 = vst.msk [vmem:[%s153 + $0x3710] sm:$0xff] %vm4393, %v3835
        %6157 = vst.msk [vmem:[%s153 + $0x3718] sm:$0xff] %vm4393, %v3836
        %6158 = vst.msk [vmem:[%s153 + $0x3720] sm:$0xff] %vm4393, %v3837
        %6159 = vst.msk [vmem:[%s153 + $0x3728] sm:$0xff] %vm4393, %v3838
        %6160 = vst.msk [vmem:[%s153 + $0x3730] sm:$0xff] %vm4393, %v3839
        %6161 = vst.msk [vmem:[%s153 + $0x3738] sm:$0xff] %vm4393, %v3840
        %6162 = vst.msk [vmem:[%s153 + $0x3740] sm:$0xff] %vm4393, %v3841
        %6163 = vst.msk [vmem:[%s153 + $0x3748] sm:$0xff] %vm4393, %v3842
        %6164 = vst.msk [vmem:[%s153 + $0x3750] sm:$0xff] %vm4393, %v3843
        %6165 = vst.msk [vmem:[%s153 + $0x3758] sm:$0xff] %vm4393, %v3844
        %6166 = vst.msk [vmem:[%s153 + $0x3760] sm:$0xff] %vm4393, %v3845
        %6167 = vst.msk [vmem:[%s153 + $0x3768] sm:$0xff] %vm4393, %v3846
        %6168 = vst.msk [vmem:[%s153 + $0x3770] sm:$0xff] %vm4393, %v3847
        %6169 = vst.msk [vmem:[%s153 + $0x3778] sm:$0xff] %vm4393, %v3848
        %6170 = vst.msk [vmem:[%s153 + $0x3780] sm:$0xff] %vm4393, %v3865
        %6171 = vst.msk [vmem:[%s153 + $0x3788] sm:$0xff] %vm4393, %v3866
        %6172 = vst.msk [vmem:[%s153 + $0x3790] sm:$0xff] %vm4393, %v3867
        %6173 = vst.msk [vmem:[%s153 + $0x3798] sm:$0xff] %vm4393, %v3868
        %6174 = vst.msk [vmem:[%s153 + $0x37a0] sm:$0xff] %vm4393, %v3869
        %6175 = vst.msk [vmem:[%s153 + $0x37a8] sm:$0xff] %vm4393, %v3870
        %6176 = vst.msk [vmem:[%s153 + $0x37b0] sm:$0xff] %vm4393, %v3871
        %6177 = vst.msk [vmem:[%s153 + $0x37b8] sm:$0xff] %vm4393, %v3872
        %6178 = vst.msk [vmem:[%s153 + $0x37c0] sm:$0xff] %vm4393, %v3873
        %6179 = vst.msk [vmem:[%s153 + $0x37c8] sm:$0xff] %vm4393, %v3874
        %6180 = vst.msk [vmem:[%s153 + $0x37d0] sm:$0xff] %vm4393, %v3875
        %6181 = vst.msk [vmem:[%s153 + $0x37d8] sm:$0xff] %vm4393, %v3876
        %6182 = vst.msk [vmem:[%s153 + $0x37e0] sm:$0xff] %vm4393, %v3877
        %6183 = vst.msk [vmem:[%s153 + $0x37e8] sm:$0xff] %vm4393, %v3878
        %6184 = vst.msk [vmem:[%s153 + $0x37f0] sm:$0xff] %vm4393, %v3879
        %6185 = vst.msk [vmem:[%s153 + $0x37f8] sm:$0xff] %vm4393, %v3880
        %6186 = vst.msk [vmem:[%s153 + $0x3800] sm:$0xff] %vm4393, %v3897
        %6187 = vst.msk [vmem:[%s153 + $0x3808] sm:$0xff] %vm4393, %v3898
        %6188 = vst.msk [vmem:[%s153 + $0x3810] sm:$0xff] %vm4393, %v3899
        %6189 = vst.msk [vmem:[%s153 + $0x3818] sm:$0xff] %vm4393, %v3900
        %6190 = vst.msk [vmem:[%s153 + $0x3820] sm:$0xff] %vm4393, %v3901
        %6191 = vst.msk [vmem:[%s153 + $0x3828] sm:$0xff] %vm4393, %v3902
        %6192 = vst.msk [vmem:[%s153 + $0x3830] sm:$0xff] %vm4393, %v3903
        %6193 = vst.msk [vmem:[%s153 + $0x3838] sm:$0xff] %vm4393, %v3904
        %6194 = vst.msk [vmem:[%s153 + $0x3840] sm:$0xff] %vm4393, %v3905
        %6195 = vst.msk [vmem:[%s153 + $0x3848] sm:$0xff] %vm4393, %v3906
        %6196 = vst.msk [vmem:[%s153 + $0x3850] sm:$0xff] %vm4393, %v3907
        %6197 = vst.msk [vmem:[%s153 + $0x3858] sm:$0xff] %vm4393, %v3908
        %6198 = vst.msk [vmem:[%s153 + $0x3860] sm:$0xff] %vm4393, %v3909
        %6199 = vst.msk [vmem:[%s153 + $0x3868] sm:$0xff] %vm4393, %v3910
        %6200 = vst.msk [vmem:[%s153 + $0x3870] sm:$0xff] %vm4393, %v3911
        %6201 = vst.msk [vmem:[%s153 + $0x3878] sm:$0xff] %vm4393, %v3912
        %6202 = vst.msk [vmem:[%s153 + $0x3880] sm:$0xff] %vm4393, %v3929
        %6203 = vst.msk [vmem:[%s153 + $0x3888] sm:$0xff] %vm4393, %v3930
        %6204 = vst.msk [vmem:[%s153 + $0x3890] sm:$0xff] %vm4393, %v3931
        %6205 = vst.msk [vmem:[%s153 + $0x3898] sm:$0xff] %vm4393, %v3932
        %6206 = vst.msk [vmem:[%s153 + $0x38a0] sm:$0xff] %vm4393, %v3933
        %6207 = vst.msk [vmem:[%s153 + $0x38a8] sm:$0xff] %vm4393, %v3934
        %6208 = vst.msk [vmem:[%s153 + $0x38b0] sm:$0xff] %vm4393, %v3935
        %6209 = vst.msk [vmem:[%s153 + $0x38b8] sm:$0xff] %vm4393, %v3936
        %6210 = vst.msk [vmem:[%s153 + $0x38c0] sm:$0xff] %vm4393, %v3937
        %6211 = vst.msk [vmem:[%s153 + $0x38c8] sm:$0xff] %vm4393, %v3938
        %6212 = vst.msk [vmem:[%s153 + $0x38d0] sm:$0xff] %vm4393, %v3939
        %6213 = vst.msk [vmem:[%s153 + $0x38d8] sm:$0xff] %vm4393, %v3940
        %6214 = vst.msk [vmem:[%s153 + $0x38e0] sm:$0xff] %vm4393, %v3941
        %6215 = vst.msk [vmem:[%s153 + $0x38e8] sm:$0xff] %vm4393, %v3942
        %6216 = vst.msk [vmem:[%s153 + $0x38f0] sm:$0xff] %vm4393, %v3943
        %6217 = vst.msk [vmem:[%s153 + $0x38f8] sm:$0xff] %vm4393, %v3944
        %6218 = vst.msk [vmem:[%s153 + $0x3900] sm:$0xff] %vm4393, %v3961
        %6219 = vst.msk [vmem:[%s153 + $0x3908] sm:$0xff] %vm4393, %v3962
        %6220 = vst.msk [vmem:[%s153 + $0x3910] sm:$0xff] %vm4393, %v3963
        %6221 = vst.msk [vmem:[%s153 + $0x3918] sm:$0xff] %vm4393, %v3964
        %6222 = vst.msk [vmem:[%s153 + $0x3920] sm:$0xff] %vm4393, %v3965
        %6223 = vst.msk [vmem:[%s153 + $0x3928] sm:$0xff] %vm4393, %v3966
        %6224 = vst.msk [vmem:[%s153 + $0x3930] sm:$0xff] %vm4393, %v3967
        %6225 = vst.msk [vmem:[%s153 + $0x3938] sm:$0xff] %vm4393, %v3968
        %6226 = vst.msk [vmem:[%s153 + $0x3940] sm:$0xff] %vm4393, %v3969
        %6227 = vst.msk [vmem:[%s153 + $0x3948] sm:$0xff] %vm4393, %v3970
        %6228 = vst.msk [vmem:[%s153 + $0x3950] sm:$0xff] %vm4393, %v3971
        %6229 = vst.msk [vmem:[%s153 + $0x3958] sm:$0xff] %vm4393, %v3972
        %6230 = vst.msk [vmem:[%s153 + $0x3960] sm:$0xff] %vm4393, %v3973
        %6231 = vst.msk [vmem:[%s153 + $0x3968] sm:$0xff] %vm4393, %v3974
        %6232 = vst.msk [vmem:[%s153 + $0x3970] sm:$0xff] %vm4393, %v3975
        %6233 = vst.msk [vmem:[%s153 + $0x3978] sm:$0xff] %vm4393, %v3976
        %6234 = vst.msk [vmem:[%s153 + $0x3980] sm:$0xff] %vm4393, %v3993
        %6235 = vst.msk [vmem:[%s153 + $0x3988] sm:$0xff] %vm4393, %v3994
        %6236 = vst.msk [vmem:[%s153 + $0x3990] sm:$0xff] %vm4393, %v3995
        %6237 = vst.msk [vmem:[%s153 + $0x3998] sm:$0xff] %vm4393, %v3996
        %6238 = vst.msk [vmem:[%s153 + $0x39a0] sm:$0xff] %vm4393, %v3997
        %6239 = vst.msk [vmem:[%s153 + $0x39a8] sm:$0xff] %vm4393, %v3998
        %6240 = vst.msk [vmem:[%s153 + $0x39b0] sm:$0xff] %vm4393, %v3999
        %6241 = vst.msk [vmem:[%s153 + $0x39b8] sm:$0xff] %vm4393, %v4000
        %6242 = vst.msk [vmem:[%s153 + $0x39c0] sm:$0xff] %vm4393, %v4001
        %6243 = vst.msk [vmem:[%s153 + $0x39c8] sm:$0xff] %vm4393, %v4002
        %6244 = vst.msk [vmem:[%s153 + $0x39d0] sm:$0xff] %vm4393, %v4003
        %6245 = vst.msk [vmem:[%s153 + $0x39d8] sm:$0xff] %vm4393, %v4004
        %6246 = vst.msk [vmem:[%s153 + $0x39e0] sm:$0xff] %vm4393, %v4005
        %6247 = vst.msk [vmem:[%s153 + $0x39e8] sm:$0xff] %vm4393, %v4006
        %6248 = vst.msk [vmem:[%s153 + $0x39f0] sm:$0xff] %vm4393, %v4007
        %6249 = vst.msk [vmem:[%s153 + $0x39f8] sm:$0xff] %vm4393, %v4008
        %6250 = vst.msk [vmem:[%s153 + $0x3a00] sm:$0xff] %vm4393, %v4025
        %6251 = vst.msk [vmem:[%s153 + $0x3a08] sm:$0xff] %vm4393, %v4026
        %6252 = vst.msk [vmem:[%s153 + $0x3a10] sm:$0xff] %vm4393, %v4027
        %6253 = vst.msk [vmem:[%s153 + $0x3a18] sm:$0xff] %vm4393, %v4028
        %6254 = vst.msk [vmem:[%s153 + $0x3a20] sm:$0xff] %vm4393, %v4029
        %6255 = vst.msk [vmem:[%s153 + $0x3a28] sm:$0xff] %vm4393, %v4030
        %6256 = vst.msk [vmem:[%s153 + $0x3a30] sm:$0xff] %vm4393, %v4031
        %6257 = vst.msk [vmem:[%s153 + $0x3a38] sm:$0xff] %vm4393, %v4032
        %6258 = vst.msk [vmem:[%s153 + $0x3a40] sm:$0xff] %vm4393, %v4033
        %6259 = vst.msk [vmem:[%s153 + $0x3a48] sm:$0xff] %vm4393, %v4034
        %6260 = vst.msk [vmem:[%s153 + $0x3a50] sm:$0xff] %vm4393, %v4035
        %6261 = vst.msk [vmem:[%s153 + $0x3a58] sm:$0xff] %vm4393, %v4036
        %6262 = vst.msk [vmem:[%s153 + $0x3a60] sm:$0xff] %vm4393, %v4037
        %6263 = vst.msk [vmem:[%s153 + $0x3a68] sm:$0xff] %vm4393, %v4038
        %6264 = vst.msk [vmem:[%s153 + $0x3a70] sm:$0xff] %vm4393, %v4039
        %6265 = vst.msk [vmem:[%s153 + $0x3a78] sm:$0xff] %vm4393, %v4040
        %6266 = vst.msk [vmem:[%s153 + $0x3a80] sm:$0xff] %vm4393, %v4057
        %6267 = vst.msk [vmem:[%s153 + $0x3a88] sm:$0xff] %vm4393, %v4058
        %6268 = vst.msk [vmem:[%s153 + $0x3a90] sm:$0xff] %vm4393, %v4059
        %6269 = vst.msk [vmem:[%s153 + $0x3a98] sm:$0xff] %vm4393, %v4060
        %6270 = vst.msk [vmem:[%s153 + $0x3aa0] sm:$0xff] %vm4393, %v4061
        %6271 = vst.msk [vmem:[%s153 + $0x3aa8] sm:$0xff] %vm4393, %v4062
        %6272 = vst.msk [vmem:[%s153 + $0x3ab0] sm:$0xff] %vm4393, %v4063
        %6273 = vst.msk [vmem:[%s153 + $0x3ab8] sm:$0xff] %vm4393, %v4064
        %6274 = vst.msk [vmem:[%s153 + $0x3ac0] sm:$0xff] %vm4393, %v4065
        %6275 = vst.msk [vmem:[%s153 + $0x3ac8] sm:$0xff] %vm4393, %v4066
        %6276 = vst.msk [vmem:[%s153 + $0x3ad0] sm:$0xff] %vm4393, %v4067
        %6277 = vst.msk [vmem:[%s153 + $0x3ad8] sm:$0xff] %vm4393, %v4068
        %6278 = vst.msk [vmem:[%s153 + $0x3ae0] sm:$0xff] %vm4393, %v4069
        %6279 = vst.msk [vmem:[%s153 + $0x3ae8] sm:$0xff] %vm4393, %v4070
        %6280 = vst.msk [vmem:[%s153 + $0x3af0] sm:$0xff] %vm4393, %v4071
        %6281 = vst.msk [vmem:[%s153 + $0x3af8] sm:$0xff] %vm4393, %v4072
        %6282 = vst.msk [vmem:[%s153 + $0x3b00] sm:$0xff] %vm4393, %v4089
        %6283 = vst.msk [vmem:[%s153 + $0x3b08] sm:$0xff] %vm4393, %v4090
        %6284 = vst.msk [vmem:[%s153 + $0x3b10] sm:$0xff] %vm4393, %v4091
        %6285 = vst.msk [vmem:[%s153 + $0x3b18] sm:$0xff] %vm4393, %v4092
        %6286 = vst.msk [vmem:[%s153 + $0x3b20] sm:$0xff] %vm4393, %v4093
        %6287 = vst.msk [vmem:[%s153 + $0x3b28] sm:$0xff] %vm4393, %v4094
        %6288 = vst.msk [vmem:[%s153 + $0x3b30] sm:$0xff] %vm4393, %v4095
        %6289 = vst.msk [vmem:[%s153 + $0x3b38] sm:$0xff] %vm4393, %v4096
        %6290 = vst.msk [vmem:[%s153 + $0x3b40] sm:$0xff] %vm4393, %v4097
        %6291 = vst.msk [vmem:[%s153 + $0x3b48] sm:$0xff] %vm4393, %v4098
        %6292 = vst.msk [vmem:[%s153 + $0x3b50] sm:$0xff] %vm4393, %v4099
        %6293 = vst.msk [vmem:[%s153 + $0x3b58] sm:$0xff] %vm4393, %v4100
        %6294 = vst.msk [vmem:[%s153 + $0x3b60] sm:$0xff] %vm4393, %v4101
        %6295 = vst.msk [vmem:[%s153 + $0x3b68] sm:$0xff] %vm4393, %v4102
        %6296 = vst.msk [vmem:[%s153 + $0x3b70] sm:$0xff] %vm4393, %v4103
        %6297 = vst.msk [vmem:[%s153 + $0x3b78] sm:$0xff] %vm4393, %v4104
        %6298 = vst.msk [vmem:[%s153 + $0x3b80] sm:$0xff] %vm4393, %v4121
        %6299 = vst.msk [vmem:[%s153 + $0x3b88] sm:$0xff] %vm4393, %v4122
        %6300 = vst.msk [vmem:[%s153 + $0x3b90] sm:$0xff] %vm4393, %v4123
        %6301 = vst.msk [vmem:[%s153 + $0x3b98] sm:$0xff] %vm4393, %v4124
        %6302 = vst.msk [vmem:[%s153 + $0x3ba0] sm:$0xff] %vm4393, %v4125
        %6303 = vst.msk [vmem:[%s153 + $0x3ba8] sm:$0xff] %vm4393, %v4126
        %6304 = vst.msk [vmem:[%s153 + $0x3bb0] sm:$0xff] %vm4393, %v4127
        %6305 = vst.msk [vmem:[%s153 + $0x3bb8] sm:$0xff] %vm4393, %v4128
        %6306 = vst.msk [vmem:[%s153 + $0x3bc0] sm:$0xff] %vm4393, %v4129
        %6307 = vst.msk [vmem:[%s153 + $0x3bc8] sm:$0xff] %vm4393, %v4130
        %6308 = vst.msk [vmem:[%s153 + $0x3bd0] sm:$0xff] %vm4393, %v4131
        %6309 = vst.msk [vmem:[%s153 + $0x3bd8] sm:$0xff] %vm4393, %v4132
        %6310 = vst.msk [vmem:[%s153 + $0x3be0] sm:$0xff] %vm4393, %v4133
        %6311 = vst.msk [vmem:[%s153 + $0x3be8] sm:$0xff] %vm4393, %v4134
        %6312 = vst.msk [vmem:[%s153 + $0x3bf0] sm:$0xff] %vm4393, %v4135
        %6313 = vst.msk [vmem:[%s153 + $0x3bf8] sm:$0xff] %vm4393, %v4136
        %6314 = vst.msk [vmem:[%s153 + $0x3c00] sm:$0xff] %vm4393, %v4153
        %6315 = vst.msk [vmem:[%s153 + $0x3c08] sm:$0xff] %vm4393, %v4154
        %6316 = vst.msk [vmem:[%s153 + $0x3c10] sm:$0xff] %vm4393, %v4155
        %6317 = vst.msk [vmem:[%s153 + $0x3c18] sm:$0xff] %vm4393, %v4156
        %6318 = vst.msk [vmem:[%s153 + $0x3c20] sm:$0xff] %vm4393, %v4157
        %6319 = vst.msk [vmem:[%s153 + $0x3c28] sm:$0xff] %vm4393, %v4158
        %6320 = vst.msk [vmem:[%s153 + $0x3c30] sm:$0xff] %vm4393, %v4159
        %6321 = vst.msk [vmem:[%s153 + $0x3c38] sm:$0xff] %vm4393, %v4160
        %6322 = vst.msk [vmem:[%s153 + $0x3c40] sm:$0xff] %vm4393, %v4161
        %6323 = vst.msk [vmem:[%s153 + $0x3c48] sm:$0xff] %vm4393, %v4162
        %6324 = vst.msk [vmem:[%s153 + $0x3c50] sm:$0xff] %vm4393, %v4163
        %6325 = vst.msk [vmem:[%s153 + $0x3c58] sm:$0xff] %vm4393, %v4164
        %6326 = vst.msk [vmem:[%s153 + $0x3c60] sm:$0xff] %vm4393, %v4165
        %6327 = vst.msk [vmem:[%s153 + $0x3c68] sm:$0xff] %vm4393, %v4166
        %6328 = vst.msk [vmem:[%s153 + $0x3c70] sm:$0xff] %vm4393, %v4167
        %6329 = vst.msk [vmem:[%s153 + $0x3c78] sm:$0xff] %vm4393, %v4168
        %6330 = vst.msk [vmem:[%s153 + $0x3c80] sm:$0xff] %vm4393, %v4185
        %6331 = vst.msk [vmem:[%s153 + $0x3c88] sm:$0xff] %vm4393, %v4186
        %6332 = vst.msk [vmem:[%s153 + $0x3c90] sm:$0xff] %vm4393, %v4187
        %6333 = vst.msk [vmem:[%s153 + $0x3c98] sm:$0xff] %vm4393, %v4188
        %6334 = vst.msk [vmem:[%s153 + $0x3ca0] sm:$0xff] %vm4393, %v4189
        %6335 = vst.msk [vmem:[%s153 + $0x3ca8] sm:$0xff] %vm4393, %v4190
        %6336 = vst.msk [vmem:[%s153 + $0x3cb0] sm:$0xff] %vm4393, %v4191
        %6337 = vst.msk [vmem:[%s153 + $0x3cb8] sm:$0xff] %vm4393, %v4192
        %6338 = vst.msk [vmem:[%s153 + $0x3cc0] sm:$0xff] %vm4393, %v4193
        %6339 = vst.msk [vmem:[%s153 + $0x3cc8] sm:$0xff] %vm4393, %v4194
        %6340 = vst.msk [vmem:[%s153 + $0x3cd0] sm:$0xff] %vm4393, %v4195
        %6341 = vst.msk [vmem:[%s153 + $0x3cd8] sm:$0xff] %vm4393, %v4196
        %6342 = vst.msk [vmem:[%s153 + $0x3ce0] sm:$0xff] %vm4393, %v4197
        %6343 = vst.msk [vmem:[%s153 + $0x3ce8] sm:$0xff] %vm4393, %v4198
        %6344 = vst.msk [vmem:[%s153 + $0x3cf0] sm:$0xff] %vm4393, %v4199
        %6345 = vst.msk [vmem:[%s153 + $0x3cf8] sm:$0xff] %vm4393, %v4200
        %6346 = vst.msk [vmem:[%s153 + $0x3d00] sm:$0xff] %vm4393, %v4217
        %6347 = vst.msk [vmem:[%s153 + $0x3d08] sm:$0xff] %vm4393, %v4218
        %6348 = vst.msk [vmem:[%s153 + $0x3d10] sm:$0xff] %vm4393, %v4219
        %6349 = vst.msk [vmem:[%s153 + $0x3d18] sm:$0xff] %vm4393, %v4220
        %6350 = vst.msk [vmem:[%s153 + $0x3d20] sm:$0xff] %vm4393, %v4221
        %6351 = vst.msk [vmem:[%s153 + $0x3d28] sm:$0xff] %vm4393, %v4222
        %6352 = vst.msk [vmem:[%s153 + $0x3d30] sm:$0xff] %vm4393, %v4223
        %6353 = vst.msk [vmem:[%s153 + $0x3d38] sm:$0xff] %vm4393, %v4224
        %6354 = vst.msk [vmem:[%s153 + $0x3d40] sm:$0xff] %vm4393, %v4225
        %6355 = vst.msk [vmem:[%s153 + $0x3d48] sm:$0xff] %vm4393, %v4226
        %6356 = vst.msk [vmem:[%s153 + $0x3d50] sm:$0xff] %vm4393, %v4227
        %6357 = vst.msk [vmem:[%s153 + $0x3d58] sm:$0xff] %vm4393, %v4228
        %6358 = vst.msk [vmem:[%s153 + $0x3d60] sm:$0xff] %vm4393, %v4229
        %6359 = vst.msk [vmem:[%s153 + $0x3d68] sm:$0xff] %vm4393, %v4230
        %6360 = vst.msk [vmem:[%s153 + $0x3d70] sm:$0xff] %vm4393, %v4231
        %6361 = vst.msk [vmem:[%s153 + $0x3d78] sm:$0xff] %vm4393, %v4232
        %6362 = vst.msk [vmem:[%s153 + $0x3d80] sm:$0xff] %vm4393, %v4249
        %6363 = vst.msk [vmem:[%s153 + $0x3d88] sm:$0xff] %vm4393, %v4250
        %6364 = vst.msk [vmem:[%s153 + $0x3d90] sm:$0xff] %vm4393, %v4251
        %6365 = vst.msk [vmem:[%s153 + $0x3d98] sm:$0xff] %vm4393, %v4252
        %6366 = vst.msk [vmem:[%s153 + $0x3da0] sm:$0xff] %vm4393, %v4253
        %6367 = vst.msk [vmem:[%s153 + $0x3da8] sm:$0xff] %vm4393, %v4254
        %6368 = vst.msk [vmem:[%s153 + $0x3db0] sm:$0xff] %vm4393, %v4255
        %6369 = vst.msk [vmem:[%s153 + $0x3db8] sm:$0xff] %vm4393, %v4256
        %6370 = vst.msk [vmem:[%s153 + $0x3dc0] sm:$0xff] %vm4393, %v4257
        %6371 = vst.msk [vmem:[%s153 + $0x3dc8] sm:$0xff] %vm4393, %v4258
        %6372 = vst.msk [vmem:[%s153 + $0x3dd0] sm:$0xff] %vm4393, %v4259
        %6373 = vst.msk [vmem:[%s153 + $0x3dd8] sm:$0xff] %vm4393, %v4260
        %6374 = vst.msk [vmem:[%s153 + $0x3de0] sm:$0xff] %vm4393, %v4261
        %6375 = vst.msk [vmem:[%s153 + $0x3de8] sm:$0xff] %vm4393, %v4262
        %6376 = vst.msk [vmem:[%s153 + $0x3df0] sm:$0xff] %vm4393, %v4263
        %6377 = vst.msk [vmem:[%s153 + $0x3df8] sm:$0xff] %vm4393, %v4264
        %6378 = vst.msk [vmem:[%s153 + $0x3e00] sm:$0xff] %vm4393, %v4281
        %6379 = vst.msk [vmem:[%s153 + $0x3e08] sm:$0xff] %vm4393, %v4282
        %6380 = vst.msk [vmem:[%s153 + $0x3e10] sm:$0xff] %vm4393, %v4283
        %6381 = vst.msk [vmem:[%s153 + $0x3e18] sm:$0xff] %vm4393, %v4284
        %6382 = vst.msk [vmem:[%s153 + $0x3e20] sm:$0xff] %vm4393, %v4285
        %6383 = vst.msk [vmem:[%s153 + $0x3e28] sm:$0xff] %vm4393, %v4286
        %6384 = vst.msk [vmem:[%s153 + $0x3e30] sm:$0xff] %vm4393, %v4287
        %6385 = vst.msk [vmem:[%s153 + $0x3e38] sm:$0xff] %vm4393, %v4288
        %6386 = vst.msk [vmem:[%s153 + $0x3e40] sm:$0xff] %vm4393, %v4289
        %6387 = vst.msk [vmem:[%s153 + $0x3e48] sm:$0xff] %vm4393, %v4290
        %6388 = vst.msk [vmem:[%s153 + $0x3e50] sm:$0xff] %vm4393, %v4291
        %6389 = vst.msk [vmem:[%s153 + $0x3e58] sm:$0xff] %vm4393, %v4292
        %6390 = vst.msk [vmem:[%s153 + $0x3e60] sm:$0xff] %vm4393, %v4293
        %6391 = vst.msk [vmem:[%s153 + $0x3e68] sm:$0xff] %vm4393, %v4294
        %6392 = vst.msk [vmem:[%s153 + $0x3e70] sm:$0xff] %vm4393, %v4295
        %6393 = vst.msk [vmem:[%s153 + $0x3e78] sm:$0xff] %vm4393, %v4296
        %6394 = vst.msk [vmem:[%s153 + $0x3e80] sm:$0xff] %vm4393, %v4313
        %6395 = vst.msk [vmem:[%s153 + $0x3e88] sm:$0xff] %vm4393, %v4314
        %6396 = vst.msk [vmem:[%s153 + $0x3e90] sm:$0xff] %vm4393, %v4315
        %6397 = vst.msk [vmem:[%s153 + $0x3e98] sm:$0xff] %vm4393, %v4316
        %6398 = vst.msk [vmem:[%s153 + $0x3ea0] sm:$0xff] %vm4393, %v4317
        %6399 = vst.msk [vmem:[%s153 + $0x3ea8] sm:$0xff] %vm4393, %v4318
        %6400 = vst.msk [vmem:[%s153 + $0x3eb0] sm:$0xff] %vm4393, %v4319
        %6401 = vst.msk [vmem:[%s153 + $0x3eb8] sm:$0xff] %vm4393, %v4320
        %6402 = vst.msk [vmem:[%s153 + $0x3ec0] sm:$0xff] %vm4393, %v4321
        %6403 = vst.msk [vmem:[%s153 + $0x3ec8] sm:$0xff] %vm4393, %v4322
        %6404 = vst.msk [vmem:[%s153 + $0x3ed0] sm:$0xff] %vm4393, %v4323
        %6405 = vst.msk [vmem:[%s153 + $0x3ed8] sm:$0xff] %vm4393, %v4324
        %6406 = vst.msk [vmem:[%s153 + $0x3ee0] sm:$0xff] %vm4393, %v4325
        %6407 = vst.msk [vmem:[%s153 + $0x3ee8] sm:$0xff] %vm4393, %v4326
        %6408 = vst.msk [vmem:[%s153 + $0x3ef0] sm:$0xff] %vm4393, %v4327
        %6409 = vst.msk [vmem:[%s153 + $0x3ef8] sm:$0xff] %vm4393, %v4328
        %6410 = vst.msk [vmem:[%s153 + $0x3f00] sm:$0xff] %vm4393, %v4345
        %6411 = vst.msk [vmem:[%s153 + $0x3f08] sm:$0xff] %vm4393, %v4346
        %6412 = vst.msk [vmem:[%s153 + $0x3f10] sm:$0xff] %vm4393, %v4347
        %6413 = vst.msk [vmem:[%s153 + $0x3f18] sm:$0xff] %vm4393, %v4348
        %6414 = vst.msk [vmem:[%s153 + $0x3f20] sm:$0xff] %vm4393, %v4349
        %6415 = vst.msk [vmem:[%s153 + $0x3f28] sm:$0xff] %vm4393, %v4350
        %6416 = vst.msk [vmem:[%s153 + $0x3f30] sm:$0xff] %vm4393, %v4351
        %6417 = vst.msk [vmem:[%s153 + $0x3f38] sm:$0xff] %vm4393, %v4352
        %6418 = vst.msk [vmem:[%s153 + $0x3f40] sm:$0xff] %vm4393, %v4353
        %6419 = vst.msk [vmem:[%s153 + $0x3f48] sm:$0xff] %vm4393, %v4354
        %6420 = vst.msk [vmem:[%s153 + $0x3f50] sm:$0xff] %vm4393, %v4355
        %6421 = vst.msk [vmem:[%s153 + $0x3f58] sm:$0xff] %vm4393, %v4356
        %6422 = vst.msk [vmem:[%s153 + $0x3f60] sm:$0xff] %vm4393, %v4357
        %6423 = vst.msk [vmem:[%s153 + $0x3f68] sm:$0xff] %vm4393, %v4358
        %6424 = vst.msk [vmem:[%s153 + $0x3f70] sm:$0xff] %vm4393, %v4359
        %6425 = vst.msk [vmem:[%s153 + $0x3f78] sm:$0xff] %vm4393, %v4360
        %6426 = vst.msk [vmem:[%s153 + $0x3f80] sm:$0xff] %vm4393, %v4377
        %6427 = vst.msk [vmem:[%s153 + $0x3f88] sm:$0xff] %vm4393, %v4378
        %6428 = vst.msk [vmem:[%s153 + $0x3f90] sm:$0xff] %vm4393, %v4379
        %6429 = vst.msk [vmem:[%s153 + $0x3f98] sm:$0xff] %vm4393, %v4380
        %6430 = vst.msk [vmem:[%s153 + $0x3fa0] sm:$0xff] %vm4393, %v4381
        %6431 = vst.msk [vmem:[%s153 + $0x3fa8] sm:$0xff] %vm4393, %v4382
        %6432 = vst.msk [vmem:[%s153 + $0x3fb0] sm:$0xff] %vm4393, %v4383
        %6433 = vst.msk [vmem:[%s153 + $0x3fb8] sm:$0xff] %vm4393, %v4384
        %6434 = vst.msk [vmem:[%s153 + $0x3fc0] sm:$0xff] %vm4393, %v4385
        %6435 = vst.msk [vmem:[%s153 + $0x3fc8] sm:$0xff] %vm4393, %v4386
        %6436 = vst.msk [vmem:[%s153 + $0x3fd0] sm:$0xff] %vm4393, %v4387
        %6437 = vst.msk [vmem:[%s153 + $0x3fd8] sm:$0xff] %vm4393, %v4388
        %6438 = vst.msk [vmem:[%s153 + $0x3fe0] sm:$0xff] %vm4393, %v4389
        %6439 = vst.msk [vmem:[%s153 + $0x3fe8] sm:$0xff] %vm4393, %v4390
        %6440 = vst.msk [vmem:[%s153 + $0x3ff0] sm:$0xff] %vm4393, %v4391
        %6441 = vst.msk [vmem:[%s153 + $0x3ff8] sm:$0xff] %vm4393, %v4392
        %s6442 = sand.u32 %s76, 1
        %s6443 = scalar_lea.sflag [#allocation3], %s6442
        %s6444 = sand.u32 %s76, 1
        %s6445 = smul.addr %s6444, 16384
        %s6446 = scalar_lea.vmem [#allocation2], %s6445
        // Predicated region
        $region25: #{_permute_call.1} parent=23 // pred_check
          %p6447 = pneg %p86
        $region26: #{_permute_call.1} parent=23 // pred_check_branch
          %6449 = sbr.rel (%p6447) target = $region28
        $region27: #{_permute_call.1} parent=23 // pred_region
          %s6450 = smul.u32 2048, %s21
          %s6452 = ssub.s32 262144, 262144
          %6453 = vsyncadd %s6443, %s6452
          %s6454 = sadd.s32 %s22, %s6450
          %s6455 = smul.addr %s20, 4096
          %s6456 = sadd.s32 %s6454, %s6455
          %s6457 = smul.addr %s6456, 128
          %s6458 = scalar_lea.hbm %s1, %s6457
          %s6459 = sshll.u32 %s6446, 4
          %s6460 = int_to_ptr.vmem [resolvable:$true] %s6459
          %6465 = dma.vmem_to_hbm [thread:$0]  %s6460, 262144, %s6458, %s6443, 128, 128, 8
        $region28: #{_permute_call.1} parent=23 // pred_fallthru
          _
      $region24: #{_permute_call.1} parent=5 // pred_fallthru
        _
      %p6466 = scmp.le.s32.totalorder 2, %s10
      // Predicated region
      $region29: #{_permute_call.1} parent=5 // pred_check
        %p6467 = pneg %p6466
      $region30: #{_permute_call.1} parent=5 // pred_check_branch
        %6469 = sbr.rel (%p6467) target = $region32
      $region31: #{_permute_call.1} parent=5 // pred_region
        %s6470 = ssub.s32 %s10, 2
        // Predicated region
        $region33: #{_permute_call.1} parent=31 // pred_check
          %p6471 = pneg %p92
        $region34: #{_permute_call.1} parent=31 // pred_check_branch
          %6473 = sbr.rel (%p6471) target = $region36
        $region35: #{_permute_call.1} parent=31 // pred_region
          %s6474 = sand.u32 %s77, 1
          %s6475 = scalar_lea.sflag [#allocation3], %s6474
          %s6476 = sand.u32 %s77, 1
          %s6477 = smul.addr %s6476, 16384
          %s6478 = scalar_lea.vmem [#allocation2], %s6477
          %6479 = dma.done %s6475, 262144
        $region36: #{_permute_call.1} parent=31 // pred_fallthru
          _
      $region32: #{_permute_call.1} parent=5 // pred_fallthru
        _
    $region6: #{_permute_call.1} parent=1 // loop_footer
      %s14 = sadd.s32 1, %s10
    $region7: #{_permute_call.1} parent=1 // loop_footer_branch
      %9 = sbr.rel target = $region3
    $region8: #{_permute_call.1} parent=1 // loop_exit
      _
    %6480 = vsyncpa [#allocation3], 1
    %s6481 = scalar_lea.sflag [#allocation3], 1
    %6482 = vsyncpa %s6481, 1

</llo_original>
